<compile_context>
chip_gen: v6e
topology: v6e:2x2x1
jax: 0.10.0
libtpu: 0.0.40
codegen_flags: <defaults>
</compile_context>

<pallas_src>
import functools

import numpy as np

import jax
import jax.numpy as jnp
from jax import lax
from jax.experimental import pallas as pl
from jax.experimental.pallas import tpu as pltpu

LEAKY_SLOPE = 0.01  # torch.nn.LeakyReLU() default negative_slope


# ---------------------------------------------------------------------------
# Fused kernel: conv1(3x3 on space-to-depth input) -> LeakyReLU
#               -> conv2(7x7) -> LeakyReLU -> conv3(5x5) -> Sigmoid
# One grid step = B_tile images; M = B_tile*oh rows per matmul.
# ---------------------------------------------------------------------------
def _fused_kernel(x_ref, bw1_ref, pb1_ref, bw2_ref, pb2_ref, bw3_ref, pb3_ref,
                  o_ref, a2_ref, a3_ref, *,
                  bt, oh, kh1, kh2, kh3, p2, p3, top2, top3):
    m = bt * oh

    def leaky(h):
        return jnp.where(h >= 0, h, jnp.float32(LEAKY_SLOPE) * h)

    def conv(taps, bw_ref, pb_ref):
        # Single long-K matmul per layer: concat taps along lanes (all tap widths
        # are multiples of 128), one MXU dot with f32 accumulation, add bias row.
        a = jnp.concatenate(taps, axis=-1) if len(taps) > 1 else taps[0]
        return jnp.dot(a, bw_ref[...], preferred_element_type=jnp.float32) + pb_ref[...]

    # ---- layer 1 (input is pre-padded, space-to-depth'd, bf16, 128-lane) ----
    x = x_ref[...]                                    # (bt, oh+2, K1P) bf16
    l1 = x.shape[-1]
    h1 = leaky(conv([x[:, ki:ki + oh, :].reshape(m, l1) for ki in range(kh1)],
                    bw1_ref, pb1_ref))

    # stage into layer-2's bf16 scratch: zero only the pad rows that get read,
    # single bf16 cast of the interior rows, store starting on a sublane multiple.
    n1 = a2_ref.shape[-1]
    zp2 = jnp.zeros((bt, p2, n1), a2_ref.dtype)
    a2_ref[:, top2 - p2:top2, :] = zp2
    a2_ref[:, top2 + oh:top2 + oh + p2, :] = zp2
    a2_ref[:, top2:top2 + oh, :] = h1.astype(a2_ref.dtype).reshape(bt, oh, n1)

    # ---- layer 2 ------------------------------------------------------------
    base2 = top2 - p2
    h2 = leaky(conv([a2_ref[:, base2 + ki:base2 + ki + oh, :].reshape(m, n1)
                     for ki in range(kh2)], bw2_ref, pb2_ref))

    n2 = a3_ref.shape[-1]
    zp3 = jnp.zeros((bt, p3, n2), a3_ref.dtype)
    a3_ref[:, top3 - p3:top3, :] = zp3
    a3_ref[:, top3 + oh:top3 + oh + p3, :] = zp3
    a3_ref[:, top3:top3 + oh, :] = h2.astype(a3_ref.dtype).reshape(bt, oh, n2)

    # ---- layer 3 + sigmoid (exact, so output stays in [0, 1]) ---------------
    base3 = top3 - p3
    h3 = conv([a3_ref[:, base3 + ki:base3 + ki + oh, :].reshape(m, n2)
               for ki in range(kh3)], bw3_ref, pb3_ref)
    h3 = 1.0 / (1.0 + jnp.exp(-h3))
    o_ref[...] = h3.reshape(bt, oh, h3.shape[-1]).astype(o_ref.dtype)


# ---------------------------------------------------------------------------
# One-time weight preprocessing (run once at parameter-load time, NOT per step)
# ---------------------------------------------------------------------------
def _space_to_depth_weight(w1, cin):
    """Rewrite the 4x4 / stride-2 / pad-1 conv weight as an equivalent
    3x3 / stride-1 / pad-1 conv weight on the 2x2 space-to-depth input."""
    co = w1.shape[0]
    w1z = jnp.zeros((co, 4 * cin, 3, 3), w1.dtype)
    for di in range(4):
        ki, p = (di + 1) // 2, (di + 1) % 2      # di = 2*ki + p - 1
        for dj in range(4):
            kj, q = (dj + 1) // 2, (dj + 1) % 2
            e0 = (p * 2 + q) * cin
            w1z = w1z.at[:, e0:e0 + cin, ki, kj].set(w1[:, :, di, dj])
    return w1z


def _pack_conv(w, b, ow, pad_next, k_pad, n_pad, dtype=jnp.bfloat16):
    """Bake width taps + the NEXT layer's width zero-padding into the weight and
    K-concatenate the kh row taps, producing
        bw_cat: (kh * k_pad, n_pad)  bf16   (zero rows/cols in the padding)
        pb    : (1, n_pad)           f32    (bias on real columns, 0 on pads)
    so one output row slab is:  out = concat_ki(A_pad[ki:ki+oh]) @ bw_cat + pb.
    """
    co, ci, kh, kw = w.shape
    win = ow + kw - 1                 # padded input width (kw = 2*pad + 1)
    wout = ow + 2 * pad_next          # padded output width
    k_real, n_real = win * ci, wout * co
    assert k_pad >= k_real and n_pad >= n_real
    # static selection tensor: s[kj, u, o] = 1 iff u = (o - pad_next) + kj
    s = np.zeros((kw, win, wout), np.float32)
    for kj in range(kw):
        for owi in range(ow):
            s[kj, owi + kj, owi + pad_next] = 1.0
    bw = jnp.einsum('juo,fcij->iucof', jnp.asarray(s), w)    # (kh,win,ci,wout,co)
    bw = bw.reshape(kh, k_real, n_real)
    bw_p = jnp.zeros((kh, k_pad, n_pad), jnp.float32).at[:, :k_real, :n_real].set(bw)
    bw_cat = bw_p.reshape(kh * k_pad, n_pad).astype(dtype)
    pb = jnp.zeros((wout, co), jnp.float32).at[pad_next:pad_next + ow, :].set(
        jnp.broadcast_to(b, (ow, co)))
    pb_p = jnp.zeros((1, n_pad), jnp.float32).at[0, :n_real].set(pb.reshape(-1))
    return bw_cat, pb_p


def _ceil_to(x, m):
    return ((x + m - 1) // m) * m


def pack_params(params, in_channels, height, width):
    """Pure parameter preprocessing — call once and reuse (hoisted out of jit)."""
    (w1, b1), (w2, b2), (w3, b3) = params
    assert height % 2 == 0 and width % 2 == 0
    ow = width // 2
    p2, p3 = w2.shape[-1] // 2, w3.shape[-1] // 2        # 3, 2
    w1z = _space_to_depth_weight(jnp.asarray(w1), in_channels)

    k1 = (ow + 2) * 4 * in_channels
    n1 = (ow + 2 * p2) * w1.shape[0]
    n2 = (ow + 2 * p3) * w2.shape[0]
    n3 = ow * w3.shape[0]
    k1p, n1p, n2p, n3p = (_ceil_to(v, 128) for v in (k1, n1, n2, n3))

    bw1, pb1 = _pack_conv(w1z, b1, ow, pad_next=p2, k_pad=k1p, n_pad=n1p)
    bw2, pb2 = _pack_conv(jnp.asarray(w2), b2, ow, pad_next=p3, k_pad=n1p, n_pad=n2p)
    bw3, pb3 = _pack_conv(jnp.asarray(w3), b3, ow, pad_next=0,  k_pad=n2p, n_pad=n3p)
    return (bw1, pb1, bw2, pb2, bw3, pb3)


# ---------------------------------------------------------------------------
# Public forward (NCHW in, NCHW out) and parameter init
# ---------------------------------------------------------------------------
def init_params(in_channels, key):
    """Same parameter shapes / init style as torch.nn.Conv2d defaults."""
    specs = [
        (32, in_channels, 4, 4),   # Conv2d(in, 32, k=4, s=2, p=1)
        (16, 32, 7, 7),            # Conv2d(32, 16, k=7, p=3)
        (8, 16, 5, 5),             # Conv2d(16, 8,  k=5, p=2)
    ]
    params = []
    for s in specs:
        key, kw_, kb_ = jax.random.split(key, 3)
        fan_in = s[1] * s[2] * s[3]
        bound = 1.0 / (fan_in ** 0.5)
        w = jax.random.uniform(kw_, s, jnp.float32, -bound, bound)
        b = jax.random.uniform(kb_, (s[0],), jnp.float32, -bound, bound)
        params.append((w, b))
    return params


def _choose_b_tile(n, oh, target_m=128):
    """Largest divisor of n with b_tile*oh <= target_m, preferring >=2 grid steps
    (keeps both TensorCores busy on v7x)."""
    divisors = [d for d in range(1, n + 1) if n % d == 0 and d * oh <= target_m]
    if not divisors:
        return 1
    multi = [d for d in divisors if n // d >= 2]
    return max(multi) if multi else max(divisors)


def patch_discriminator(x_nchw, packed, *, target_m=128):
    bw1, pb1, bw2, pb2, bw3, pb3 = packed
    n, cin, h, w = x_nchw.shape
    assert h % 2 == 0 and w % 2 == 0
    oh, ow = h // 2, w // 2
    c4 = 8                                   # final output channels
    kh1, kh2, kh3 = 3, 7, 5                  # row taps per layer (after s2d rewrite)
    p2, p3 = 3, 2                            # paddings of layer 2 / layer 3
    k1 = (ow + 2) * 4 * cin
    k1p = bw1.shape[0] // kh1
    n1p, n2p, n3p = bw1.shape[1], bw2.shape[1], bw3.shape[1]
    assert bw2.shape[0] == kh2 * n1p and bw3.shape[0] == kh3 * n2p

    bt = _choose_b_tile(n, oh, target_m)
    top2 = _ceil_to(p2, 8)                   # sublane-aligned staging store offsets
    top3 = _ceil_to(p3, 8)

    # Input glue (tiny): NCHW -> NHWC -> 2x2 space-to-depth -> pad 1 -> rows/lanes,
    # lane dim zero-padded to a multiple of 128, cast to bf16 once.
    x = jnp.transpose(x_nchw, (0, 2, 3, 1))
    z = x.reshape(n, oh, 2, ow, 2, cin).transpose(0, 1, 3, 2, 4, 5)
    z = z.reshape(n, oh, ow, 4 * cin)
    zp = jnp.pad(z, ((0, 0), (1, 1), (1, 1), (0, 0)))
    a1 = zp.reshape(n, oh + 2, k1)
    a1 = jnp.pad(a1, ((0, 0), (0, 0), (0, k1p - k1))).astype(jnp.bfloat16)

    kernel = functools.partial(_fused_kernel, bt=bt, oh=oh,
                               kh1=kh1, kh2=kh2, kh3=kh3,
                               p2=p2, p3=p3, top2=top2, top3=top3)

    out = pl.pallas_call(
        kernel,
        out_shape=jax.ShapeDtypeStruct((n, oh, n3p), jnp.float32),
        grid_spec=pltpu.PrefetchScalarGridSpec(
            num_scalar_prefetch=0,
            grid=(n // bt,),
            in_specs=[
                pl.BlockSpec((bt, oh + 2, k1p), lambda i: (i, 0, 0)),
                pl.BlockSpec(bw1.shape, lambda i: (0, 0)),   # weights VMEM-resident
                pl.BlockSpec(pb1.shape, lambda i: (0, 0)),
                pl.BlockSpec(bw2.shape, lambda i: (0, 0)),
                pl.BlockSpec(pb2.shape, lambda i: (0, 0)),
                pl.BlockSpec(bw3.shape, lambda i: (0, 0)),
                pl.BlockSpec(pb3.shape, lambda i: (0, 0)),
            ],
            out_specs=pl.BlockSpec((bt, oh, n3p), lambda i: (i, 0, 0)),
            scratch_shapes=[
                pltpu.VMEM((bt, top2 + oh + p2, n1p), jnp.bfloat16),
                pltpu.VMEM((bt, top3 + oh + p3, n2p), jnp.bfloat16),
            ],
        ),
        compiler_params=pltpu.CompilerParams(
            dimension_semantics=("parallel",)),
    )(a1, bw1, pb1, bw2, pb2, bw3, pb3)

    y = out[:, :, :ow * c4].reshape(n, oh, ow, c4)   # drop pad lanes -> NHWC
    return jnp.transpose(y, (0, 3, 1, 2))            # back to NCHW


# ---------------------------------------------------------------------------
# Pure-JAX reference (for numerical verification only)
# ---------------------------------------------------------------------------
def _reference(x_nchw, params):
    (w1, b1), (w2, b2), (w3, b3) = params

    def conv(x, w, b, stride, pad):
        y = lax.conv_general_dilated(
            x, w, window_strides=(stride, stride),
            padding=((pad, pad), (pad, pad)),
            dimension_numbers=('NCHW', 'OIHW', 'NCHW'),
            precision=lax.Precision.HIGHEST)
        return y + b.reshape(1, -1, 1, 1)

    y = conv(x_nchw, w1, b1, 2, 1)
    y = jnp.where(y >= 0, y, LEAKY_SLOPE * y)
    y = conv(y, w2, b2, 1, 3)
    y = jnp.where(y >= 0, y, LEAKY_SLOPE * y)
    y = conv(y, w3, b3, 1, 2)
    return jax.nn.sigmoid(y)


if __name__ == "__main__":
    key = jax.random.PRNGKey(0)
    k_in, k_par = jax.random.split(key)
    in_channels = 3
    batch, H, W = 16, 16, 16
    x = jax.random.normal(k_in, (batch, in_channels, H, W), jnp.float32)
    params = init_params(in_channels, k_par)

    packed = pack_params(params, in_channels, H, W)   # once, outside the forward
    fwd = jax.jit(patch_discriminator)
    y = fwd(x, packed)
    jax.block_until_ready(y)

    assert y.shape == (batch, 8, H // 2, W // 2), y.shape
    assert bool(jnp.all((y >= 0.0) & (y <= 1.0)))     # exact sigmoid -> true range

    y_ref = _reference(x, params)
    err = float(jnp.max(jnp.abs(y - y_ref)))
    assert err < 3e-2, f"max abs err vs reference: {err}"   # bf16 MXU inputs
    print("KERNEL_OK")
</pallas_src>

<mosaic_0001>
module attributes {stable_mosaic.version = 11 : i64} {
  func.func @_fused_kernel(%arg0: i32, %arg1: memref<8x10x128xbf16, #tpu.memory_space<vmem>>, %arg2: memref<384x512xbf16, #tpu.memory_space<vmem>>, %arg3: memref<1x512xf32, #tpu.memory_space<vmem>>, %arg4: memref<3584x256xbf16, #tpu.memory_space<vmem>>, %arg5: memref<1x256xf32, #tpu.memory_space<vmem>>, %arg6: memref<1280x128xbf16, #tpu.memory_space<vmem>>, %arg7: memref<1x128xf32, #tpu.memory_space<vmem>>, %arg8: memref<8x8x128xf32, #tpu.memory_space<vmem>>, %arg9: memref<8x19x512xbf16, #tpu.memory_space<vmem>>, %arg10: memref<8x18x256xbf16, #tpu.memory_space<vmem>>) attributes {dimension_semantics = [#tpu.dimension_semantics<parallel>], iteration_bounds = array<i64: 2>, scalar_prefetch = 0 : i64, scratch_operands = 2 : i64, tpu.core_type = #tpu.core_type<tc>, window_params = [{transform_indices = @transform_0, window_bounds = array<i64: 8, 10, 128>}, {pipeline_mode = #tpu.pipeline_mode<synchronous>, transform_indices = @transform_1, window_bounds = array<i64: 384, 512>}, {pipeline_mode = #tpu.pipeline_mode<synchronous>, transform_indices = @transform_2, window_bounds = array<i64: 1, 512>}, {pipeline_mode = #tpu.pipeline_mode<synchronous>, transform_indices = @transform_3, window_bounds = array<i64: 3584, 256>}, {pipeline_mode = #tpu.pipeline_mode<synchronous>, transform_indices = @transform_4, window_bounds = array<i64: 1, 256>}, {pipeline_mode = #tpu.pipeline_mode<synchronous>, transform_indices = @transform_5, window_bounds = array<i64: 1280, 128>}, {pipeline_mode = #tpu.pipeline_mode<synchronous>, transform_indices = @transform_6, window_bounds = array<i64: 1, 128>}, {transform_indices = @transform_7, window_bounds = array<i64: 8, 8, 128>}]} {
    %c0 = arith.constant 0 : index
    %c0_0 = arith.constant 0 : index
    %c0_1 = arith.constant 0 : index
    %0 = vector.load %arg1[%c0, %c0_0, %c0_1] : memref<8x10x128xbf16, #tpu.memory_space<vmem>>, vector<8x10x128xbf16>
    %1 = vector.extract_strided_slice %0 {offsets = [0, 0, 0], sizes = [8, 8, 128], strides = [1, 1, 1]} : vector<8x10x128xbf16> to vector<8x8x128xbf16>
    %2 = vector.shape_cast %1 : vector<8x8x128xbf16> to vector<64x128xbf16>
    %3 = vector.extract_strided_slice %0 {offsets = [0, 1, 0], sizes = [8, 8, 128], strides = [1, 1, 1]} : vector<8x10x128xbf16> to vector<8x8x128xbf16>
    %4 = vector.shape_cast %3 : vector<8x8x128xbf16> to vector<64x128xbf16>
    %5 = vector.extract_strided_slice %0 {offsets = [0, 2, 0], sizes = [8, 8, 128], strides = [1, 1, 1]} : vector<8x10x128xbf16> to vector<8x8x128xbf16>
    %6 = vector.shape_cast %5 : vector<8x8x128xbf16> to vector<64x128xbf16>
    %7 = tpu.concatenate %2, %4, %6 in 1 : vector<64x128xbf16>, vector<64x128xbf16>, vector<64x128xbf16> -> vector<64x384xbf16>
    %c0_2 = arith.constant 0 : index
    %c0_3 = arith.constant 0 : index
    %8 = vector.load %arg2[%c0_2, %c0_3] : memref<384x512xbf16, #tpu.memory_space<vmem>>, vector<384x512xbf16>
    %cst = arith.constant dense<0.000000e+00> : vector<64x512xf32>
    %9 = tpu.matmul %7, %8, %cst {dimension_numbers = #tpu.dot_dimension_numbers<[1], [0], [0], [1], [0, 0, 1, 1], [], []>} : vector<64x384xbf16>, vector<384x512xbf16>, vector<64x512xf32> -> vector<64x512xf32>
    %c0_4 = arith.constant 0 : index
    %c0_5 = arith.constant 0 : index
    %10 = vector.load %arg3[%c0_4, %c0_5] : memref<1x512xf32, #tpu.memory_space<vmem>>, vector<1x512xf32>
    %11 = vector.broadcast %10 : vector<1x512xf32> to vector<64x512xf32>
    %12 = arith.addf %9, %11 : vector<64x512xf32>
    %cst_6 = arith.constant 0.000000e+00 : f32
    %13 = vector.broadcast %cst_6 : f32 to vector<64x512xf32>
    %14 = arith.cmpf oge, %12, %13 : vector<64x512xf32>
    %cst_7 = arith.constant 0.00999999977 : f32
    %15 = vector.broadcast %cst_7 : f32 to vector<64x512xf32>
    %16 = arith.mulf %15, %12 : vector<64x512xf32>
    %17 = arith.select %14, %12, %16 : vector<64x512xi1>, vector<64x512xf32>
    %cst_8 = arith.constant 0.000000e+00 : bf16
    %18 = vector.broadcast %cst_8 : bf16 to vector<8x3x512xbf16>
    %c0_9 = arith.constant 0 : index
    %c5 = arith.constant 5 : index
    %c0_10 = arith.constant 0 : index
    %19 = vector.load %arg9[%c0_9, %c5, %c0_10] : memref<8x19x512xbf16, #tpu.memory_space<vmem>>, vector<8x3x512xbf16>
    tpu.vector_store %arg9[%c0_9, %c5, %c0_10], %18 {strides = array<i32>} : memref<8x19x512xbf16, #tpu.memory_space<vmem>>, vector<8x3x512xbf16>,
    %c0_11 = arith.constant 0 : index
    %c16 = arith.constant 16 : index
    %c0_12 = arith.constant 0 : index
    %20 = vector.load %arg9[%c0_11, %c16, %c0_12] : memref<8x19x512xbf16, #tpu.memory_space<vmem>>, vector<8x3x512xbf16>
    tpu.vector_store %arg9[%c0_11, %c16, %c0_12], %18 {strides = array<i32>} : memref<8x19x512xbf16, #tpu.memory_space<vmem>>, vector<8x3x512xbf16>,
    %21 = arith.truncf %17 : vector<64x512xf32> to vector<64x512xbf16>
    %22 = vector.shape_cast %21 : vector<64x512xbf16> to vector<8x8x512xbf16>
    %c0_13 = arith.constant 0 : index
    %c8 = arith.constant 8 : index
    %c0_14 = arith.constant 0 : index
    %23 = vector.load %arg9[%c0_13, %c8, %c0_14] : memref<8x19x512xbf16, #tpu.memory_space<vmem>>, vector<8x8x512xbf16>
    tpu.vector_store %arg9[%c0_13, %c8, %c0_14], %22 {strides = array<i32>} : memref<8x19x512xbf16, #tpu.memory_space<vmem>>, vector<8x8x512xbf16>,
    %c0_15 = arith.constant 0 : index
    %c5_16 = arith.constant 5 : index
    %c0_17 = arith.constant 0 : index
    %24 = vector.load %arg9[%c0_15, %c5_16, %c0_17] : memref<8x19x512xbf16, #tpu.memory_space<vmem>>, vector<8x8x512xbf16>
    %25 = vector.shape_cast %24 : vector<8x8x512xbf16> to vector<64x512xbf16>
    %c0_18 = arith.constant 0 : index
    %c6 = arith.constant 6 : index
    %c0_19 = arith.constant 0 : index
    %26 = vector.load %arg9[%c0_18, %c6, %c0_19] : memref<8x19x512xbf16, #tpu.memory_space<vmem>>, vector<8x8x512xbf16>
    %27 = vector.shape_cast %26 : vector<8x8x512xbf16> to vector<64x512xbf16>
    %c0_20 = arith.constant 0 : index
    %c7 = arith.constant 7 : index
    %c0_21 = arith.constant 0 : index
    %28 = vector.load %arg9[%c0_20, %c7, %c0_21] : memref<8x19x512xbf16, #tpu.memory_space<vmem>>, vector<8x8x512xbf16>
    %29 = vector.shape_cast %28 : vector<8x8x512xbf16> to vector<64x512xbf16>
    %c0_22 = arith.constant 0 : index
    %c8_23 = arith.constant 8 : index
    %c0_24 = arith.constant 0 : index
    %30 = vector.load %arg9[%c0_22, %c8_23, %c0_24] : memref<8x19x512xbf16, #tpu.memory_space<vmem>>, vector<8x8x512xbf16>
    %31 = vector.shape_cast %30 : vector<8x8x512xbf16> to vector<64x512xbf16>
    %c0_25 = arith.constant 0 : index
    %c9 = arith.constant 9 : index
    %c0_26 = arith.constant 0 : index
    %32 = vector.load %arg9[%c0_25, %c9, %c0_26] : memref<8x19x512xbf16, #tpu.memory_space<vmem>>, vector<8x8x512xbf16>
    %33 = vector.shape_cast %32 : vector<8x8x512xbf16> to vector<64x512xbf16>
    %c0_27 = arith.constant 0 : index
    %c10 = arith.constant 10 : index
    %c0_28 = arith.constant 0 : index
    %34 = vector.load %arg9[%c0_27, %c10, %c0_28] : memref<8x19x512xbf16, #tpu.memory_space<vmem>>, vector<8x8x512xbf16>
    %35 = vector.shape_cast %34 : vector<8x8x512xbf16> to vector<64x512xbf16>
    %c0_29 = arith.constant 0 : index
    %c11 = arith.constant 11 : index
    %c0_30 = arith.constant 0 : index
    %36 = vector.load %arg9[%c0_29, %c11, %c0_30] : memref<8x19x512xbf16, #tpu.memory_space<vmem>>, vector<8x8x512xbf16>
    %37 = vector.shape_cast %36 : vector<8x8x512xbf16> to vector<64x512xbf16>
    %38 = tpu.concatenate %25, %27, %29, %31, %33, %35, %37 in 1 : vector<64x512xbf16>, vector<64x512xbf16>, vector<64x512xbf16>, vector<64x512xbf16>, vector<64x512xbf16>, vector<64x512xbf16>, vector<64x512xbf16> -> vector<64x3584xbf16>
    %c0_31 = arith.constant 0 : index
    %c0_32 = arith.constant 0 : index
    %39 = vector.load %arg4[%c0_31, %c0_32] : memref<3584x256xbf16, #tpu.memory_space<vmem>>, vector<3584x256xbf16>
    %cst_33 = arith.constant dense<0.000000e+00> : vector<64x256xf32>
    %40 = tpu.matmul %38, %39, %cst_33 {dimension_numbers = #tpu.dot_dimension_numbers<[1], [0], [0], [1], [0, 0, 1, 1], [], []>} : vector<64x3584xbf16>, vector<3584x256xbf16>, vector<64x256xf32> -> vector<64x256xf32>
    %c0_34 = arith.constant 0 : index
    %c0_35 = arith.constant 0 : index
    %41 = vector.load %arg5[%c0_34, %c0_35] : memref<1x256xf32, #tpu.memory_space<vmem>>, vector<1x256xf32>
    %42 = vector.broadcast %41 : vector<1x256xf32> to vector<64x256xf32>
    %43 = arith.addf %40, %42 : vector<64x256xf32>
    %cst_36 = arith.constant 0.000000e+00 : f32
    %44 = vector.broadcast %cst_36 : f32 to vector<64x256xf32>
    %45 = arith.cmpf oge, %43, %44 : vector<64x256xf32>
    %cst_37 = arith.constant 0.00999999977 : f32
    %46 = vector.broadcast %cst_37 : f32 to vector<64x256xf32>
    %47 = arith.mulf %46, %43 : vector<64x256xf32>
    %48 = arith.select %45, %43, %47 : vector<64x256xi1>, vector<64x256xf32>
    %cst_38 = arith.constant 0.000000e+00 : bf16
    %49 = vector.broadcast %cst_38 : bf16 to vector<8x2x256xbf16>
    %c0_39 = arith.constant 0 : index
    %c6_40 = arith.constant 6 : index
    %c0_41 = arith.constant 0 : index
    %50 = vector.load %arg10[%c0_39, %c6_40, %c0_41] : memref<8x18x256xbf16, #tpu.memory_space<vmem>>, vector<8x2x256xbf16>
    tpu.vector_store %arg10[%c0_39, %c6_40, %c0_41], %49 {strides = array<i32>} : memref<8x18x256xbf16, #tpu.memory_space<vmem>>, vector<8x2x256xbf16>,
    %c0_42 = arith.constant 0 : index
    %c16_43 = arith.constant 16 : index
    %c0_44 = arith.constant 0 : index
    %51 = vector.load %arg10[%c0_42, %c16_43, %c0_44] : memref<8x18x256xbf16, #tpu.memory_space<vmem>>, vector<8x2x256xbf16>
    tpu.vector_store %arg10[%c0_42, %c16_43, %c0_44], %49 {strides = array<i32>} : memref<8x18x256xbf16, #tpu.memory_space<vmem>>, vector<8x2x256xbf16>,
    %52 = arith.truncf %48 : vector<64x256xf32> to vector<64x256xbf16>
    %53 = vector.shape_cast %52 : vector<64x256xbf16> to vector<8x8x256xbf16>
    %c0_45 = arith.constant 0 : index
    %c8_46 = arith.constant 8 : index
    %c0_47 = arith.constant 0 : index
    %54 = vector.load %arg10[%c0_45, %c8_46, %c0_47] : memref<8x18x256xbf16, #tpu.memory_space<vmem>>, vector<8x8x256xbf16>
    tpu.vector_store %arg10[%c0_45, %c8_46, %c0_47], %53 {strides = array<i32>} : memref<8x18x256xbf16, #tpu.memory_space<vmem>>, vector<8x8x256xbf16>,
    %c0_48 = arith.constant 0 : index
    %c6_49 = arith.constant 6 : index
    %c0_50 = arith.constant 0 : index
    %55 = vector.load %arg10[%c0_48, %c6_49, %c0_50] : memref<8x18x256xbf16, #tpu.memory_space<vmem>>, vector<8x8x256xbf16>
    %56 = vector.shape_cast %55 : vector<8x8x256xbf16> to vector<64x256xbf16>
    %c0_51 = arith.constant 0 : index
    %c7_52 = arith.constant 7 : index
    %c0_53 = arith.constant 0 : index
    %57 = vector.load %arg10[%c0_51, %c7_52, %c0_53] : memref<8x18x256xbf16, #tpu.memory_space<vmem>>, vector<8x8x256xbf16>
    %58 = vector.shape_cast %57 : vector<8x8x256xbf16> to vector<64x256xbf16>
    %c0_54 = arith.constant 0 : index
    %c8_55 = arith.constant 8 : index
    %c0_56 = arith.constant 0 : index
    %59 = vector.load %arg10[%c0_54, %c8_55, %c0_56] : memref<8x18x256xbf16, #tpu.memory_space<vmem>>, vector<8x8x256xbf16>
    %60 = vector.shape_cast %59 : vector<8x8x256xbf16> to vector<64x256xbf16>
    %c0_57 = arith.constant 0 : index
    %c9_58 = arith.constant 9 : index
    %c0_59 = arith.constant 0 : index
    %61 = vector.load %arg10[%c0_57, %c9_58, %c0_59] : memref<8x18x256xbf16, #tpu.memory_space<vmem>>, vector<8x8x256xbf16>
    %62 = vector.shape_cast %61 : vector<8x8x256xbf16> to vector<64x256xbf16>
    %c0_60 = arith.constant 0 : index
    %c10_61 = arith.constant 10 : index
    %c0_62 = arith.constant 0 : index
    %63 = vector.load %arg10[%c0_60, %c10_61, %c0_62] : memref<8x18x256xbf16, #tpu.memory_space<vmem>>, vector<8x8x256xbf16>
    %64 = vector.shape_cast %63 : vector<8x8x256xbf16> to vector<64x256xbf16>
    %65 = tpu.concatenate %56, %58, %60, %62, %64 in 1 : vector<64x256xbf16>, vector<64x256xbf16>, vector<64x256xbf16>, vector<64x256xbf16>, vector<64x256xbf16> -> vector<64x1280xbf16>
    %c0_63 = arith.constant 0 : index
    %c0_64 = arith.constant 0 : index
    %66 = vector.load %arg6[%c0_63, %c0_64] : memref<1280x128xbf16, #tpu.memory_space<vmem>>, vector<1280x128xbf16>
    %cst_65 = arith.constant dense<0.000000e+00> : vector<64x128xf32>
    %67 = tpu.matmul %65, %66, %cst_65 {dimension_numbers = #tpu.dot_dimension_numbers<[1], [0], [0], [1], [0, 0, 1, 1], [], []>} : vector<64x1280xbf16>, vector<1280x128xbf16>, vector<64x128xf32> -> vector<64x128xf32>
    %c0_66 = arith.constant 0 : index
    %c0_67 = arith.constant 0 : index
    %68 = vector.load %arg7[%c0_66, %c0_67] : memref<1x128xf32, #tpu.memory_space<vmem>>, vector<1x128xf32>
    %69 = vector.broadcast %68 : vector<1x128xf32> to vector<64x128xf32>
    %70 = arith.addf %67, %69 : vector<64x128xf32>
    %cst_68 = arith.constant 0.000000e+00 : f32
    %71 = vector.broadcast %cst_68 : f32 to vector<64x128xf32>
    %72 = arith.subf %71, %70 : vector<64x128xf32>
    %73 = math.exp %72 : vector<64x128xf32>
    %cst_69 = arith.constant 1.000000e+00 : f32
    %74 = vector.broadcast %cst_69 : f32 to vector<64x128xf32>
    %75 = arith.addf %74, %73 : vector<64x128xf32>
    %cst_70 = arith.constant 1.000000e+00 : f32
    %76 = vector.broadcast %cst_70 : f32 to vector<64x128xf32>
    %77 = arith.divf %76, %75 : vector<64x128xf32>
    %78 = vector.shape_cast %77 : vector<64x128xf32> to vector<8x8x128xf32>
    %c0_71 = arith.constant 0 : index
    %c0_72 = arith.constant 0 : index
    %c0_73 = arith.constant 0 : index
    %79 = vector.load %arg8[%c0_71, %c0_72, %c0_73] : memref<8x8x128xf32, #tpu.memory_space<vmem>>, vector<8x8x128xf32>
    tpu.vector_store %arg8[%c0_71, %c0_72, %c0_73], %78 {strides = array<i32>} : memref<8x8x128xf32, #tpu.memory_space<vmem>>, vector<8x8x128xf32>,
    return
  }
  func.func @transform_0(%arg0: i32) -> (i32, i32, i32) {
    %c0_i32 = arith.constant 0 : i32
    %c0_i32_0 = arith.constant 0 : i32
    %c0_i32_1 = arith.constant 0 : i32
    return %arg0, %c0_i32, %c0_i32_0 : i32, i32, i32
  }
  func.func @transform_1(%arg0: i32) -> (i32, i32) {
    %c0_i32 = arith.constant 0 : i32
    %c0_i32_0 = arith.constant 0 : i32
    %c0_i32_1 = arith.constant 0 : i32
    return %c0_i32, %c0_i32_0 : i32, i32
  }
  func.func @transform_2(%arg0: i32) -> (i32, i32) {
    %c0_i32 = arith.constant 0 : i32
    %c0_i32_0 = arith.constant 0 : i32
    %c0_i32_1 = arith.constant 0 : i32
    return %c0_i32, %c0_i32_0 : i32, i32
  }
  func.func @transform_3(%arg0: i32) -> (i32, i32) {
    %c0_i32 = arith.constant 0 : i32
    %c0_i32_0 = arith.constant 0 : i32
    %c0_i32_1 = arith.constant 0 : i32
    return %c0_i32, %c0_i32_0 : i32, i32
  }
  func.func @transform_4(%arg0: i32) -> (i32, i32) {
    %c0_i32 = arith.constant 0 : i32
    %c0_i32_0 = arith.constant 0 : i32
    %c0_i32_1 = arith.constant 0 : i32
    return %c0_i32, %c0_i32_0 : i32, i32
  }
  func.func @transform_5(%arg0: i32) -> (i32, i32) {
    %c0_i32 = arith.constant 0 : i32
    %c0_i32_0 = arith.constant 0 : i32
    %c0_i32_1 = arith.constant 0 : i32
    return %c0_i32, %c0_i32_0 : i32, i32
  }
  func.func @transform_6(%arg0: i32) -> (i32, i32) {
    %c0_i32 = arith.constant 0 : i32
    %c0_i32_0 = arith.constant 0 : i32
    %c0_i32_1 = arith.constant 0 : i32
    return %c0_i32, %c0_i32_0 : i32, i32
  }
  func.func @transform_7(%arg0: i32) -> (i32, i32, i32) {
    %c0_i32 = arith.constant 0 : i32
    %c0_i32_0 = arith.constant 0 : i32
    %c0_i32_1 = arith.constant 0 : i32
    return %arg0, %c0_i32, %c0_i32_0 : i32, i32, i32
  }
}

</mosaic_0001>

<llo_original>
// kernel: patch_discriminator.1
$region0: #{patch_discriminator.1}
  #allocation0 [shape = 'u32[]', space=smem, size = 0x4, offset = 0x4, fixed_abs, tag = 'smem constant byte address 0x4 - core index']
  #allocation1 [shape = 'u32[144,128]{1,0:T(1,128)}', space=vmem, size = 0x12000, scoped, tag = 'internal scratch']
  #allocation2 [shape = 'bf16[8,19,512]{2,1,0:T(8,128)(2,1)}', space=vmem, size = 0x30000, scoped, tag = 'scratch operand']
  #allocation3 [shape = 'bf16[8,18,256]{2,1,0:T(8,128)(2,1)}', space=vmem, size = 0x18000, scoped, tag = 'scratch operand']
  %s0 = inlined_call_operand.vmem [shape: bf16[16,10,128], index: 0, kind: input, shape index: {}]
  %s1 = inlined_call_operand.vmem [shape: bf16[384,512], index: 1, kind: input, shape index: {}]
  %s2 = inlined_call_operand.vmem [shape: f32[1,512], index: 2, kind: input, shape index: {}]
  %s3 = inlined_call_operand.vmem [shape: bf16[3584,256], index: 3, kind: input, shape index: {}]
  %s4 = inlined_call_operand.vmem [shape: f32[1,256], index: 4, kind: input, shape index: {}]
  %s5 = inlined_call_operand.vmem [shape: bf16[1280,128], index: 5, kind: input, shape index: {}]
  %s6 = inlined_call_operand.vmem [shape: f32[1,128], index: 6, kind: input, shape index: {}]
  %s7 = inlined_call_operand.vmem [shape: f32[16,8,128], index: 7, kind: output, shape index: {}]
  %s8 = sld [smem:[#allocation0]]
  $region61: #{patch_discriminator.1} parent=0
    _
  %s10 = ssub.s32 1, %s8
  %s11 = scalar_select 0, %s10, %s8
  loop: start=0, step=1, limit=4
  $region2: #{patch_discriminator.1} parent=0 // loop_pre_header
    _
  $region3: #{patch_discriminator.1} parent=0 // loop_header
    %s13 = sphi 0, %s17
    %p14 = scmp.ge.s32.totalorder %s13, 4
    %s23 = sphi 0, %s25
    %s26 = sphi 0, %s23
    %s27 = sphi 0, %s26
    %s43 = sphi 0, %s27
    %s47 = sphi 0, %s47
    %s49 = sphi 0, %s47
    %s50 = sphi 0, %s49
    %s64 = sphi 0, %s50
    %s68 = sphi 0, %s68
    %s70 = sphi 0, %s68
    %s71 = sphi 0, %s70
    %s85 = sphi 0, %s71
    %s89 = sphi 0, %s89
    %s91 = sphi 0, %s89
    %s92 = sphi 0, %s91
    %s106 = sphi 0, %s92
    %s110 = sphi 0, %s110
    %s112 = sphi 0, %s110
    %s113 = sphi 0, %s112
    %s127 = sphi 0, %s113
    %s131 = sphi 0, %s131
    %s133 = sphi 0, %s131
    %s134 = sphi 0, %s133
    %s148 = sphi 0, %s134
    %s152 = sphi 0, %s152
    %s154 = sphi 0, %s152
    %s155 = sphi 0, %s154
    %s169 = sphi 0, %s155
    %s175 = sphi 0, %s177
    %s178 = sphi 0, %s175
    %s179 = sphi 0, %s178
    %s195 = sphi 0, %s179
  $region4: #{patch_discriminator.1} parent=0 // loop_header_branch
    %16 = sbr.rel (%p14) target = $region8
  $region5: #{patch_discriminator.1} parent=0 // loop_body
    %s18 = ssub.s32 %s13, 1
    %s19 = ssub.s32 %s13, 2
    %s20 = sadd.s32 %s13, 1
    %s21 = ssub.s32 %s13, %s20
    %p22 = scmp.eq.s32.totalorder %s21, 0
    %s24 = sadd.s32 %s23, 1
    %s25 = scalar_select %p22, %s23, %s24
    %p28 = pneg %p22
    %p29 = scmp.eq.s32.totalorder %s13, 1
    %p30 = por %p28, %p29
    %p31 = scmp.ne.s32.totalorder %s23, %s26
    %p32 = scmp.eq.s32.totalorder %s13, 0
    %p33 = por %p31, %p32
    %p34 = scmp.ne.s32.totalorder %s23, %s26
    %p35 = scmp.eq.s32.totalorder %s18, 1
    %p36 = por %p34, %p35
    %p37 = scmp.ne.s32.totalorder %s26, %s27
    %p38 = scmp.eq.s32.totalorder %s18, 0
    %p39 = por %p37, %p38
    %p40 = scmp.ne.s32.totalorder %s26, %s27
    %p41 = scmp.eq.s32.totalorder %s19, 1
    %p42 = por %p40, %p41
    %p44 = scmp.ne.s32.totalorder %s27, %s43
    %p45 = scmp.eq.s32.totalorder %s19, 0
    %p46 = por %p44, %p45
    %s48 = sadd.s32 %s47, 1
    %p51 = scmp.eq.s32.totalorder %s13, 1
    %p52 = scmp.ne.s32.totalorder %s47, %s49
    %p53 = scmp.eq.s32.totalorder %s13, 0
    %p54 = por %p52, %p53
    %p55 = scmp.ne.s32.totalorder %s47, %s49
    %p56 = scmp.eq.s32.totalorder %s18, 1
    %p57 = por %p55, %p56
    %p58 = scmp.ne.s32.totalorder %s49, %s50
    %p59 = scmp.eq.s32.totalorder %s18, 0
    %p60 = por %p58, %p59
    %p61 = scmp.ne.s32.totalorder %s49, %s50
    %p62 = scmp.eq.s32.totalorder %s19, 1
    %p63 = por %p61, %p62
    %p65 = scmp.ne.s32.totalorder %s50, %s64
    %p66 = scmp.eq.s32.totalorder %s19, 0
    %p67 = por %p65, %p66
    %s69 = sadd.s32 %s68, 1
    %p72 = scmp.eq.s32.totalorder %s13, 1
    %p73 = scmp.ne.s32.totalorder %s68, %s70
    %p74 = scmp.eq.s32.totalorder %s13, 0
    %p75 = por %p73, %p74
    %p76 = scmp.ne.s32.totalorder %s68, %s70
    %p77 = scmp.eq.s32.totalorder %s18, 1
    %p78 = por %p76, %p77
    %p79 = scmp.ne.s32.totalorder %s70, %s71
    %p80 = scmp.eq.s32.totalorder %s18, 0
    %p81 = por %p79, %p80
    %p82 = scmp.ne.s32.totalorder %s70, %s71
    %p83 = scmp.eq.s32.totalorder %s19, 1
    %p84 = por %p82, %p83
    %p86 = scmp.ne.s32.totalorder %s71, %s85
    %p87 = scmp.eq.s32.totalorder %s19, 0
    %p88 = por %p86, %p87
    %s90 = sadd.s32 %s89, 1
    %p93 = scmp.eq.s32.totalorder %s13, 1
    %p94 = scmp.ne.s32.totalorder %s89, %s91
    %p95 = scmp.eq.s32.totalorder %s13, 0
    %p96 = por %p94, %p95
    %p97 = scmp.ne.s32.totalorder %s89, %s91
    %p98 = scmp.eq.s32.totalorder %s18, 1
    %p99 = por %p97, %p98
    %p100 = scmp.ne.s32.totalorder %s91, %s92
    %p101 = scmp.eq.s32.totalorder %s18, 0
    %p102 = por %p100, %p101
    %p103 = scmp.ne.s32.totalorder %s91, %s92
    %p104 = scmp.eq.s32.totalorder %s19, 1
    %p105 = por %p103, %p104
    %p107 = scmp.ne.s32.totalorder %s92, %s106
    %p108 = scmp.eq.s32.totalorder %s19, 0
    %p109 = por %p107, %p108
    %s111 = sadd.s32 %s110, 1
    %p114 = scmp.eq.s32.totalorder %s13, 1
    %p115 = scmp.ne.s32.totalorder %s110, %s112
    %p116 = scmp.eq.s32.totalorder %s13, 0
    %p117 = por %p115, %p116
    %p118 = scmp.ne.s32.totalorder %s110, %s112
    %p119 = scmp.eq.s32.totalorder %s18, 1
    %p120 = por %p118, %p119
    %p121 = scmp.ne.s32.totalorder %s112, %s113
    %p122 = scmp.eq.s32.totalorder %s18, 0
    %p123 = por %p121, %p122
    %p124 = scmp.ne.s32.totalorder %s112, %s113
    %p125 = scmp.eq.s32.totalorder %s19, 1
    %p126 = por %p124, %p125
    %p128 = scmp.ne.s32.totalorder %s113, %s127
    %p129 = scmp.eq.s32.totalorder %s19, 0
    %p130 = por %p128, %p129
    %s132 = sadd.s32 %s131, 1
    %p135 = scmp.eq.s32.totalorder %s13, 1
    %p136 = scmp.ne.s32.totalorder %s131, %s133
    %p137 = scmp.eq.s32.totalorder %s13, 0
    %p138 = por %p136, %p137
    %p139 = scmp.ne.s32.totalorder %s131, %s133
    %p140 = scmp.eq.s32.totalorder %s18, 1
    %p141 = por %p139, %p140
    %p142 = scmp.ne.s32.totalorder %s133, %s134
    %p143 = scmp.eq.s32.totalorder %s18, 0
    %p144 = por %p142, %p143
    %p145 = scmp.ne.s32.totalorder %s133, %s134
    %p146 = scmp.eq.s32.totalorder %s19, 1
    %p147 = por %p145, %p146
    %p149 = scmp.ne.s32.totalorder %s134, %s148
    %p150 = scmp.eq.s32.totalorder %s19, 0
    %p151 = por %p149, %p150
    %s153 = sadd.s32 %s152, 1
    %p156 = scmp.eq.s32.totalorder %s13, 1
    %p157 = scmp.ne.s32.totalorder %s152, %s154
    %p158 = scmp.eq.s32.totalorder %s13, 0
    %p159 = por %p157, %p158
    %p160 = scmp.ne.s32.totalorder %s152, %s154
    %p161 = scmp.eq.s32.totalorder %s18, 1
    %p162 = por %p160, %p161
    %p163 = scmp.ne.s32.totalorder %s154, %s155
    %p164 = scmp.eq.s32.totalorder %s18, 0
    %p165 = por %p163, %p164
    %p166 = scmp.ne.s32.totalorder %s154, %s155
    %p167 = scmp.eq.s32.totalorder %s19, 1
    %p168 = por %p166, %p167
    %p170 = scmp.ne.s32.totalorder %s155, %s169
    %p171 = scmp.eq.s32.totalorder %s19, 0
    %p172 = por %p170, %p171
    %s173 = ssub.s32 %s13, %s20
    %p174 = scmp.eq.s32.totalorder %s173, 0
    %s176 = sadd.s32 %s175, 1
    %s177 = scalar_select %p174, %s175, %s176
    %p180 = pneg %p174
    %p181 = scmp.eq.s32.totalorder %s13, 1
    %p182 = por %p180, %p181
    %p183 = scmp.ne.s32.totalorder %s175, %s178
    %p184 = scmp.eq.s32.totalorder %s13, 0
    %p185 = por %p183, %p184
    %p186 = scmp.ne.s32.totalorder %s175, %s178
    %p187 = scmp.eq.s32.totalorder %s18, 1
    %p188 = por %p186, %p187
    %p189 = scmp.ne.s32.totalorder %s178, %s179
    %p190 = scmp.eq.s32.totalorder %s18, 0
    %p191 = por %p189, %p190
    %p192 = scmp.ne.s32.totalorder %s178, %s179
    %p193 = scmp.eq.s32.totalorder %s19, 1
    %p194 = por %p192, %p193
    %p196 = scmp.ne.s32.totalorder %s179, %s195
    %p197 = scmp.eq.s32.totalorder %s19, 0
    %p198 = por %p196, %p197
    %p199 = scmp.le.s32.totalorder 1, %s13
    %p200 = scmp.lt.s32.totalorder %s13, 3
    %p201 = pnand %p199, %p200
    %p202 = pneg %p201
    // Predicated region
    $region9: #{patch_discriminator.1} parent=5 // pred_check
      _
    $region10: #{patch_discriminator.1} parent=5 // pred_check_branch
      %204 = sbr.rel (%p201) target = $region12
    $region11: #{patch_discriminator.1} parent=5 // pred_region
      %s205 = ssub.s32 %s13, 1
      // Predicated region
      $region13: #{patch_discriminator.1} parent=11 // pred_check
        %p206 = pneg %p60
      $region14: #{patch_discriminator.1} parent=11 // pred_check_branch
        %208 = sbr.rel (%p206) target = $region16
      $region15: #{patch_discriminator.1} parent=11 // pred_region
        _
      $region16: #{patch_discriminator.1} parent=11 // pred_fallthru
        _
      // Predicated region
      $region17: #{patch_discriminator.1} parent=11 // pred_check
        %p209 = pneg %p81
      $region18: #{patch_discriminator.1} parent=11 // pred_check_branch
        %211 = sbr.rel (%p209) target = $region20
      $region19: #{patch_discriminator.1} parent=11 // pred_region
        _
      $region20: #{patch_discriminator.1} parent=11 // pred_fallthru
        _
      // Predicated region
      $region21: #{patch_discriminator.1} parent=11 // pred_check
        %p212 = pneg %p102
      $region22: #{patch_discriminator.1} parent=11 // pred_check_branch
        %214 = sbr.rel (%p212) target = $region24
      $region23: #{patch_discriminator.1} parent=11 // pred_region
        _
      $region24: #{patch_discriminator.1} parent=11 // pred_fallthru
        _
      // Predicated region
      $region25: #{patch_discriminator.1} parent=11 // pred_check
        %p215 = pneg %p123
      $region26: #{patch_discriminator.1} parent=11 // pred_check_branch
        %217 = sbr.rel (%p215) target = $region28
      $region27: #{patch_discriminator.1} parent=11 // pred_region
        _
      $region28: #{patch_discriminator.1} parent=11 // pred_fallthru
        _
      // Predicated region
      $region29: #{patch_discriminator.1} parent=11 // pred_check
        %p218 = pneg %p144
      $region30: #{patch_discriminator.1} parent=11 // pred_check_branch
        %220 = sbr.rel (%p218) target = $region32
      $region31: #{patch_discriminator.1} parent=11 // pred_region
        _
      $region32: #{patch_discriminator.1} parent=11 // pred_fallthru
        _
      // Predicated region
      $region33: #{patch_discriminator.1} parent=11 // pred_check
        %p221 = pneg %p165
      $region34: #{patch_discriminator.1} parent=11 // pred_check_branch
        %223 = sbr.rel (%p221) target = $region36
      $region35: #{patch_discriminator.1} parent=11 // pred_region
        _
      $region36: #{patch_discriminator.1} parent=11 // pred_fallthru
        _
    $region12: #{patch_discriminator.1} parent=5 // pred_fallthru
      _
    %p224 = scmp.lt.s32.totalorder %s13, 2
    // Predicated region
    $region37: #{patch_discriminator.1} parent=5 // pred_check
      %p225 = pneg %p224
    $region38: #{patch_discriminator.1} parent=5 // pred_check_branch
      %227 = sbr.rel (%p225) target = $region40
    $region39: #{patch_discriminator.1} parent=5 // pred_region
      // Predicated region
      $region41: #{patch_discriminator.1} parent=39 // pred_check
        %p228 = pneg %p33
      $region42: #{patch_discriminator.1} parent=39 // pred_check_branch
        %230 = sbr.rel (%p228) target = $region44
      $region43: #{patch_discriminator.1} parent=39 // pred_region
        %s231 = smul.u32 8, %s13
        %p232 = scmp.lt.s32.totalorder %s231, 15
        %s233 = scalar_select %p232, %s231, 15
        %s234 = smul.addr %s233, 2
        %s235 = smul.addr %s234, 4
        %s236 = scalar_lea.vmem %s0, %s235
        %s237 = smul.u32 8, %s13
      $region44: #{patch_discriminator.1} parent=39 // pred_fallthru
        _
    $region40: #{patch_discriminator.1} parent=5 // pred_fallthru
      _
    %p238 = scmp.le.s32.totalorder 1, %s13
    %p239 = scmp.lt.s32.totalorder %s13, 3
    %p240 = pnand %p238, %p239
    %p241 = pneg %p240
    // Predicated region
    $region45: #{patch_discriminator.1} parent=5 // pred_check
      _
    $region46: #{patch_discriminator.1} parent=5 // pred_check_branch
      %243 = sbr.rel (%p240) target = $region48
    $region47: #{patch_discriminator.1} parent=5 // pred_region
      %s244 = ssub.s32 %s13, 1
      %s245 = smul.u32 8, %s18
      %p246 = scmp.lt.s32.totalorder %s245, 15
      %s247 = scalar_select %p246, %s245, 15
      %s248 = smul.addr %s247, 2
      %s249 = smul.addr %s248, 4
      %s250 = scalar_lea.vmem %s0, %s249
      %p251 = pneg %p39
      %p252 = pneg %p36
      %p253 = pneg %p60
      %p254 = pneg %p57
      %p255 = pneg %p81
      %p256 = pneg %p78
      %p257 = pneg %p102
      %p258 = pneg %p99
      %p259 = pneg %p123
      %p260 = pneg %p120
      %p261 = pneg %p144
      %p262 = pneg %p141
      %p263 = pneg %p165
      %p264 = pneg %p162
      %p265 = pneg %p191
      %p266 = pneg %p188
      %s267 = smul.u32 8, %s18
      %p268 = scmp.lt.s32.totalorder %s267, 15
      %s269 = scalar_select %p268, %s267, 15
      %s270 = smul.addr %s269, 8
      %s271 = scalar_lea.vmem %s7, %s270
      %s272 = smul.u32 8, %s18
      %p273 = scmp.lt.s32.totalorder %s272, 15
      %s274 = scalar_select %p273, %s272, 15
      %s275 = smul.addr %s274, 2
      %s276 = smul.addr %s275, 4
      %s277 = scalar_lea.vmem %s0, %s276
      %s278 = smul.u32 8, %s18
      %s279 = smul.u32 8, %s18
      %p280 = scmp.lt.s32.totalorder %s279, 15
      %s281 = scalar_select %p280, %s279, 15
      %s282 = smul.addr %s281, 8
      %s283 = scalar_lea.vmem %s7, %s282
      %s284 = smul.u32 8, %s18
      %v286 = vld [vmem:[%s277] sm:$0xf]
      %v287 = vld [vmem:[%s277 + $0x4] sm:$0x1]
      %v288 = vld [vmem:[%s277 + $0x8] sm:$0xf]
      %v289 = vld [vmem:[%s277 + $0xc] sm:$0x1]
      %v290 = vld [vmem:[%s277 + $0x10] sm:$0xf]
      %v291 = vld [vmem:[%s277 + $0x14] sm:$0x1]
      %v292 = vld [vmem:[%s277 + $0x18] sm:$0xf]
      %v293 = vld [vmem:[%s277 + $0x1c] sm:$0x1]
      %v294 = vld [vmem:[%s277 + $0x20] sm:$0xf]
      %v295 = vld [vmem:[%s277 + $0x24] sm:$0x1]
      %v296 = vld [vmem:[%s277 + $0x28] sm:$0xf]
      %v297 = vld [vmem:[%s277 + $0x2c] sm:$0x1]
      %v298 = vld [vmem:[%s277 + $0x30] sm:$0xf]
      %v299 = vld [vmem:[%s277 + $0x34] sm:$0x1]
      %v300 = vld [vmem:[%s277 + $0x38] sm:$0xf]
      %v301 = vld [vmem:[%s277 + $0x3c] sm:$0x1]
      %vm302 = vsmask.f32 3328
      %vm303 = vsmask.f32 7440
      %vm304 = vmor %vm302, %vm303
      %v306 = vshrl.u32 %v286, 16
      %v308 = vrot.slane %v306, 4
      %v309 = vshll.u32 %v286, 16
      %v311 = vrot.slane %v309, 5
      %v312 = vor.u32 %v308, %v311
      %v313 = vrot.slane %v312, 4
      %v315 = vshll.u32 %v287, 16
      %v317 = vrot.slane %v315, 5
      %v318 = vsel %vm304, %v313, %v317
      %v320 = vshrl.u32 %v288, 16
      %v322 = vrot.slane %v320, 4
      %v323 = vshll.u32 %v288, 16
      %v325 = vrot.slane %v323, 5
      %v326 = vor.u32 %v322, %v325
      %v327 = vrot.slane %v326, 4
      %v329 = vshll.u32 %v289, 16
      %v331 = vrot.slane %v329, 5
      %v332 = vsel %vm304, %v327, %v331
      %v334 = vshrl.u32 %v290, 16
      %v336 = vrot.slane %v334, 4
      %v337 = vshll.u32 %v290, 16
      %v339 = vrot.slane %v337, 5
      %v340 = vor.u32 %v336, %v339
      %v341 = vrot.slane %v340, 4
      %v343 = vshll.u32 %v291, 16
      %v345 = vrot.slane %v343, 5
      %v346 = vsel %vm304, %v341, %v345
      %v348 = vshrl.u32 %v292, 16
      %v350 = vrot.slane %v348, 4
      %v351 = vshll.u32 %v292, 16
      %v353 = vrot.slane %v351, 5
      %v354 = vor.u32 %v350, %v353
      %v355 = vrot.slane %v354, 4
      %v357 = vshll.u32 %v293, 16
      %v359 = vrot.slane %v357, 5
      %v360 = vsel %vm304, %v355, %v359
      %v362 = vshrl.u32 %v294, 16
      %v364 = vrot.slane %v362, 4
      %v365 = vshll.u32 %v294, 16
      %v367 = vrot.slane %v365, 5
      %v368 = vor.u32 %v364, %v367
      %v369 = vrot.slane %v368, 4
      %v371 = vshll.u32 %v295, 16
      %v373 = vrot.slane %v371, 5
      %v374 = vsel %vm304, %v369, %v373
      %v376 = vshrl.u32 %v296, 16
      %v378 = vrot.slane %v376, 4
      %v379 = vshll.u32 %v296, 16
      %v381 = vrot.slane %v379, 5
      %v382 = vor.u32 %v378, %v381
      %v383 = vrot.slane %v382, 4
      %v385 = vshll.u32 %v297, 16
      %v387 = vrot.slane %v385, 5
      %v388 = vsel %vm304, %v383, %v387
      %v390 = vshrl.u32 %v298, 16
      %v392 = vrot.slane %v390, 4
      %v393 = vshll.u32 %v298, 16
      %v395 = vrot.slane %v393, 5
      %v396 = vor.u32 %v392, %v395
      %v397 = vrot.slane %v396, 4
      %v399 = vshll.u32 %v299, 16
      %v401 = vrot.slane %v399, 5
      %v402 = vsel %vm304, %v397, %v401
      %v404 = vshrl.u32 %v300, 16
      %v406 = vrot.slane %v404, 4
      %v407 = vshll.u32 %v300, 16
      %v409 = vrot.slane %v407, 5
      %v410 = vor.u32 %v406, %v409
      %v411 = vrot.slane %v410, 4
      %v413 = vshll.u32 %v301, 16
      %v415 = vrot.slane %v413, 5
      %v416 = vsel %vm304, %v411, %v415
      %vm433 = vcmask 1042432
      %vm434 = vcmask 1046532
      %vm435 = vmor %vm433, %vm434
      %v436 = vrot.slane %v286, 5
      %v437 = vrot.slane %v436, 4
      %v438 = vrot.slane %v287, 5
      %v439 = vsel %vm435, %v437, %v438
      %v440 = vrot.slane %v288, 5
      %v441 = vrot.slane %v440, 4
      %v442 = vrot.slane %v289, 5
      %v443 = vsel %vm435, %v441, %v442
      %v444 = vrot.slane %v290, 5
      %v445 = vrot.slane %v444, 4
      %v446 = vrot.slane %v291, 5
      %v447 = vsel %vm435, %v445, %v446
      %v448 = vrot.slane %v292, 5
      %v449 = vrot.slane %v448, 4
      %v450 = vrot.slane %v293, 5
      %v451 = vsel %vm435, %v449, %v450
      %v452 = vrot.slane %v294, 5
      %v453 = vrot.slane %v452, 4
      %v454 = vrot.slane %v295, 5
      %v455 = vsel %vm435, %v453, %v454
      %v456 = vrot.slane %v296, 5
      %v457 = vrot.slane %v456, 4
      %v458 = vrot.slane %v297, 5
      %v459 = vsel %vm435, %v457, %v458
      %v460 = vrot.slane %v298, 5
      %v461 = vrot.slane %v460, 4
      %v462 = vrot.slane %v299, 5
      %v463 = vsel %vm435, %v461, %v462
      %v464 = vrot.slane %v300, 5
      %v465 = vrot.slane %v464, 4
      %v466 = vrot.slane %v301, 5
      %v467 = vsel %vm435, %v465, %v466
      %v468 = vunpack.c.l.b16 %v286
      %v469 = vunpack.c.l.b16 %v288
      %v470 = vunpack.c.l.b16 %v290
      %v471 = vunpack.c.l.b16 %v292
      %v472 = vunpack.c.l.b16 %v294
      %v473 = vunpack.c.l.b16 %v296
      %v474 = vunpack.c.l.b16 %v298
      %v475 = vunpack.c.l.b16 %v300
      %v476 = vpack.c.b16 %v469, %v468
      %v477 = vpack.c.b16 %v471, %v470
      %v478 = vpack.c.b16 %v473, %v472
      %v479 = vpack.c.b16 %v475, %v474
      %v484 = vunpack.c.l.b16 %v318
      %v485 = vunpack.c.l.b16 %v332
      %v486 = vunpack.c.l.b16 %v346
      %v487 = vunpack.c.l.b16 %v360
      %v488 = vunpack.c.l.b16 %v374
      %v489 = vunpack.c.l.b16 %v388
      %v490 = vunpack.c.l.b16 %v402
      %v491 = vunpack.c.l.b16 %v416
      %v492 = vpack.c.b16 %v485, %v484
      %v493 = vpack.c.b16 %v487, %v486
      %v494 = vpack.c.b16 %v489, %v488
      %v495 = vpack.c.b16 %v491, %v490
      %v500 = vunpack.c.l.b16 %v439
      %v501 = vunpack.c.l.b16 %v443
      %v502 = vunpack.c.l.b16 %v447
      %v503 = vunpack.c.l.b16 %v451
      %v504 = vunpack.c.l.b16 %v455
      %v505 = vunpack.c.l.b16 %v459
      %v506 = vunpack.c.l.b16 %v463
      %v507 = vunpack.c.l.b16 %v467
      %v508 = vpack.c.b16 %v501, %v500
      %v509 = vpack.c.b16 %v503, %v502
      %v510 = vpack.c.b16 %v505, %v504
      %v511 = vpack.c.b16 %v507, %v506
      %v516 = vld [vmem:[%s1] sm:$0xff]
      %v517 = vld [vmem:[%s1 + $0x8] sm:$0xff]
      %v518 = vld [vmem:[%s1 + $0x10] sm:$0xff]
      %v519 = vld [vmem:[%s1 + $0x18] sm:$0xff]
      %v520 = vld [vmem:[%s1 + $0x20] sm:$0xff]
      %v521 = vld [vmem:[%s1 + $0x28] sm:$0xff]
      %v522 = vld [vmem:[%s1 + $0x30] sm:$0xff]
      %v523 = vld [vmem:[%s1 + $0x38] sm:$0xff]
      %v524 = vld [vmem:[%s1 + $0x40] sm:$0xff]
      %v525 = vld [vmem:[%s1 + $0x48] sm:$0xff]
      %v526 = vld [vmem:[%s1 + $0x50] sm:$0xff]
      %v527 = vld [vmem:[%s1 + $0x58] sm:$0xff]
      %v528 = vld [vmem:[%s1 + $0x60] sm:$0xff]
      %v529 = vld [vmem:[%s1 + $0x68] sm:$0xff]
      %v530 = vld [vmem:[%s1 + $0x70] sm:$0xff]
      %v531 = vld [vmem:[%s1 + $0x78] sm:$0xff]
      %v532 = vld [vmem:[%s1 + $0x80] sm:$0xff]
      %v533 = vld [vmem:[%s1 + $0x88] sm:$0xff]
      %v534 = vld [vmem:[%s1 + $0x90] sm:$0xff]
      %v535 = vld [vmem:[%s1 + $0x98] sm:$0xff]
      %v536 = vld [vmem:[%s1 + $0xa0] sm:$0xff]
      %v537 = vld [vmem:[%s1 + $0xa8] sm:$0xff]
      %v538 = vld [vmem:[%s1 + $0xb0] sm:$0xff]
      %v539 = vld [vmem:[%s1 + $0xb8] sm:$0xff]
      %v540 = vld [vmem:[%s1 + $0xc0] sm:$0xff]
      %v541 = vld [vmem:[%s1 + $0xc8] sm:$0xff]
      %v542 = vld [vmem:[%s1 + $0xd0] sm:$0xff]
      %v543 = vld [vmem:[%s1 + $0xd8] sm:$0xff]
      %v544 = vld [vmem:[%s1 + $0xe0] sm:$0xff]
      %v545 = vld [vmem:[%s1 + $0xe8] sm:$0xff]
      %v546 = vld [vmem:[%s1 + $0xf0] sm:$0xff]
      %v547 = vld [vmem:[%s1 + $0xf8] sm:$0xff]
      %v548 = vld [vmem:[%s1 + $0x100] sm:$0xff]
      %v549 = vld [vmem:[%s1 + $0x108] sm:$0xff]
      %v550 = vld [vmem:[%s1 + $0x110] sm:$0xff]
      %v551 = vld [vmem:[%s1 + $0x118] sm:$0xff]
      %v552 = vld [vmem:[%s1 + $0x120] sm:$0xff]
      %v553 = vld [vmem:[%s1 + $0x128] sm:$0xff]
      %v554 = vld [vmem:[%s1 + $0x130] sm:$0xff]
      %v555 = vld [vmem:[%s1 + $0x138] sm:$0xff]
      %v556 = vld [vmem:[%s1 + $0x140] sm:$0xff]
      %v557 = vld [vmem:[%s1 + $0x148] sm:$0xff]
      %v558 = vld [vmem:[%s1 + $0x150] sm:$0xff]
      %v559 = vld [vmem:[%s1 + $0x158] sm:$0xff]
      %v560 = vld [vmem:[%s1 + $0x160] sm:$0xff]
      %v561 = vld [vmem:[%s1 + $0x168] sm:$0xff]
      %v562 = vld [vmem:[%s1 + $0x170] sm:$0xff]
      %v563 = vld [vmem:[%s1 + $0x178] sm:$0xff]
      %v564 = vld [vmem:[%s1 + $0x180] sm:$0xff]
      %v565 = vld [vmem:[%s1 + $0x188] sm:$0xff]
      %v566 = vld [vmem:[%s1 + $0x190] sm:$0xff]
      %v567 = vld [vmem:[%s1 + $0x198] sm:$0xff]
      %v568 = vld [vmem:[%s1 + $0x1a0] sm:$0xff]
      %v569 = vld [vmem:[%s1 + $0x1a8] sm:$0xff]
      %v570 = vld [vmem:[%s1 + $0x1b0] sm:$0xff]
      %v571 = vld [vmem:[%s1 + $0x1b8] sm:$0xff]
      %v572 = vld [vmem:[%s1 + $0x1c0] sm:$0xff]
      %v573 = vld [vmem:[%s1 + $0x1c8] sm:$0xff]
      %v574 = vld [vmem:[%s1 + $0x1d0] sm:$0xff]
      %v575 = vld [vmem:[%s1 + $0x1d8] sm:$0xff]
      %v576 = vld [vmem:[%s1 + $0x1e0] sm:$0xff]
      %v577 = vld [vmem:[%s1 + $0x1e8] sm:$0xff]
      %v578 = vld [vmem:[%s1 + $0x1f0] sm:$0xff]
      %v579 = vld [vmem:[%s1 + $0x1f8] sm:$0xff]
      %v580 = vld [vmem:[%s1 + $0x200] sm:$0xff]
      %v581 = vld [vmem:[%s1 + $0x208] sm:$0xff]
      %v582 = vld [vmem:[%s1 + $0x210] sm:$0xff]
      %v583 = vld [vmem:[%s1 + $0x218] sm:$0xff]
      %v584 = vld [vmem:[%s1 + $0x220] sm:$0xff]
      %v585 = vld [vmem:[%s1 + $0x228] sm:$0xff]
      %v586 = vld [vmem:[%s1 + $0x230] sm:$0xff]
      %v587 = vld [vmem:[%s1 + $0x238] sm:$0xff]
      %v588 = vld [vmem:[%s1 + $0x240] sm:$0xff]
      %v589 = vld [vmem:[%s1 + $0x248] sm:$0xff]
      %v590 = vld [vmem:[%s1 + $0x250] sm:$0xff]
      %v591 = vld [vmem:[%s1 + $0x258] sm:$0xff]
      %v592 = vld [vmem:[%s1 + $0x260] sm:$0xff]
      %v593 = vld [vmem:[%s1 + $0x268] sm:$0xff]
      %v594 = vld [vmem:[%s1 + $0x270] sm:$0xff]
      %v595 = vld [vmem:[%s1 + $0x278] sm:$0xff]
      %v596 = vld [vmem:[%s1 + $0x280] sm:$0xff]
      %v597 = vld [vmem:[%s1 + $0x288] sm:$0xff]
      %v598 = vld [vmem:[%s1 + $0x290] sm:$0xff]
      %v599 = vld [vmem:[%s1 + $0x298] sm:$0xff]
      %v600 = vld [vmem:[%s1 + $0x2a0] sm:$0xff]
      %v601 = vld [vmem:[%s1 + $0x2a8] sm:$0xff]
      %v602 = vld [vmem:[%s1 + $0x2b0] sm:$0xff]
      %v603 = vld [vmem:[%s1 + $0x2b8] sm:$0xff]
      %v604 = vld [vmem:[%s1 + $0x2c0] sm:$0xff]
      %v605 = vld [vmem:[%s1 + $0x2c8] sm:$0xff]
      %v606 = vld [vmem:[%s1 + $0x2d0] sm:$0xff]
      %v607 = vld [vmem:[%s1 + $0x2d8] sm:$0xff]
      %v608 = vld [vmem:[%s1 + $0x2e0] sm:$0xff]
      %v609 = vld [vmem:[%s1 + $0x2e8] sm:$0xff]
      %v610 = vld [vmem:[%s1 + $0x2f0] sm:$0xff]
      %v611 = vld [vmem:[%s1 + $0x2f8] sm:$0xff]
      %v612 = vld [vmem:[%s2] sm:$0xf]
      %v614 = vlaneseq
      %v615 = vshrl.u32 %v614, 7
      %v616 = vsub.s32 0, %v615
      %v617 = vrot.slane %v612, %v616
      %v618 = vlaneseq
      %v619 = vshrl.u32 %v618, 7
      %v620 = vsub.s32 1, %v619
      %v621 = vrot.slane %v612, %v620
      %v622 = vlaneseq
      %v623 = vshrl.u32 %v622, 7
      %v624 = vsub.s32 2, %v623
      %v625 = vrot.slane %v612, %v624
      %v626 = vlaneseq
      %v627 = vshrl.u32 %v626, 7
      %v628 = vsub.s32 3, %v627
      %v629 = vrot.slane %v612, %v628
      %v730 = vunpack.c.l.b16 %v516
      %v731 = vunpack.c.h.b16 %v516
      %v732 = vunpack.c.l.b16 %v517
      %v733 = vunpack.c.h.b16 %v517
      %v734 = vunpack.c.l.b16 %v518
      %v735 = vunpack.c.h.b16 %v518
      %v736 = vunpack.c.l.b16 %v519
      %v737 = vunpack.c.h.b16 %v519
      %v738 = vunpack.c.l.b16 %v520
      %v739 = vunpack.c.h.b16 %v520
      %v740 = vunpack.c.l.b16 %v521
      %v741 = vunpack.c.h.b16 %v521
      %v742 = vunpack.c.l.b16 %v522
      %v743 = vunpack.c.h.b16 %v522
      %v744 = vunpack.c.l.b16 %v523
      %v745 = vunpack.c.h.b16 %v523
      %v746 = vunpack.c.l.b16 %v524
      %v747 = vunpack.c.h.b16 %v524
      %v748 = vunpack.c.l.b16 %v525
      %v749 = vunpack.c.h.b16 %v525
      %v750 = vunpack.c.l.b16 %v526
      %v751 = vunpack.c.h.b16 %v526
      %v752 = vunpack.c.l.b16 %v527
      %v753 = vunpack.c.h.b16 %v527
      %v754 = vunpack.c.l.b16 %v528
      %v755 = vunpack.c.h.b16 %v528
      %v756 = vunpack.c.l.b16 %v529
      %v757 = vunpack.c.h.b16 %v529
      %v758 = vunpack.c.l.b16 %v530
      %v759 = vunpack.c.h.b16 %v530
      %v760 = vunpack.c.l.b16 %v531
      %v761 = vunpack.c.h.b16 %v531
      %v762 = vunpack.c.l.b16 %v532
      %v763 = vunpack.c.h.b16 %v532
      %v764 = vunpack.c.l.b16 %v533
      %v765 = vunpack.c.h.b16 %v533
      %v766 = vunpack.c.l.b16 %v534
      %v767 = vunpack.c.h.b16 %v534
      %v768 = vunpack.c.l.b16 %v535
      %v769 = vunpack.c.h.b16 %v535
      %v770 = vunpack.c.l.b16 %v536
      %v771 = vunpack.c.h.b16 %v536
      %v772 = vunpack.c.l.b16 %v537
      %v773 = vunpack.c.h.b16 %v537
      %v774 = vunpack.c.l.b16 %v538
      %v775 = vunpack.c.h.b16 %v538
      %v776 = vunpack.c.l.b16 %v539
      %v777 = vunpack.c.h.b16 %v539
      %v778 = vunpack.c.l.b16 %v540
      %v779 = vunpack.c.h.b16 %v540
      %v780 = vunpack.c.l.b16 %v541
      %v781 = vunpack.c.h.b16 %v541
      %v782 = vunpack.c.l.b16 %v542
      %v783 = vunpack.c.h.b16 %v542
      %v784 = vunpack.c.l.b16 %v543
      %v785 = vunpack.c.h.b16 %v543
      %v786 = vunpack.c.l.b16 %v544
      %v787 = vunpack.c.h.b16 %v544
      %v788 = vunpack.c.l.b16 %v545
      %v789 = vunpack.c.h.b16 %v545
      %v790 = vunpack.c.l.b16 %v546
      %v791 = vunpack.c.h.b16 %v546
      %v792 = vunpack.c.l.b16 %v547
      %v793 = vunpack.c.h.b16 %v547
      %v794 = vunpack.c.l.b16 %v548
      %v795 = vunpack.c.h.b16 %v548
      %v796 = vunpack.c.l.b16 %v549
      %v797 = vunpack.c.h.b16 %v549
      %v798 = vunpack.c.l.b16 %v550
      %v799 = vunpack.c.h.b16 %v550
      %v800 = vunpack.c.l.b16 %v551
      %v801 = vunpack.c.h.b16 %v551
      %v802 = vunpack.c.l.b16 %v552
      %v803 = vunpack.c.h.b16 %v552
      %v804 = vunpack.c.l.b16 %v553
      %v805 = vunpack.c.h.b16 %v553
      %v806 = vunpack.c.l.b16 %v554
      %v807 = vunpack.c.h.b16 %v554
      %v808 = vunpack.c.l.b16 %v555
      %v809 = vunpack.c.h.b16 %v555
      %v810 = vunpack.c.l.b16 %v556
      %v811 = vunpack.c.h.b16 %v556
      %v812 = vunpack.c.l.b16 %v557
      %v813 = vunpack.c.h.b16 %v557
      %v814 = vunpack.c.l.b16 %v558
      %v815 = vunpack.c.h.b16 %v558
      %v816 = vunpack.c.l.b16 %v559
      %v817 = vunpack.c.h.b16 %v559
      %v818 = vunpack.c.l.b16 %v560
      %v819 = vunpack.c.h.b16 %v560
      %v820 = vunpack.c.l.b16 %v561
      %v821 = vunpack.c.h.b16 %v561
      %v822 = vunpack.c.l.b16 %v562
      %v823 = vunpack.c.h.b16 %v562
      %v824 = vunpack.c.l.b16 %v563
      %v825 = vunpack.c.h.b16 %v563
      %v826 = vunpack.c.l.b16 %v564
      %v827 = vunpack.c.h.b16 %v564
      %v828 = vunpack.c.l.b16 %v565
      %v829 = vunpack.c.h.b16 %v565
      %v830 = vunpack.c.l.b16 %v566
      %v831 = vunpack.c.h.b16 %v566
      %v832 = vunpack.c.l.b16 %v567
      %v833 = vunpack.c.h.b16 %v567
      %v834 = vunpack.c.l.b16 %v568
      %v835 = vunpack.c.h.b16 %v568
      %v836 = vunpack.c.l.b16 %v569
      %v837 = vunpack.c.h.b16 %v569
      %v838 = vunpack.c.l.b16 %v570
      %v839 = vunpack.c.h.b16 %v570
      %v840 = vunpack.c.l.b16 %v571
      %v841 = vunpack.c.h.b16 %v571
      %v842 = vunpack.c.l.b16 %v572
      %v843 = vunpack.c.h.b16 %v572
      %v844 = vunpack.c.l.b16 %v573
      %v845 = vunpack.c.h.b16 %v573
      %v846 = vunpack.c.l.b16 %v574
      %v847 = vunpack.c.h.b16 %v574
      %v848 = vunpack.c.l.b16 %v575
      %v849 = vunpack.c.h.b16 %v575
      %v850 = vunpack.c.l.b16 %v576
      %v851 = vunpack.c.h.b16 %v576
      %v852 = vunpack.c.l.b16 %v577
      %v853 = vunpack.c.h.b16 %v577
      %v854 = vunpack.c.l.b16 %v578
      %v855 = vunpack.c.h.b16 %v578
      %v856 = vunpack.c.l.b16 %v579
      %v857 = vunpack.c.h.b16 %v579
      %v858 = vunpack.c.l.b16 %v580
      %v859 = vunpack.c.h.b16 %v580
      %v860 = vunpack.c.l.b16 %v581
      %v861 = vunpack.c.h.b16 %v581
      %v862 = vunpack.c.l.b16 %v582
      %v863 = vunpack.c.h.b16 %v582
      %v864 = vunpack.c.l.b16 %v583
      %v865 = vunpack.c.h.b16 %v583
      %v866 = vunpack.c.l.b16 %v584
      %v867 = vunpack.c.h.b16 %v584
      %v868 = vunpack.c.l.b16 %v585
      %v869 = vunpack.c.h.b16 %v585
      %v870 = vunpack.c.l.b16 %v586
      %v871 = vunpack.c.h.b16 %v586
      %v872 = vunpack.c.l.b16 %v587
      %v873 = vunpack.c.h.b16 %v587
      %v874 = vunpack.c.l.b16 %v588
      %v875 = vunpack.c.h.b16 %v588
      %v876 = vunpack.c.l.b16 %v589
      %v877 = vunpack.c.h.b16 %v589
      %v878 = vunpack.c.l.b16 %v590
      %v879 = vunpack.c.h.b16 %v590
      %v880 = vunpack.c.l.b16 %v591
      %v881 = vunpack.c.h.b16 %v591
      %v882 = vunpack.c.l.b16 %v592
      %v883 = vunpack.c.h.b16 %v592
      %v884 = vunpack.c.l.b16 %v593
      %v885 = vunpack.c.h.b16 %v593
      %v886 = vunpack.c.l.b16 %v594
      %v887 = vunpack.c.h.b16 %v594
      %v888 = vunpack.c.l.b16 %v595
      %v889 = vunpack.c.h.b16 %v595
      %v890 = vunpack.c.l.b16 %v596
      %v891 = vunpack.c.h.b16 %v596
      %v892 = vunpack.c.l.b16 %v597
      %v893 = vunpack.c.h.b16 %v597
      %v894 = vunpack.c.l.b16 %v598
      %v895 = vunpack.c.h.b16 %v598
      %v896 = vunpack.c.l.b16 %v599
      %v897 = vunpack.c.h.b16 %v599
      %v898 = vunpack.c.l.b16 %v600
      %v899 = vunpack.c.h.b16 %v600
      %v900 = vunpack.c.l.b16 %v601
      %v901 = vunpack.c.h.b16 %v601
      %v902 = vunpack.c.l.b16 %v602
      %v903 = vunpack.c.h.b16 %v602
      %v904 = vunpack.c.l.b16 %v603
      %v905 = vunpack.c.h.b16 %v603
      %v906 = vunpack.c.l.b16 %v604
      %v907 = vunpack.c.h.b16 %v604
      %v908 = vunpack.c.l.b16 %v605
      %v909 = vunpack.c.h.b16 %v605
      %v910 = vunpack.c.l.b16 %v606
      %v911 = vunpack.c.h.b16 %v606
      %v912 = vunpack.c.l.b16 %v607
      %v913 = vunpack.c.h.b16 %v607
      %v914 = vunpack.c.l.b16 %v608
      %v915 = vunpack.c.h.b16 %v608
      %v916 = vunpack.c.l.b16 %v609
      %v917 = vunpack.c.h.b16 %v609
      %v918 = vunpack.c.l.b16 %v610
      %v919 = vunpack.c.h.b16 %v610
      %v920 = vunpack.c.l.b16 %v611
      %v921 = vunpack.c.h.b16 %v611
      %v922 = vpack.c.b16 %v734, %v730
      %v923 = vpack.c.b16 %v735, %v731
      %v924 = vpack.c.b16 %v736, %v732
      %v925 = vpack.c.b16 %v737, %v733
      %v926 = vpack.c.b16 %v742, %v738
      %v927 = vpack.c.b16 %v743, %v739
      %v928 = vpack.c.b16 %v744, %v740
      %v929 = vpack.c.b16 %v745, %v741
      %v930 = vpack.c.b16 %v750, %v746
      %v931 = vpack.c.b16 %v751, %v747
      %v932 = vpack.c.b16 %v752, %v748
      %v933 = vpack.c.b16 %v753, %v749
      %v934 = vpack.c.b16 %v758, %v754
      %v935 = vpack.c.b16 %v759, %v755
      %v936 = vpack.c.b16 %v760, %v756
      %v937 = vpack.c.b16 %v761, %v757
      %v938 = vpack.c.b16 %v766, %v762
      %v939 = vpack.c.b16 %v767, %v763
      %v940 = vpack.c.b16 %v768, %v764
      %v941 = vpack.c.b16 %v769, %v765
      %v942 = vpack.c.b16 %v774, %v770
      %v943 = vpack.c.b16 %v775, %v771
      %v944 = vpack.c.b16 %v776, %v772
      %v945 = vpack.c.b16 %v777, %v773
      %v946 = vpack.c.b16 %v782, %v778
      %v947 = vpack.c.b16 %v783, %v779
      %v948 = vpack.c.b16 %v784, %v780
      %v949 = vpack.c.b16 %v785, %v781
      %v950 = vpack.c.b16 %v790, %v786
      %v951 = vpack.c.b16 %v791, %v787
      %v952 = vpack.c.b16 %v792, %v788
      %v953 = vpack.c.b16 %v793, %v789
      %v954 = vpack.c.b16 %v798, %v794
      %v955 = vpack.c.b16 %v799, %v795
      %v956 = vpack.c.b16 %v800, %v796
      %v957 = vpack.c.b16 %v801, %v797
      %v958 = vpack.c.b16 %v806, %v802
      %v959 = vpack.c.b16 %v807, %v803
      %v960 = vpack.c.b16 %v808, %v804
      %v961 = vpack.c.b16 %v809, %v805
      %v962 = vpack.c.b16 %v814, %v810
      %v963 = vpack.c.b16 %v815, %v811
      %v964 = vpack.c.b16 %v816, %v812
      %v965 = vpack.c.b16 %v817, %v813
      %v966 = vpack.c.b16 %v822, %v818
      %v967 = vpack.c.b16 %v823, %v819
      %v968 = vpack.c.b16 %v824, %v820
      %v969 = vpack.c.b16 %v825, %v821
      %v970 = vpack.c.b16 %v830, %v826
      %v971 = vpack.c.b16 %v831, %v827
      %v972 = vpack.c.b16 %v832, %v828
      %v973 = vpack.c.b16 %v833, %v829
      %v974 = vpack.c.b16 %v838, %v834
      %v975 = vpack.c.b16 %v839, %v835
      %v976 = vpack.c.b16 %v840, %v836
      %v977 = vpack.c.b16 %v841, %v837
      %v978 = vpack.c.b16 %v846, %v842
      %v979 = vpack.c.b16 %v847, %v843
      %v980 = vpack.c.b16 %v848, %v844
      %v981 = vpack.c.b16 %v849, %v845
      %v982 = vpack.c.b16 %v854, %v850
      %v983 = vpack.c.b16 %v855, %v851
      %v984 = vpack.c.b16 %v856, %v852
      %v985 = vpack.c.b16 %v857, %v853
      %v986 = vpack.c.b16 %v862, %v858
      %v987 = vpack.c.b16 %v863, %v859
      %v988 = vpack.c.b16 %v864, %v860
      %v989 = vpack.c.b16 %v865, %v861
      %v990 = vpack.c.b16 %v870, %v866
      %v991 = vpack.c.b16 %v871, %v867
      %v992 = vpack.c.b16 %v872, %v868
      %v993 = vpack.c.b16 %v873, %v869
      %v994 = vpack.c.b16 %v878, %v874
      %v995 = vpack.c.b16 %v879, %v875
      %v996 = vpack.c.b16 %v880, %v876
      %v997 = vpack.c.b16 %v881, %v877
      %v998 = vpack.c.b16 %v886, %v882
      %v999 = vpack.c.b16 %v887, %v883
      %v1000 = vpack.c.b16 %v888, %v884
      %v1001 = vpack.c.b16 %v889, %v885
      %v1002 = vpack.c.b16 %v894, %v890
      %v1003 = vpack.c.b16 %v895, %v891
      %v1004 = vpack.c.b16 %v896, %v892
      %v1005 = vpack.c.b16 %v897, %v893
      %v1006 = vpack.c.b16 %v902, %v898
      %v1007 = vpack.c.b16 %v903, %v899
      %v1008 = vpack.c.b16 %v904, %v900
      %v1009 = vpack.c.b16 %v905, %v901
      %v1010 = vpack.c.b16 %v910, %v906
      %v1011 = vpack.c.b16 %v911, %v907
      %v1012 = vpack.c.b16 %v912, %v908
      %v1013 = vpack.c.b16 %v913, %v909
      %v1014 = vpack.c.b16 %v918, %v914
      %v1015 = vpack.c.b16 %v919, %v915
      %v1016 = vpack.c.b16 %v920, %v916
      %v1017 = vpack.c.b16 %v921, %v917
      %1114 = vmatprep.subr.bf16.mxu0 %v951
      %1115 = vmatpush1.bf16.msra.mxu0 %v950
      %1116 = vmatprep.subr.bf16.mxu0 %v947
      %1117 = vmatpush1.bf16.msra.mxu0 %v946
      %1118 = vmatprep.subr.bf16.mxu0 %v943
      %1119 = vmatpush1.bf16.msra.mxu0 %v942
      %1120 = vmatprep.subr.bf16.mxu0 %v939
      %1121 = vmatpush1.bf16.msra.mxu0 %v938
      %1122 = vmatprep.subr.bf16.mxu0 %v935
      %1123 = vmatpush1.bf16.msra.mxu0 %v934
      %1124 = vmatprep.subr.bf16.mxu0 %v931
      %1125 = vmatpush1.bf16.msra.mxu0 %v930
      %1126 = vmatprep.subr.bf16.mxu0 %v927
      %1127 = vmatpush1.bf16.msra.mxu0 %v926
      %1128 = vmatprep.subr.bf16.mxu0 %v923
      %1129 = vmatpush1.bf16.msra.mxu0 %v922
      %1130 = vmatprep.subr.bf16.mxu0 %v983
      %1131 = vmatpush2.bf16.msra.mxu0 %v982
      %1132 = vmatprep.subr.bf16.mxu0 %v979
      %1133 = vmatpush2.bf16.msra.mxu0 %v978
      %1134 = vmatprep.subr.bf16.mxu0 %v975
      %1135 = vmatpush2.bf16.msra.mxu0 %v974
      %1136 = vmatprep.subr.bf16.mxu0 %v971
      %1137 = vmatpush2.bf16.msra.mxu0 %v970
      %1138 = vmatprep.subr.bf16.mxu0 %v967
      %1139 = vmatpush2.bf16.msra.mxu0 %v966
      %1140 = vmatprep.subr.bf16.mxu0 %v963
      %1141 = vmatpush2.bf16.msra.mxu0 %v962
      %1142 = vmatprep.subr.bf16.mxu0 %v959
      %1143 = vmatpush2.bf16.msra.mxu0 %v958
      %1144 = vmatprep.subr.bf16.mxu0 %v955
      %1145 = vmatpush2.bf16.msra.mxu0 %v954
      %1146 = vmatprep.mubr.bf16.mxu0 %v492
      %1147 = vmatmul.mubr.bf16.gmra.mxu0 %v476
      %v1148 = vpop.f32.mrf.mxu0
      %v1149 = vadd.f32 %v617, %v1148
      %v1150 = vpop.f32.mrf.mxu0
      %v1151 = vadd.f32 %v621, %v1150
      %v1152 = vpop.f32.mrf.mxu0
      %v1153 = vadd.f32 %v617, %v1152
      %v1154 = vpop.f32.mrf.mxu0
      %v1155 = vadd.f32 %v621, %v1154
      %1156 = vmatprep.mubr.bf16.mxu0 %v493
      %1157 = vmatmul.mubr.bf16.gmra.mxu0 %v477
      %v1158 = vpop.f32.mrf.mxu0
      %v1159 = vadd.f32 %v617, %v1158
      %v1160 = vpop.f32.mrf.mxu0
      %v1161 = vadd.f32 %v621, %v1160
      %v1162 = vpop.f32.mrf.mxu0
      %v1163 = vadd.f32 %v617, %v1162
      %v1164 = vpop.f32.mrf.mxu0
      %v1165 = vadd.f32 %v621, %v1164
      %1166 = vmatprep.mubr.bf16.mxu0 %v494
      %1167 = vmatmul.mubr.bf16.gmra.mxu0 %v478
      %v1168 = vpop.f32.mrf.mxu0
      %v1169 = vadd.f32 %v617, %v1168
      %v1170 = vpop.f32.mrf.mxu0
      %v1171 = vadd.f32 %v621, %v1170
      %v1172 = vpop.f32.mrf.mxu0
      %v1173 = vadd.f32 %v617, %v1172
      %v1174 = vpop.f32.mrf.mxu0
      %v1175 = vadd.f32 %v621, %v1174
      %1176 = vmatprep.mubr.bf16.mxu0 %v495
      %1177 = vmatmul.mubr.bf16.gmra.mxu0 %v479
      %v1178 = vpop.f32.mrf.mxu0
      %v1179 = vadd.f32 %v617, %v1178
      %v1180 = vpop.f32.mrf.mxu0
      %v1181 = vadd.f32 %v621, %v1180
      %v1182 = vpop.f32.mrf.mxu0
      %v1183 = vadd.f32 %v617, %v1182
      %v1184 = vpop.f32.mrf.mxu0
      %v1185 = vadd.f32 %v621, %v1184
      %1186 = vdwg.mxu0
      %1187 = vmatprep.subr.bf16.mxu0 %v1015
      %1188 = vmatpush1.bf16.msra.mxu0 %v1014
      %1189 = vmatprep.subr.bf16.mxu0 %v1011
      %1190 = vmatpush1.bf16.msra.mxu0 %v1010
      %1191 = vmatprep.subr.bf16.mxu0 %v1007
      %1192 = vmatpush1.bf16.msra.mxu0 %v1006
      %1193 = vmatprep.subr.bf16.mxu0 %v1003
      %1194 = vmatpush1.bf16.msra.mxu0 %v1002
      %1195 = vmatprep.subr.bf16.mxu0 %v999
      %1196 = vmatpush1.bf16.msra.mxu0 %v998
      %1197 = vmatprep.subr.bf16.mxu0 %v995
      %1198 = vmatpush1.bf16.msra.mxu0 %v994
      %1199 = vmatprep.subr.bf16.mxu0 %v991
      %1200 = vmatpush1.bf16.msra.mxu0 %v990
      %1201 = vmatprep.subr.bf16.mxu0 %v987
      %1202 = vmatpush1.bf16.msra.mxu0 %v986
      %1203 = vmatprep.subr.bf16.mxu0 0
      %1204 = vmatpush2.bf16.msra.mxu0 0
      %1205 = vmatprep.subr.bf16.mxu0 0
      %1206 = vmatpush2.bf16.msra.mxu0 0
      %1207 = vmatprep.subr.bf16.mxu0 0
      %1208 = vmatpush2.bf16.msra.mxu0 0
      %1209 = vmatprep.subr.bf16.mxu0 0
      %1210 = vmatpush2.bf16.msra.mxu0 0
      %1211 = vmatprep.subr.bf16.mxu0 0
      %1212 = vmatpush2.bf16.msra.mxu0 0
      %1213 = vmatprep.subr.bf16.mxu0 0
      %1214 = vmatpush2.bf16.msra.mxu0 0
      %1215 = vmatprep.subr.bf16.mxu0 0
      %1216 = vmatpush2.bf16.msra.mxu0 0
      %1217 = vmatprep.subr.bf16.mxu0 0
      %1218 = vmatpush2.bf16.msra.mxu0 0
      %1219 = vmatprep.mubr.bf16.mxu0 0
      %1220 = vmatmul.mubr.bf16.gmra.mxu0 %v508
      %v1221 = vpop.f32.mrf.mxu0
      %v1222 = vadd.f32 %v1149, %v1221
      %v1223 = vpop.f32.mrf.mxu0
      %v1224 = vadd.f32 %v1151, %v1223
      %v1225 = vpop.f32.mrf.mxu0
      %v1226 = vadd.f32 %v1153, %v1225
      %v1227 = vpop.f32.mrf.mxu0
      %v1228 = vadd.f32 %v1155, %v1227
      %1229 = vmatprep.mubr.bf16.mxu0 0
      %1230 = vmatmul.mubr.bf16.gmra.mxu0 %v509
      %v1231 = vpop.f32.mrf.mxu0
      %v1232 = vadd.f32 %v1159, %v1231
      %v1233 = vpop.f32.mrf.mxu0
      %v1234 = vadd.f32 %v1161, %v1233
      %v1235 = vpop.f32.mrf.mxu0
      %v1236 = vadd.f32 %v1163, %v1235
      %v1237 = vpop.f32.mrf.mxu0
      %v1238 = vadd.f32 %v1165, %v1237
      %1239 = vmatprep.mubr.bf16.mxu0 0
      %1240 = vmatmul.mubr.bf16.gmra.mxu0 %v510
      %v1241 = vpop.f32.mrf.mxu0
      %v1242 = vadd.f32 %v1169, %v1241
      %v1243 = vpop.f32.mrf.mxu0
      %v1244 = vadd.f32 %v1171, %v1243
      %v1245 = vpop.f32.mrf.mxu0
      %v1246 = vadd.f32 %v1173, %v1245
      %v1247 = vpop.f32.mrf.mxu0
      %v1248 = vadd.f32 %v1175, %v1247
      %1249 = vmatprep.mubr.bf16.mxu0 0
      %1250 = vmatmul.mubr.bf16.gmra.mxu0 %v511
      %v1251 = vpop.f32.mrf.mxu0
      %v1252 = vadd.f32 %v1179, %v1251
      %v1253 = vpop.f32.mrf.mxu0
      %v1254 = vadd.f32 %v1181, %v1253
      %v1255 = vpop.f32.mrf.mxu0
      %v1256 = vadd.f32 %v1183, %v1255
      %v1257 = vpop.f32.mrf.mxu0
      %v1258 = vadd.f32 %v1185, %v1257
      %1259 = vdwg.mxu0
      %1260 = vmatprep.subr.bf16.mxu0 %v953
      %1261 = vmatpush1.bf16.msra.mxu0 %v952
      %1262 = vmatprep.subr.bf16.mxu0 %v949
      %1263 = vmatpush1.bf16.msra.mxu0 %v948
      %1264 = vmatprep.subr.bf16.mxu0 %v945
      %1265 = vmatpush1.bf16.msra.mxu0 %v944
      %1266 = vmatprep.subr.bf16.mxu0 %v941
      %1267 = vmatpush1.bf16.msra.mxu0 %v940
      %1268 = vmatprep.subr.bf16.mxu0 %v937
      %1269 = vmatpush1.bf16.msra.mxu0 %v936
      %1270 = vmatprep.subr.bf16.mxu0 %v933
      %1271 = vmatpush1.bf16.msra.mxu0 %v932
      %1272 = vmatprep.subr.bf16.mxu0 %v929
      %1273 = vmatpush1.bf16.msra.mxu0 %v928
      %1274 = vmatprep.subr.bf16.mxu0 %v925
      %1275 = vmatpush1.bf16.msra.mxu0 %v924
      %1276 = vmatprep.subr.bf16.mxu0 %v985
      %1277 = vmatpush2.bf16.msra.mxu0 %v984
      %1278 = vmatprep.subr.bf16.mxu0 %v981
      %1279 = vmatpush2.bf16.msra.mxu0 %v980
      %1280 = vmatprep.subr.bf16.mxu0 %v977
      %1281 = vmatpush2.bf16.msra.mxu0 %v976
      %1282 = vmatprep.subr.bf16.mxu0 %v973
      %1283 = vmatpush2.bf16.msra.mxu0 %v972
      %1284 = vmatprep.subr.bf16.mxu0 %v969
      %1285 = vmatpush2.bf16.msra.mxu0 %v968
      %1286 = vmatprep.subr.bf16.mxu0 %v965
      %1287 = vmatpush2.bf16.msra.mxu0 %v964
      %1288 = vmatprep.subr.bf16.mxu0 %v961
      %1289 = vmatpush2.bf16.msra.mxu0 %v960
      %1290 = vmatprep.subr.bf16.mxu0 %v957
      %1291 = vmatpush2.bf16.msra.mxu0 %v956
      %1292 = vmatprep.mubr.bf16.mxu0 %v492
      %1293 = vmatmul.mubr.bf16.gmra.mxu0 %v476
      %v1294 = vpop.f32.mrf.mxu0
      %v1295 = vadd.f32 %v625, %v1294
      %v1296 = vpop.f32.mrf.mxu0
      %v1297 = vadd.f32 %v629, %v1296
      %v1298 = vpop.f32.mrf.mxu0
      %v1299 = vadd.f32 %v625, %v1298
      %v1300 = vpop.f32.mrf.mxu0
      %v1301 = vadd.f32 %v629, %v1300
      %1302 = vmatprep.mubr.bf16.mxu0 %v493
      %1303 = vmatmul.mubr.bf16.gmra.mxu0 %v477
      %v1304 = vpop.f32.mrf.mxu0
      %v1305 = vadd.f32 %v625, %v1304
      %v1306 = vpop.f32.mrf.mxu0
      %v1307 = vadd.f32 %v629, %v1306
      %v1308 = vpop.f32.mrf.mxu0
      %v1309 = vadd.f32 %v625, %v1308
      %v1310 = vpop.f32.mrf.mxu0
      %v1311 = vadd.f32 %v629, %v1310
      %1312 = vmatprep.mubr.bf16.mxu0 %v494
      %1313 = vmatmul.mubr.bf16.gmra.mxu0 %v478
      %v1314 = vpop.f32.mrf.mxu0
      %v1315 = vadd.f32 %v625, %v1314
      %v1316 = vpop.f32.mrf.mxu0
      %v1317 = vadd.f32 %v629, %v1316
      %v1318 = vpop.f32.mrf.mxu0
      %v1319 = vadd.f32 %v625, %v1318
      %v1320 = vpop.f32.mrf.mxu0
      %v1321 = vadd.f32 %v629, %v1320
      %1322 = vmatprep.mubr.bf16.mxu0 %v495
      %1323 = vmatmul.mubr.bf16.gmra.mxu0 %v479
      %v1324 = vpop.f32.mrf.mxu0
      %v1325 = vadd.f32 %v625, %v1324
      %v1326 = vpop.f32.mrf.mxu0
      %v1327 = vadd.f32 %v629, %v1326
      %v1328 = vpop.f32.mrf.mxu0
      %v1329 = vadd.f32 %v625, %v1328
      %v1330 = vpop.f32.mrf.mxu0
      %v1331 = vadd.f32 %v629, %v1330
      %1332 = vdwg.mxu0
      %1333 = vmatprep.subr.bf16.mxu0 %v1017
      %1334 = vmatpush1.bf16.msra.mxu0 %v1016
      %1335 = vmatprep.subr.bf16.mxu0 %v1013
      %1336 = vmatpush1.bf16.msra.mxu0 %v1012
      %1337 = vmatprep.subr.bf16.mxu0 %v1009
      %1338 = vmatpush1.bf16.msra.mxu0 %v1008
      %1339 = vmatprep.subr.bf16.mxu0 %v1005
      %1340 = vmatpush1.bf16.msra.mxu0 %v1004
      %1341 = vmatprep.subr.bf16.mxu0 %v1001
      %1342 = vmatpush1.bf16.msra.mxu0 %v1000
      %1343 = vmatprep.subr.bf16.mxu0 %v997
      %1344 = vmatpush1.bf16.msra.mxu0 %v996
      %1345 = vmatprep.subr.bf16.mxu0 %v993
      %1346 = vmatpush1.bf16.msra.mxu0 %v992
      %1347 = vmatprep.subr.bf16.mxu0 %v989
      %1348 = vmatpush1.bf16.msra.mxu0 %v988
      %1349 = vmatprep.subr.bf16.mxu0 0
      %1350 = vmatpush2.bf16.msra.mxu0 0
      %1351 = vmatprep.subr.bf16.mxu0 0
      %1352 = vmatpush2.bf16.msra.mxu0 0
      %1353 = vmatprep.subr.bf16.mxu0 0
      %1354 = vmatpush2.bf16.msra.mxu0 0
      %1355 = vmatprep.subr.bf16.mxu0 0
      %1356 = vmatpush2.bf16.msra.mxu0 0
      %1357 = vmatprep.subr.bf16.mxu0 0
      %1358 = vmatpush2.bf16.msra.mxu0 0
      %1359 = vmatprep.subr.bf16.mxu0 0
      %1360 = vmatpush2.bf16.msra.mxu0 0
      %1361 = vmatprep.subr.bf16.mxu0 0
      %1362 = vmatpush2.bf16.msra.mxu0 0
      %1363 = vmatprep.subr.bf16.mxu0 0
      %1364 = vmatpush2.bf16.msra.mxu0 0
      %1365 = vmatprep.mubr.bf16.mxu0 0
      %1366 = vmatmul.mubr.bf16.gmra.mxu0 %v508
      %v1367 = vpop.f32.mrf.mxu0
      %v1368 = vadd.f32 %v1295, %v1367
      %v1369 = vpop.f32.mrf.mxu0
      %v1370 = vadd.f32 %v1297, %v1369
      %v1371 = vpop.f32.mrf.mxu0
      %v1372 = vadd.f32 %v1299, %v1371
      %v1373 = vpop.f32.mrf.mxu0
      %v1374 = vadd.f32 %v1301, %v1373
      %1375 = vmatprep.mubr.bf16.mxu0 0
      %1376 = vmatmul.mubr.bf16.gmra.mxu0 %v509
      %v1377 = vpop.f32.mrf.mxu0
      %v1378 = vadd.f32 %v1305, %v1377
      %v1379 = vpop.f32.mrf.mxu0
      %v1380 = vadd.f32 %v1307, %v1379
      %v1381 = vpop.f32.mrf.mxu0
      %v1382 = vadd.f32 %v1309, %v1381
      %v1383 = vpop.f32.mrf.mxu0
      %v1384 = vadd.f32 %v1311, %v1383
      %1385 = vmatprep.mubr.bf16.mxu0 0
      %1386 = vmatmul.mubr.bf16.gmra.mxu0 %v510
      %v1387 = vpop.f32.mrf.mxu0
      %v1388 = vadd.f32 %v1315, %v1387
      %v1389 = vpop.f32.mrf.mxu0
      %v1390 = vadd.f32 %v1317, %v1389
      %v1391 = vpop.f32.mrf.mxu0
      %v1392 = vadd.f32 %v1319, %v1391
      %v1393 = vpop.f32.mrf.mxu0
      %v1394 = vadd.f32 %v1321, %v1393
      %1395 = vmatprep.mubr.bf16.mxu0 0
      %1396 = vmatmul.mubr.bf16.gmra.mxu0 %v511
      %v1397 = vpop.f32.mrf.mxu0
      %v1398 = vadd.f32 %v1325, %v1397
      %v1399 = vpop.f32.mrf.mxu0
      %v1400 = vadd.f32 %v1327, %v1399
      %v1401 = vpop.f32.mrf.mxu0
      %v1402 = vadd.f32 %v1329, %v1401
      %v1403 = vpop.f32.mrf.mxu0
      %v1404 = vadd.f32 %v1331, %v1403
      %1405 = vdwg.mxu0
      %vm1406 = vcmp.ge.f32.partialorder %v1222, 0.0
      %vm1407 = vcmp.ge.f32.partialorder %v1224, 0.0
      %vm1408 = vcmp.ge.f32.partialorder %v1368, 0.0
      %vm1409 = vcmp.ge.f32.partialorder %v1370, 0.0
      %vm1410 = vcmp.ge.f32.partialorder %v1226, 0.0
      %vm1411 = vcmp.ge.f32.partialorder %v1228, 0.0
      %vm1412 = vcmp.ge.f32.partialorder %v1372, 0.0
      %vm1413 = vcmp.ge.f32.partialorder %v1374, 0.0
      %vm1414 = vcmp.ge.f32.partialorder %v1232, 0.0
      %vm1415 = vcmp.ge.f32.partialorder %v1234, 0.0
      %vm1416 = vcmp.ge.f32.partialorder %v1378, 0.0
      %vm1417 = vcmp.ge.f32.partialorder %v1380, 0.0
      %vm1418 = vcmp.ge.f32.partialorder %v1236, 0.0
      %vm1419 = vcmp.ge.f32.partialorder %v1238, 0.0
      %vm1420 = vcmp.ge.f32.partialorder %v1382, 0.0
      %vm1421 = vcmp.ge.f32.partialorder %v1384, 0.0
      %vm1422 = vcmp.ge.f32.partialorder %v1242, 0.0
      %vm1423 = vcmp.ge.f32.partialorder %v1244, 0.0
      %vm1424 = vcmp.ge.f32.partialorder %v1388, 0.0
      %vm1425 = vcmp.ge.f32.partialorder %v1390, 0.0
      %vm1426 = vcmp.ge.f32.partialorder %v1246, 0.0
      %vm1427 = vcmp.ge.f32.partialorder %v1248, 0.0
      %vm1428 = vcmp.ge.f32.partialorder %v1392, 0.0
      %vm1429 = vcmp.ge.f32.partialorder %v1394, 0.0
      %vm1430 = vcmp.ge.f32.partialorder %v1252, 0.0
      %vm1431 = vcmp.ge.f32.partialorder %v1254, 0.0
      %vm1432 = vcmp.ge.f32.partialorder %v1398, 0.0
      %vm1433 = vcmp.ge.f32.partialorder %v1400, 0.0
      %vm1434 = vcmp.ge.f32.partialorder %v1256, 0.0
      %vm1435 = vcmp.ge.f32.partialorder %v1258, 0.0
      %vm1436 = vcmp.ge.f32.partialorder %v1402, 0.0
      %vm1437 = vcmp.ge.f32.partialorder %v1404, 0.0
      %v1438 = vmul.f32 %v1222, 0.01
      %v1439 = vmul.f32 %v1224, 0.01
      %v1440 = vmul.f32 %v1368, 0.01
      %v1441 = vmul.f32 %v1370, 0.01
      %v1442 = vmul.f32 %v1226, 0.01
      %v1443 = vmul.f32 %v1228, 0.01
      %v1444 = vmul.f32 %v1372, 0.01
      %v1445 = vmul.f32 %v1374, 0.01
      %v1446 = vmul.f32 %v1232, 0.01
      %v1447 = vmul.f32 %v1234, 0.01
      %v1448 = vmul.f32 %v1378, 0.01
      %v1449 = vmul.f32 %v1380, 0.01
      %v1450 = vmul.f32 %v1236, 0.01
      %v1451 = vmul.f32 %v1238, 0.01
      %v1452 = vmul.f32 %v1382, 0.01
      %v1453 = vmul.f32 %v1384, 0.01
      %v1454 = vmul.f32 %v1242, 0.01
      %v1455 = vmul.f32 %v1244, 0.01
      %v1456 = vmul.f32 %v1388, 0.01
      %v1457 = vmul.f32 %v1390, 0.01
      %v1458 = vmul.f32 %v1246, 0.01
      %v1459 = vmul.f32 %v1248, 0.01
      %v1460 = vmul.f32 %v1392, 0.01
      %v1461 = vmul.f32 %v1394, 0.01
      %v1462 = vmul.f32 %v1252, 0.01
      %v1463 = vmul.f32 %v1254, 0.01
      %v1464 = vmul.f32 %v1398, 0.01
      %v1465 = vmul.f32 %v1400, 0.01
      %v1466 = vmul.f32 %v1256, 0.01
      %v1467 = vmul.f32 %v1258, 0.01
      %v1468 = vmul.f32 %v1402, 0.01
      %v1469 = vmul.f32 %v1404, 0.01
      %v1470 = vsel %vm1406, %v1222, %v1438
      %v1471 = vsel %vm1407, %v1224, %v1439
      %v1472 = vsel %vm1408, %v1368, %v1440
      %v1473 = vsel %vm1409, %v1370, %v1441
      %v1474 = vsel %vm1410, %v1226, %v1442
      %v1475 = vsel %vm1411, %v1228, %v1443
      %v1476 = vsel %vm1412, %v1372, %v1444
      %v1477 = vsel %vm1413, %v1374, %v1445
      %v1478 = vsel %vm1414, %v1232, %v1446
      %v1479 = vsel %vm1415, %v1234, %v1447
      %v1480 = vsel %vm1416, %v1378, %v1448
      %v1481 = vsel %vm1417, %v1380, %v1449
      %v1482 = vsel %vm1418, %v1236, %v1450
      %v1483 = vsel %vm1419, %v1238, %v1451
      %v1484 = vsel %vm1420, %v1382, %v1452
      %v1485 = vsel %vm1421, %v1384, %v1453
      %v1486 = vsel %vm1422, %v1242, %v1454
      %v1487 = vsel %vm1423, %v1244, %v1455
      %v1488 = vsel %vm1424, %v1388, %v1456
      %v1489 = vsel %vm1425, %v1390, %v1457
      %v1490 = vsel %vm1426, %v1246, %v1458
      %v1491 = vsel %vm1427, %v1248, %v1459
      %v1492 = vsel %vm1428, %v1392, %v1460
      %v1493 = vsel %vm1429, %v1394, %v1461
      %v1494 = vsel %vm1430, %v1252, %v1462
      %v1495 = vsel %vm1431, %v1254, %v1463
      %v1496 = vsel %vm1432, %v1398, %v1464
      %v1497 = vsel %vm1433, %v1400, %v1465
      %v1498 = vsel %vm1434, %v1256, %v1466
      %v1499 = vsel %vm1435, %v1258, %v1467
      %v1500 = vsel %vm1436, %v1402, %v1468
      %v1501 = vsel %vm1437, %v1404, %v1469
      %vm1502 = vcmask 1043458
      %vm1503 = vsmask.f32 7946
      %vm1504 = vmand %vm1502, %vm1503
      %vm1505 = vcmask 1047558
      %vm1506 = vsmask.f32 7962
      %vm1507 = vmand %vm1505, %vm1506
      %vm1508 = vmor %vm1507, %vm1504
      %v1509 = vld [vmem:[#allocation2] sm:$0xcc]
      %v1510 = vsel %vm1508, 0, %v1509
      %1511 = vst [vmem:[#allocation2] sm:$0xcc] %v1510
      %v1512 = vld [vmem:[#allocation2 + $0x8] sm:$0xcc]
      %v1513 = vsel %vm1508, 0, %v1512
      %1514 = vst [vmem:[#allocation2 + $0x8] sm:$0xcc] %v1513
      %v1515 = vld [vmem:[#allocation2 + $0x30] sm:$0xcc]
      %v1516 = vsel %vm1508, 0, %v1515
      %1517 = vst [vmem:[#allocation2 + $0x30] sm:$0xcc] %v1516
      %v1518 = vld [vmem:[#allocation2 + $0x38] sm:$0xcc]
      %v1519 = vsel %vm1508, 0, %v1518
      %1520 = vst [vmem:[#allocation2 + $0x38] sm:$0xcc] %v1519
      %v1521 = vld [vmem:[#allocation2 + $0x60] sm:$0xcc]
      %v1522 = vsel %vm1508, 0, %v1521
      %1523 = vst [vmem:[#allocation2 + $0x60] sm:$0xcc] %v1522
      %v1524 = vld [vmem:[#allocation2 + $0x68] sm:$0xcc]
      %v1525 = vsel %vm1508, 0, %v1524
      %1526 = vst [vmem:[#allocation2 + $0x68] sm:$0xcc] %v1525
      %v1527 = vld [vmem:[#allocation2 + $0x90] sm:$0xcc]
      %v1528 = vsel %vm1508, 0, %v1527
      %1529 = vst [vmem:[#allocation2 + $0x90] sm:$0xcc] %v1528
      %v1530 = vld [vmem:[#allocation2 + $0x98] sm:$0xcc]
      %v1531 = vsel %vm1508, 0, %v1530
      %1532 = vst [vmem:[#allocation2 + $0x98] sm:$0xcc] %v1531
      %v1533 = vld [vmem:[#allocation2 + $0xc0] sm:$0xcc]
      %v1534 = vsel %vm1508, 0, %v1533
      %1535 = vst [vmem:[#allocation2 + $0xc0] sm:$0xcc] %v1534
      %v1536 = vld [vmem:[#allocation2 + $0xc8] sm:$0xcc]
      %v1537 = vsel %vm1508, 0, %v1536
      %1538 = vst [vmem:[#allocation2 + $0xc8] sm:$0xcc] %v1537
      %v1539 = vld [vmem:[#allocation2 + $0xf0] sm:$0xcc]
      %v1540 = vsel %vm1508, 0, %v1539
      %1541 = vst [vmem:[#allocation2 + $0xf0] sm:$0xcc] %v1540
      %v1542 = vld [vmem:[#allocation2 + $0xf8] sm:$0xcc]
      %v1543 = vsel %vm1508, 0, %v1542
      %1544 = vst [vmem:[#allocation2 + $0xf8] sm:$0xcc] %v1543
      %v1545 = vld [vmem:[#allocation2 + $0x120] sm:$0xcc]
      %v1546 = vsel %vm1508, 0, %v1545
      %1547 = vst [vmem:[#allocation2 + $0x120] sm:$0xcc] %v1546
      %v1548 = vld [vmem:[#allocation2 + $0x128] sm:$0xcc]
      %v1549 = vsel %vm1508, 0, %v1548
      %1550 = vst [vmem:[#allocation2 + $0x128] sm:$0xcc] %v1549
      %v1551 = vld [vmem:[#allocation2 + $0x150] sm:$0xcc]
      %v1552 = vsel %vm1508, 0, %v1551
      %1553 = vst [vmem:[#allocation2 + $0x150] sm:$0xcc] %v1552
      %v1554 = vld [vmem:[#allocation2 + $0x158] sm:$0xcc]
      %v1555 = vsel %vm1508, 0, %v1554
      %1556 = vst [vmem:[#allocation2 + $0x158] sm:$0xcc] %v1555
      %vm1557 = vcmask 1041408
      %vm1558 = vsmask.f32 1280
      %vm1559 = vmand %vm1557, %vm1558
      %vm1560 = vcmask 1045508
      %vm1561 = vsmask.f32 5376
      %vm1562 = vmand %vm1560, %vm1561
      %vm1563 = vmor %vm1562, %vm1559
      %v1564 = vld [vmem:[#allocation2 + $0x20] sm:$0x33]
      %v1565 = vsel %vm1563, 0, %v1564
      %1566 = vst [vmem:[#allocation2 + $0x20] sm:$0x33] %v1565
      %v1567 = vld [vmem:[#allocation2 + $0x28] sm:$0x33]
      %v1568 = vsel %vm1563, 0, %v1567
      %1569 = vst [vmem:[#allocation2 + $0x28] sm:$0x33] %v1568
      %v1570 = vld [vmem:[#allocation2 + $0x50] sm:$0x33]
      %v1571 = vsel %vm1563, 0, %v1570
      %1572 = vst [vmem:[#allocation2 + $0x50] sm:$0x33] %v1571
      %v1573 = vld [vmem:[#allocation2 + $0x58] sm:$0x33]
      %v1574 = vsel %vm1563, 0, %v1573
      %1575 = vst [vmem:[#allocation2 + $0x58] sm:$0x33] %v1574
      %v1576 = vld [vmem:[#allocation2 + $0x80] sm:$0x33]
      %v1577 = vsel %vm1563, 0, %v1576
      %1578 = vst [vmem:[#allocation2 + $0x80] sm:$0x33] %v1577
      %v1579 = vld [vmem:[#allocation2 + $0x88] sm:$0x33]
      %v1580 = vsel %vm1563, 0, %v1579
      %1581 = vst [vmem:[#allocation2 + $0x88] sm:$0x33] %v1580
      %v1582 = vld [vmem:[#allocation2 + $0xb0] sm:$0x33]
      %v1583 = vsel %vm1563, 0, %v1582
      %1584 = vst [vmem:[#allocation2 + $0xb0] sm:$0x33] %v1583
      %v1585 = vld [vmem:[#allocation2 + $0xb8] sm:$0x33]
      %v1586 = vsel %vm1563, 0, %v1585
      %1587 = vst [vmem:[#allocation2 + $0xb8] sm:$0x33] %v1586
      %v1588 = vld [vmem:[#allocation2 + $0xe0] sm:$0x33]
      %v1589 = vsel %vm1563, 0, %v1588
      %1590 = vst [vmem:[#allocation2 + $0xe0] sm:$0x33] %v1589
      %v1591 = vld [vmem:[#allocation2 + $0xe8] sm:$0x33]
      %v1592 = vsel %vm1563, 0, %v1591
      %1593 = vst [vmem:[#allocation2 + $0xe8] sm:$0x33] %v1592
      %v1594 = vld [vmem:[#allocation2 + $0x110] sm:$0x33]
      %v1595 = vsel %vm1563, 0, %v1594
      %1596 = vst [vmem:[#allocation2 + $0x110] sm:$0x33] %v1595
      %v1597 = vld [vmem:[#allocation2 + $0x118] sm:$0x33]
      %v1598 = vsel %vm1563, 0, %v1597
      %1599 = vst [vmem:[#allocation2 + $0x118] sm:$0x33] %v1598
      %v1600 = vld [vmem:[#allocation2 + $0x140] sm:$0x33]
      %v1601 = vsel %vm1563, 0, %v1600
      %1602 = vst [vmem:[#allocation2 + $0x140] sm:$0x33] %v1601
      %v1603 = vld [vmem:[#allocation2 + $0x148] sm:$0x33]
      %v1604 = vsel %vm1563, 0, %v1603
      %1605 = vst [vmem:[#allocation2 + $0x148] sm:$0x33] %v1604
      %v1606 = vld [vmem:[#allocation2 + $0x170] sm:$0x33]
      %v1607 = vsel %vm1563, 0, %v1606
      %1608 = vst [vmem:[#allocation2 + $0x170] sm:$0x33] %v1607
      %v1609 = vld [vmem:[#allocation2 + $0x178] sm:$0x33]
      %v1610 = vsel %vm1563, 0, %v1609
      %1611 = vst [vmem:[#allocation2 + $0x178] sm:$0x33] %v1610
      %v1612 = vpack.c.bf16 %v1474, %v1470
      %v1613 = vpack.c.bf16 %v1475, %v1471
      %v1614 = vpack.c.bf16 %v1476, %v1472
      %v1615 = vpack.c.bf16 %v1477, %v1473
      %v1616 = vpack.c.bf16 %v1482, %v1478
      %v1617 = vpack.c.bf16 %v1483, %v1479
      %v1618 = vpack.c.bf16 %v1484, %v1480
      %v1619 = vpack.c.bf16 %v1485, %v1481
      %v1620 = vpack.c.bf16 %v1490, %v1486
      %v1621 = vpack.c.bf16 %v1491, %v1487
      %v1622 = vpack.c.bf16 %v1492, %v1488
      %v1623 = vpack.c.bf16 %v1493, %v1489
      %v1624 = vpack.c.bf16 %v1498, %v1494
      %v1625 = vpack.c.bf16 %v1499, %v1495
      %v1626 = vpack.c.bf16 %v1500, %v1496
      %v1627 = vpack.c.bf16 %v1501, %v1497
      %v1644 = vunpack.c.l.b16 %v1612
      %v1645 = vunpack.c.l.b16 %v1613
      %v1646 = vunpack.c.l.b16 %v1614
      %v1647 = vunpack.c.l.b16 %v1615
      %v1648 = vunpack.c.h.b16 %v1612
      %v1649 = vunpack.c.h.b16 %v1613
      %v1650 = vunpack.c.h.b16 %v1614
      %v1651 = vunpack.c.h.b16 %v1615
      %v1652 = vunpack.c.l.b16 %v1616
      %v1653 = vunpack.c.l.b16 %v1617
      %v1654 = vunpack.c.l.b16 %v1618
      %v1655 = vunpack.c.l.b16 %v1619
      %v1656 = vunpack.c.h.b16 %v1616
      %v1657 = vunpack.c.h.b16 %v1617
      %v1658 = vunpack.c.h.b16 %v1618
      %v1659 = vunpack.c.h.b16 %v1619
      %v1660 = vunpack.c.l.b16 %v1620
      %v1661 = vunpack.c.l.b16 %v1621
      %v1662 = vunpack.c.l.b16 %v1622
      %v1663 = vunpack.c.l.b16 %v1623
      %v1664 = vunpack.c.h.b16 %v1620
      %v1665 = vunpack.c.h.b16 %v1621
      %v1666 = vunpack.c.h.b16 %v1622
      %v1667 = vunpack.c.h.b16 %v1623
      %v1668 = vunpack.c.l.b16 %v1624
      %v1669 = vunpack.c.l.b16 %v1625
      %v1670 = vunpack.c.l.b16 %v1626
      %v1671 = vunpack.c.l.b16 %v1627
      %v1672 = vunpack.c.h.b16 %v1624
      %v1673 = vunpack.c.h.b16 %v1625
      %v1674 = vunpack.c.h.b16 %v1626
      %v1675 = vunpack.c.h.b16 %v1627
      %v1676 = vpack.c.b16 %v1645, %v1644
      %v1677 = vpack.c.b16 %v1647, %v1646
      %v1678 = vpack.c.b16 %v1649, %v1648
      %v1679 = vpack.c.b16 %v1651, %v1650
      %v1680 = vpack.c.b16 %v1653, %v1652
      %v1681 = vpack.c.b16 %v1655, %v1654
      %v1682 = vpack.c.b16 %v1657, %v1656
      %v1683 = vpack.c.b16 %v1659, %v1658
      %v1684 = vpack.c.b16 %v1661, %v1660
      %v1685 = vpack.c.b16 %v1663, %v1662
      %v1686 = vpack.c.b16 %v1665, %v1664
      %v1687 = vpack.c.b16 %v1667, %v1666
      %v1688 = vpack.c.b16 %v1669, %v1668
      %v1689 = vpack.c.b16 %v1671, %v1670
      %v1690 = vpack.c.b16 %v1673, %v1672
      %v1691 = vpack.c.b16 %v1675, %v1674
      %1708 = vst [vmem:[#allocation2 + $0x10] sm:$0xff] %v1676
      %1709 = vst [vmem:[#allocation2 + $0x18] sm:$0xff] %v1677
      %1710 = vst [vmem:[#allocation2 + $0x40] sm:$0xff] %v1678
      %1711 = vst [vmem:[#allocation2 + $0x48] sm:$0xff] %v1679
      %1712 = vst [vmem:[#allocation2 + $0x70] sm:$0xff] %v1680
      %1713 = vst [vmem:[#allocation2 + $0x78] sm:$0xff] %v1681
      %1714 = vst [vmem:[#allocation2 + $0xa0] sm:$0xff] %v1682
      %1715 = vst [vmem:[#allocation2 + $0xa8] sm:$0xff] %v1683
      %1716 = vst [vmem:[#allocation2 + $0xd0] sm:$0xff] %v1684
      %1717 = vst [vmem:[#allocation2 + $0xd8] sm:$0xff] %v1685
      %1718 = vst [vmem:[#allocation2 + $0x100] sm:$0xff] %v1686
      %1719 = vst [vmem:[#allocation2 + $0x108] sm:$0xff] %v1687
      %1720 = vst [vmem:[#allocation2 + $0x130] sm:$0xff] %v1688
      %1721 = vst [vmem:[#allocation2 + $0x138] sm:$0xff] %v1689
      %1722 = vst [vmem:[#allocation2 + $0x160] sm:$0xff] %v1690
      %1723 = vst [vmem:[#allocation2 + $0x168] sm:$0xff] %v1691
      %v1724 = vld [vmem:[#allocation2] sm:$0xcc]
      %v1725 = vld [vmem:[#allocation2 + $0x8] sm:$0xcc]
      %v1726 = vld [vmem:[#allocation2 + $0x10] sm:$0x77]
      %v1727 = vld [vmem:[#allocation2 + $0x18] sm:$0x77]
      %v1728 = vld [vmem:[#allocation2 + $0x30] sm:$0xcc]
      %v1729 = vld [vmem:[#allocation2 + $0x38] sm:$0xcc]
      %v1730 = vld [vmem:[#allocation2 + $0x40] sm:$0x77]
      %v1731 = vld [vmem:[#allocation2 + $0x48] sm:$0x77]
      %v1732 = vld [vmem:[#allocation2 + $0x60] sm:$0xcc]
      %v1733 = vld [vmem:[#allocation2 + $0x68] sm:$0xcc]
      %v1734 = vld [vmem:[#allocation2 + $0x70] sm:$0x77]
      %v1735 = vld [vmem:[#allocation2 + $0x78] sm:$0x77]
      %v1736 = vld [vmem:[#allocation2 + $0x90] sm:$0xcc]
      %v1737 = vld [vmem:[#allocation2 + $0x98] sm:$0xcc]
      %v1738 = vld [vmem:[#allocation2 + $0xa0] sm:$0x77]
      %v1739 = vld [vmem:[#allocation2 + $0xa8] sm:$0x77]
      %v1740 = vld [vmem:[#allocation2 + $0xc0] sm:$0xcc]
      %v1741 = vld [vmem:[#allocation2 + $0xc8] sm:$0xcc]
      %v1742 = vld [vmem:[#allocation2 + $0xd0] sm:$0x77]
      %v1743 = vld [vmem:[#allocation2 + $0xd8] sm:$0x77]
      %v1744 = vld [vmem:[#allocation2 + $0xf0] sm:$0xcc]
      %v1745 = vld [vmem:[#allocation2 + $0xf8] sm:$0xcc]
      %v1746 = vld [vmem:[#allocation2 + $0x100] sm:$0x77]
      %v1747 = vld [vmem:[#allocation2 + $0x108] sm:$0x77]
      %v1748 = vld [vmem:[#allocation2 + $0x120] sm:$0xcc]
      %v1749 = vld [vmem:[#allocation2 + $0x128] sm:$0xcc]
      %v1750 = vld [vmem:[#allocation2 + $0x130] sm:$0x77]
      %v1751 = vld [vmem:[#allocation2 + $0x138] sm:$0x77]
      %v1752 = vld [vmem:[#allocation2 + $0x150] sm:$0xcc]
      %v1753 = vld [vmem:[#allocation2 + $0x158] sm:$0xcc]
      %v1754 = vld [vmem:[#allocation2 + $0x160] sm:$0x77]
      %v1755 = vld [vmem:[#allocation2 + $0x168] sm:$0x77]
      %vm1756 = vsmask.f32 5392
      %vm1757 = vmor %vm1558, %vm1756
      %v1759 = vshrl.u32 %v1724, 16
      %v1761 = vrot.slane %v1759, 6
      %v1762 = vshll.u32 %v1724, 16
      %v1764 = vrot.slane %v1762, 7
      %v1765 = vor.u32 %v1761, %v1764
      %v1766 = vrot.slane %v1765, 4
      %v1768 = vshrl.u32 %v1726, 16
      %v1770 = vrot.slane %v1768, 6
      %v1771 = vshll.u32 %v1726, 16
      %v1773 = vrot.slane %v1771, 7
      %v1774 = vor.u32 %v1770, %v1773
      %v1775 = vsel %vm1757, %v1766, %v1774
      %v1777 = vshrl.u32 %v1725, 16
      %v1779 = vrot.slane %v1777, 6
      %v1780 = vshll.u32 %v1725, 16
      %v1782 = vrot.slane %v1780, 7
      %v1783 = vor.u32 %v1779, %v1782
      %v1784 = vrot.slane %v1783, 4
      %v1786 = vshrl.u32 %v1727, 16
      %v1788 = vrot.slane %v1786, 6
      %v1789 = vshll.u32 %v1727, 16
      %v1791 = vrot.slane %v1789, 7
      %v1792 = vor.u32 %v1788, %v1791
      %v1793 = vsel %vm1757, %v1784, %v1792
      %v1795 = vshrl.u32 %v1728, 16
      %v1797 = vrot.slane %v1795, 6
      %v1798 = vshll.u32 %v1728, 16
      %v1800 = vrot.slane %v1798, 7
      %v1801 = vor.u32 %v1797, %v1800
      %v1802 = vrot.slane %v1801, 4
      %v1804 = vshrl.u32 %v1730, 16
      %v1806 = vrot.slane %v1804, 6
      %v1807 = vshll.u32 %v1730, 16
      %v1809 = vrot.slane %v1807, 7
      %v1810 = vor.u32 %v1806, %v1809
      %v1811 = vsel %vm1757, %v1802, %v1810
      %v1813 = vshrl.u32 %v1729, 16
      %v1815 = vrot.slane %v1813, 6
      %v1816 = vshll.u32 %v1729, 16
      %v1818 = vrot.slane %v1816, 7
      %v1819 = vor.u32 %v1815, %v1818
      %v1820 = vrot.slane %v1819, 4
      %v1822 = vshrl.u32 %v1731, 16
      %v1824 = vrot.slane %v1822, 6
      %v1825 = vshll.u32 %v1731, 16
      %v1827 = vrot.slane %v1825, 7
      %v1828 = vor.u32 %v1824, %v1827
      %v1829 = vsel %vm1757, %v1820, %v1828
      %v1831 = vshrl.u32 %v1732, 16
      %v1833 = vrot.slane %v1831, 6
      %v1834 = vshll.u32 %v1732, 16
      %v1836 = vrot.slane %v1834, 7
      %v1837 = vor.u32 %v1833, %v1836
      %v1838 = vrot.slane %v1837, 4
      %v1840 = vshrl.u32 %v1734, 16
      %v1842 = vrot.slane %v1840, 6
      %v1843 = vshll.u32 %v1734, 16
      %v1845 = vrot.slane %v1843, 7
      %v1846 = vor.u32 %v1842, %v1845
      %v1847 = vsel %vm1757, %v1838, %v1846
      %v1849 = vshrl.u32 %v1733, 16
      %v1851 = vrot.slane %v1849, 6
      %v1852 = vshll.u32 %v1733, 16
      %v1854 = vrot.slane %v1852, 7
      %v1855 = vor.u32 %v1851, %v1854
      %v1856 = vrot.slane %v1855, 4
      %v1858 = vshrl.u32 %v1735, 16
      %v1860 = vrot.slane %v1858, 6
      %v1861 = vshll.u32 %v1735, 16
      %v1863 = vrot.slane %v1861, 7
      %v1864 = vor.u32 %v1860, %v1863
      %v1865 = vsel %vm1757, %v1856, %v1864
      %v1867 = vshrl.u32 %v1736, 16
      %v1869 = vrot.slane %v1867, 6
      %v1870 = vshll.u32 %v1736, 16
      %v1872 = vrot.slane %v1870, 7
      %v1873 = vor.u32 %v1869, %v1872
      %v1874 = vrot.slane %v1873, 4
      %v1876 = vshrl.u32 %v1738, 16
      %v1878 = vrot.slane %v1876, 6
      %v1879 = vshll.u32 %v1738, 16
      %v1881 = vrot.slane %v1879, 7
      %v1882 = vor.u32 %v1878, %v1881
      %v1883 = vsel %vm1757, %v1874, %v1882
      %v1885 = vshrl.u32 %v1737, 16
      %v1887 = vrot.slane %v1885, 6
      %v1888 = vshll.u32 %v1737, 16
      %v1890 = vrot.slane %v1888, 7
      %v1891 = vor.u32 %v1887, %v1890
      %v1892 = vrot.slane %v1891, 4
      %v1894 = vshrl.u32 %v1739, 16
      %v1896 = vrot.slane %v1894, 6
      %v1897 = vshll.u32 %v1739, 16
      %v1899 = vrot.slane %v1897, 7
      %v1900 = vor.u32 %v1896, %v1899
      %v1901 = vsel %vm1757, %v1892, %v1900
      %v1903 = vshrl.u32 %v1740, 16
      %v1905 = vrot.slane %v1903, 6
      %v1906 = vshll.u32 %v1740, 16
      %v1908 = vrot.slane %v1906, 7
      %v1909 = vor.u32 %v1905, %v1908
      %v1910 = vrot.slane %v1909, 4
      %v1912 = vshrl.u32 %v1742, 16
      %v1914 = vrot.slane %v1912, 6
      %v1915 = vshll.u32 %v1742, 16
      %v1917 = vrot.slane %v1915, 7
      %v1918 = vor.u32 %v1914, %v1917
      %v1919 = vsel %vm1757, %v1910, %v1918
      %v1921 = vshrl.u32 %v1741, 16
      %v1923 = vrot.slane %v1921, 6
      %v1924 = vshll.u32 %v1741, 16
      %v1926 = vrot.slane %v1924, 7
      %v1927 = vor.u32 %v1923, %v1926
      %v1928 = vrot.slane %v1927, 4
      %v1930 = vshrl.u32 %v1743, 16
      %v1932 = vrot.slane %v1930, 6
      %v1933 = vshll.u32 %v1743, 16
      %v1935 = vrot.slane %v1933, 7
      %v1936 = vor.u32 %v1932, %v1935
      %v1937 = vsel %vm1757, %v1928, %v1936
      %v1939 = vshrl.u32 %v1744, 16
      %v1941 = vrot.slane %v1939, 6
      %v1942 = vshll.u32 %v1744, 16
      %v1944 = vrot.slane %v1942, 7
      %v1945 = vor.u32 %v1941, %v1944
      %v1946 = vrot.slane %v1945, 4
      %v1948 = vshrl.u32 %v1746, 16
      %v1950 = vrot.slane %v1948, 6
      %v1951 = vshll.u32 %v1746, 16
      %v1953 = vrot.slane %v1951, 7
      %v1954 = vor.u32 %v1950, %v1953
      %v1955 = vsel %vm1757, %v1946, %v1954
      %v1957 = vshrl.u32 %v1745, 16
      %v1959 = vrot.slane %v1957, 6
      %v1960 = vshll.u32 %v1745, 16
      %v1962 = vrot.slane %v1960, 7
      %v1963 = vor.u32 %v1959, %v1962
      %v1964 = vrot.slane %v1963, 4
      %v1966 = vshrl.u32 %v1747, 16
      %v1968 = vrot.slane %v1966, 6
      %v1969 = vshll.u32 %v1747, 16
      %v1971 = vrot.slane %v1969, 7
      %v1972 = vor.u32 %v1968, %v1971
      %v1973 = vsel %vm1757, %v1964, %v1972
      %v1975 = vshrl.u32 %v1748, 16
      %v1977 = vrot.slane %v1975, 6
      %v1978 = vshll.u32 %v1748, 16
      %v1980 = vrot.slane %v1978, 7
      %v1981 = vor.u32 %v1977, %v1980
      %v1982 = vrot.slane %v1981, 4
      %v1984 = vshrl.u32 %v1750, 16
      %v1986 = vrot.slane %v1984, 6
      %v1987 = vshll.u32 %v1750, 16
      %v1989 = vrot.slane %v1987, 7
      %v1990 = vor.u32 %v1986, %v1989
      %v1991 = vsel %vm1757, %v1982, %v1990
      %v1993 = vshrl.u32 %v1749, 16
      %v1995 = vrot.slane %v1993, 6
      %v1996 = vshll.u32 %v1749, 16
      %v1998 = vrot.slane %v1996, 7
      %v1999 = vor.u32 %v1995, %v1998
      %v2000 = vrot.slane %v1999, 4
      %v2002 = vshrl.u32 %v1751, 16
      %v2004 = vrot.slane %v2002, 6
      %v2005 = vshll.u32 %v1751, 16
      %v2007 = vrot.slane %v2005, 7
      %v2008 = vor.u32 %v2004, %v2007
      %v2009 = vsel %vm1757, %v2000, %v2008
      %v2011 = vshrl.u32 %v1752, 16
      %v2013 = vrot.slane %v2011, 6
      %v2014 = vshll.u32 %v1752, 16
      %v2016 = vrot.slane %v2014, 7
      %v2017 = vor.u32 %v2013, %v2016
      %v2018 = vrot.slane %v2017, 4
      %v2020 = vshrl.u32 %v1754, 16
      %v2022 = vrot.slane %v2020, 6
      %v2023 = vshll.u32 %v1754, 16
      %v2025 = vrot.slane %v2023, 7
      %v2026 = vor.u32 %v2022, %v2025
      %v2027 = vsel %vm1757, %v2018, %v2026
      %v2029 = vshrl.u32 %v1753, 16
      %v2031 = vrot.slane %v2029, 6
      %v2032 = vshll.u32 %v1753, 16
      %v2034 = vrot.slane %v2032, 7
      %v2035 = vor.u32 %v2031, %v2034
      %v2036 = vrot.slane %v2035, 4
      %v2038 = vshrl.u32 %v1755, 16
      %v2040 = vrot.slane %v2038, 6
      %v2041 = vshll.u32 %v1755, 16
      %v2043 = vrot.slane %v2041, 7
      %v2044 = vor.u32 %v2040, %v2043
      %v2045 = vsel %vm1757, %v2036, %v2044
      %v2046 = vld [vmem:[#allocation2] sm:$0x88]
      %v2047 = vld [vmem:[#allocation2 + $0x8] sm:$0x88]
      %v2048 = vld [vmem:[#allocation2 + $0x30] sm:$0x88]
      %v2049 = vld [vmem:[#allocation2 + $0x38] sm:$0x88]
      %v2050 = vld [vmem:[#allocation2 + $0x60] sm:$0x88]
      %v2051 = vld [vmem:[#allocation2 + $0x68] sm:$0x88]
      %v2052 = vld [vmem:[#allocation2 + $0x90] sm:$0x88]
      %v2053 = vld [vmem:[#allocation2 + $0x98] sm:$0x88]
      %v2054 = vld [vmem:[#allocation2 + $0xc0] sm:$0x88]
      %v2055 = vld [vmem:[#allocation2 + $0xc8] sm:$0x88]
      %v2056 = vld [vmem:[#allocation2 + $0xf0] sm:$0x88]
      %v2057 = vld [vmem:[#allocation2 + $0xf8] sm:$0x88]
      %v2058 = vld [vmem:[#allocation2 + $0x120] sm:$0x88]
      %v2059 = vld [vmem:[#allocation2 + $0x128] sm:$0x88]
      %v2060 = vld [vmem:[#allocation2 + $0x150] sm:$0x88]
      %v2061 = vld [vmem:[#allocation2 + $0x158] sm:$0x88]
      %vm2094 = vcmask 1040384
      %vm2095 = vcmask 1044484
      %vm2096 = vmor %vm2094, %vm2095
      %v2097 = vrot.slane %v2046, 7
      %v2098 = vrot.slane %v2097, 4
      %v2099 = vrot.slane %v1726, 7
      %v2100 = vsel %vm2096, %v2098, %v2099
      %v2101 = vrot.slane %v2047, 7
      %v2102 = vrot.slane %v2101, 4
      %v2103 = vrot.slane %v1727, 7
      %v2104 = vsel %vm2096, %v2102, %v2103
      %v2105 = vrot.slane %v2048, 7
      %v2106 = vrot.slane %v2105, 4
      %v2107 = vrot.slane %v1730, 7
      %v2108 = vsel %vm2096, %v2106, %v2107
      %v2109 = vrot.slane %v2049, 7
      %v2110 = vrot.slane %v2109, 4
      %v2111 = vrot.slane %v1731, 7
      %v2112 = vsel %vm2096, %v2110, %v2111
      %v2113 = vrot.slane %v2050, 7
      %v2114 = vrot.slane %v2113, 4
      %v2115 = vrot.slane %v1734, 7
      %v2116 = vsel %vm2096, %v2114, %v2115
      %v2117 = vrot.slane %v2051, 7
      %v2118 = vrot.slane %v2117, 4
      %v2119 = vrot.slane %v1735, 7
      %v2120 = vsel %vm2096, %v2118, %v2119
      %v2121 = vrot.slane %v2052, 7
      %v2122 = vrot.slane %v2121, 4
      %v2123 = vrot.slane %v1738, 7
      %v2124 = vsel %vm2096, %v2122, %v2123
      %v2125 = vrot.slane %v2053, 7
      %v2126 = vrot.slane %v2125, 4
      %v2127 = vrot.slane %v1739, 7
      %v2128 = vsel %vm2096, %v2126, %v2127
      %v2129 = vrot.slane %v2054, 7
      %v2130 = vrot.slane %v2129, 4
      %v2131 = vrot.slane %v1742, 7
      %v2132 = vsel %vm2096, %v2130, %v2131
      %v2133 = vrot.slane %v2055, 7
      %v2134 = vrot.slane %v2133, 4
      %v2135 = vrot.slane %v1743, 7
      %v2136 = vsel %vm2096, %v2134, %v2135
      %v2137 = vrot.slane %v2056, 7
      %v2138 = vrot.slane %v2137, 4
      %v2139 = vrot.slane %v1746, 7
      %v2140 = vsel %vm2096, %v2138, %v2139
      %v2141 = vrot.slane %v2057, 7
      %v2142 = vrot.slane %v2141, 4
      %v2143 = vrot.slane %v1747, 7
      %v2144 = vsel %vm2096, %v2142, %v2143
      %v2145 = vrot.slane %v2058, 7
      %v2146 = vrot.slane %v2145, 4
      %v2147 = vrot.slane %v1750, 7
      %v2148 = vsel %vm2096, %v2146, %v2147
      %v2149 = vrot.slane %v2059, 7
      %v2150 = vrot.slane %v2149, 4
      %v2151 = vrot.slane %v1751, 7
      %v2152 = vsel %vm2096, %v2150, %v2151
      %v2153 = vrot.slane %v2060, 7
      %v2154 = vrot.slane %v2153, 4
      %v2155 = vrot.slane %v1754, 7
      %v2156 = vsel %vm2096, %v2154, %v2155
      %v2157 = vrot.slane %v2061, 7
      %v2158 = vrot.slane %v2157, 4
      %v2159 = vrot.slane %v1755, 7
      %v2160 = vsel %vm2096, %v2158, %v2159
      %v2161 = vld [vmem:[#allocation2 + $0x10] sm:$0xff]
      %v2162 = vld [vmem:[#allocation2 + $0x18] sm:$0xff]
      %v2163 = vld [vmem:[#allocation2 + $0x40] sm:$0xff]
      %v2164 = vld [vmem:[#allocation2 + $0x48] sm:$0xff]
      %v2165 = vld [vmem:[#allocation2 + $0x70] sm:$0xff]
      %v2166 = vld [vmem:[#allocation2 + $0x78] sm:$0xff]
      %v2167 = vld [vmem:[#allocation2 + $0xa0] sm:$0xff]
      %v2168 = vld [vmem:[#allocation2 + $0xa8] sm:$0xff]
      %v2169 = vld [vmem:[#allocation2 + $0xd0] sm:$0xff]
      %v2170 = vld [vmem:[#allocation2 + $0xd8] sm:$0xff]
      %v2171 = vld [vmem:[#allocation2 + $0x100] sm:$0xff]
      %v2172 = vld [vmem:[#allocation2 + $0x108] sm:$0xff]
      %v2173 = vld [vmem:[#allocation2 + $0x130] sm:$0xff]
      %v2174 = vld [vmem:[#allocation2 + $0x138] sm:$0xff]
      %v2175 = vld [vmem:[#allocation2 + $0x160] sm:$0xff]
      %v2176 = vld [vmem:[#allocation2 + $0x168] sm:$0xff]
      %vm2177 = vsmask.f32 256
      %vm2178 = vsmask.f32 4368
      %vm2179 = vmor %vm2177, %vm2178
      %v2181 = vshrl.u32 %v2046, 16
      %v2183 = vrot.slane %v2181, 7
      %v2184 = vrot.slane %v2183, 4
      %v2186 = vshrl.u32 %v2161, 16
      %v2188 = vrot.slane %v2186, 7
      %v2189 = vshll.u32 %v2161, 16
      %v2191 = vor.u32 %v2188, %v2189
      %v2192 = vsel %vm2179, %v2184, %v2191
      %v2194 = vshrl.u32 %v2047, 16
      %v2196 = vrot.slane %v2194, 7
      %v2197 = vrot.slane %v2196, 4
      %v2199 = vshrl.u32 %v2162, 16
      %v2201 = vrot.slane %v2199, 7
      %v2202 = vshll.u32 %v2162, 16
      %v2204 = vor.u32 %v2201, %v2202
      %v2205 = vsel %vm2179, %v2197, %v2204
      %v2207 = vshrl.u32 %v2048, 16
      %v2209 = vrot.slane %v2207, 7
      %v2210 = vrot.slane %v2209, 4
      %v2212 = vshrl.u32 %v2163, 16
      %v2214 = vrot.slane %v2212, 7
      %v2215 = vshll.u32 %v2163, 16
      %v2217 = vor.u32 %v2214, %v2215
      %v2218 = vsel %vm2179, %v2210, %v2217
      %v2220 = vshrl.u32 %v2049, 16
      %v2222 = vrot.slane %v2220, 7
      %v2223 = vrot.slane %v2222, 4
      %v2225 = vshrl.u32 %v2164, 16
      %v2227 = vrot.slane %v2225, 7
      %v2228 = vshll.u32 %v2164, 16
      %v2230 = vor.u32 %v2227, %v2228
      %v2231 = vsel %vm2179, %v2223, %v2230
      %v2233 = vshrl.u32 %v2050, 16
      %v2235 = vrot.slane %v2233, 7
      %v2236 = vrot.slane %v2235, 4
      %v2238 = vshrl.u32 %v2165, 16
      %v2240 = vrot.slane %v2238, 7
      %v2241 = vshll.u32 %v2165, 16
      %v2243 = vor.u32 %v2240, %v2241
      %v2244 = vsel %vm2179, %v2236, %v2243
      %v2246 = vshrl.u32 %v2051, 16
      %v2248 = vrot.slane %v2246, 7
      %v2249 = vrot.slane %v2248, 4
      %v2251 = vshrl.u32 %v2166, 16
      %v2253 = vrot.slane %v2251, 7
      %v2254 = vshll.u32 %v2166, 16
      %v2256 = vor.u32 %v2253, %v2254
      %v2257 = vsel %vm2179, %v2249, %v2256
      %v2259 = vshrl.u32 %v2052, 16
      %v2261 = vrot.slane %v2259, 7
      %v2262 = vrot.slane %v2261, 4
      %v2264 = vshrl.u32 %v2167, 16
      %v2266 = vrot.slane %v2264, 7
      %v2267 = vshll.u32 %v2167, 16
      %v2269 = vor.u32 %v2266, %v2267
      %v2270 = vsel %vm2179, %v2262, %v2269
      %v2272 = vshrl.u32 %v2053, 16
      %v2274 = vrot.slane %v2272, 7
      %v2275 = vrot.slane %v2274, 4
      %v2277 = vshrl.u32 %v2168, 16
      %v2279 = vrot.slane %v2277, 7
      %v2280 = vshll.u32 %v2168, 16
      %v2282 = vor.u32 %v2279, %v2280
      %v2283 = vsel %vm2179, %v2275, %v2282
      %v2285 = vshrl.u32 %v2054, 16
      %v2287 = vrot.slane %v2285, 7
      %v2288 = vrot.slane %v2287, 4
      %v2290 = vshrl.u32 %v2169, 16
      %v2292 = vrot.slane %v2290, 7
      %v2293 = vshll.u32 %v2169, 16
      %v2295 = vor.u32 %v2292, %v2293
      %v2296 = vsel %vm2179, %v2288, %v2295
      %v2298 = vshrl.u32 %v2055, 16
      %v2300 = vrot.slane %v2298, 7
      %v2301 = vrot.slane %v2300, 4
      %v2303 = vshrl.u32 %v2170, 16
      %v2305 = vrot.slane %v2303, 7
      %v2306 = vshll.u32 %v2170, 16
      %v2308 = vor.u32 %v2305, %v2306
      %v2309 = vsel %vm2179, %v2301, %v2308
      %v2311 = vshrl.u32 %v2056, 16
      %v2313 = vrot.slane %v2311, 7
      %v2314 = vrot.slane %v2313, 4
      %v2316 = vshrl.u32 %v2171, 16
      %v2318 = vrot.slane %v2316, 7
      %v2319 = vshll.u32 %v2171, 16
      %v2321 = vor.u32 %v2318, %v2319
      %v2322 = vsel %vm2179, %v2314, %v2321
      %v2324 = vshrl.u32 %v2057, 16
      %v2326 = vrot.slane %v2324, 7
      %v2327 = vrot.slane %v2326, 4
      %v2329 = vshrl.u32 %v2172, 16
      %v2331 = vrot.slane %v2329, 7
      %v2332 = vshll.u32 %v2172, 16
      %v2334 = vor.u32 %v2331, %v2332
      %v2335 = vsel %vm2179, %v2327, %v2334
      %v2337 = vshrl.u32 %v2058, 16
      %v2339 = vrot.slane %v2337, 7
      %v2340 = vrot.slane %v2339, 4
      %v2342 = vshrl.u32 %v2173, 16
      %v2344 = vrot.slane %v2342, 7
      %v2345 = vshll.u32 %v2173, 16
      %v2347 = vor.u32 %v2344, %v2345
      %v2348 = vsel %vm2179, %v2340, %v2347
      %v2350 = vshrl.u32 %v2059, 16
      %v2352 = vrot.slane %v2350, 7
      %v2353 = vrot.slane %v2352, 4
      %v2355 = vshrl.u32 %v2174, 16
      %v2357 = vrot.slane %v2355, 7
      %v2358 = vshll.u32 %v2174, 16
      %v2360 = vor.u32 %v2357, %v2358
      %v2361 = vsel %vm2179, %v2353, %v2360
      %v2363 = vshrl.u32 %v2060, 16
      %v2365 = vrot.slane %v2363, 7
      %v2366 = vrot.slane %v2365, 4
      %v2368 = vshrl.u32 %v2175, 16
      %v2370 = vrot.slane %v2368, 7
      %v2371 = vshll.u32 %v2175, 16
      %v2373 = vor.u32 %v2370, %v2371
      %v2374 = vsel %vm2179, %v2366, %v2373
      %v2376 = vshrl.u32 %v2061, 16
      %v2378 = vrot.slane %v2376, 7
      %v2379 = vrot.slane %v2378, 4
      %v2381 = vshrl.u32 %v2176, 16
      %v2383 = vrot.slane %v2381, 7
      %v2384 = vshll.u32 %v2176, 16
      %v2386 = vor.u32 %v2383, %v2384
      %v2387 = vsel %vm2179, %v2379, %v2386
      %v2388 = vld [vmem:[#allocation2 + $0x20] sm:$0x11]
      %v2389 = vld [vmem:[#allocation2 + $0x28] sm:$0x11]
      %v2390 = vld [vmem:[#allocation2 + $0x50] sm:$0x11]
      %v2391 = vld [vmem:[#allocation2 + $0x58] sm:$0x11]
      %v2392 = vld [vmem:[#allocation2 + $0x80] sm:$0x11]
      %v2393 = vld [vmem:[#allocation2 + $0x88] sm:$0x11]
      %v2394 = vld [vmem:[#allocation2 + $0xb0] sm:$0x11]
      %v2395 = vld [vmem:[#allocation2 + $0xb8] sm:$0x11]
      %v2396 = vld [vmem:[#allocation2 + $0xe0] sm:$0x11]
      %v2397 = vld [vmem:[#allocation2 + $0xe8] sm:$0x11]
      %v2398 = vld [vmem:[#allocation2 + $0x110] sm:$0x11]
      %v2399 = vld [vmem:[#allocation2 + $0x118] sm:$0x11]
      %v2400 = vld [vmem:[#allocation2 + $0x140] sm:$0x11]
      %v2401 = vld [vmem:[#allocation2 + $0x148] sm:$0x11]
      %v2402 = vld [vmem:[#allocation2 + $0x170] sm:$0x11]
      %v2403 = vld [vmem:[#allocation2 + $0x178] sm:$0x11]
      %v2404 = vrot.slane %v2186, 4
      %v2405 = vrot.slane %v2189, 5
      %v2406 = vor.u32 %v2404, %v2405
      %v2407 = vrot.slane %v2406, 4
      %v2409 = vshll.u32 %v2388, 16
      %v2411 = vrot.slane %v2409, 5
      %v2412 = vsel %vm304, %v2407, %v2411
      %v2413 = vrot.slane %v2199, 4
      %v2414 = vrot.slane %v2202, 5
      %v2415 = vor.u32 %v2413, %v2414
      %v2416 = vrot.slane %v2415, 4
      %v2418 = vshll.u32 %v2389, 16
      %v2420 = vrot.slane %v2418, 5
      %v2421 = vsel %vm304, %v2416, %v2420
      %v2422 = vrot.slane %v2212, 4
      %v2423 = vrot.slane %v2215, 5
      %v2424 = vor.u32 %v2422, %v2423
      %v2425 = vrot.slane %v2424, 4
      %v2427 = vshll.u32 %v2390, 16
      %v2429 = vrot.slane %v2427, 5
      %v2430 = vsel %vm304, %v2425, %v2429
      %v2431 = vrot.slane %v2225, 4
      %v2432 = vrot.slane %v2228, 5
      %v2433 = vor.u32 %v2431, %v2432
      %v2434 = vrot.slane %v2433, 4
      %v2436 = vshll.u32 %v2391, 16
      %v2438 = vrot.slane %v2436, 5
      %v2439 = vsel %vm304, %v2434, %v2438
      %v2440 = vrot.slane %v2238, 4
      %v2441 = vrot.slane %v2241, 5
      %v2442 = vor.u32 %v2440, %v2441
      %v2443 = vrot.slane %v2442, 4
      %v2445 = vshll.u32 %v2392, 16
      %v2447 = vrot.slane %v2445, 5
      %v2448 = vsel %vm304, %v2443, %v2447
      %v2449 = vrot.slane %v2251, 4
      %v2450 = vrot.slane %v2254, 5
      %v2451 = vor.u32 %v2449, %v2450
      %v2452 = vrot.slane %v2451, 4
      %v2454 = vshll.u32 %v2393, 16
      %v2456 = vrot.slane %v2454, 5
      %v2457 = vsel %vm304, %v2452, %v2456
      %v2458 = vrot.slane %v2264, 4
      %v2459 = vrot.slane %v2267, 5
      %v2460 = vor.u32 %v2458, %v2459
      %v2461 = vrot.slane %v2460, 4
      %v2463 = vshll.u32 %v2394, 16
      %v2465 = vrot.slane %v2463, 5
      %v2466 = vsel %vm304, %v2461, %v2465
      %v2467 = vrot.slane %v2277, 4
      %v2468 = vrot.slane %v2280, 5
      %v2469 = vor.u32 %v2467, %v2468
      %v2470 = vrot.slane %v2469, 4
      %v2472 = vshll.u32 %v2395, 16
      %v2474 = vrot.slane %v2472, 5
      %v2475 = vsel %vm304, %v2470, %v2474
      %v2476 = vrot.slane %v2290, 4
      %v2477 = vrot.slane %v2293, 5
      %v2478 = vor.u32 %v2476, %v2477
      %v2479 = vrot.slane %v2478, 4
      %v2481 = vshll.u32 %v2396, 16
      %v2483 = vrot.slane %v2481, 5
      %v2484 = vsel %vm304, %v2479, %v2483
      %v2485 = vrot.slane %v2303, 4
      %v2486 = vrot.slane %v2306, 5
      %v2487 = vor.u32 %v2485, %v2486
      %v2488 = vrot.slane %v2487, 4
      %v2490 = vshll.u32 %v2397, 16
      %v2492 = vrot.slane %v2490, 5
      %v2493 = vsel %vm304, %v2488, %v2492
      %v2494 = vrot.slane %v2316, 4
      %v2495 = vrot.slane %v2319, 5
      %v2496 = vor.u32 %v2494, %v2495
      %v2497 = vrot.slane %v2496, 4
      %v2499 = vshll.u32 %v2398, 16
      %v2501 = vrot.slane %v2499, 5
      %v2502 = vsel %vm304, %v2497, %v2501
      %v2503 = vrot.slane %v2329, 4
      %v2504 = vrot.slane %v2332, 5
      %v2505 = vor.u32 %v2503, %v2504
      %v2506 = vrot.slane %v2505, 4
      %v2508 = vshll.u32 %v2399, 16
      %v2510 = vrot.slane %v2508, 5
      %v2511 = vsel %vm304, %v2506, %v2510
      %v2512 = vrot.slane %v2342, 4
      %v2513 = vrot.slane %v2345, 5
      %v2514 = vor.u32 %v2512, %v2513
      %v2515 = vrot.slane %v2514, 4
      %v2517 = vshll.u32 %v2400, 16
      %v2519 = vrot.slane %v2517, 5
      %v2520 = vsel %vm304, %v2515, %v2519
      %v2521 = vrot.slane %v2355, 4
      %v2522 = vrot.slane %v2358, 5
      %v2523 = vor.u32 %v2521, %v2522
      %v2524 = vrot.slane %v2523, 4
      %v2526 = vshll.u32 %v2401, 16
      %v2528 = vrot.slane %v2526, 5
      %v2529 = vsel %vm304, %v2524, %v2528
      %v2530 = vrot.slane %v2368, 4
      %v2531 = vrot.slane %v2371, 5
      %v2532 = vor.u32 %v2530, %v2531
      %v2533 = vrot.slane %v2532, 4
      %v2535 = vshll.u32 %v2402, 16
      %v2537 = vrot.slane %v2535, 5
      %v2538 = vsel %vm304, %v2533, %v2537
      %v2539 = vrot.slane %v2381, 4
      %v2540 = vrot.slane %v2384, 5
      %v2541 = vor.u32 %v2539, %v2540
      %v2542 = vrot.slane %v2541, 4
      %v2544 = vshll.u32 %v2403, 16
      %v2546 = vrot.slane %v2544, 5
      %v2547 = vsel %vm304, %v2542, %v2546
      %v2548 = vld [vmem:[#allocation2 + $0x10] sm:$0xee]
      %v2549 = vld [vmem:[#allocation2 + $0x18] sm:$0xee]
      %v2550 = vld [vmem:[#allocation2 + $0x40] sm:$0xee]
      %v2551 = vld [vmem:[#allocation2 + $0x48] sm:$0xee]
      %v2552 = vld [vmem:[#allocation2 + $0x70] sm:$0xee]
      %v2553 = vld [vmem:[#allocation2 + $0x78] sm:$0xee]
      %v2554 = vld [vmem:[#allocation2 + $0xa0] sm:$0xee]
      %v2555 = vld [vmem:[#allocation2 + $0xa8] sm:$0xee]
      %v2556 = vld [vmem:[#allocation2 + $0xd0] sm:$0xee]
      %v2557 = vld [vmem:[#allocation2 + $0xd8] sm:$0xee]
      %v2558 = vld [vmem:[#allocation2 + $0x100] sm:$0xee]
      %v2559 = vld [vmem:[#allocation2 + $0x108] sm:$0xee]
      %v2560 = vld [vmem:[#allocation2 + $0x130] sm:$0xee]
      %v2561 = vld [vmem:[#allocation2 + $0x138] sm:$0xee]
      %v2562 = vld [vmem:[#allocation2 + $0x160] sm:$0xee]
      %v2563 = vld [vmem:[#allocation2 + $0x168] sm:$0xee]
      %v2596 = vrot.slane %v2548, 5
      %v2597 = vrot.slane %v2596, 4
      %v2598 = vrot.slane %v2388, 5
      %v2599 = vsel %vm435, %v2597, %v2598
      %v2600 = vrot.slane %v2549, 5
      %v2601 = vrot.slane %v2600, 4
      %v2602 = vrot.slane %v2389, 5
      %v2603 = vsel %vm435, %v2601, %v2602
      %v2604 = vrot.slane %v2550, 5
      %v2605 = vrot.slane %v2604, 4
      %v2606 = vrot.slane %v2390, 5
      %v2607 = vsel %vm435, %v2605, %v2606
      %v2608 = vrot.slane %v2551, 5
      %v2609 = vrot.slane %v2608, 4
      %v2610 = vrot.slane %v2391, 5
      %v2611 = vsel %vm435, %v2609, %v2610
      %v2612 = vrot.slane %v2552, 5
      %v2613 = vrot.slane %v2612, 4
      %v2614 = vrot.slane %v2392, 5
      %v2615 = vsel %vm435, %v2613, %v2614
      %v2616 = vrot.slane %v2553, 5
      %v2617 = vrot.slane %v2616, 4
      %v2618 = vrot.slane %v2393, 5
      %v2619 = vsel %vm435, %v2617, %v2618
      %v2620 = vrot.slane %v2554, 5
      %v2621 = vrot.slane %v2620, 4
      %v2622 = vrot.slane %v2394, 5
      %v2623 = vsel %vm435, %v2621, %v2622
      %v2624 = vrot.slane %v2555, 5
      %v2625 = vrot.slane %v2624, 4
      %v2626 = vrot.slane %v2395, 5
      %v2627 = vsel %vm435, %v2625, %v2626
      %v2628 = vrot.slane %v2556, 5
      %v2629 = vrot.slane %v2628, 4
      %v2630 = vrot.slane %v2396, 5
      %v2631 = vsel %vm435, %v2629, %v2630
      %v2632 = vrot.slane %v2557, 5
      %v2633 = vrot.slane %v2632, 4
      %v2634 = vrot.slane %v2397, 5
      %v2635 = vsel %vm435, %v2633, %v2634
      %v2636 = vrot.slane %v2558, 5
      %v2637 = vrot.slane %v2636, 4
      %v2638 = vrot.slane %v2398, 5
      %v2639 = vsel %vm435, %v2637, %v2638
      %v2640 = vrot.slane %v2559, 5
      %v2641 = vrot.slane %v2640, 4
      %v2642 = vrot.slane %v2399, 5
      %v2643 = vsel %vm435, %v2641, %v2642
      %v2644 = vrot.slane %v2560, 5
      %v2645 = vrot.slane %v2644, 4
      %v2646 = vrot.slane %v2400, 5
      %v2647 = vsel %vm435, %v2645, %v2646
      %v2648 = vrot.slane %v2561, 5
      %v2649 = vrot.slane %v2648, 4
      %v2650 = vrot.slane %v2401, 5
      %v2651 = vsel %vm435, %v2649, %v2650
      %v2652 = vrot.slane %v2562, 5
      %v2653 = vrot.slane %v2652, 4
      %v2654 = vrot.slane %v2402, 5
      %v2655 = vsel %vm435, %v2653, %v2654
      %v2656 = vrot.slane %v2563, 5
      %v2657 = vrot.slane %v2656, 4
      %v2658 = vrot.slane %v2403, 5
      %v2659 = vsel %vm435, %v2657, %v2658
      %v2660 = vld [vmem:[#allocation2 + $0x20] sm:$0x33]
      %v2661 = vld [vmem:[#allocation2 + $0x28] sm:$0x33]
      %v2662 = vld [vmem:[#allocation2 + $0x50] sm:$0x33]
      %v2663 = vld [vmem:[#allocation2 + $0x58] sm:$0x33]
      %v2664 = vld [vmem:[#allocation2 + $0x80] sm:$0x33]
      %v2665 = vld [vmem:[#allocation2 + $0x88] sm:$0x33]
      %v2666 = vld [vmem:[#allocation2 + $0xb0] sm:$0x33]
      %v2667 = vld [vmem:[#allocation2 + $0xb8] sm:$0x33]
      %v2668 = vld [vmem:[#allocation2 + $0xe0] sm:$0x33]
      %v2669 = vld [vmem:[#allocation2 + $0xe8] sm:$0x33]
      %v2670 = vld [vmem:[#allocation2 + $0x110] sm:$0x33]
      %v2671 = vld [vmem:[#allocation2 + $0x118] sm:$0x33]
      %v2672 = vld [vmem:[#allocation2 + $0x140] sm:$0x33]
      %v2673 = vld [vmem:[#allocation2 + $0x148] sm:$0x33]
      %v2674 = vld [vmem:[#allocation2 + $0x170] sm:$0x33]
      %v2675 = vld [vmem:[#allocation2 + $0x178] sm:$0x33]
      %vm2676 = vsmask.f32 2304
      %vm2677 = vsmask.f32 6416
      %vm2678 = vmor %vm2676, %vm2677
      %v2680 = vshrl.u32 %v2548, 16
      %v2682 = vrot.slane %v2680, 5
      %v2683 = vshll.u32 %v2548, 16
      %v2685 = vrot.slane %v2683, 6
      %v2686 = vor.u32 %v2682, %v2685
      %v2687 = vrot.slane %v2686, 4
      %v2689 = vshrl.u32 %v2660, 16
      %v2691 = vrot.slane %v2689, 5
      %v2692 = vshll.u32 %v2660, 16
      %v2694 = vrot.slane %v2692, 6
      %v2695 = vor.u32 %v2691, %v2694
      %v2696 = vsel %vm2678, %v2687, %v2695
      %v2698 = vshrl.u32 %v2549, 16
      %v2700 = vrot.slane %v2698, 5
      %v2701 = vshll.u32 %v2549, 16
      %v2703 = vrot.slane %v2701, 6
      %v2704 = vor.u32 %v2700, %v2703
      %v2705 = vrot.slane %v2704, 4
      %v2707 = vshrl.u32 %v2661, 16
      %v2709 = vrot.slane %v2707, 5
      %v2710 = vshll.u32 %v2661, 16
      %v2712 = vrot.slane %v2710, 6
      %v2713 = vor.u32 %v2709, %v2712
      %v2714 = vsel %vm2678, %v2705, %v2713
      %v2716 = vshrl.u32 %v2550, 16
      %v2718 = vrot.slane %v2716, 5
      %v2719 = vshll.u32 %v2550, 16
      %v2721 = vrot.slane %v2719, 6
      %v2722 = vor.u32 %v2718, %v2721
      %v2723 = vrot.slane %v2722, 4
      %v2725 = vshrl.u32 %v2662, 16
      %v2727 = vrot.slane %v2725, 5
      %v2728 = vshll.u32 %v2662, 16
      %v2730 = vrot.slane %v2728, 6
      %v2731 = vor.u32 %v2727, %v2730
      %v2732 = vsel %vm2678, %v2723, %v2731
      %v2734 = vshrl.u32 %v2551, 16
      %v2736 = vrot.slane %v2734, 5
      %v2737 = vshll.u32 %v2551, 16
      %v2739 = vrot.slane %v2737, 6
      %v2740 = vor.u32 %v2736, %v2739
      %v2741 = vrot.slane %v2740, 4
      %v2743 = vshrl.u32 %v2663, 16
      %v2745 = vrot.slane %v2743, 5
      %v2746 = vshll.u32 %v2663, 16
      %v2748 = vrot.slane %v2746, 6
      %v2749 = vor.u32 %v2745, %v2748
      %v2750 = vsel %vm2678, %v2741, %v2749
      %v2752 = vshrl.u32 %v2552, 16
      %v2754 = vrot.slane %v2752, 5
      %v2755 = vshll.u32 %v2552, 16
      %v2757 = vrot.slane %v2755, 6
      %v2758 = vor.u32 %v2754, %v2757
      %v2759 = vrot.slane %v2758, 4
      %v2761 = vshrl.u32 %v2664, 16
      %v2763 = vrot.slane %v2761, 5
      %v2764 = vshll.u32 %v2664, 16
      %v2766 = vrot.slane %v2764, 6
      %v2767 = vor.u32 %v2763, %v2766
      %v2768 = vsel %vm2678, %v2759, %v2767
      %v2770 = vshrl.u32 %v2553, 16
      %v2772 = vrot.slane %v2770, 5
      %v2773 = vshll.u32 %v2553, 16
      %v2775 = vrot.slane %v2773, 6
      %v2776 = vor.u32 %v2772, %v2775
      %v2777 = vrot.slane %v2776, 4
      %v2779 = vshrl.u32 %v2665, 16
      %v2781 = vrot.slane %v2779, 5
      %v2782 = vshll.u32 %v2665, 16
      %v2784 = vrot.slane %v2782, 6
      %v2785 = vor.u32 %v2781, %v2784
      %v2786 = vsel %vm2678, %v2777, %v2785
      %v2788 = vshrl.u32 %v2554, 16
      %v2790 = vrot.slane %v2788, 5
      %v2791 = vshll.u32 %v2554, 16
      %v2793 = vrot.slane %v2791, 6
      %v2794 = vor.u32 %v2790, %v2793
      %v2795 = vrot.slane %v2794, 4
      %v2797 = vshrl.u32 %v2666, 16
      %v2799 = vrot.slane %v2797, 5
      %v2800 = vshll.u32 %v2666, 16
      %v2802 = vrot.slane %v2800, 6
      %v2803 = vor.u32 %v2799, %v2802
      %v2804 = vsel %vm2678, %v2795, %v2803
      %v2806 = vshrl.u32 %v2555, 16
      %v2808 = vrot.slane %v2806, 5
      %v2809 = vshll.u32 %v2555, 16
      %v2811 = vrot.slane %v2809, 6
      %v2812 = vor.u32 %v2808, %v2811
      %v2813 = vrot.slane %v2812, 4
      %v2815 = vshrl.u32 %v2667, 16
      %v2817 = vrot.slane %v2815, 5
      %v2818 = vshll.u32 %v2667, 16
      %v2820 = vrot.slane %v2818, 6
      %v2821 = vor.u32 %v2817, %v2820
      %v2822 = vsel %vm2678, %v2813, %v2821
      %v2824 = vshrl.u32 %v2556, 16
      %v2826 = vrot.slane %v2824, 5
      %v2827 = vshll.u32 %v2556, 16
      %v2829 = vrot.slane %v2827, 6
      %v2830 = vor.u32 %v2826, %v2829
      %v2831 = vrot.slane %v2830, 4
      %v2833 = vshrl.u32 %v2668, 16
      %v2835 = vrot.slane %v2833, 5
      %v2836 = vshll.u32 %v2668, 16
      %v2838 = vrot.slane %v2836, 6
      %v2839 = vor.u32 %v2835, %v2838
      %v2840 = vsel %vm2678, %v2831, %v2839
      %v2842 = vshrl.u32 %v2557, 16
      %v2844 = vrot.slane %v2842, 5
      %v2845 = vshll.u32 %v2557, 16
      %v2847 = vrot.slane %v2845, 6
      %v2848 = vor.u32 %v2844, %v2847
      %v2849 = vrot.slane %v2848, 4
      %v2851 = vshrl.u32 %v2669, 16
      %v2853 = vrot.slane %v2851, 5
      %v2854 = vshll.u32 %v2669, 16
      %v2856 = vrot.slane %v2854, 6
      %v2857 = vor.u32 %v2853, %v2856
      %v2858 = vsel %vm2678, %v2849, %v2857
      %v2860 = vshrl.u32 %v2558, 16
      %v2862 = vrot.slane %v2860, 5
      %v2863 = vshll.u32 %v2558, 16
      %v2865 = vrot.slane %v2863, 6
      %v2866 = vor.u32 %v2862, %v2865
      %v2867 = vrot.slane %v2866, 4
      %v2869 = vshrl.u32 %v2670, 16
      %v2871 = vrot.slane %v2869, 5
      %v2872 = vshll.u32 %v2670, 16
      %v2874 = vrot.slane %v2872, 6
      %v2875 = vor.u32 %v2871, %v2874
      %v2876 = vsel %vm2678, %v2867, %v2875
      %v2878 = vshrl.u32 %v2559, 16
      %v2880 = vrot.slane %v2878, 5
      %v2881 = vshll.u32 %v2559, 16
      %v2883 = vrot.slane %v2881, 6
      %v2884 = vor.u32 %v2880, %v2883
      %v2885 = vrot.slane %v2884, 4
      %v2887 = vshrl.u32 %v2671, 16
      %v2889 = vrot.slane %v2887, 5
      %v2890 = vshll.u32 %v2671, 16
      %v2892 = vrot.slane %v2890, 6
      %v2893 = vor.u32 %v2889, %v2892
      %v2894 = vsel %vm2678, %v2885, %v2893
      %v2896 = vshrl.u32 %v2560, 16
      %v2898 = vrot.slane %v2896, 5
      %v2899 = vshll.u32 %v2560, 16
      %v2901 = vrot.slane %v2899, 6
      %v2902 = vor.u32 %v2898, %v2901
      %v2903 = vrot.slane %v2902, 4
      %v2905 = vshrl.u32 %v2672, 16
      %v2907 = vrot.slane %v2905, 5
      %v2908 = vshll.u32 %v2672, 16
      %v2910 = vrot.slane %v2908, 6
      %v2911 = vor.u32 %v2907, %v2910
      %v2912 = vsel %vm2678, %v2903, %v2911
      %v2914 = vshrl.u32 %v2561, 16
      %v2916 = vrot.slane %v2914, 5
      %v2917 = vshll.u32 %v2561, 16
      %v2919 = vrot.slane %v2917, 6
      %v2920 = vor.u32 %v2916, %v2919
      %v2921 = vrot.slane %v2920, 4
      %v2923 = vshrl.u32 %v2673, 16
      %v2925 = vrot.slane %v2923, 5
      %v2926 = vshll.u32 %v2673, 16
      %v2928 = vrot.slane %v2926, 6
      %v2929 = vor.u32 %v2925, %v2928
      %v2930 = vsel %vm2678, %v2921, %v2929
      %v2932 = vshrl.u32 %v2562, 16
      %v2934 = vrot.slane %v2932, 5
      %v2935 = vshll.u32 %v2562, 16
      %v2937 = vrot.slane %v2935, 6
      %v2938 = vor.u32 %v2934, %v2937
      %v2939 = vrot.slane %v2938, 4
      %v2941 = vshrl.u32 %v2674, 16
      %v2943 = vrot.slane %v2941, 5
      %v2944 = vshll.u32 %v2674, 16
      %v2946 = vrot.slane %v2944, 6
      %v2947 = vor.u32 %v2943, %v2946
      %v2948 = vsel %vm2678, %v2939, %v2947
      %v2950 = vshrl.u32 %v2563, 16
      %v2952 = vrot.slane %v2950, 5
      %v2953 = vshll.u32 %v2563, 16
      %v2955 = vrot.slane %v2953, 6
      %v2956 = vor.u32 %v2952, %v2955
      %v2957 = vrot.slane %v2956, 4
      %v2959 = vshrl.u32 %v2675, 16
      %v2961 = vrot.slane %v2959, 5
      %v2962 = vshll.u32 %v2675, 16
      %v2964 = vrot.slane %v2962, 6
      %v2965 = vor.u32 %v2961, %v2964
      %v2966 = vsel %vm2678, %v2957, %v2965
      %v2967 = vunpack.c.l.b16 %v1775
      %v2968 = vunpack.c.h.b16 %v1775
      %v2969 = vunpack.c.l.b16 %v1793
      %v2970 = vunpack.c.h.b16 %v1793
      %v2971 = vunpack.c.l.b16 %v1811
      %v2972 = vunpack.c.h.b16 %v1811
      %v2973 = vunpack.c.l.b16 %v1829
      %v2974 = vunpack.c.h.b16 %v1829
      %v2975 = vunpack.c.l.b16 %v1847
      %v2976 = vunpack.c.h.b16 %v1847
      %v2977 = vunpack.c.l.b16 %v1865
      %v2978 = vunpack.c.h.b16 %v1865
      %v2979 = vunpack.c.l.b16 %v1883
      %v2980 = vunpack.c.h.b16 %v1883
      %v2981 = vunpack.c.l.b16 %v1901
      %v2982 = vunpack.c.h.b16 %v1901
      %v2983 = vunpack.c.l.b16 %v1919
      %v2984 = vunpack.c.h.b16 %v1919
      %v2985 = vunpack.c.l.b16 %v1937
      %v2986 = vunpack.c.h.b16 %v1937
      %v2987 = vunpack.c.l.b16 %v1955
      %v2988 = vunpack.c.h.b16 %v1955
      %v2989 = vunpack.c.l.b16 %v1973
      %v2990 = vunpack.c.h.b16 %v1973
      %v2991 = vunpack.c.l.b16 %v1991
      %v2992 = vunpack.c.h.b16 %v1991
      %v2993 = vunpack.c.l.b16 %v2009
      %v2994 = vunpack.c.h.b16 %v2009
      %v2995 = vunpack.c.l.b16 %v2027
      %v2996 = vunpack.c.h.b16 %v2027
      %v2997 = vunpack.c.l.b16 %v2045
      %v2998 = vunpack.c.h.b16 %v2045
      %v2999 = vpack.c.b16 %v2971, %v2967
      %v3000 = vpack.c.b16 %v2972, %v2968
      %v3001 = vpack.c.b16 %v2973, %v2969
      %v3002 = vpack.c.b16 %v2974, %v2970
      %v3003 = vpack.c.b16 %v2979, %v2975
      %v3004 = vpack.c.b16 %v2980, %v2976
      %v3005 = vpack.c.b16 %v2981, %v2977
      %v3006 = vpack.c.b16 %v2982, %v2978
      %v3007 = vpack.c.b16 %v2987, %v2983
      %v3008 = vpack.c.b16 %v2988, %v2984
      %v3009 = vpack.c.b16 %v2989, %v2985
      %v3010 = vpack.c.b16 %v2990, %v2986
      %v3011 = vpack.c.b16 %v2995, %v2991
      %v3012 = vpack.c.b16 %v2996, %v2992
      %v3013 = vpack.c.b16 %v2997, %v2993
      %v3014 = vpack.c.b16 %v2998, %v2994
      %v3031 = vunpack.c.l.b16 %v2100
      %v3032 = vunpack.c.h.b16 %v2100
      %v3033 = vunpack.c.l.b16 %v2104
      %v3034 = vunpack.c.h.b16 %v2104
      %v3035 = vunpack.c.l.b16 %v2108
      %v3036 = vunpack.c.h.b16 %v2108
      %v3037 = vunpack.c.l.b16 %v2112
      %v3038 = vunpack.c.h.b16 %v2112
      %v3039 = vunpack.c.l.b16 %v2116
      %v3040 = vunpack.c.h.b16 %v2116
      %v3041 = vunpack.c.l.b16 %v2120
      %v3042 = vunpack.c.h.b16 %v2120
      %v3043 = vunpack.c.l.b16 %v2124
      %v3044 = vunpack.c.h.b16 %v2124
      %v3045 = vunpack.c.l.b16 %v2128
      %v3046 = vunpack.c.h.b16 %v2128
      %v3047 = vunpack.c.l.b16 %v2132
      %v3048 = vunpack.c.h.b16 %v2132
      %v3049 = vunpack.c.l.b16 %v2136
      %v3050 = vunpack.c.h.b16 %v2136
      %v3051 = vunpack.c.l.b16 %v2140
      %v3052 = vunpack.c.h.b16 %v2140
      %v3053 = vunpack.c.l.b16 %v2144
      %v3054 = vunpack.c.h.b16 %v2144
      %v3055 = vunpack.c.l.b16 %v2148
      %v3056 = vunpack.c.h.b16 %v2148
      %v3057 = vunpack.c.l.b16 %v2152
      %v3058 = vunpack.c.h.b16 %v2152
      %v3059 = vunpack.c.l.b16 %v2156
      %v3060 = vunpack.c.h.b16 %v2156
      %v3061 = vunpack.c.l.b16 %v2160
      %v3062 = vunpack.c.h.b16 %v2160
      %v3063 = vpack.c.b16 %v3035, %v3031
      %v3064 = vpack.c.b16 %v3036, %v3032
      %v3065 = vpack.c.b16 %v3037, %v3033
      %v3066 = vpack.c.b16 %v3038, %v3034
      %v3067 = vpack.c.b16 %v3043, %v3039
      %v3068 = vpack.c.b16 %v3044, %v3040
      %v3069 = vpack.c.b16 %v3045, %v3041
      %v3070 = vpack.c.b16 %v3046, %v3042
      %v3071 = vpack.c.b16 %v3051, %v3047
      %v3072 = vpack.c.b16 %v3052, %v3048
      %v3073 = vpack.c.b16 %v3053, %v3049
      %v3074 = vpack.c.b16 %v3054, %v3050
      %v3075 = vpack.c.b16 %v3059, %v3055
      %v3076 = vpack.c.b16 %v3060, %v3056
      %v3077 = vpack.c.b16 %v3061, %v3057
      %v3078 = vpack.c.b16 %v3062, %v3058
      %v3095 = vunpack.c.l.b16 %v2192
      %v3096 = vunpack.c.h.b16 %v2192
      %v3097 = vunpack.c.l.b16 %v2205
      %v3098 = vunpack.c.h.b16 %v2205
      %v3099 = vunpack.c.l.b16 %v2218
      %v3100 = vunpack.c.h.b16 %v2218
      %v3101 = vunpack.c.l.b16 %v2231
      %v3102 = vunpack.c.h.b16 %v2231
      %v3103 = vunpack.c.l.b16 %v2244
      %v3104 = vunpack.c.h.b16 %v2244
      %v3105 = vunpack.c.l.b16 %v2257
      %v3106 = vunpack.c.h.b16 %v2257
      %v3107 = vunpack.c.l.b16 %v2270
      %v3108 = vunpack.c.h.b16 %v2270
      %v3109 = vunpack.c.l.b16 %v2283
      %v3110 = vunpack.c.h.b16 %v2283
      %v3111 = vunpack.c.l.b16 %v2296
      %v3112 = vunpack.c.h.b16 %v2296
      %v3113 = vunpack.c.l.b16 %v2309
      %v3114 = vunpack.c.h.b16 %v2309
      %v3115 = vunpack.c.l.b16 %v2322
      %v3116 = vunpack.c.h.b16 %v2322
      %v3117 = vunpack.c.l.b16 %v2335
      %v3118 = vunpack.c.h.b16 %v2335
      %v3119 = vunpack.c.l.b16 %v2348
      %v3120 = vunpack.c.h.b16 %v2348
      %v3121 = vunpack.c.l.b16 %v2361
      %v3122 = vunpack.c.h.b16 %v2361
      %v3123 = vunpack.c.l.b16 %v2374
      %v3124 = vunpack.c.h.b16 %v2374
      %v3125 = vunpack.c.l.b16 %v2387
      %v3126 = vunpack.c.h.b16 %v2387
      %v3127 = vpack.c.b16 %v3099, %v3095
      %v3128 = vpack.c.b16 %v3100, %v3096
      %v3129 = vpack.c.b16 %v3101, %v3097
      %v3130 = vpack.c.b16 %v3102, %v3098
      %v3131 = vpack.c.b16 %v3107, %v3103
      %v3132 = vpack.c.b16 %v3108, %v3104
      %v3133 = vpack.c.b16 %v3109, %v3105
      %v3134 = vpack.c.b16 %v3110, %v3106
      %v3135 = vpack.c.b16 %v3115, %v3111
      %v3136 = vpack.c.b16 %v3116, %v3112
      %v3137 = vpack.c.b16 %v3117, %v3113
      %v3138 = vpack.c.b16 %v3118, %v3114
      %v3139 = vpack.c.b16 %v3123, %v3119
      %v3140 = vpack.c.b16 %v3124, %v3120
      %v3141 = vpack.c.b16 %v3125, %v3121
      %v3142 = vpack.c.b16 %v3126, %v3122
      %v3175 = vunpack.c.l.b16 %v2161
      %v3176 = vunpack.c.h.b16 %v2161
      %v3177 = vunpack.c.l.b16 %v2162
      %v3178 = vunpack.c.h.b16 %v2162
      %v3179 = vunpack.c.l.b16 %v2163
      %v3180 = vunpack.c.h.b16 %v2163
      %v3181 = vunpack.c.l.b16 %v2164
      %v3182 = vunpack.c.h.b16 %v2164
      %v3183 = vunpack.c.l.b16 %v2165
      %v3184 = vunpack.c.h.b16 %v2165
      %v3185 = vunpack.c.l.b16 %v2166
      %v3186 = vunpack.c.h.b16 %v2166
      %v3187 = vunpack.c.l.b16 %v2167
      %v3188 = vunpack.c.h.b16 %v2167
      %v3189 = vunpack.c.l.b16 %v2168
      %v3190 = vunpack.c.h.b16 %v2168
      %v3191 = vunpack.c.l.b16 %v2169
      %v3192 = vunpack.c.h.b16 %v2169
      %v3193 = vunpack.c.l.b16 %v2170
      %v3194 = vunpack.c.h.b16 %v2170
      %v3195 = vunpack.c.l.b16 %v2171
      %v3196 = vunpack.c.h.b16 %v2171
      %v3197 = vunpack.c.l.b16 %v2172
      %v3198 = vunpack.c.h.b16 %v2172
      %v3199 = vunpack.c.l.b16 %v2173
      %v3200 = vunpack.c.h.b16 %v2173
      %v3201 = vunpack.c.l.b16 %v2174
      %v3202 = vunpack.c.h.b16 %v2174
      %v3203 = vunpack.c.l.b16 %v2175
      %v3204 = vunpack.c.h.b16 %v2175
      %v3205 = vunpack.c.l.b16 %v2176
      %v3206 = vunpack.c.h.b16 %v2176
      %v3207 = vpack.c.b16 %v3179, %v3175
      %v3208 = vpack.c.b16 %v3180, %v3176
      %v3209 = vpack.c.b16 %v3181, %v3177
      %v3210 = vpack.c.b16 %v3182, %v3178
      %v3211 = vpack.c.b16 %v3187, %v3183
      %v3212 = vpack.c.b16 %v3188, %v3184
      %v3213 = vpack.c.b16 %v3189, %v3185
      %v3214 = vpack.c.b16 %v3190, %v3186
      %v3215 = vpack.c.b16 %v3195, %v3191
      %v3216 = vpack.c.b16 %v3196, %v3192
      %v3217 = vpack.c.b16 %v3197, %v3193
      %v3218 = vpack.c.b16 %v3198, %v3194
      %v3219 = vpack.c.b16 %v3203, %v3199
      %v3220 = vpack.c.b16 %v3204, %v3200
      %v3221 = vpack.c.b16 %v3205, %v3201
      %v3222 = vpack.c.b16 %v3206, %v3202
      %v3239 = vunpack.c.l.b16 %v2412
      %v3240 = vunpack.c.h.b16 %v2412
      %v3241 = vunpack.c.l.b16 %v2421
      %v3242 = vunpack.c.h.b16 %v2421
      %v3243 = vunpack.c.l.b16 %v2430
      %v3244 = vunpack.c.h.b16 %v2430
      %v3245 = vunpack.c.l.b16 %v2439
      %v3246 = vunpack.c.h.b16 %v2439
      %v3247 = vunpack.c.l.b16 %v2448
      %v3248 = vunpack.c.h.b16 %v2448
      %v3249 = vunpack.c.l.b16 %v2457
      %v3250 = vunpack.c.h.b16 %v2457
      %v3251 = vunpack.c.l.b16 %v2466
      %v3252 = vunpack.c.h.b16 %v2466
      %v3253 = vunpack.c.l.b16 %v2475
      %v3254 = vunpack.c.h.b16 %v2475
      %v3255 = vunpack.c.l.b16 %v2484
      %v3256 = vunpack.c.h.b16 %v2484
      %v3257 = vunpack.c.l.b16 %v2493
      %v3258 = vunpack.c.h.b16 %v2493
      %v3259 = vunpack.c.l.b16 %v2502
      %v3260 = vunpack.c.h.b16 %v2502
      %v3261 = vunpack.c.l.b16 %v2511
      %v3262 = vunpack.c.h.b16 %v2511
      %v3263 = vunpack.c.l.b16 %v2520
      %v3264 = vunpack.c.h.b16 %v2520
      %v3265 = vunpack.c.l.b16 %v2529
      %v3266 = vunpack.c.h.b16 %v2529
      %v3267 = vunpack.c.l.b16 %v2538
      %v3268 = vunpack.c.h.b16 %v2538
      %v3269 = vunpack.c.l.b16 %v2547
      %v3270 = vunpack.c.h.b16 %v2547
      %v3271 = vpack.c.b16 %v3243, %v3239
      %v3272 = vpack.c.b16 %v3244, %v3240
      %v3273 = vpack.c.b16 %v3245, %v3241
      %v3274 = vpack.c.b16 %v3246, %v3242
      %v3275 = vpack.c.b16 %v3251, %v3247
      %v3276 = vpack.c.b16 %v3252, %v3248
      %v3277 = vpack.c.b16 %v3253, %v3249
      %v3278 = vpack.c.b16 %v3254, %v3250
      %v3279 = vpack.c.b16 %v3259, %v3255
      %v3280 = vpack.c.b16 %v3260, %v3256
      %v3281 = vpack.c.b16 %v3261, %v3257
      %v3282 = vpack.c.b16 %v3262, %v3258
      %v3283 = vpack.c.b16 %v3267, %v3263
      %v3284 = vpack.c.b16 %v3268, %v3264
      %v3285 = vpack.c.b16 %v3269, %v3265
      %v3286 = vpack.c.b16 %v3270, %v3266
      %v3303 = vunpack.c.l.b16 %v2599
      %v3304 = vunpack.c.h.b16 %v2599
      %v3305 = vunpack.c.l.b16 %v2603
      %v3306 = vunpack.c.h.b16 %v2603
      %v3307 = vunpack.c.l.b16 %v2607
      %v3308 = vunpack.c.h.b16 %v2607
      %v3309 = vunpack.c.l.b16 %v2611
      %v3310 = vunpack.c.h.b16 %v2611
      %v3311 = vunpack.c.l.b16 %v2615
      %v3312 = vunpack.c.h.b16 %v2615
      %v3313 = vunpack.c.l.b16 %v2619
      %v3314 = vunpack.c.h.b16 %v2619
      %v3315 = vunpack.c.l.b16 %v2623
      %v3316 = vunpack.c.h.b16 %v2623
      %v3317 = vunpack.c.l.b16 %v2627
      %v3318 = vunpack.c.h.b16 %v2627
      %v3319 = vunpack.c.l.b16 %v2631
      %v3320 = vunpack.c.h.b16 %v2631
      %v3321 = vunpack.c.l.b16 %v2635
      %v3322 = vunpack.c.h.b16 %v2635
      %v3323 = vunpack.c.l.b16 %v2639
      %v3324 = vunpack.c.h.b16 %v2639
      %v3325 = vunpack.c.l.b16 %v2643
      %v3326 = vunpack.c.h.b16 %v2643
      %v3327 = vunpack.c.l.b16 %v2647
      %v3328 = vunpack.c.h.b16 %v2647
      %v3329 = vunpack.c.l.b16 %v2651
      %v3330 = vunpack.c.h.b16 %v2651
      %v3331 = vunpack.c.l.b16 %v2655
      %v3332 = vunpack.c.h.b16 %v2655
      %v3333 = vunpack.c.l.b16 %v2659
      %v3334 = vunpack.c.h.b16 %v2659
      %v3335 = vpack.c.b16 %v3307, %v3303
      %v3336 = vpack.c.b16 %v3308, %v3304
      %v3337 = vpack.c.b16 %v3309, %v3305
      %v3338 = vpack.c.b16 %v3310, %v3306
      %v3339 = vpack.c.b16 %v3315, %v3311
      %v3340 = vpack.c.b16 %v3316, %v3312
      %v3341 = vpack.c.b16 %v3317, %v3313
      %v3342 = vpack.c.b16 %v3318, %v3314
      %v3343 = vpack.c.b16 %v3323, %v3319
      %v3344 = vpack.c.b16 %v3324, %v3320
      %v3345 = vpack.c.b16 %v3325, %v3321
      %v3346 = vpack.c.b16 %v3326, %v3322
      %v3347 = vpack.c.b16 %v3331, %v3327
      %v3348 = vpack.c.b16 %v3332, %v3328
      %v3349 = vpack.c.b16 %v3333, %v3329
      %v3350 = vpack.c.b16 %v3334, %v3330
      %v3367 = vunpack.c.l.b16 %v2696
      %v3368 = vunpack.c.h.b16 %v2696
      %v3369 = vunpack.c.l.b16 %v2714
      %v3370 = vunpack.c.h.b16 %v2714
      %v3371 = vunpack.c.l.b16 %v2732
      %v3372 = vunpack.c.h.b16 %v2732
      %v3373 = vunpack.c.l.b16 %v2750
      %v3374 = vunpack.c.h.b16 %v2750
      %v3375 = vunpack.c.l.b16 %v2768
      %v3376 = vunpack.c.h.b16 %v2768
      %v3377 = vunpack.c.l.b16 %v2786
      %v3378 = vunpack.c.h.b16 %v2786
      %v3379 = vunpack.c.l.b16 %v2804
      %v3380 = vunpack.c.h.b16 %v2804
      %v3381 = vunpack.c.l.b16 %v2822
      %v3382 = vunpack.c.h.b16 %v2822
      %v3383 = vunpack.c.l.b16 %v2840
      %v3384 = vunpack.c.h.b16 %v2840
      %v3385 = vunpack.c.l.b16 %v2858
      %v3386 = vunpack.c.h.b16 %v2858
      %v3387 = vunpack.c.l.b16 %v2876
      %v3388 = vunpack.c.h.b16 %v2876
      %v3389 = vunpack.c.l.b16 %v2894
      %v3390 = vunpack.c.h.b16 %v2894
      %v3391 = vunpack.c.l.b16 %v2912
      %v3392 = vunpack.c.h.b16 %v2912
      %v3393 = vunpack.c.l.b16 %v2930
      %v3394 = vunpack.c.h.b16 %v2930
      %v3395 = vunpack.c.l.b16 %v2948
      %v3396 = vunpack.c.h.b16 %v2948
      %v3397 = vunpack.c.l.b16 %v2966
      %v3398 = vunpack.c.h.b16 %v2966
      %v3399 = vpack.c.b16 %v3371, %v3367
      %v3400 = vpack.c.b16 %v3372, %v3368
      %v3401 = vpack.c.b16 %v3373, %v3369
      %v3402 = vpack.c.b16 %v3374, %v3370
      %v3403 = vpack.c.b16 %v3379, %v3375
      %v3404 = vpack.c.b16 %v3380, %v3376
      %v3405 = vpack.c.b16 %v3381, %v3377
      %v3406 = vpack.c.b16 %v3382, %v3378
      %v3407 = vpack.c.b16 %v3387, %v3383
      %v3408 = vpack.c.b16 %v3388, %v3384
      %v3409 = vpack.c.b16 %v3389, %v3385
      %v3410 = vpack.c.b16 %v3390, %v3386
      %v3411 = vpack.c.b16 %v3395, %v3391
      %v3412 = vpack.c.b16 %v3396, %v3392
      %v3413 = vpack.c.b16 %v3397, %v3393
      %v3414 = vpack.c.b16 %v3398, %v3394
      %v3431 = vld [vmem:[%s3] sm:$0xff]
      %v3432 = vld [vmem:[%s3 + $0x8] sm:$0xff]
      %v3433 = vld [vmem:[%s3 + $0x10] sm:$0xff]
      %v3434 = vld [vmem:[%s3 + $0x18] sm:$0xff]
      %v3435 = vld [vmem:[%s3 + $0x20] sm:$0xff]
      %v3436 = vld [vmem:[%s3 + $0x28] sm:$0xff]
      %v3437 = vld [vmem:[%s3 + $0x30] sm:$0xff]
      %v3438 = vld [vmem:[%s3 + $0x38] sm:$0xff]
      %v3439 = vld [vmem:[%s3 + $0x40] sm:$0xff]
      %v3440 = vld [vmem:[%s3 + $0x48] sm:$0xff]
      %v3441 = vld [vmem:[%s3 + $0x50] sm:$0xff]
      %v3442 = vld [vmem:[%s3 + $0x58] sm:$0xff]
      %v3443 = vld [vmem:[%s3 + $0x60] sm:$0xff]
      %v3444 = vld [vmem:[%s3 + $0x68] sm:$0xff]
      %v3445 = vld [vmem:[%s3 + $0x70] sm:$0xff]
      %v3446 = vld [vmem:[%s3 + $0x78] sm:$0xff]
      %v3447 = vld [vmem:[%s3 + $0x80] sm:$0xff]
      %v3448 = vld [vmem:[%s3 + $0x88] sm:$0xff]
      %v3449 = vld [vmem:[%s3 + $0x90] sm:$0xff]
      %v3450 = vld [vmem:[%s3 + $0x98] sm:$0xff]
      %v3451 = vld [vmem:[%s3 + $0xa0] sm:$0xff]
      %v3452 = vld [vmem:[%s3 + $0xa8] sm:$0xff]
      %v3453 = vld [vmem:[%s3 + $0xb0] sm:$0xff]
      %v3454 = vld [vmem:[%s3 + $0xb8] sm:$0xff]
      %v3455 = vld [vmem:[%s3 + $0xc0] sm:$0xff]
      %v3456 = vld [vmem:[%s3 + $0xc8] sm:$0xff]
      %v3457 = vld [vmem:[%s3 + $0xd0] sm:$0xff]
      %v3458 = vld [vmem:[%s3 + $0xd8] sm:$0xff]
      %v3459 = vld [vmem:[%s3 + $0xe0] sm:$0xff]
      %v3460 = vld [vmem:[%s3 + $0xe8] sm:$0xff]
      %v3461 = vld [vmem:[%s3 + $0xf0] sm:$0xff]
      %v3462 = vld [vmem:[%s3 + $0xf8] sm:$0xff]
      %v3463 = vld [vmem:[%s3 + $0x100] sm:$0xff]
      %v3464 = vld [vmem:[%s3 + $0x108] sm:$0xff]
      %v3465 = vld [vmem:[%s3 + $0x110] sm:$0xff]
      %v3466 = vld [vmem:[%s3 + $0x118] sm:$0xff]
      %v3467 = vld [vmem:[%s3 + $0x120] sm:$0xff]
      %v3468 = vld [vmem:[%s3 + $0x128] sm:$0xff]
      %v3469 = vld [vmem:[%s3 + $0x130] sm:$0xff]
      %v3470 = vld [vmem:[%s3 + $0x138] sm:$0xff]
      %v3471 = vld [vmem:[%s3 + $0x140] sm:$0xff]
      %v3472 = vld [vmem:[%s3 + $0x148] sm:$0xff]
      %v3473 = vld [vmem:[%s3 + $0x150] sm:$0xff]
      %v3474 = vld [vmem:[%s3 + $0x158] sm:$0xff]
      %v3475 = vld [vmem:[%s3 + $0x160] sm:$0xff]
      %v3476 = vld [vmem:[%s3 + $0x168] sm:$0xff]
      %v3477 = vld [vmem:[%s3 + $0x170] sm:$0xff]
      %v3478 = vld [vmem:[%s3 + $0x178] sm:$0xff]
      %v3479 = vld [vmem:[%s3 + $0x180] sm:$0xff]
      %v3480 = vld [vmem:[%s3 + $0x188] sm:$0xff]
      %v3481 = vld [vmem:[%s3 + $0x190] sm:$0xff]
      %v3482 = vld [vmem:[%s3 + $0x198] sm:$0xff]
      %v3483 = vld [vmem:[%s3 + $0x1a0] sm:$0xff]
      %v3484 = vld [vmem:[%s3 + $0x1a8] sm:$0xff]
      %v3485 = vld [vmem:[%s3 + $0x1b0] sm:$0xff]
      %v3486 = vld [vmem:[%s3 + $0x1b8] sm:$0xff]
      %v3487 = vld [vmem:[%s3 + $0x1c0] sm:$0xff]
      %v3488 = vld [vmem:[%s3 + $0x1c8] sm:$0xff]
      %v3489 = vld [vmem:[%s3 + $0x1d0] sm:$0xff]
      %v3490 = vld [vmem:[%s3 + $0x1d8] sm:$0xff]
      %v3491 = vld [vmem:[%s3 + $0x1e0] sm:$0xff]
      %v3492 = vld [vmem:[%s3 + $0x1e8] sm:$0xff]
      %v3493 = vld [vmem:[%s3 + $0x1f0] sm:$0xff]
      %v3494 = vld [vmem:[%s3 + $0x1f8] sm:$0xff]
      %v3495 = vld [vmem:[%s3 + $0x200] sm:$0xff]
      %v3496 = vld [vmem:[%s3 + $0x208] sm:$0xff]
      %v3497 = vld [vmem:[%s3 + $0x210] sm:$0xff]
      %v3498 = vld [vmem:[%s3 + $0x218] sm:$0xff]
      %v3499 = vld [vmem:[%s3 + $0x220] sm:$0xff]
      %v3500 = vld [vmem:[%s3 + $0x228] sm:$0xff]
      %v3501 = vld [vmem:[%s3 + $0x230] sm:$0xff]
      %v3502 = vld [vmem:[%s3 + $0x238] sm:$0xff]
      %v3503 = vld [vmem:[%s3 + $0x240] sm:$0xff]
      %v3504 = vld [vmem:[%s3 + $0x248] sm:$0xff]
      %v3505 = vld [vmem:[%s3 + $0x250] sm:$0xff]
      %v3506 = vld [vmem:[%s3 + $0x258] sm:$0xff]
      %v3507 = vld [vmem:[%s3 + $0x260] sm:$0xff]
      %v3508 = vld [vmem:[%s3 + $0x268] sm:$0xff]
      %v3509 = vld [vmem:[%s3 + $0x270] sm:$0xff]
      %v3510 = vld [vmem:[%s3 + $0x278] sm:$0xff]
      %v3511 = vld [vmem:[%s3 + $0x280] sm:$0xff]
      %v3512 = vld [vmem:[%s3 + $0x288] sm:$0xff]
      %v3513 = vld [vmem:[%s3 + $0x290] sm:$0xff]
      %v3514 = vld [vmem:[%s3 + $0x298] sm:$0xff]
      %v3515 = vld [vmem:[%s3 + $0x2a0] sm:$0xff]
      %v3516 = vld [vmem:[%s3 + $0x2a8] sm:$0xff]
      %v3517 = vld [vmem:[%s3 + $0x2b0] sm:$0xff]
      %v3518 = vld [vmem:[%s3 + $0x2b8] sm:$0xff]
      %v3519 = vld [vmem:[%s3 + $0x2c0] sm:$0xff]
      %v3520 = vld [vmem:[%s3 + $0x2c8] sm:$0xff]
      %v3521 = vld [vmem:[%s3 + $0x2d0] sm:$0xff]
      %v3522 = vld [vmem:[%s3 + $0x2d8] sm:$0xff]
      %v3523 = vld [vmem:[%s3 + $0x2e0] sm:$0xff]
      %v3524 = vld [vmem:[%s3 + $0x2e8] sm:$0xff]
      %v3525 = vld [vmem:[%s3 + $0x2f0] sm:$0xff]
      %v3526 = vld [vmem:[%s3 + $0x2f8] sm:$0xff]
      %v3527 = vld [vmem:[%s3 + $0x300] sm:$0xff]
      %v3528 = vld [vmem:[%s3 + $0x308] sm:$0xff]
      %v3529 = vld [vmem:[%s3 + $0x310] sm:$0xff]
      %v3530 = vld [vmem:[%s3 + $0x318] sm:$0xff]
      %v3531 = vld [vmem:[%s3 + $0x320] sm:$0xff]
      %v3532 = vld [vmem:[%s3 + $0x328] sm:$0xff]
      %v3533 = vld [vmem:[%s3 + $0x330] sm:$0xff]
      %v3534 = vld [vmem:[%s3 + $0x338] sm:$0xff]
      %v3535 = vld [vmem:[%s3 + $0x340] sm:$0xff]
      %v3536 = vld [vmem:[%s3 + $0x348] sm:$0xff]
      %v3537 = vld [vmem:[%s3 + $0x350] sm:$0xff]
      %v3538 = vld [vmem:[%s3 + $0x358] sm:$0xff]
      %v3539 = vld [vmem:[%s3 + $0x360] sm:$0xff]
      %v3540 = vld [vmem:[%s3 + $0x368] sm:$0xff]
      %v3541 = vld [vmem:[%s3 + $0x370] sm:$0xff]
      %v3542 = vld [vmem:[%s3 + $0x378] sm:$0xff]
      %v3543 = vld [vmem:[%s3 + $0x380] sm:$0xff]
      %v3544 = vld [vmem:[%s3 + $0x388] sm:$0xff]
      %v3545 = vld [vmem:[%s3 + $0x390] sm:$0xff]
      %v3546 = vld [vmem:[%s3 + $0x398] sm:$0xff]
      %v3547 = vld [vmem:[%s3 + $0x3a0] sm:$0xff]
      %v3548 = vld [vmem:[%s3 + $0x3a8] sm:$0xff]
      %v3549 = vld [vmem:[%s3 + $0x3b0] sm:$0xff]
      %v3550 = vld [vmem:[%s3 + $0x3b8] sm:$0xff]
      %v3551 = vld [vmem:[%s3 + $0x3c0] sm:$0xff]
      %v3552 = vld [vmem:[%s3 + $0x3c8] sm:$0xff]
      %v3553 = vld [vmem:[%s3 + $0x3d0] sm:$0xff]
      %v3554 = vld [vmem:[%s3 + $0x3d8] sm:$0xff]
      %v3555 = vld [vmem:[%s3 + $0x3e0] sm:$0xff]
      %v3556 = vld [vmem:[%s3 + $0x3e8] sm:$0xff]
      %v3557 = vld [vmem:[%s3 + $0x3f0] sm:$0xff]
      %v3558 = vld [vmem:[%s3 + $0x3f8] sm:$0xff]
      %v3559 = vld [vmem:[%s3 + $0x400] sm:$0xff]
      %v3560 = vld [vmem:[%s3 + $0x408] sm:$0xff]
      %v3561 = vld [vmem:[%s3 + $0x410] sm:$0xff]
      %v3562 = vld [vmem:[%s3 + $0x418] sm:$0xff]
      %v3563 = vld [vmem:[%s3 + $0x420] sm:$0xff]
      %v3564 = vld [vmem:[%s3 + $0x428] sm:$0xff]
      %v3565 = vld [vmem:[%s3 + $0x430] sm:$0xff]
      %v3566 = vld [vmem:[%s3 + $0x438] sm:$0xff]
      %v3567 = vld [vmem:[%s3 + $0x440] sm:$0xff]
      %v3568 = vld [vmem:[%s3 + $0x448] sm:$0xff]
      %v3569 = vld [vmem:[%s3 + $0x450] sm:$0xff]
      %v3570 = vld [vmem:[%s3 + $0x458] sm:$0xff]
      %v3571 = vld [vmem:[%s3 + $0x460] sm:$0xff]
      %v3572 = vld [vmem:[%s3 + $0x468] sm:$0xff]
      %v3573 = vld [vmem:[%s3 + $0x470] sm:$0xff]
      %v3574 = vld [vmem:[%s3 + $0x478] sm:$0xff]
      %v3575 = vld [vmem:[%s3 + $0x480] sm:$0xff]
      %v3576 = vld [vmem:[%s3 + $0x488] sm:$0xff]
      %v3577 = vld [vmem:[%s3 + $0x490] sm:$0xff]
      %v3578 = vld [vmem:[%s3 + $0x498] sm:$0xff]
      %v3579 = vld [vmem:[%s3 + $0x4a0] sm:$0xff]
      %v3580 = vld [vmem:[%s3 + $0x4a8] sm:$0xff]
      %v3581 = vld [vmem:[%s3 + $0x4b0] sm:$0xff]
      %v3582 = vld [vmem:[%s3 + $0x4b8] sm:$0xff]
      %v3583 = vld [vmem:[%s3 + $0x4c0] sm:$0xff]
      %v3584 = vld [vmem:[%s3 + $0x4c8] sm:$0xff]
      %v3585 = vld [vmem:[%s3 + $0x4d0] sm:$0xff]
      %v3586 = vld [vmem:[%s3 + $0x4d8] sm:$0xff]
      %v3587 = vld [vmem:[%s3 + $0x4e0] sm:$0xff]
      %v3588 = vld [vmem:[%s3 + $0x4e8] sm:$0xff]
      %v3589 = vld [vmem:[%s3 + $0x4f0] sm:$0xff]
      %v3590 = vld [vmem:[%s3 + $0x4f8] sm:$0xff]
      %v3591 = vld [vmem:[%s3 + $0x500] sm:$0xff]
      %v3592 = vld [vmem:[%s3 + $0x508] sm:$0xff]
      %v3593 = vld [vmem:[%s3 + $0x510] sm:$0xff]
      %v3594 = vld [vmem:[%s3 + $0x518] sm:$0xff]
      %v3595 = vld [vmem:[%s3 + $0x520] sm:$0xff]
      %v3596 = vld [vmem:[%s3 + $0x528] sm:$0xff]
      %v3597 = vld [vmem:[%s3 + $0x530] sm:$0xff]
      %v3598 = vld [vmem:[%s3 + $0x538] sm:$0xff]
      %v3599 = vld [vmem:[%s3 + $0x540] sm:$0xff]
      %v3600 = vld [vmem:[%s3 + $0x548] sm:$0xff]
      %v3601 = vld [vmem:[%s3 + $0x550] sm:$0xff]
      %v3602 = vld [vmem:[%s3 + $0x558] sm:$0xff]
      %v3603 = vld [vmem:[%s3 + $0x560] sm:$0xff]
      %v3604 = vld [vmem:[%s3 + $0x568] sm:$0xff]
      %v3605 = vld [vmem:[%s3 + $0x570] sm:$0xff]
      %v3606 = vld [vmem:[%s3 + $0x578] sm:$0xff]
      %v3607 = vld [vmem:[%s3 + $0x580] sm:$0xff]
      %v3608 = vld [vmem:[%s3 + $0x588] sm:$0xff]
      %v3609 = vld [vmem:[%s3 + $0x590] sm:$0xff]
      %v3610 = vld [vmem:[%s3 + $0x598] sm:$0xff]
      %v3611 = vld [vmem:[%s3 + $0x5a0] sm:$0xff]
      %v3612 = vld [vmem:[%s3 + $0x5a8] sm:$0xff]
      %v3613 = vld [vmem:[%s3 + $0x5b0] sm:$0xff]
      %v3614 = vld [vmem:[%s3 + $0x5b8] sm:$0xff]
      %v3615 = vld [vmem:[%s3 + $0x5c0] sm:$0xff]
      %v3616 = vld [vmem:[%s3 + $0x5c8] sm:$0xff]
      %v3617 = vld [vmem:[%s3 + $0x5d0] sm:$0xff]
      %v3618 = vld [vmem:[%s3 + $0x5d8] sm:$0xff]
      %v3619 = vld [vmem:[%s3 + $0x5e0] sm:$0xff]
      %v3620 = vld [vmem:[%s3 + $0x5e8] sm:$0xff]
      %v3621 = vld [vmem:[%s3 + $0x5f0] sm:$0xff]
      %v3622 = vld [vmem:[%s3 + $0x5f8] sm:$0xff]
      %v3623 = vld [vmem:[%s3 + $0x600] sm:$0xff]
      %v3624 = vld [vmem:[%s3 + $0x608] sm:$0xff]
      %v3625 = vld [vmem:[%s3 + $0x610] sm:$0xff]
      %v3626 = vld [vmem:[%s3 + $0x618] sm:$0xff]
      %v3627 = vld [vmem:[%s3 + $0x620] sm:$0xff]
      %v3628 = vld [vmem:[%s3 + $0x628] sm:$0xff]
      %v3629 = vld [vmem:[%s3 + $0x630] sm:$0xff]
      %v3630 = vld [vmem:[%s3 + $0x638] sm:$0xff]
      %v3631 = vld [vmem:[%s3 + $0x640] sm:$0xff]
      %v3632 = vld [vmem:[%s3 + $0x648] sm:$0xff]
      %v3633 = vld [vmem:[%s3 + $0x650] sm:$0xff]
      %v3634 = vld [vmem:[%s3 + $0x658] sm:$0xff]
      %v3635 = vld [vmem:[%s3 + $0x660] sm:$0xff]
      %v3636 = vld [vmem:[%s3 + $0x668] sm:$0xff]
      %v3637 = vld [vmem:[%s3 + $0x670] sm:$0xff]
      %v3638 = vld [vmem:[%s3 + $0x678] sm:$0xff]
      %v3639 = vld [vmem:[%s3 + $0x680] sm:$0xff]
      %v3640 = vld [vmem:[%s3 + $0x688] sm:$0xff]
      %v3641 = vld [vmem:[%s3 + $0x690] sm:$0xff]
      %v3642 = vld [vmem:[%s3 + $0x698] sm:$0xff]
      %v3643 = vld [vmem:[%s3 + $0x6a0] sm:$0xff]
      %v3644 = vld [vmem:[%s3 + $0x6a8] sm:$0xff]
      %v3645 = vld [vmem:[%s3 + $0x6b0] sm:$0xff]
      %v3646 = vld [vmem:[%s3 + $0x6b8] sm:$0xff]
      %v3647 = vld [vmem:[%s3 + $0x6c0] sm:$0xff]
      %v3648 = vld [vmem:[%s3 + $0x6c8] sm:$0xff]
      %v3649 = vld [vmem:[%s3 + $0x6d0] sm:$0xff]
      %v3650 = vld [vmem:[%s3 + $0x6d8] sm:$0xff]
      %v3651 = vld [vmem:[%s3 + $0x6e0] sm:$0xff]
      %v3652 = vld [vmem:[%s3 + $0x6e8] sm:$0xff]
      %v3653 = vld [vmem:[%s3 + $0x6f0] sm:$0xff]
      %v3654 = vld [vmem:[%s3 + $0x6f8] sm:$0xff]
      %v3655 = vld [vmem:[%s3 + $0x700] sm:$0xff]
      %v3656 = vld [vmem:[%s3 + $0x708] sm:$0xff]
      %v3657 = vld [vmem:[%s3 + $0x710] sm:$0xff]
      %v3658 = vld [vmem:[%s3 + $0x718] sm:$0xff]
      %v3659 = vld [vmem:[%s3 + $0x720] sm:$0xff]
      %v3660 = vld [vmem:[%s3 + $0x728] sm:$0xff]
      %v3661 = vld [vmem:[%s3 + $0x730] sm:$0xff]
      %v3662 = vld [vmem:[%s3 + $0x738] sm:$0xff]
      %v3663 = vld [vmem:[%s3 + $0x740] sm:$0xff]
      %v3664 = vld [vmem:[%s3 + $0x748] sm:$0xff]
      %v3665 = vld [vmem:[%s3 + $0x750] sm:$0xff]
      %v3666 = vld [vmem:[%s3 + $0x758] sm:$0xff]
      %v3667 = vld [vmem:[%s3 + $0x760] sm:$0xff]
      %v3668 = vld [vmem:[%s3 + $0x768] sm:$0xff]
      %v3669 = vld [vmem:[%s3 + $0x770] sm:$0xff]
      %v3670 = vld [vmem:[%s3 + $0x778] sm:$0xff]
      %v3671 = vld [vmem:[%s3 + $0x780] sm:$0xff]
      %v3672 = vld [vmem:[%s3 + $0x788] sm:$0xff]
      %v3673 = vld [vmem:[%s3 + $0x790] sm:$0xff]
      %v3674 = vld [vmem:[%s3 + $0x798] sm:$0xff]
      %v3675 = vld [vmem:[%s3 + $0x7a0] sm:$0xff]
      %v3676 = vld [vmem:[%s3 + $0x7a8] sm:$0xff]
      %v3677 = vld [vmem:[%s3 + $0x7b0] sm:$0xff]
      %v3678 = vld [vmem:[%s3 + $0x7b8] sm:$0xff]
      %v3679 = vld [vmem:[%s3 + $0x7c0] sm:$0xff]
      %v3680 = vld [vmem:[%s3 + $0x7c8] sm:$0xff]
      %v3681 = vld [vmem:[%s3 + $0x7d0] sm:$0xff]
      %v3682 = vld [vmem:[%s3 + $0x7d8] sm:$0xff]
      %v3683 = vld [vmem:[%s3 + $0x7e0] sm:$0xff]
      %v3684 = vld [vmem:[%s3 + $0x7e8] sm:$0xff]
      %v3685 = vld [vmem:[%s3 + $0x7f0] sm:$0xff]
      %v3686 = vld [vmem:[%s3 + $0x7f8] sm:$0xff]
      %v3687 = vld [vmem:[%s3 + $0x800] sm:$0xff]
      %v3688 = vld [vmem:[%s3 + $0x808] sm:$0xff]
      %v3689 = vld [vmem:[%s3 + $0x810] sm:$0xff]
      %v3690 = vld [vmem:[%s3 + $0x818] sm:$0xff]
      %v3691 = vld [vmem:[%s3 + $0x820] sm:$0xff]
      %v3692 = vld [vmem:[%s3 + $0x828] sm:$0xff]
      %v3693 = vld [vmem:[%s3 + $0x830] sm:$0xff]
      %v3694 = vld [vmem:[%s3 + $0x838] sm:$0xff]
      %v3695 = vld [vmem:[%s3 + $0x840] sm:$0xff]
      %v3696 = vld [vmem:[%s3 + $0x848] sm:$0xff]
      %v3697 = vld [vmem:[%s3 + $0x850] sm:$0xff]
      %v3698 = vld [vmem:[%s3 + $0x858] sm:$0xff]
      %v3699 = vld [vmem:[%s3 + $0x860] sm:$0xff]
      %v3700 = vld [vmem:[%s3 + $0x868] sm:$0xff]
      %v3701 = vld [vmem:[%s3 + $0x870] sm:$0xff]
      %v3702 = vld [vmem:[%s3 + $0x878] sm:$0xff]
      %v3703 = vld [vmem:[%s3 + $0x880] sm:$0xff]
      %v3704 = vld [vmem:[%s3 + $0x888] sm:$0xff]
      %v3705 = vld [vmem:[%s3 + $0x890] sm:$0xff]
      %v3706 = vld [vmem:[%s3 + $0x898] sm:$0xff]
      %v3707 = vld [vmem:[%s3 + $0x8a0] sm:$0xff]
      %v3708 = vld [vmem:[%s3 + $0x8a8] sm:$0xff]
      %v3709 = vld [vmem:[%s3 + $0x8b0] sm:$0xff]
      %v3710 = vld [vmem:[%s3 + $0x8b8] sm:$0xff]
      %v3711 = vld [vmem:[%s3 + $0x8c0] sm:$0xff]
      %v3712 = vld [vmem:[%s3 + $0x8c8] sm:$0xff]
      %v3713 = vld [vmem:[%s3 + $0x8d0] sm:$0xff]
      %v3714 = vld [vmem:[%s3 + $0x8d8] sm:$0xff]
      %v3715 = vld [vmem:[%s3 + $0x8e0] sm:$0xff]
      %v3716 = vld [vmem:[%s3 + $0x8e8] sm:$0xff]
      %v3717 = vld [vmem:[%s3 + $0x8f0] sm:$0xff]
      %v3718 = vld [vmem:[%s3 + $0x8f8] sm:$0xff]
      %v3719 = vld [vmem:[%s3 + $0x900] sm:$0xff]
      %v3720 = vld [vmem:[%s3 + $0x908] sm:$0xff]
      %v3721 = vld [vmem:[%s3 + $0x910] sm:$0xff]
      %v3722 = vld [vmem:[%s3 + $0x918] sm:$0xff]
      %v3723 = vld [vmem:[%s3 + $0x920] sm:$0xff]
      %v3724 = vld [vmem:[%s3 + $0x928] sm:$0xff]
      %v3725 = vld [vmem:[%s3 + $0x930] sm:$0xff]
      %v3726 = vld [vmem:[%s3 + $0x938] sm:$0xff]
      %v3727 = vld [vmem:[%s3 + $0x940] sm:$0xff]
      %v3728 = vld [vmem:[%s3 + $0x948] sm:$0xff]
      %v3729 = vld [vmem:[%s3 + $0x950] sm:$0xff]
      %v3730 = vld [vmem:[%s3 + $0x958] sm:$0xff]
      %v3731 = vld [vmem:[%s3 + $0x960] sm:$0xff]
      %v3732 = vld [vmem:[%s3 + $0x968] sm:$0xff]
      %v3733 = vld [vmem:[%s3 + $0x970] sm:$0xff]
      %v3734 = vld [vmem:[%s3 + $0x978] sm:$0xff]
      %v3735 = vld [vmem:[%s3 + $0x980] sm:$0xff]
      %v3736 = vld [vmem:[%s3 + $0x988] sm:$0xff]
      %v3737 = vld [vmem:[%s3 + $0x990] sm:$0xff]
      %v3738 = vld [vmem:[%s3 + $0x998] sm:$0xff]
      %v3739 = vld [vmem:[%s3 + $0x9a0] sm:$0xff]
      %v3740 = vld [vmem:[%s3 + $0x9a8] sm:$0xff]
      %v3741 = vld [vmem:[%s3 + $0x9b0] sm:$0xff]
      %v3742 = vld [vmem:[%s3 + $0x9b8] sm:$0xff]
      %v3743 = vld [vmem:[%s3 + $0x9c0] sm:$0xff]
      %v3744 = vld [vmem:[%s3 + $0x9c8] sm:$0xff]
      %v3745 = vld [vmem:[%s3 + $0x9d0] sm:$0xff]
      %v3746 = vld [vmem:[%s3 + $0x9d8] sm:$0xff]
      %v3747 = vld [vmem:[%s3 + $0x9e0] sm:$0xff]
      %v3748 = vld [vmem:[%s3 + $0x9e8] sm:$0xff]
      %v3749 = vld [vmem:[%s3 + $0x9f0] sm:$0xff]
      %v3750 = vld [vmem:[%s3 + $0x9f8] sm:$0xff]
      %v3751 = vld [vmem:[%s3 + $0xa00] sm:$0xff]
      %v3752 = vld [vmem:[%s3 + $0xa08] sm:$0xff]
      %v3753 = vld [vmem:[%s3 + $0xa10] sm:$0xff]
      %v3754 = vld [vmem:[%s3 + $0xa18] sm:$0xff]
      %v3755 = vld [vmem:[%s3 + $0xa20] sm:$0xff]
      %v3756 = vld [vmem:[%s3 + $0xa28] sm:$0xff]
      %v3757 = vld [vmem:[%s3 + $0xa30] sm:$0xff]
      %v3758 = vld [vmem:[%s3 + $0xa38] sm:$0xff]
      %v3759 = vld [vmem:[%s3 + $0xa40] sm:$0xff]
      %v3760 = vld [vmem:[%s3 + $0xa48] sm:$0xff]
      %v3761 = vld [vmem:[%s3 + $0xa50] sm:$0xff]
      %v3762 = vld [vmem:[%s3 + $0xa58] sm:$0xff]
      %v3763 = vld [vmem:[%s3 + $0xa60] sm:$0xff]
      %v3764 = vld [vmem:[%s3 + $0xa68] sm:$0xff]
      %v3765 = vld [vmem:[%s3 + $0xa70] sm:$0xff]
      %v3766 = vld [vmem:[%s3 + $0xa78] sm:$0xff]
      %v3767 = vld [vmem:[%s3 + $0xa80] sm:$0xff]
      %v3768 = vld [vmem:[%s3 + $0xa88] sm:$0xff]
      %v3769 = vld [vmem:[%s3 + $0xa90] sm:$0xff]
      %v3770 = vld [vmem:[%s3 + $0xa98] sm:$0xff]
      %v3771 = vld [vmem:[%s3 + $0xaa0] sm:$0xff]
      %v3772 = vld [vmem:[%s3 + $0xaa8] sm:$0xff]
      %v3773 = vld [vmem:[%s3 + $0xab0] sm:$0xff]
      %v3774 = vld [vmem:[%s3 + $0xab8] sm:$0xff]
      %v3775 = vld [vmem:[%s3 + $0xac0] sm:$0xff]
      %v3776 = vld [vmem:[%s3 + $0xac8] sm:$0xff]
      %v3777 = vld [vmem:[%s3 + $0xad0] sm:$0xff]
      %v3778 = vld [vmem:[%s3 + $0xad8] sm:$0xff]
      %v3779 = vld [vmem:[%s3 + $0xae0] sm:$0xff]
      %v3780 = vld [vmem:[%s3 + $0xae8] sm:$0xff]
      %v3781 = vld [vmem:[%s3 + $0xaf0] sm:$0xff]
      %v3782 = vld [vmem:[%s3 + $0xaf8] sm:$0xff]
      %v3783 = vld [vmem:[%s3 + $0xb00] sm:$0xff]
      %v3784 = vld [vmem:[%s3 + $0xb08] sm:$0xff]
      %v3785 = vld [vmem:[%s3 + $0xb10] sm:$0xff]
      %v3786 = vld [vmem:[%s3 + $0xb18] sm:$0xff]
      %v3787 = vld [vmem:[%s3 + $0xb20] sm:$0xff]
      %v3788 = vld [vmem:[%s3 + $0xb28] sm:$0xff]
      %v3789 = vld [vmem:[%s3 + $0xb30] sm:$0xff]
      %v3790 = vld [vmem:[%s3 + $0xb38] sm:$0xff]
      %v3791 = vld [vmem:[%s3 + $0xb40] sm:$0xff]
      %v3792 = vld [vmem:[%s3 + $0xb48] sm:$0xff]
      %v3793 = vld [vmem:[%s3 + $0xb50] sm:$0xff]
      %v3794 = vld [vmem:[%s3 + $0xb58] sm:$0xff]
      %v3795 = vld [vmem:[%s3 + $0xb60] sm:$0xff]
      %v3796 = vld [vmem:[%s3 + $0xb68] sm:$0xff]
      %v3797 = vld [vmem:[%s3 + $0xb70] sm:$0xff]
      %v3798 = vld [vmem:[%s3 + $0xb78] sm:$0xff]
      %v3799 = vld [vmem:[%s3 + $0xb80] sm:$0xff]
      %v3800 = vld [vmem:[%s3 + $0xb88] sm:$0xff]
      %v3801 = vld [vmem:[%s3 + $0xb90] sm:$0xff]
      %v3802 = vld [vmem:[%s3 + $0xb98] sm:$0xff]
      %v3803 = vld [vmem:[%s3 + $0xba0] sm:$0xff]
      %v3804 = vld [vmem:[%s3 + $0xba8] sm:$0xff]
      %v3805 = vld [vmem:[%s3 + $0xbb0] sm:$0xff]
      %v3806 = vld [vmem:[%s3 + $0xbb8] sm:$0xff]
      %v3807 = vld [vmem:[%s3 + $0xbc0] sm:$0xff]
      %v3808 = vld [vmem:[%s3 + $0xbc8] sm:$0xff]
      %v3809 = vld [vmem:[%s3 + $0xbd0] sm:$0xff]
      %v3810 = vld [vmem:[%s3 + $0xbd8] sm:$0xff]
      %v3811 = vld [vmem:[%s3 + $0xbe0] sm:$0xff]
      %v3812 = vld [vmem:[%s3 + $0xbe8] sm:$0xff]
      %v3813 = vld [vmem:[%s3 + $0xbf0] sm:$0xff]
      %v3814 = vld [vmem:[%s3 + $0xbf8] sm:$0xff]
      %v3815 = vld [vmem:[%s3 + $0xc00] sm:$0xff]
      %v3816 = vld [vmem:[%s3 + $0xc08] sm:$0xff]
      %v3817 = vld [vmem:[%s3 + $0xc10] sm:$0xff]
      %v3818 = vld [vmem:[%s3 + $0xc18] sm:$0xff]
      %v3819 = vld [vmem:[%s3 + $0xc20] sm:$0xff]
      %v3820 = vld [vmem:[%s3 + $0xc28] sm:$0xff]
      %v3821 = vld [vmem:[%s3 + $0xc30] sm:$0xff]
      %v3822 = vld [vmem:[%s3 + $0xc38] sm:$0xff]
      %v3823 = vld [vmem:[%s3 + $0xc40] sm:$0xff]
      %v3824 = vld [vmem:[%s3 + $0xc48] sm:$0xff]
      %v3825 = vld [vmem:[%s3 + $0xc50] sm:$0xff]
      %v3826 = vld [vmem:[%s3 + $0xc58] sm:$0xff]
      %v3827 = vld [vmem:[%s3 + $0xc60] sm:$0xff]
      %v3828 = vld [vmem:[%s3 + $0xc68] sm:$0xff]
      %v3829 = vld [vmem:[%s3 + $0xc70] sm:$0xff]
      %v3830 = vld [vmem:[%s3 + $0xc78] sm:$0xff]
      %v3831 = vld [vmem:[%s3 + $0xc80] sm:$0xff]
      %v3832 = vld [vmem:[%s3 + $0xc88] sm:$0xff]
      %v3833 = vld [vmem:[%s3 + $0xc90] sm:$0xff]
      %v3834 = vld [vmem:[%s3 + $0xc98] sm:$0xff]
      %v3835 = vld [vmem:[%s3 + $0xca0] sm:$0xff]
      %v3836 = vld [vmem:[%s3 + $0xca8] sm:$0xff]
      %v3837 = vld [vmem:[%s3 + $0xcb0] sm:$0xff]
      %v3838 = vld [vmem:[%s3 + $0xcb8] sm:$0xff]
      %v3839 = vld [vmem:[%s3 + $0xcc0] sm:$0xff]
      %v3840 = vld [vmem:[%s3 + $0xcc8] sm:$0xff]
      %v3841 = vld [vmem:[%s3 + $0xcd0] sm:$0xff]
      %v3842 = vld [vmem:[%s3 + $0xcd8] sm:$0xff]
      %v3843 = vld [vmem:[%s3 + $0xce0] sm:$0xff]
      %v3844 = vld [vmem:[%s3 + $0xce8] sm:$0xff]
      %v3845 = vld [vmem:[%s3 + $0xcf0] sm:$0xff]
      %v3846 = vld [vmem:[%s3 + $0xcf8] sm:$0xff]
      %v3847 = vld [vmem:[%s3 + $0xd00] sm:$0xff]
      %v3848 = vld [vmem:[%s3 + $0xd08] sm:$0xff]
      %v3849 = vld [vmem:[%s3 + $0xd10] sm:$0xff]
      %v3850 = vld [vmem:[%s3 + $0xd18] sm:$0xff]
      %v3851 = vld [vmem:[%s3 + $0xd20] sm:$0xff]
      %v3852 = vld [vmem:[%s3 + $0xd28] sm:$0xff]
      %v3853 = vld [vmem:[%s3 + $0xd30] sm:$0xff]
      %v3854 = vld [vmem:[%s3 + $0xd38] sm:$0xff]
      %v3855 = vld [vmem:[%s3 + $0xd40] sm:$0xff]
      %v3856 = vld [vmem:[%s3 + $0xd48] sm:$0xff]
      %v3857 = vld [vmem:[%s3 + $0xd50] sm:$0xff]
      %v3858 = vld [vmem:[%s3 + $0xd58] sm:$0xff]
      %v3859 = vld [vmem:[%s3 + $0xd60] sm:$0xff]
      %v3860 = vld [vmem:[%s3 + $0xd68] sm:$0xff]
      %v3861 = vld [vmem:[%s3 + $0xd70] sm:$0xff]
      %v3862 = vld [vmem:[%s3 + $0xd78] sm:$0xff]
      %v3863 = vld [vmem:[%s3 + $0xd80] sm:$0xff]
      %v3864 = vld [vmem:[%s3 + $0xd88] sm:$0xff]
      %v3865 = vld [vmem:[%s3 + $0xd90] sm:$0xff]
      %v3866 = vld [vmem:[%s3 + $0xd98] sm:$0xff]
      %v3867 = vld [vmem:[%s3 + $0xda0] sm:$0xff]
      %v3868 = vld [vmem:[%s3 + $0xda8] sm:$0xff]
      %v3869 = vld [vmem:[%s3 + $0xdb0] sm:$0xff]
      %v3870 = vld [vmem:[%s3 + $0xdb8] sm:$0xff]
      %v3871 = vld [vmem:[%s3 + $0xdc0] sm:$0xff]
      %v3872 = vld [vmem:[%s3 + $0xdc8] sm:$0xff]
      %v3873 = vld [vmem:[%s3 + $0xdd0] sm:$0xff]
      %v3874 = vld [vmem:[%s3 + $0xdd8] sm:$0xff]
      %v3875 = vld [vmem:[%s3 + $0xde0] sm:$0xff]
      %v3876 = vld [vmem:[%s3 + $0xde8] sm:$0xff]
      %v3877 = vld [vmem:[%s3 + $0xdf0] sm:$0xff]
      %v3878 = vld [vmem:[%s3 + $0xdf8] sm:$0xff]
      %v3879 = vld [vmem:[%s4] sm:$0x3]
      %v3881 = vlaneseq
      %v3882 = vshrl.u32 %v3881, 7
      %v3883 = vsub.s32 0, %v3882
      %v3884 = vrot.slane %v3879, %v3883
      %v3885 = vlaneseq
      %v3886 = vshrl.u32 %v3885, 7
      %v3887 = vsub.s32 1, %v3886
      %v3888 = vrot.slane %v3879, %v3887
      %v4339 = vunpack.c.l.b16 %v3431
      %v4340 = vunpack.c.h.b16 %v3431
      %v4341 = vunpack.c.l.b16 %v3432
      %v4342 = vunpack.c.h.b16 %v3432
      %v4343 = vunpack.c.l.b16 %v3433
      %v4344 = vunpack.c.h.b16 %v3433
      %v4345 = vunpack.c.l.b16 %v3434
      %v4346 = vunpack.c.h.b16 %v3434
      %v4347 = vunpack.c.l.b16 %v3435
      %v4348 = vunpack.c.h.b16 %v3435
      %v4349 = vunpack.c.l.b16 %v3436
      %v4350 = vunpack.c.h.b16 %v3436
      %v4351 = vunpack.c.l.b16 %v3437
      %v4352 = vunpack.c.h.b16 %v3437
      %v4353 = vunpack.c.l.b16 %v3438
      %v4354 = vunpack.c.h.b16 %v3438
      %v4355 = vunpack.c.l.b16 %v3439
      %v4356 = vunpack.c.h.b16 %v3439
      %v4357 = vunpack.c.l.b16 %v3440
      %v4358 = vunpack.c.h.b16 %v3440
      %v4359 = vunpack.c.l.b16 %v3441
      %v4360 = vunpack.c.h.b16 %v3441
      %v4361 = vunpack.c.l.b16 %v3442
      %v4362 = vunpack.c.h.b16 %v3442
      %v4363 = vunpack.c.l.b16 %v3443
      %v4364 = vunpack.c.h.b16 %v3443
      %v4365 = vunpack.c.l.b16 %v3444
      %v4366 = vunpack.c.h.b16 %v3444
      %v4367 = vunpack.c.l.b16 %v3445
      %v4368 = vunpack.c.h.b16 %v3445
      %v4369 = vunpack.c.l.b16 %v3446
      %v4370 = vunpack.c.h.b16 %v3446
      %v4371 = vunpack.c.l.b16 %v3447
      %v4372 = vunpack.c.h.b16 %v3447
      %v4373 = vunpack.c.l.b16 %v3448
      %v4374 = vunpack.c.h.b16 %v3448
      %v4375 = vunpack.c.l.b16 %v3449
      %v4376 = vunpack.c.h.b16 %v3449
      %v4377 = vunpack.c.l.b16 %v3450
      %v4378 = vunpack.c.h.b16 %v3450
      %v4379 = vunpack.c.l.b16 %v3451
      %v4380 = vunpack.c.h.b16 %v3451
      %v4381 = vunpack.c.l.b16 %v3452
      %v4382 = vunpack.c.h.b16 %v3452
      %v4383 = vunpack.c.l.b16 %v3453
      %v4384 = vunpack.c.h.b16 %v3453
      %v4385 = vunpack.c.l.b16 %v3454
      %v4386 = vunpack.c.h.b16 %v3454
      %v4387 = vunpack.c.l.b16 %v3455
      %v4388 = vunpack.c.h.b16 %v3455
      %v4389 = vunpack.c.l.b16 %v3456
      %v4390 = vunpack.c.h.b16 %v3456
      %v4391 = vunpack.c.l.b16 %v3457
      %v4392 = vunpack.c.h.b16 %v3457
      %v4393 = vunpack.c.l.b16 %v3458
      %v4394 = vunpack.c.h.b16 %v3458
      %v4395 = vunpack.c.l.b16 %v3459
      %v4396 = vunpack.c.h.b16 %v3459
      %v4397 = vunpack.c.l.b16 %v3460
      %v4398 = vunpack.c.h.b16 %v3460
      %v4399 = vunpack.c.l.b16 %v3461
      %v4400 = vunpack.c.h.b16 %v3461
      %v4401 = vunpack.c.l.b16 %v3462
      %v4402 = vunpack.c.h.b16 %v3462
      %v4403 = vunpack.c.l.b16 %v3463
      %v4404 = vunpack.c.h.b16 %v3463
      %v4405 = vunpack.c.l.b16 %v3464
      %v4406 = vunpack.c.h.b16 %v3464
      %v4407 = vunpack.c.l.b16 %v3465
      %v4408 = vunpack.c.h.b16 %v3465
      %v4409 = vunpack.c.l.b16 %v3466
      %v4410 = vunpack.c.h.b16 %v3466
      %v4411 = vunpack.c.l.b16 %v3467
      %v4412 = vunpack.c.h.b16 %v3467
      %v4413 = vunpack.c.l.b16 %v3468
      %v4414 = vunpack.c.h.b16 %v3468
      %v4415 = vunpack.c.l.b16 %v3469
      %v4416 = vunpack.c.h.b16 %v3469
      %v4417 = vunpack.c.l.b16 %v3470
      %v4418 = vunpack.c.h.b16 %v3470
      %v4419 = vunpack.c.l.b16 %v3471
      %v4420 = vunpack.c.h.b16 %v3471
      %v4421 = vunpack.c.l.b16 %v3472
      %v4422 = vunpack.c.h.b16 %v3472
      %v4423 = vunpack.c.l.b16 %v3473
      %v4424 = vunpack.c.h.b16 %v3473
      %v4425 = vunpack.c.l.b16 %v3474
      %v4426 = vunpack.c.h.b16 %v3474
      %v4427 = vunpack.c.l.b16 %v3475
      %v4428 = vunpack.c.h.b16 %v3475
      %v4429 = vunpack.c.l.b16 %v3476
      %v4430 = vunpack.c.h.b16 %v3476
      %v4431 = vunpack.c.l.b16 %v3477
      %v4432 = vunpack.c.h.b16 %v3477
      %v4433 = vunpack.c.l.b16 %v3478
      %v4434 = vunpack.c.h.b16 %v3478
      %v4435 = vunpack.c.l.b16 %v3479
      %v4436 = vunpack.c.h.b16 %v3479
      %v4437 = vunpack.c.l.b16 %v3480
      %v4438 = vunpack.c.h.b16 %v3480
      %v4439 = vunpack.c.l.b16 %v3481
      %v4440 = vunpack.c.h.b16 %v3481
      %v4441 = vunpack.c.l.b16 %v3482
      %v4442 = vunpack.c.h.b16 %v3482
      %v4443 = vunpack.c.l.b16 %v3483
      %v4444 = vunpack.c.h.b16 %v3483
      %v4445 = vunpack.c.l.b16 %v3484
      %v4446 = vunpack.c.h.b16 %v3484
      %v4447 = vunpack.c.l.b16 %v3485
      %v4448 = vunpack.c.h.b16 %v3485
      %v4449 = vunpack.c.l.b16 %v3486
      %v4450 = vunpack.c.h.b16 %v3486
      %v4451 = vunpack.c.l.b16 %v3487
      %v4452 = vunpack.c.h.b16 %v3487
      %v4453 = vunpack.c.l.b16 %v3488
      %v4454 = vunpack.c.h.b16 %v3488
      %v4455 = vunpack.c.l.b16 %v3489
      %v4456 = vunpack.c.h.b16 %v3489
      %v4457 = vunpack.c.l.b16 %v3490
      %v4458 = vunpack.c.h.b16 %v3490
      %v4459 = vunpack.c.l.b16 %v3491
      %v4460 = vunpack.c.h.b16 %v3491
      %v4461 = vunpack.c.l.b16 %v3492
      %v4462 = vunpack.c.h.b16 %v3492
      %v4463 = vunpack.c.l.b16 %v3493
      %v4464 = vunpack.c.h.b16 %v3493
      %v4465 = vunpack.c.l.b16 %v3494
      %v4466 = vunpack.c.h.b16 %v3494
      %v4467 = vunpack.c.l.b16 %v3495
      %v4468 = vunpack.c.h.b16 %v3495
      %v4469 = vunpack.c.l.b16 %v3496
      %v4470 = vunpack.c.h.b16 %v3496
      %v4471 = vunpack.c.l.b16 %v3497
      %v4472 = vunpack.c.h.b16 %v3497
      %v4473 = vunpack.c.l.b16 %v3498
      %v4474 = vunpack.c.h.b16 %v3498
      %v4475 = vunpack.c.l.b16 %v3499
      %v4476 = vunpack.c.h.b16 %v3499
      %v4477 = vunpack.c.l.b16 %v3500
      %v4478 = vunpack.c.h.b16 %v3500
      %v4479 = vunpack.c.l.b16 %v3501
      %v4480 = vunpack.c.h.b16 %v3501
      %v4481 = vunpack.c.l.b16 %v3502
      %v4482 = vunpack.c.h.b16 %v3502
      %v4483 = vunpack.c.l.b16 %v3503
      %v4484 = vunpack.c.h.b16 %v3503
      %v4485 = vunpack.c.l.b16 %v3504
      %v4486 = vunpack.c.h.b16 %v3504
      %v4487 = vunpack.c.l.b16 %v3505
      %v4488 = vunpack.c.h.b16 %v3505
      %v4489 = vunpack.c.l.b16 %v3506
      %v4490 = vunpack.c.h.b16 %v3506
      %v4491 = vunpack.c.l.b16 %v3507
      %v4492 = vunpack.c.h.b16 %v3507
      %v4493 = vunpack.c.l.b16 %v3508
      %v4494 = vunpack.c.h.b16 %v3508
      %v4495 = vunpack.c.l.b16 %v3509
      %v4496 = vunpack.c.h.b16 %v3509
      %v4497 = vunpack.c.l.b16 %v3510
      %v4498 = vunpack.c.h.b16 %v3510
      %v4499 = vunpack.c.l.b16 %v3511
      %v4500 = vunpack.c.h.b16 %v3511
      %v4501 = vunpack.c.l.b16 %v3512
      %v4502 = vunpack.c.h.b16 %v3512
      %v4503 = vunpack.c.l.b16 %v3513
      %v4504 = vunpack.c.h.b16 %v3513
      %v4505 = vunpack.c.l.b16 %v3514
      %v4506 = vunpack.c.h.b16 %v3514
      %v4507 = vunpack.c.l.b16 %v3515
      %v4508 = vunpack.c.h.b16 %v3515
      %v4509 = vunpack.c.l.b16 %v3516
      %v4510 = vunpack.c.h.b16 %v3516
      %v4511 = vunpack.c.l.b16 %v3517
      %v4512 = vunpack.c.h.b16 %v3517
      %v4513 = vunpack.c.l.b16 %v3518
      %v4514 = vunpack.c.h.b16 %v3518
      %v4515 = vunpack.c.l.b16 %v3519
      %v4516 = vunpack.c.h.b16 %v3519
      %v4517 = vunpack.c.l.b16 %v3520
      %v4518 = vunpack.c.h.b16 %v3520
      %v4519 = vunpack.c.l.b16 %v3521
      %v4520 = vunpack.c.h.b16 %v3521
      %v4521 = vunpack.c.l.b16 %v3522
      %v4522 = vunpack.c.h.b16 %v3522
      %v4523 = vunpack.c.l.b16 %v3523
      %v4524 = vunpack.c.h.b16 %v3523
      %v4525 = vunpack.c.l.b16 %v3524
      %v4526 = vunpack.c.h.b16 %v3524
      %v4527 = vunpack.c.l.b16 %v3525
      %v4528 = vunpack.c.h.b16 %v3525
      %v4529 = vunpack.c.l.b16 %v3526
      %v4530 = vunpack.c.h.b16 %v3526
      %v4531 = vunpack.c.l.b16 %v3527
      %v4532 = vunpack.c.h.b16 %v3527
      %v4533 = vunpack.c.l.b16 %v3528
      %v4534 = vunpack.c.h.b16 %v3528
      %v4535 = vunpack.c.l.b16 %v3529
      %v4536 = vunpack.c.h.b16 %v3529
      %v4537 = vunpack.c.l.b16 %v3530
      %v4538 = vunpack.c.h.b16 %v3530
      %v4539 = vunpack.c.l.b16 %v3531
      %v4540 = vunpack.c.h.b16 %v3531
      %v4541 = vunpack.c.l.b16 %v3532
      %v4542 = vunpack.c.h.b16 %v3532
      %v4543 = vunpack.c.l.b16 %v3533
      %v4544 = vunpack.c.h.b16 %v3533
      %v4545 = vunpack.c.l.b16 %v3534
      %v4546 = vunpack.c.h.b16 %v3534
      %v4547 = vunpack.c.l.b16 %v3535
      %v4548 = vunpack.c.h.b16 %v3535
      %v4549 = vunpack.c.l.b16 %v3536
      %v4550 = vunpack.c.h.b16 %v3536
      %v4551 = vunpack.c.l.b16 %v3537
      %v4552 = vunpack.c.h.b16 %v3537
      %v4553 = vunpack.c.l.b16 %v3538
      %v4554 = vunpack.c.h.b16 %v3538
      %v4555 = vunpack.c.l.b16 %v3539
      %v4556 = vunpack.c.h.b16 %v3539
      %v4557 = vunpack.c.l.b16 %v3540
      %v4558 = vunpack.c.h.b16 %v3540
      %v4559 = vunpack.c.l.b16 %v3541
      %v4560 = vunpack.c.h.b16 %v3541
      %v4561 = vunpack.c.l.b16 %v3542
      %v4562 = vunpack.c.h.b16 %v3542
      %v4563 = vunpack.c.l.b16 %v3543
      %v4564 = vunpack.c.h.b16 %v3543
      %v4565 = vunpack.c.l.b16 %v3544
      %v4566 = vunpack.c.h.b16 %v3544
      %v4567 = vunpack.c.l.b16 %v3545
      %v4568 = vunpack.c.h.b16 %v3545
      %v4569 = vunpack.c.l.b16 %v3546
      %v4570 = vunpack.c.h.b16 %v3546
      %v4571 = vunpack.c.l.b16 %v3547
      %v4572 = vunpack.c.h.b16 %v3547
      %v4573 = vunpack.c.l.b16 %v3548
      %v4574 = vunpack.c.h.b16 %v3548
      %v4575 = vunpack.c.l.b16 %v3549
      %v4576 = vunpack.c.h.b16 %v3549
      %v4577 = vunpack.c.l.b16 %v3550
      %v4578 = vunpack.c.h.b16 %v3550
      %v4579 = vunpack.c.l.b16 %v3551
      %v4580 = vunpack.c.h.b16 %v3551
      %v4581 = vunpack.c.l.b16 %v3552
      %v4582 = vunpack.c.h.b16 %v3552
      %v4583 = vunpack.c.l.b16 %v3553
      %v4584 = vunpack.c.h.b16 %v3553
      %v4585 = vunpack.c.l.b16 %v3554
      %v4586 = vunpack.c.h.b16 %v3554
      %v4587 = vunpack.c.l.b16 %v3555
      %v4588 = vunpack.c.h.b16 %v3555
      %v4589 = vunpack.c.l.b16 %v3556
      %v4590 = vunpack.c.h.b16 %v3556
      %v4591 = vunpack.c.l.b16 %v3557
      %v4592 = vunpack.c.h.b16 %v3557
      %v4593 = vunpack.c.l.b16 %v3558
      %v4594 = vunpack.c.h.b16 %v3558
      %v4595 = vunpack.c.l.b16 %v3559
      %v4596 = vunpack.c.h.b16 %v3559
      %v4597 = vunpack.c.l.b16 %v3560
      %v4598 = vunpack.c.h.b16 %v3560
      %v4599 = vunpack.c.l.b16 %v3561
      %v4600 = vunpack.c.h.b16 %v3561
      %v4601 = vunpack.c.l.b16 %v3562
      %v4602 = vunpack.c.h.b16 %v3562
      %v4603 = vunpack.c.l.b16 %v3563
      %v4604 = vunpack.c.h.b16 %v3563
      %v4605 = vunpack.c.l.b16 %v3564
      %v4606 = vunpack.c.h.b16 %v3564
      %v4607 = vunpack.c.l.b16 %v3565
      %v4608 = vunpack.c.h.b16 %v3565
      %v4609 = vunpack.c.l.b16 %v3566
      %v4610 = vunpack.c.h.b16 %v3566
      %v4611 = vunpack.c.l.b16 %v3567
      %v4612 = vunpack.c.h.b16 %v3567
      %v4613 = vunpack.c.l.b16 %v3568
      %v4614 = vunpack.c.h.b16 %v3568
      %v4615 = vunpack.c.l.b16 %v3569
      %v4616 = vunpack.c.h.b16 %v3569
      %v4617 = vunpack.c.l.b16 %v3570
      %v4618 = vunpack.c.h.b16 %v3570
      %v4619 = vunpack.c.l.b16 %v3571
      %v4620 = vunpack.c.h.b16 %v3571
      %v4621 = vunpack.c.l.b16 %v3572
      %v4622 = vunpack.c.h.b16 %v3572
      %v4623 = vunpack.c.l.b16 %v3573
      %v4624 = vunpack.c.h.b16 %v3573
      %v4625 = vunpack.c.l.b16 %v3574
      %v4626 = vunpack.c.h.b16 %v3574
      %v4627 = vunpack.c.l.b16 %v3575
      %v4628 = vunpack.c.h.b16 %v3575
      %v4629 = vunpack.c.l.b16 %v3576
      %v4630 = vunpack.c.h.b16 %v3576
      %v4631 = vunpack.c.l.b16 %v3577
      %v4632 = vunpack.c.h.b16 %v3577
      %v4633 = vunpack.c.l.b16 %v3578
      %v4634 = vunpack.c.h.b16 %v3578
      %v4635 = vunpack.c.l.b16 %v3579
      %v4636 = vunpack.c.h.b16 %v3579
      %v4637 = vunpack.c.l.b16 %v3580
      %v4638 = vunpack.c.h.b16 %v3580
      %v4639 = vunpack.c.l.b16 %v3581
      %v4640 = vunpack.c.h.b16 %v3581
      %v4641 = vunpack.c.l.b16 %v3582
      %v4642 = vunpack.c.h.b16 %v3582
      %v4643 = vunpack.c.l.b16 %v3583
      %v4644 = vunpack.c.h.b16 %v3583
      %v4645 = vunpack.c.l.b16 %v3584
      %v4646 = vunpack.c.h.b16 %v3584
      %v4647 = vunpack.c.l.b16 %v3585
      %v4648 = vunpack.c.h.b16 %v3585
      %v4649 = vunpack.c.l.b16 %v3586
      %v4650 = vunpack.c.h.b16 %v3586
      %v4651 = vunpack.c.l.b16 %v3587
      %v4652 = vunpack.c.h.b16 %v3587
      %v4653 = vunpack.c.l.b16 %v3588
      %v4654 = vunpack.c.h.b16 %v3588
      %v4655 = vunpack.c.l.b16 %v3589
      %v4656 = vunpack.c.h.b16 %v3589
      %v4657 = vunpack.c.l.b16 %v3590
      %v4658 = vunpack.c.h.b16 %v3590
      %v4659 = vunpack.c.l.b16 %v3591
      %v4660 = vunpack.c.h.b16 %v3591
      %v4661 = vunpack.c.l.b16 %v3592
      %v4662 = vunpack.c.h.b16 %v3592
      %v4663 = vunpack.c.l.b16 %v3593
      %v4664 = vunpack.c.h.b16 %v3593
      %v4665 = vunpack.c.l.b16 %v3594
      %v4666 = vunpack.c.h.b16 %v3594
      %v4667 = vunpack.c.l.b16 %v3595
      %v4668 = vunpack.c.h.b16 %v3595
      %v4669 = vunpack.c.l.b16 %v3596
      %v4670 = vunpack.c.h.b16 %v3596
      %v4671 = vunpack.c.l.b16 %v3597
      %v4672 = vunpack.c.h.b16 %v3597
      %v4673 = vunpack.c.l.b16 %v3598
      %v4674 = vunpack.c.h.b16 %v3598
      %v4675 = vunpack.c.l.b16 %v3599
      %v4676 = vunpack.c.h.b16 %v3599
      %v4677 = vunpack.c.l.b16 %v3600
      %v4678 = vunpack.c.h.b16 %v3600
      %v4679 = vunpack.c.l.b16 %v3601
      %v4680 = vunpack.c.h.b16 %v3601
      %v4681 = vunpack.c.l.b16 %v3602
      %v4682 = vunpack.c.h.b16 %v3602
      %v4683 = vunpack.c.l.b16 %v3603
      %v4684 = vunpack.c.h.b16 %v3603
      %v4685 = vunpack.c.l.b16 %v3604
      %v4686 = vunpack.c.h.b16 %v3604
      %v4687 = vunpack.c.l.b16 %v3605
      %v4688 = vunpack.c.h.b16 %v3605
      %v4689 = vunpack.c.l.b16 %v3606
      %v4690 = vunpack.c.h.b16 %v3606
      %v4691 = vunpack.c.l.b16 %v3607
      %v4692 = vunpack.c.h.b16 %v3607
      %v4693 = vunpack.c.l.b16 %v3608
      %v4694 = vunpack.c.h.b16 %v3608
      %v4695 = vunpack.c.l.b16 %v3609
      %v4696 = vunpack.c.h.b16 %v3609
      %v4697 = vunpack.c.l.b16 %v3610
      %v4698 = vunpack.c.h.b16 %v3610
      %v4699 = vunpack.c.l.b16 %v3611
      %v4700 = vunpack.c.h.b16 %v3611
      %v4701 = vunpack.c.l.b16 %v3612
      %v4702 = vunpack.c.h.b16 %v3612
      %v4703 = vunpack.c.l.b16 %v3613
      %v4704 = vunpack.c.h.b16 %v3613
      %v4705 = vunpack.c.l.b16 %v3614
      %v4706 = vunpack.c.h.b16 %v3614
      %v4707 = vunpack.c.l.b16 %v3615
      %v4708 = vunpack.c.h.b16 %v3615
      %v4709 = vunpack.c.l.b16 %v3616
      %v4710 = vunpack.c.h.b16 %v3616
      %v4711 = vunpack.c.l.b16 %v3617
      %v4712 = vunpack.c.h.b16 %v3617
      %v4713 = vunpack.c.l.b16 %v3618
      %v4714 = vunpack.c.h.b16 %v3618
      %v4715 = vunpack.c.l.b16 %v3619
      %v4716 = vunpack.c.h.b16 %v3619
      %v4717 = vunpack.c.l.b16 %v3620
      %v4718 = vunpack.c.h.b16 %v3620
      %v4719 = vunpack.c.l.b16 %v3621
      %v4720 = vunpack.c.h.b16 %v3621
      %v4721 = vunpack.c.l.b16 %v3622
      %v4722 = vunpack.c.h.b16 %v3622
      %v4723 = vunpack.c.l.b16 %v3623
      %v4724 = vunpack.c.h.b16 %v3623
      %v4725 = vunpack.c.l.b16 %v3624
      %v4726 = vunpack.c.h.b16 %v3624
      %v4727 = vunpack.c.l.b16 %v3625
      %v4728 = vunpack.c.h.b16 %v3625
      %v4729 = vunpack.c.l.b16 %v3626
      %v4730 = vunpack.c.h.b16 %v3626
      %v4731 = vunpack.c.l.b16 %v3627
      %v4732 = vunpack.c.h.b16 %v3627
      %v4733 = vunpack.c.l.b16 %v3628
      %v4734 = vunpack.c.h.b16 %v3628
      %v4735 = vunpack.c.l.b16 %v3629
      %v4736 = vunpack.c.h.b16 %v3629
      %v4737 = vunpack.c.l.b16 %v3630
      %v4738 = vunpack.c.h.b16 %v3630
      %v4739 = vunpack.c.l.b16 %v3631
      %v4740 = vunpack.c.h.b16 %v3631
      %v4741 = vunpack.c.l.b16 %v3632
      %v4742 = vunpack.c.h.b16 %v3632
      %v4743 = vunpack.c.l.b16 %v3633
      %v4744 = vunpack.c.h.b16 %v3633
      %v4745 = vunpack.c.l.b16 %v3634
      %v4746 = vunpack.c.h.b16 %v3634
      %v4747 = vunpack.c.l.b16 %v3635
      %v4748 = vunpack.c.h.b16 %v3635
      %v4749 = vunpack.c.l.b16 %v3636
      %v4750 = vunpack.c.h.b16 %v3636
      %v4751 = vunpack.c.l.b16 %v3637
      %v4752 = vunpack.c.h.b16 %v3637
      %v4753 = vunpack.c.l.b16 %v3638
      %v4754 = vunpack.c.h.b16 %v3638
      %v4755 = vunpack.c.l.b16 %v3639
      %v4756 = vunpack.c.h.b16 %v3639
      %v4757 = vunpack.c.l.b16 %v3640
      %v4758 = vunpack.c.h.b16 %v3640
      %v4759 = vunpack.c.l.b16 %v3641
      %v4760 = vunpack.c.h.b16 %v3641
      %v4761 = vunpack.c.l.b16 %v3642
      %v4762 = vunpack.c.h.b16 %v3642
      %v4763 = vunpack.c.l.b16 %v3643
      %v4764 = vunpack.c.h.b16 %v3643
      %v4765 = vunpack.c.l.b16 %v3644
      %v4766 = vunpack.c.h.b16 %v3644
      %v4767 = vunpack.c.l.b16 %v3645
      %v4768 = vunpack.c.h.b16 %v3645
      %v4769 = vunpack.c.l.b16 %v3646
      %v4770 = vunpack.c.h.b16 %v3646
      %v4771 = vunpack.c.l.b16 %v3647
      %v4772 = vunpack.c.h.b16 %v3647
      %v4773 = vunpack.c.l.b16 %v3648
      %v4774 = vunpack.c.h.b16 %v3648
      %v4775 = vunpack.c.l.b16 %v3649
      %v4776 = vunpack.c.h.b16 %v3649
      %v4777 = vunpack.c.l.b16 %v3650
      %v4778 = vunpack.c.h.b16 %v3650
      %v4779 = vunpack.c.l.b16 %v3651
      %v4780 = vunpack.c.h.b16 %v3651
      %v4781 = vunpack.c.l.b16 %v3652
      %v4782 = vunpack.c.h.b16 %v3652
      %v4783 = vunpack.c.l.b16 %v3653
      %v4784 = vunpack.c.h.b16 %v3653
      %v4785 = vunpack.c.l.b16 %v3654
      %v4786 = vunpack.c.h.b16 %v3654
      %v4787 = vunpack.c.l.b16 %v3655
      %v4788 = vunpack.c.h.b16 %v3655
      %v4789 = vunpack.c.l.b16 %v3656
      %v4790 = vunpack.c.h.b16 %v3656
      %v4791 = vunpack.c.l.b16 %v3657
      %v4792 = vunpack.c.h.b16 %v3657
      %v4793 = vunpack.c.l.b16 %v3658
      %v4794 = vunpack.c.h.b16 %v3658
      %v4795 = vunpack.c.l.b16 %v3659
      %v4796 = vunpack.c.h.b16 %v3659
      %v4797 = vunpack.c.l.b16 %v3660
      %v4798 = vunpack.c.h.b16 %v3660
      %v4799 = vunpack.c.l.b16 %v3661
      %v4800 = vunpack.c.h.b16 %v3661
      %v4801 = vunpack.c.l.b16 %v3662
      %v4802 = vunpack.c.h.b16 %v3662
      %v4803 = vunpack.c.l.b16 %v3663
      %v4804 = vunpack.c.h.b16 %v3663
      %v4805 = vunpack.c.l.b16 %v3664
      %v4806 = vunpack.c.h.b16 %v3664
      %v4807 = vunpack.c.l.b16 %v3665
      %v4808 = vunpack.c.h.b16 %v3665
      %v4809 = vunpack.c.l.b16 %v3666
      %v4810 = vunpack.c.h.b16 %v3666
      %v4811 = vunpack.c.l.b16 %v3667
      %v4812 = vunpack.c.h.b16 %v3667
      %v4813 = vunpack.c.l.b16 %v3668
      %v4814 = vunpack.c.h.b16 %v3668
      %v4815 = vunpack.c.l.b16 %v3669
      %v4816 = vunpack.c.h.b16 %v3669
      %v4817 = vunpack.c.l.b16 %v3670
      %v4818 = vunpack.c.h.b16 %v3670
      %v4819 = vunpack.c.l.b16 %v3671
      %v4820 = vunpack.c.h.b16 %v3671
      %v4821 = vunpack.c.l.b16 %v3672
      %v4822 = vunpack.c.h.b16 %v3672
      %v4823 = vunpack.c.l.b16 %v3673
      %v4824 = vunpack.c.h.b16 %v3673
      %v4825 = vunpack.c.l.b16 %v3674
      %v4826 = vunpack.c.h.b16 %v3674
      %v4827 = vunpack.c.l.b16 %v3675
      %v4828 = vunpack.c.h.b16 %v3675
      %v4829 = vunpack.c.l.b16 %v3676
      %v4830 = vunpack.c.h.b16 %v3676
      %v4831 = vunpack.c.l.b16 %v3677
      %v4832 = vunpack.c.h.b16 %v3677
      %v4833 = vunpack.c.l.b16 %v3678
      %v4834 = vunpack.c.h.b16 %v3678
      %v4835 = vunpack.c.l.b16 %v3679
      %v4836 = vunpack.c.h.b16 %v3679
      %v4837 = vunpack.c.l.b16 %v3680
      %v4838 = vunpack.c.h.b16 %v3680
      %v4839 = vunpack.c.l.b16 %v3681
      %v4840 = vunpack.c.h.b16 %v3681
      %v4841 = vunpack.c.l.b16 %v3682
      %v4842 = vunpack.c.h.b16 %v3682
      %v4843 = vunpack.c.l.b16 %v3683
      %v4844 = vunpack.c.h.b16 %v3683
      %v4845 = vunpack.c.l.b16 %v3684
      %v4846 = vunpack.c.h.b16 %v3684
      %v4847 = vunpack.c.l.b16 %v3685
      %v4848 = vunpack.c.h.b16 %v3685
      %v4849 = vunpack.c.l.b16 %v3686
      %v4850 = vunpack.c.h.b16 %v3686
      %v4851 = vunpack.c.l.b16 %v3687
      %v4852 = vunpack.c.h.b16 %v3687
      %v4853 = vunpack.c.l.b16 %v3688
      %v4854 = vunpack.c.h.b16 %v3688
      %v4855 = vunpack.c.l.b16 %v3689
      %v4856 = vunpack.c.h.b16 %v3689
      %v4857 = vunpack.c.l.b16 %v3690
      %v4858 = vunpack.c.h.b16 %v3690
      %v4859 = vunpack.c.l.b16 %v3691
      %v4860 = vunpack.c.h.b16 %v3691
      %v4861 = vunpack.c.l.b16 %v3692
      %v4862 = vunpack.c.h.b16 %v3692
      %v4863 = vunpack.c.l.b16 %v3693
      %v4864 = vunpack.c.h.b16 %v3693
      %v4865 = vunpack.c.l.b16 %v3694
      %v4866 = vunpack.c.h.b16 %v3694
      %v4867 = vunpack.c.l.b16 %v3695
      %v4868 = vunpack.c.h.b16 %v3695
      %v4869 = vunpack.c.l.b16 %v3696
      %v4870 = vunpack.c.h.b16 %v3696
      %v4871 = vunpack.c.l.b16 %v3697
      %v4872 = vunpack.c.h.b16 %v3697
      %v4873 = vunpack.c.l.b16 %v3698
      %v4874 = vunpack.c.h.b16 %v3698
      %v4875 = vunpack.c.l.b16 %v3699
      %v4876 = vunpack.c.h.b16 %v3699
      %v4877 = vunpack.c.l.b16 %v3700
      %v4878 = vunpack.c.h.b16 %v3700
      %v4879 = vunpack.c.l.b16 %v3701
      %v4880 = vunpack.c.h.b16 %v3701
      %v4881 = vunpack.c.l.b16 %v3702
      %v4882 = vunpack.c.h.b16 %v3702
      %v4883 = vunpack.c.l.b16 %v3703
      %v4884 = vunpack.c.h.b16 %v3703
      %v4885 = vunpack.c.l.b16 %v3704
      %v4886 = vunpack.c.h.b16 %v3704
      %v4887 = vunpack.c.l.b16 %v3705
      %v4888 = vunpack.c.h.b16 %v3705
      %v4889 = vunpack.c.l.b16 %v3706
      %v4890 = vunpack.c.h.b16 %v3706
      %v4891 = vunpack.c.l.b16 %v3707
      %v4892 = vunpack.c.h.b16 %v3707
      %v4893 = vunpack.c.l.b16 %v3708
      %v4894 = vunpack.c.h.b16 %v3708
      %v4895 = vunpack.c.l.b16 %v3709
      %v4896 = vunpack.c.h.b16 %v3709
      %v4897 = vunpack.c.l.b16 %v3710
      %v4898 = vunpack.c.h.b16 %v3710
      %v4899 = vunpack.c.l.b16 %v3711
      %v4900 = vunpack.c.h.b16 %v3711
      %v4901 = vunpack.c.l.b16 %v3712
      %v4902 = vunpack.c.h.b16 %v3712
      %v4903 = vunpack.c.l.b16 %v3713
      %v4904 = vunpack.c.h.b16 %v3713
      %v4905 = vunpack.c.l.b16 %v3714
      %v4906 = vunpack.c.h.b16 %v3714
      %v4907 = vunpack.c.l.b16 %v3715
      %v4908 = vunpack.c.h.b16 %v3715
      %v4909 = vunpack.c.l.b16 %v3716
      %v4910 = vunpack.c.h.b16 %v3716
      %v4911 = vunpack.c.l.b16 %v3717
      %v4912 = vunpack.c.h.b16 %v3717
      %v4913 = vunpack.c.l.b16 %v3718
      %v4914 = vunpack.c.h.b16 %v3718
      %v4915 = vunpack.c.l.b16 %v3719
      %v4916 = vunpack.c.h.b16 %v3719
      %v4917 = vunpack.c.l.b16 %v3720
      %v4918 = vunpack.c.h.b16 %v3720
      %v4919 = vunpack.c.l.b16 %v3721
      %v4920 = vunpack.c.h.b16 %v3721
      %v4921 = vunpack.c.l.b16 %v3722
      %v4922 = vunpack.c.h.b16 %v3722
      %v4923 = vunpack.c.l.b16 %v3723
      %v4924 = vunpack.c.h.b16 %v3723
      %v4925 = vunpack.c.l.b16 %v3724
      %v4926 = vunpack.c.h.b16 %v3724
      %v4927 = vunpack.c.l.b16 %v3725
      %v4928 = vunpack.c.h.b16 %v3725
      %v4929 = vunpack.c.l.b16 %v3726
      %v4930 = vunpack.c.h.b16 %v3726
      %v4931 = vunpack.c.l.b16 %v3727
      %v4932 = vunpack.c.h.b16 %v3727
      %v4933 = vunpack.c.l.b16 %v3728
      %v4934 = vunpack.c.h.b16 %v3728
      %v4935 = vunpack.c.l.b16 %v3729
      %v4936 = vunpack.c.h.b16 %v3729
      %v4937 = vunpack.c.l.b16 %v3730
      %v4938 = vunpack.c.h.b16 %v3730
      %v4939 = vunpack.c.l.b16 %v3731
      %v4940 = vunpack.c.h.b16 %v3731
      %v4941 = vunpack.c.l.b16 %v3732
      %v4942 = vunpack.c.h.b16 %v3732
      %v4943 = vunpack.c.l.b16 %v3733
      %v4944 = vunpack.c.h.b16 %v3733
      %v4945 = vunpack.c.l.b16 %v3734
      %v4946 = vunpack.c.h.b16 %v3734
      %v4947 = vunpack.c.l.b16 %v3735
      %v4948 = vunpack.c.h.b16 %v3735
      %v4949 = vunpack.c.l.b16 %v3736
      %v4950 = vunpack.c.h.b16 %v3736
      %v4951 = vunpack.c.l.b16 %v3737
      %v4952 = vunpack.c.h.b16 %v3737
      %v4953 = vunpack.c.l.b16 %v3738
      %v4954 = vunpack.c.h.b16 %v3738
      %v4955 = vunpack.c.l.b16 %v3739
      %v4956 = vunpack.c.h.b16 %v3739
      %v4957 = vunpack.c.l.b16 %v3740
      %v4958 = vunpack.c.h.b16 %v3740
      %v4959 = vunpack.c.l.b16 %v3741
      %v4960 = vunpack.c.h.b16 %v3741
      %v4961 = vunpack.c.l.b16 %v3742
      %v4962 = vunpack.c.h.b16 %v3742
      %v4963 = vunpack.c.l.b16 %v3743
      %v4964 = vunpack.c.h.b16 %v3743
      %v4965 = vunpack.c.l.b16 %v3744
      %v4966 = vunpack.c.h.b16 %v3744
      %v4967 = vunpack.c.l.b16 %v3745
      %v4968 = vunpack.c.h.b16 %v3745
      %v4969 = vunpack.c.l.b16 %v3746
      %v4970 = vunpack.c.h.b16 %v3746
      %v4971 = vunpack.c.l.b16 %v3747
      %v4972 = vunpack.c.h.b16 %v3747
      %v4973 = vunpack.c.l.b16 %v3748
      %v4974 = vunpack.c.h.b16 %v3748
      %v4975 = vunpack.c.l.b16 %v3749
      %v4976 = vunpack.c.h.b16 %v3749
      %v4977 = vunpack.c.l.b16 %v3750
      %v4978 = vunpack.c.h.b16 %v3750
      %v4979 = vunpack.c.l.b16 %v3751
      %v4980 = vunpack.c.h.b16 %v3751
      %v4981 = vunpack.c.l.b16 %v3752
      %v4982 = vunpack.c.h.b16 %v3752
      %v4983 = vunpack.c.l.b16 %v3753
      %v4984 = vunpack.c.h.b16 %v3753
      %v4985 = vunpack.c.l.b16 %v3754
      %v4986 = vunpack.c.h.b16 %v3754
      %v4987 = vunpack.c.l.b16 %v3755
      %v4988 = vunpack.c.h.b16 %v3755
      %v4989 = vunpack.c.l.b16 %v3756
      %v4990 = vunpack.c.h.b16 %v3756
      %v4991 = vunpack.c.l.b16 %v3757
      %v4992 = vunpack.c.h.b16 %v3757
      %v4993 = vunpack.c.l.b16 %v3758
      %v4994 = vunpack.c.h.b16 %v3758
      %v4995 = vunpack.c.l.b16 %v3759
      %v4996 = vunpack.c.h.b16 %v3759
      %v4997 = vunpack.c.l.b16 %v3760
      %v4998 = vunpack.c.h.b16 %v3760
      %v4999 = vunpack.c.l.b16 %v3761
      %v5000 = vunpack.c.h.b16 %v3761
      %v5001 = vunpack.c.l.b16 %v3762
      %v5002 = vunpack.c.h.b16 %v3762
      %v5003 = vunpack.c.l.b16 %v3763
      %v5004 = vunpack.c.h.b16 %v3763
      %v5005 = vunpack.c.l.b16 %v3764
      %v5006 = vunpack.c.h.b16 %v3764
      %v5007 = vunpack.c.l.b16 %v3765
      %v5008 = vunpack.c.h.b16 %v3765
      %v5009 = vunpack.c.l.b16 %v3766
      %v5010 = vunpack.c.h.b16 %v3766
      %v5011 = vunpack.c.l.b16 %v3767
      %v5012 = vunpack.c.h.b16 %v3767
      %v5013 = vunpack.c.l.b16 %v3768
      %v5014 = vunpack.c.h.b16 %v3768
      %v5015 = vunpack.c.l.b16 %v3769
      %v5016 = vunpack.c.h.b16 %v3769
      %v5017 = vunpack.c.l.b16 %v3770
      %v5018 = vunpack.c.h.b16 %v3770
      %v5019 = vunpack.c.l.b16 %v3771
      %v5020 = vunpack.c.h.b16 %v3771
      %v5021 = vunpack.c.l.b16 %v3772
      %v5022 = vunpack.c.h.b16 %v3772
      %v5023 = vunpack.c.l.b16 %v3773
      %v5024 = vunpack.c.h.b16 %v3773
      %v5025 = vunpack.c.l.b16 %v3774
      %v5026 = vunpack.c.h.b16 %v3774
      %v5027 = vunpack.c.l.b16 %v3775
      %v5028 = vunpack.c.h.b16 %v3775
      %v5029 = vunpack.c.l.b16 %v3776
      %v5030 = vunpack.c.h.b16 %v3776
      %v5031 = vunpack.c.l.b16 %v3777
      %v5032 = vunpack.c.h.b16 %v3777
      %v5033 = vunpack.c.l.b16 %v3778
      %v5034 = vunpack.c.h.b16 %v3778
      %v5035 = vunpack.c.l.b16 %v3779
      %v5036 = vunpack.c.h.b16 %v3779
      %v5037 = vunpack.c.l.b16 %v3780
      %v5038 = vunpack.c.h.b16 %v3780
      %v5039 = vunpack.c.l.b16 %v3781
      %v5040 = vunpack.c.h.b16 %v3781
      %v5041 = vunpack.c.l.b16 %v3782
      %v5042 = vunpack.c.h.b16 %v3782
      %v5043 = vunpack.c.l.b16 %v3783
      %v5044 = vunpack.c.h.b16 %v3783
      %v5045 = vunpack.c.l.b16 %v3784
      %v5046 = vunpack.c.h.b16 %v3784
      %v5047 = vunpack.c.l.b16 %v3785
      %v5048 = vunpack.c.h.b16 %v3785
      %v5049 = vunpack.c.l.b16 %v3786
      %v5050 = vunpack.c.h.b16 %v3786
      %v5051 = vunpack.c.l.b16 %v3787
      %v5052 = vunpack.c.h.b16 %v3787
      %v5053 = vunpack.c.l.b16 %v3788
      %v5054 = vunpack.c.h.b16 %v3788
      %v5055 = vunpack.c.l.b16 %v3789
      %v5056 = vunpack.c.h.b16 %v3789
      %v5057 = vunpack.c.l.b16 %v3790
      %v5058 = vunpack.c.h.b16 %v3790
      %v5059 = vunpack.c.l.b16 %v3791
      %v5060 = vunpack.c.h.b16 %v3791
      %v5061 = vunpack.c.l.b16 %v3792
      %v5062 = vunpack.c.h.b16 %v3792
      %v5063 = vunpack.c.l.b16 %v3793
      %v5064 = vunpack.c.h.b16 %v3793
      %v5065 = vunpack.c.l.b16 %v3794
      %v5066 = vunpack.c.h.b16 %v3794
      %v5067 = vunpack.c.l.b16 %v3795
      %v5068 = vunpack.c.h.b16 %v3795
      %v5069 = vunpack.c.l.b16 %v3796
      %v5070 = vunpack.c.h.b16 %v3796
      %v5071 = vunpack.c.l.b16 %v3797
      %v5072 = vunpack.c.h.b16 %v3797
      %v5073 = vunpack.c.l.b16 %v3798
      %v5074 = vunpack.c.h.b16 %v3798
      %v5075 = vunpack.c.l.b16 %v3799
      %v5076 = vunpack.c.h.b16 %v3799
      %v5077 = vunpack.c.l.b16 %v3800
      %v5078 = vunpack.c.h.b16 %v3800
      %v5079 = vunpack.c.l.b16 %v3801
      %v5080 = vunpack.c.h.b16 %v3801
      %v5081 = vunpack.c.l.b16 %v3802
      %v5082 = vunpack.c.h.b16 %v3802
      %v5083 = vunpack.c.l.b16 %v3803
      %v5084 = vunpack.c.h.b16 %v3803
      %v5085 = vunpack.c.l.b16 %v3804
      %v5086 = vunpack.c.h.b16 %v3804
      %v5087 = vunpack.c.l.b16 %v3805
      %v5088 = vunpack.c.h.b16 %v3805
      %v5089 = vunpack.c.l.b16 %v3806
      %v5090 = vunpack.c.h.b16 %v3806
      %v5091 = vunpack.c.l.b16 %v3807
      %v5092 = vunpack.c.h.b16 %v3807
      %v5093 = vunpack.c.l.b16 %v3808
      %v5094 = vunpack.c.h.b16 %v3808
      %v5095 = vunpack.c.l.b16 %v3809
      %v5096 = vunpack.c.h.b16 %v3809
      %v5097 = vunpack.c.l.b16 %v3810
      %v5098 = vunpack.c.h.b16 %v3810
      %v5099 = vunpack.c.l.b16 %v3811
      %v5100 = vunpack.c.h.b16 %v3811
      %v5101 = vunpack.c.l.b16 %v3812
      %v5102 = vunpack.c.h.b16 %v3812
      %v5103 = vunpack.c.l.b16 %v3813
      %v5104 = vunpack.c.h.b16 %v3813
      %v5105 = vunpack.c.l.b16 %v3814
      %v5106 = vunpack.c.h.b16 %v3814
      %v5107 = vunpack.c.l.b16 %v3815
      %v5108 = vunpack.c.h.b16 %v3815
      %v5109 = vunpack.c.l.b16 %v3816
      %v5110 = vunpack.c.h.b16 %v3816
      %v5111 = vunpack.c.l.b16 %v3817
      %v5112 = vunpack.c.h.b16 %v3817
      %v5113 = vunpack.c.l.b16 %v3818
      %v5114 = vunpack.c.h.b16 %v3818
      %v5115 = vunpack.c.l.b16 %v3819
      %v5116 = vunpack.c.h.b16 %v3819
      %v5117 = vunpack.c.l.b16 %v3820
      %v5118 = vunpack.c.h.b16 %v3820
      %v5119 = vunpack.c.l.b16 %v3821
      %v5120 = vunpack.c.h.b16 %v3821
      %v5121 = vunpack.c.l.b16 %v3822
      %v5122 = vunpack.c.h.b16 %v3822
      %v5123 = vunpack.c.l.b16 %v3823
      %v5124 = vunpack.c.h.b16 %v3823
      %v5125 = vunpack.c.l.b16 %v3824
      %v5126 = vunpack.c.h.b16 %v3824
      %v5127 = vunpack.c.l.b16 %v3825
      %v5128 = vunpack.c.h.b16 %v3825
      %v5129 = vunpack.c.l.b16 %v3826
      %v5130 = vunpack.c.h.b16 %v3826
      %v5131 = vunpack.c.l.b16 %v3827
      %v5132 = vunpack.c.h.b16 %v3827
      %v5133 = vunpack.c.l.b16 %v3828
      %v5134 = vunpack.c.h.b16 %v3828
      %v5135 = vunpack.c.l.b16 %v3829
      %v5136 = vunpack.c.h.b16 %v3829
      %v5137 = vunpack.c.l.b16 %v3830
      %v5138 = vunpack.c.h.b16 %v3830
      %v5139 = vunpack.c.l.b16 %v3831
      %v5140 = vunpack.c.h.b16 %v3831
      %v5141 = vunpack.c.l.b16 %v3832
      %v5142 = vunpack.c.h.b16 %v3832
      %v5143 = vunpack.c.l.b16 %v3833
      %v5144 = vunpack.c.h.b16 %v3833
      %v5145 = vunpack.c.l.b16 %v3834
      %v5146 = vunpack.c.h.b16 %v3834
      %v5147 = vunpack.c.l.b16 %v3835
      %v5148 = vunpack.c.h.b16 %v3835
      %v5149 = vunpack.c.l.b16 %v3836
      %v5150 = vunpack.c.h.b16 %v3836
      %v5151 = vunpack.c.l.b16 %v3837
      %v5152 = vunpack.c.h.b16 %v3837
      %v5153 = vunpack.c.l.b16 %v3838
      %v5154 = vunpack.c.h.b16 %v3838
      %v5155 = vunpack.c.l.b16 %v3839
      %v5156 = vunpack.c.h.b16 %v3839
      %v5157 = vunpack.c.l.b16 %v3840
      %v5158 = vunpack.c.h.b16 %v3840
      %v5159 = vunpack.c.l.b16 %v3841
      %v5160 = vunpack.c.h.b16 %v3841
      %v5161 = vunpack.c.l.b16 %v3842
      %v5162 = vunpack.c.h.b16 %v3842
      %v5163 = vunpack.c.l.b16 %v3843
      %v5164 = vunpack.c.h.b16 %v3843
      %v5165 = vunpack.c.l.b16 %v3844
      %v5166 = vunpack.c.h.b16 %v3844
      %v5167 = vunpack.c.l.b16 %v3845
      %v5168 = vunpack.c.h.b16 %v3845
      %v5169 = vunpack.c.l.b16 %v3846
      %v5170 = vunpack.c.h.b16 %v3846
      %v5171 = vunpack.c.l.b16 %v3847
      %v5172 = vunpack.c.h.b16 %v3847
      %v5173 = vunpack.c.l.b16 %v3848
      %v5174 = vunpack.c.h.b16 %v3848
      %v5175 = vunpack.c.l.b16 %v3849
      %v5176 = vunpack.c.h.b16 %v3849
      %v5177 = vunpack.c.l.b16 %v3850
      %v5178 = vunpack.c.h.b16 %v3850
      %v5179 = vunpack.c.l.b16 %v3851
      %v5180 = vunpack.c.h.b16 %v3851
      %v5181 = vunpack.c.l.b16 %v3852
      %v5182 = vunpack.c.h.b16 %v3852
      %v5183 = vunpack.c.l.b16 %v3853
      %v5184 = vunpack.c.h.b16 %v3853
      %v5185 = vunpack.c.l.b16 %v3854
      %v5186 = vunpack.c.h.b16 %v3854
      %v5187 = vunpack.c.l.b16 %v3855
      %v5188 = vunpack.c.h.b16 %v3855
      %v5189 = vunpack.c.l.b16 %v3856
      %v5190 = vunpack.c.h.b16 %v3856
      %v5191 = vunpack.c.l.b16 %v3857
      %v5192 = vunpack.c.h.b16 %v3857
      %v5193 = vunpack.c.l.b16 %v3858
      %v5194 = vunpack.c.h.b16 %v3858
      %v5195 = vunpack.c.l.b16 %v3859
      %v5196 = vunpack.c.h.b16 %v3859
      %v5197 = vunpack.c.l.b16 %v3860
      %v5198 = vunpack.c.h.b16 %v3860
      %v5199 = vunpack.c.l.b16 %v3861
      %v5200 = vunpack.c.h.b16 %v3861
      %v5201 = vunpack.c.l.b16 %v3862
      %v5202 = vunpack.c.h.b16 %v3862
      %v5203 = vunpack.c.l.b16 %v3863
      %v5204 = vunpack.c.h.b16 %v3863
      %v5205 = vunpack.c.l.b16 %v3864
      %v5206 = vunpack.c.h.b16 %v3864
      %v5207 = vunpack.c.l.b16 %v3865
      %v5208 = vunpack.c.h.b16 %v3865
      %v5209 = vunpack.c.l.b16 %v3866
      %v5210 = vunpack.c.h.b16 %v3866
      %v5211 = vunpack.c.l.b16 %v3867
      %v5212 = vunpack.c.h.b16 %v3867
      %v5213 = vunpack.c.l.b16 %v3868
      %v5214 = vunpack.c.h.b16 %v3868
      %v5215 = vunpack.c.l.b16 %v3869
      %v5216 = vunpack.c.h.b16 %v3869
      %v5217 = vunpack.c.l.b16 %v3870
      %v5218 = vunpack.c.h.b16 %v3870
      %v5219 = vunpack.c.l.b16 %v3871
      %v5220 = vunpack.c.h.b16 %v3871
      %v5221 = vunpack.c.l.b16 %v3872
      %v5222 = vunpack.c.h.b16 %v3872
      %v5223 = vunpack.c.l.b16 %v3873
      %v5224 = vunpack.c.h.b16 %v3873
      %v5225 = vunpack.c.l.b16 %v3874
      %v5226 = vunpack.c.h.b16 %v3874
      %v5227 = vunpack.c.l.b16 %v3875
      %v5228 = vunpack.c.h.b16 %v3875
      %v5229 = vunpack.c.l.b16 %v3876
      %v5230 = vunpack.c.h.b16 %v3876
      %v5231 = vunpack.c.l.b16 %v3877
      %v5232 = vunpack.c.h.b16 %v3877
      %v5233 = vunpack.c.l.b16 %v3878
      %v5234 = vunpack.c.h.b16 %v3878
      %v5235 = vpack.c.b16 %v4341, %v4339
      %v5236 = vpack.c.b16 %v4342, %v4340
      %v5237 = vpack.c.b16 %v4345, %v4343
      %v5238 = vpack.c.b16 %v4346, %v4344
      %v5239 = vpack.c.b16 %v4349, %v4347
      %v5240 = vpack.c.b16 %v4350, %v4348
      %v5241 = vpack.c.b16 %v4353, %v4351
      %v5242 = vpack.c.b16 %v4354, %v4352
      %v5243 = vpack.c.b16 %v4357, %v4355
      %v5244 = vpack.c.b16 %v4358, %v4356
      %v5245 = vpack.c.b16 %v4361, %v4359
      %v5246 = vpack.c.b16 %v4362, %v4360
      %v5247 = vpack.c.b16 %v4365, %v4363
      %v5248 = vpack.c.b16 %v4366, %v4364
      %v5249 = vpack.c.b16 %v4369, %v4367
      %v5250 = vpack.c.b16 %v4370, %v4368
      %v5251 = vpack.c.b16 %v4373, %v4371
      %v5252 = vpack.c.b16 %v4374, %v4372
      %v5253 = vpack.c.b16 %v4377, %v4375
      %v5254 = vpack.c.b16 %v4378, %v4376
      %v5255 = vpack.c.b16 %v4381, %v4379
      %v5256 = vpack.c.b16 %v4382, %v4380
      %v5257 = vpack.c.b16 %v4385, %v4383
      %v5258 = vpack.c.b16 %v4386, %v4384
      %v5259 = vpack.c.b16 %v4389, %v4387
      %v5260 = vpack.c.b16 %v4390, %v4388
      %v5261 = vpack.c.b16 %v4393, %v4391
      %v5262 = vpack.c.b16 %v4394, %v4392
      %v5263 = vpack.c.b16 %v4397, %v4395
      %v5264 = vpack.c.b16 %v4398, %v4396
      %v5265 = vpack.c.b16 %v4401, %v4399
      %v5266 = vpack.c.b16 %v4402, %v4400
      %v5267 = vpack.c.b16 %v4405, %v4403
      %v5268 = vpack.c.b16 %v4406, %v4404
      %v5269 = vpack.c.b16 %v4409, %v4407
      %v5270 = vpack.c.b16 %v4410, %v4408
      %v5271 = vpack.c.b16 %v4413, %v4411
      %v5272 = vpack.c.b16 %v4414, %v4412
      %v5273 = vpack.c.b16 %v4417, %v4415
      %v5274 = vpack.c.b16 %v4418, %v4416
      %v5275 = vpack.c.b16 %v4421, %v4419
      %v5276 = vpack.c.b16 %v4422, %v4420
      %v5277 = vpack.c.b16 %v4425, %v4423
      %v5278 = vpack.c.b16 %v4426, %v4424
      %v5279 = vpack.c.b16 %v4429, %v4427
      %v5280 = vpack.c.b16 %v4430, %v4428
      %v5281 = vpack.c.b16 %v4433, %v4431
      %v5282 = vpack.c.b16 %v4434, %v4432
      %v5283 = vpack.c.b16 %v4437, %v4435
      %v5284 = vpack.c.b16 %v4438, %v4436
      %v5285 = vpack.c.b16 %v4441, %v4439
      %v5286 = vpack.c.b16 %v4442, %v4440
      %v5287 = vpack.c.b16 %v4445, %v4443
      %v5288 = vpack.c.b16 %v4446, %v4444
      %v5289 = vpack.c.b16 %v4449, %v4447
      %v5290 = vpack.c.b16 %v4450, %v4448
      %v5291 = vpack.c.b16 %v4453, %v4451
      %v5292 = vpack.c.b16 %v4454, %v4452
      %v5293 = vpack.c.b16 %v4457, %v4455
      %v5294 = vpack.c.b16 %v4458, %v4456
      %v5295 = vpack.c.b16 %v4461, %v4459
      %v5296 = vpack.c.b16 %v4462, %v4460
      %v5297 = vpack.c.b16 %v4465, %v4463
      %v5298 = vpack.c.b16 %v4466, %v4464
      %v5299 = vpack.c.b16 %v4469, %v4467
      %v5300 = vpack.c.b16 %v4470, %v4468
      %v5301 = vpack.c.b16 %v4473, %v4471
      %v5302 = vpack.c.b16 %v4474, %v4472
      %v5303 = vpack.c.b16 %v4477, %v4475
      %v5304 = vpack.c.b16 %v4478, %v4476
      %v5305 = vpack.c.b16 %v4481, %v4479
      %v5306 = vpack.c.b16 %v4482, %v4480
      %v5307 = vpack.c.b16 %v4485, %v4483
      %v5308 = vpack.c.b16 %v4486, %v4484
      %v5309 = vpack.c.b16 %v4489, %v4487
      %v5310 = vpack.c.b16 %v4490, %v4488
      %v5311 = vpack.c.b16 %v4493, %v4491
      %v5312 = vpack.c.b16 %v4494, %v4492
      %v5313 = vpack.c.b16 %v4497, %v4495
      %v5314 = vpack.c.b16 %v4498, %v4496
      %v5315 = vpack.c.b16 %v4501, %v4499
      %v5316 = vpack.c.b16 %v4502, %v4500
      %v5317 = vpack.c.b16 %v4505, %v4503
      %v5318 = vpack.c.b16 %v4506, %v4504
      %v5319 = vpack.c.b16 %v4509, %v4507
      %v5320 = vpack.c.b16 %v4510, %v4508
      %v5321 = vpack.c.b16 %v4513, %v4511
      %v5322 = vpack.c.b16 %v4514, %v4512
      %v5323 = vpack.c.b16 %v4517, %v4515
      %v5324 = vpack.c.b16 %v4518, %v4516
      %v5325 = vpack.c.b16 %v4521, %v4519
      %v5326 = vpack.c.b16 %v4522, %v4520
      %v5327 = vpack.c.b16 %v4525, %v4523
      %v5328 = vpack.c.b16 %v4526, %v4524
      %v5329 = vpack.c.b16 %v4529, %v4527
      %v5330 = vpack.c.b16 %v4530, %v4528
      %v5331 = vpack.c.b16 %v4533, %v4531
      %v5332 = vpack.c.b16 %v4534, %v4532
      %v5333 = vpack.c.b16 %v4537, %v4535
      %v5334 = vpack.c.b16 %v4538, %v4536
      %v5335 = vpack.c.b16 %v4541, %v4539
      %v5336 = vpack.c.b16 %v4542, %v4540
      %v5337 = vpack.c.b16 %v4545, %v4543
      %v5338 = vpack.c.b16 %v4546, %v4544
      %v5339 = vpack.c.b16 %v4549, %v4547
      %v5340 = vpack.c.b16 %v4550, %v4548
      %v5341 = vpack.c.b16 %v4553, %v4551
      %v5342 = vpack.c.b16 %v4554, %v4552
      %v5343 = vpack.c.b16 %v4557, %v4555
      %v5344 = vpack.c.b16 %v4558, %v4556
      %v5345 = vpack.c.b16 %v4561, %v4559
      %v5346 = vpack.c.b16 %v4562, %v4560
      %v5347 = vpack.c.b16 %v4565, %v4563
      %v5348 = vpack.c.b16 %v4566, %v4564
      %v5349 = vpack.c.b16 %v4569, %v4567
      %v5350 = vpack.c.b16 %v4570, %v4568
      %v5351 = vpack.c.b16 %v4573, %v4571
      %v5352 = vpack.c.b16 %v4574, %v4572
      %v5353 = vpack.c.b16 %v4577, %v4575
      %v5354 = vpack.c.b16 %v4578, %v4576
      %v5355 = vpack.c.b16 %v4581, %v4579
      %v5356 = vpack.c.b16 %v4582, %v4580
      %v5357 = vpack.c.b16 %v4585, %v4583
      %v5358 = vpack.c.b16 %v4586, %v4584
      %v5359 = vpack.c.b16 %v4589, %v4587
      %v5360 = vpack.c.b16 %v4590, %v4588
      %v5361 = vpack.c.b16 %v4593, %v4591
      %v5362 = vpack.c.b16 %v4594, %v4592
      %v5363 = vpack.c.b16 %v4597, %v4595
      %v5364 = vpack.c.b16 %v4598, %v4596
      %v5365 = vpack.c.b16 %v4601, %v4599
      %v5366 = vpack.c.b16 %v4602, %v4600
      %v5367 = vpack.c.b16 %v4605, %v4603
      %v5368 = vpack.c.b16 %v4606, %v4604
      %v5369 = vpack.c.b16 %v4609, %v4607
      %v5370 = vpack.c.b16 %v4610, %v4608
      %v5371 = vpack.c.b16 %v4613, %v4611
      %v5372 = vpack.c.b16 %v4614, %v4612
      %v5373 = vpack.c.b16 %v4617, %v4615
      %v5374 = vpack.c.b16 %v4618, %v4616
      %v5375 = vpack.c.b16 %v4621, %v4619
      %v5376 = vpack.c.b16 %v4622, %v4620
      %v5377 = vpack.c.b16 %v4625, %v4623
      %v5378 = vpack.c.b16 %v4626, %v4624
      %v5379 = vpack.c.b16 %v4629, %v4627
      %v5380 = vpack.c.b16 %v4630, %v4628
      %v5381 = vpack.c.b16 %v4633, %v4631
      %v5382 = vpack.c.b16 %v4634, %v4632
      %v5383 = vpack.c.b16 %v4637, %v4635
      %v5384 = vpack.c.b16 %v4638, %v4636
      %v5385 = vpack.c.b16 %v4641, %v4639
      %v5386 = vpack.c.b16 %v4642, %v4640
      %v5387 = vpack.c.b16 %v4645, %v4643
      %v5388 = vpack.c.b16 %v4646, %v4644
      %v5389 = vpack.c.b16 %v4649, %v4647
      %v5390 = vpack.c.b16 %v4650, %v4648
      %v5391 = vpack.c.b16 %v4653, %v4651
      %v5392 = vpack.c.b16 %v4654, %v4652
      %v5393 = vpack.c.b16 %v4657, %v4655
      %v5394 = vpack.c.b16 %v4658, %v4656
      %v5395 = vpack.c.b16 %v4661, %v4659
      %v5396 = vpack.c.b16 %v4662, %v4660
      %v5397 = vpack.c.b16 %v4665, %v4663
      %v5398 = vpack.c.b16 %v4666, %v4664
      %v5399 = vpack.c.b16 %v4669, %v4667
      %v5400 = vpack.c.b16 %v4670, %v4668
      %v5401 = vpack.c.b16 %v4673, %v4671
      %v5402 = vpack.c.b16 %v4674, %v4672
      %v5403 = vpack.c.b16 %v4677, %v4675
      %v5404 = vpack.c.b16 %v4678, %v4676
      %v5405 = vpack.c.b16 %v4681, %v4679
      %v5406 = vpack.c.b16 %v4682, %v4680
      %v5407 = vpack.c.b16 %v4685, %v4683
      %v5408 = vpack.c.b16 %v4686, %v4684
      %v5409 = vpack.c.b16 %v4689, %v4687
      %v5410 = vpack.c.b16 %v4690, %v4688
      %v5411 = vpack.c.b16 %v4693, %v4691
      %v5412 = vpack.c.b16 %v4694, %v4692
      %v5413 = vpack.c.b16 %v4697, %v4695
      %v5414 = vpack.c.b16 %v4698, %v4696
      %v5415 = vpack.c.b16 %v4701, %v4699
      %v5416 = vpack.c.b16 %v4702, %v4700
      %v5417 = vpack.c.b16 %v4705, %v4703
      %v5418 = vpack.c.b16 %v4706, %v4704
      %v5419 = vpack.c.b16 %v4709, %v4707
      %v5420 = vpack.c.b16 %v4710, %v4708
      %v5421 = vpack.c.b16 %v4713, %v4711
      %v5422 = vpack.c.b16 %v4714, %v4712
      %v5423 = vpack.c.b16 %v4717, %v4715
      %v5424 = vpack.c.b16 %v4718, %v4716
      %v5425 = vpack.c.b16 %v4721, %v4719
      %v5426 = vpack.c.b16 %v4722, %v4720
      %v5427 = vpack.c.b16 %v4725, %v4723
      %v5428 = vpack.c.b16 %v4726, %v4724
      %v5429 = vpack.c.b16 %v4729, %v4727
      %v5430 = vpack.c.b16 %v4730, %v4728
      %v5431 = vpack.c.b16 %v4733, %v4731
      %v5432 = vpack.c.b16 %v4734, %v4732
      %v5433 = vpack.c.b16 %v4737, %v4735
      %v5434 = vpack.c.b16 %v4738, %v4736
      %v5435 = vpack.c.b16 %v4741, %v4739
      %v5436 = vpack.c.b16 %v4742, %v4740
      %v5437 = vpack.c.b16 %v4745, %v4743
      %v5438 = vpack.c.b16 %v4746, %v4744
      %v5439 = vpack.c.b16 %v4749, %v4747
      %v5440 = vpack.c.b16 %v4750, %v4748
      %v5441 = vpack.c.b16 %v4753, %v4751
      %v5442 = vpack.c.b16 %v4754, %v4752
      %v5443 = vpack.c.b16 %v4757, %v4755
      %v5444 = vpack.c.b16 %v4758, %v4756
      %v5445 = vpack.c.b16 %v4761, %v4759
      %v5446 = vpack.c.b16 %v4762, %v4760
      %v5447 = vpack.c.b16 %v4765, %v4763
      %v5448 = vpack.c.b16 %v4766, %v4764
      %v5449 = vpack.c.b16 %v4769, %v4767
      %v5450 = vpack.c.b16 %v4770, %v4768
      %v5451 = vpack.c.b16 %v4773, %v4771
      %v5452 = vpack.c.b16 %v4774, %v4772
      %v5453 = vpack.c.b16 %v4777, %v4775
      %v5454 = vpack.c.b16 %v4778, %v4776
      %v5455 = vpack.c.b16 %v4781, %v4779
      %v5456 = vpack.c.b16 %v4782, %v4780
      %v5457 = vpack.c.b16 %v4785, %v4783
      %v5458 = vpack.c.b16 %v4786, %v4784
      %v5459 = vpack.c.b16 %v4789, %v4787
      %v5460 = vpack.c.b16 %v4790, %v4788
      %v5461 = vpack.c.b16 %v4793, %v4791
      %v5462 = vpack.c.b16 %v4794, %v4792
      %v5463 = vpack.c.b16 %v4797, %v4795
      %v5464 = vpack.c.b16 %v4798, %v4796
      %v5465 = vpack.c.b16 %v4801, %v4799
      %v5466 = vpack.c.b16 %v4802, %v4800
      %v5467 = vpack.c.b16 %v4805, %v4803
      %v5468 = vpack.c.b16 %v4806, %v4804
      %v5469 = vpack.c.b16 %v4809, %v4807
      %v5470 = vpack.c.b16 %v4810, %v4808
      %v5471 = vpack.c.b16 %v4813, %v4811
      %v5472 = vpack.c.b16 %v4814, %v4812
      %v5473 = vpack.c.b16 %v4817, %v4815
      %v5474 = vpack.c.b16 %v4818, %v4816
      %v5475 = vpack.c.b16 %v4821, %v4819
      %v5476 = vpack.c.b16 %v4822, %v4820
      %v5477 = vpack.c.b16 %v4825, %v4823
      %v5478 = vpack.c.b16 %v4826, %v4824
      %v5479 = vpack.c.b16 %v4829, %v4827
      %v5480 = vpack.c.b16 %v4830, %v4828
      %v5481 = vpack.c.b16 %v4833, %v4831
      %v5482 = vpack.c.b16 %v4834, %v4832
      %v5483 = vpack.c.b16 %v4837, %v4835
      %v5484 = vpack.c.b16 %v4838, %v4836
      %v5485 = vpack.c.b16 %v4841, %v4839
      %v5486 = vpack.c.b16 %v4842, %v4840
      %v5487 = vpack.c.b16 %v4845, %v4843
      %v5488 = vpack.c.b16 %v4846, %v4844
      %v5489 = vpack.c.b16 %v4849, %v4847
      %v5490 = vpack.c.b16 %v4850, %v4848
      %v5491 = vpack.c.b16 %v4853, %v4851
      %v5492 = vpack.c.b16 %v4854, %v4852
      %v5493 = vpack.c.b16 %v4857, %v4855
      %v5494 = vpack.c.b16 %v4858, %v4856
      %v5495 = vpack.c.b16 %v4861, %v4859
      %v5496 = vpack.c.b16 %v4862, %v4860
      %v5497 = vpack.c.b16 %v4865, %v4863
      %v5498 = vpack.c.b16 %v4866, %v4864
      %v5499 = vpack.c.b16 %v4869, %v4867
      %v5500 = vpack.c.b16 %v4870, %v4868
      %v5501 = vpack.c.b16 %v4873, %v4871
      %v5502 = vpack.c.b16 %v4874, %v4872
      %v5503 = vpack.c.b16 %v4877, %v4875
      %v5504 = vpack.c.b16 %v4878, %v4876
      %v5505 = vpack.c.b16 %v4881, %v4879
      %v5506 = vpack.c.b16 %v4882, %v4880
      %v5507 = vpack.c.b16 %v4885, %v4883
      %v5508 = vpack.c.b16 %v4886, %v4884
      %v5509 = vpack.c.b16 %v4889, %v4887
      %v5510 = vpack.c.b16 %v4890, %v4888
      %v5511 = vpack.c.b16 %v4893, %v4891
      %v5512 = vpack.c.b16 %v4894, %v4892
      %v5513 = vpack.c.b16 %v4897, %v4895
      %v5514 = vpack.c.b16 %v4898, %v4896
      %v5515 = vpack.c.b16 %v4901, %v4899
      %v5516 = vpack.c.b16 %v4902, %v4900
      %v5517 = vpack.c.b16 %v4905, %v4903
      %v5518 = vpack.c.b16 %v4906, %v4904
      %v5519 = vpack.c.b16 %v4909, %v4907
      %v5520 = vpack.c.b16 %v4910, %v4908
      %v5521 = vpack.c.b16 %v4913, %v4911
      %v5522 = vpack.c.b16 %v4914, %v4912
      %v5523 = vpack.c.b16 %v4917, %v4915
      %v5524 = vpack.c.b16 %v4918, %v4916
      %v5525 = vpack.c.b16 %v4921, %v4919
      %v5526 = vpack.c.b16 %v4922, %v4920
      %v5527 = vpack.c.b16 %v4925, %v4923
      %v5528 = vpack.c.b16 %v4926, %v4924
      %v5529 = vpack.c.b16 %v4929, %v4927
      %v5530 = vpack.c.b16 %v4930, %v4928
      %v5531 = vpack.c.b16 %v4933, %v4931
      %v5532 = vpack.c.b16 %v4934, %v4932
      %v5533 = vpack.c.b16 %v4937, %v4935
      %v5534 = vpack.c.b16 %v4938, %v4936
      %v5535 = vpack.c.b16 %v4941, %v4939
      %v5536 = vpack.c.b16 %v4942, %v4940
      %v5537 = vpack.c.b16 %v4945, %v4943
      %v5538 = vpack.c.b16 %v4946, %v4944
      %v5539 = vpack.c.b16 %v4949, %v4947
      %v5540 = vpack.c.b16 %v4950, %v4948
      %v5541 = vpack.c.b16 %v4953, %v4951
      %v5542 = vpack.c.b16 %v4954, %v4952
      %v5543 = vpack.c.b16 %v4957, %v4955
      %v5544 = vpack.c.b16 %v4958, %v4956
      %v5545 = vpack.c.b16 %v4961, %v4959
      %v5546 = vpack.c.b16 %v4962, %v4960
      %v5547 = vpack.c.b16 %v4965, %v4963
      %v5548 = vpack.c.b16 %v4966, %v4964
      %v5549 = vpack.c.b16 %v4969, %v4967
      %v5550 = vpack.c.b16 %v4970, %v4968
      %v5551 = vpack.c.b16 %v4973, %v4971
      %v5552 = vpack.c.b16 %v4974, %v4972
      %v5553 = vpack.c.b16 %v4977, %v4975
      %v5554 = vpack.c.b16 %v4978, %v4976
      %v5555 = vpack.c.b16 %v4981, %v4979
      %v5556 = vpack.c.b16 %v4982, %v4980
      %v5557 = vpack.c.b16 %v4985, %v4983
      %v5558 = vpack.c.b16 %v4986, %v4984
      %v5559 = vpack.c.b16 %v4989, %v4987
      %v5560 = vpack.c.b16 %v4990, %v4988
      %v5561 = vpack.c.b16 %v4993, %v4991
      %v5562 = vpack.c.b16 %v4994, %v4992
      %v5563 = vpack.c.b16 %v4997, %v4995
      %v5564 = vpack.c.b16 %v4998, %v4996
      %v5565 = vpack.c.b16 %v5001, %v4999
      %v5566 = vpack.c.b16 %v5002, %v5000
      %v5567 = vpack.c.b16 %v5005, %v5003
      %v5568 = vpack.c.b16 %v5006, %v5004
      %v5569 = vpack.c.b16 %v5009, %v5007
      %v5570 = vpack.c.b16 %v5010, %v5008
      %v5571 = vpack.c.b16 %v5013, %v5011
      %v5572 = vpack.c.b16 %v5014, %v5012
      %v5573 = vpack.c.b16 %v5017, %v5015
      %v5574 = vpack.c.b16 %v5018, %v5016
      %v5575 = vpack.c.b16 %v5021, %v5019
      %v5576 = vpack.c.b16 %v5022, %v5020
      %v5577 = vpack.c.b16 %v5025, %v5023
      %v5578 = vpack.c.b16 %v5026, %v5024
      %v5579 = vpack.c.b16 %v5029, %v5027
      %v5580 = vpack.c.b16 %v5030, %v5028
      %v5581 = vpack.c.b16 %v5033, %v5031
      %v5582 = vpack.c.b16 %v5034, %v5032
      %v5583 = vpack.c.b16 %v5037, %v5035
      %v5584 = vpack.c.b16 %v5038, %v5036
      %v5585 = vpack.c.b16 %v5041, %v5039
      %v5586 = vpack.c.b16 %v5042, %v5040
      %v5587 = vpack.c.b16 %v5045, %v5043
      %v5588 = vpack.c.b16 %v5046, %v5044
      %v5589 = vpack.c.b16 %v5049, %v5047
      %v5590 = vpack.c.b16 %v5050, %v5048
      %v5591 = vpack.c.b16 %v5053, %v5051
      %v5592 = vpack.c.b16 %v5054, %v5052
      %v5593 = vpack.c.b16 %v5057, %v5055
      %v5594 = vpack.c.b16 %v5058, %v5056
      %v5595 = vpack.c.b16 %v5061, %v5059
      %v5596 = vpack.c.b16 %v5062, %v5060
      %v5597 = vpack.c.b16 %v5065, %v5063
      %v5598 = vpack.c.b16 %v5066, %v5064
      %v5599 = vpack.c.b16 %v5069, %v5067
      %v5600 = vpack.c.b16 %v5070, %v5068
      %v5601 = vpack.c.b16 %v5073, %v5071
      %v5602 = vpack.c.b16 %v5074, %v5072
      %v5603 = vpack.c.b16 %v5077, %v5075
      %v5604 = vpack.c.b16 %v5078, %v5076
      %v5605 = vpack.c.b16 %v5081, %v5079
      %v5606 = vpack.c.b16 %v5082, %v5080
      %v5607 = vpack.c.b16 %v5085, %v5083
      %v5608 = vpack.c.b16 %v5086, %v5084
      %v5609 = vpack.c.b16 %v5089, %v5087
      %v5610 = vpack.c.b16 %v5090, %v5088
      %v5611 = vpack.c.b16 %v5093, %v5091
      %v5612 = vpack.c.b16 %v5094, %v5092
      %v5613 = vpack.c.b16 %v5097, %v5095
      %v5614 = vpack.c.b16 %v5098, %v5096
      %v5615 = vpack.c.b16 %v5101, %v5099
      %v5616 = vpack.c.b16 %v5102, %v5100
      %v5617 = vpack.c.b16 %v5105, %v5103
      %v5618 = vpack.c.b16 %v5106, %v5104
      %v5619 = vpack.c.b16 %v5109, %v5107
      %v5620 = vpack.c.b16 %v5110, %v5108
      %v5621 = vpack.c.b16 %v5113, %v5111
      %v5622 = vpack.c.b16 %v5114, %v5112
      %v5623 = vpack.c.b16 %v5117, %v5115
      %v5624 = vpack.c.b16 %v5118, %v5116
      %v5625 = vpack.c.b16 %v5121, %v5119
      %v5626 = vpack.c.b16 %v5122, %v5120
      %v5627 = vpack.c.b16 %v5125, %v5123
      %v5628 = vpack.c.b16 %v5126, %v5124
      %v5629 = vpack.c.b16 %v5129, %v5127
      %v5630 = vpack.c.b16 %v5130, %v5128
      %v5631 = vpack.c.b16 %v5133, %v5131
      %v5632 = vpack.c.b16 %v5134, %v5132
      %v5633 = vpack.c.b16 %v5137, %v5135
      %v5634 = vpack.c.b16 %v5138, %v5136
      %v5635 = vpack.c.b16 %v5141, %v5139
      %v5636 = vpack.c.b16 %v5142, %v5140
      %v5637 = vpack.c.b16 %v5145, %v5143
      %v5638 = vpack.c.b16 %v5146, %v5144
      %v5639 = vpack.c.b16 %v5149, %v5147
      %v5640 = vpack.c.b16 %v5150, %v5148
      %v5641 = vpack.c.b16 %v5153, %v5151
      %v5642 = vpack.c.b16 %v5154, %v5152
      %v5643 = vpack.c.b16 %v5157, %v5155
      %v5644 = vpack.c.b16 %v5158, %v5156
      %v5645 = vpack.c.b16 %v5161, %v5159
      %v5646 = vpack.c.b16 %v5162, %v5160
      %v5647 = vpack.c.b16 %v5165, %v5163
      %v5648 = vpack.c.b16 %v5166, %v5164
      %v5649 = vpack.c.b16 %v5169, %v5167
      %v5650 = vpack.c.b16 %v5170, %v5168
      %v5651 = vpack.c.b16 %v5173, %v5171
      %v5652 = vpack.c.b16 %v5174, %v5172
      %v5653 = vpack.c.b16 %v5177, %v5175
      %v5654 = vpack.c.b16 %v5178, %v5176
      %v5655 = vpack.c.b16 %v5181, %v5179
      %v5656 = vpack.c.b16 %v5182, %v5180
      %v5657 = vpack.c.b16 %v5185, %v5183
      %v5658 = vpack.c.b16 %v5186, %v5184
      %v5659 = vpack.c.b16 %v5189, %v5187
      %v5660 = vpack.c.b16 %v5190, %v5188
      %v5661 = vpack.c.b16 %v5193, %v5191
      %v5662 = vpack.c.b16 %v5194, %v5192
      %v5663 = vpack.c.b16 %v5197, %v5195
      %v5664 = vpack.c.b16 %v5198, %v5196
      %v5665 = vpack.c.b16 %v5201, %v5199
      %v5666 = vpack.c.b16 %v5202, %v5200
      %v5667 = vpack.c.b16 %v5205, %v5203
      %v5668 = vpack.c.b16 %v5206, %v5204
      %v5669 = vpack.c.b16 %v5209, %v5207
      %v5670 = vpack.c.b16 %v5210, %v5208
      %v5671 = vpack.c.b16 %v5213, %v5211
      %v5672 = vpack.c.b16 %v5214, %v5212
      %v5673 = vpack.c.b16 %v5217, %v5215
      %v5674 = vpack.c.b16 %v5218, %v5216
      %v5675 = vpack.c.b16 %v5221, %v5219
      %v5676 = vpack.c.b16 %v5222, %v5220
      %v5677 = vpack.c.b16 %v5225, %v5223
      %v5678 = vpack.c.b16 %v5226, %v5224
      %v5679 = vpack.c.b16 %v5229, %v5227
      %v5680 = vpack.c.b16 %v5230, %v5228
      %v5681 = vpack.c.b16 %v5233, %v5231
      %v5682 = vpack.c.b16 %v5234, %v5232
      %6131 = vmatprep.subr.bf16.mxu0 %v5250
      %6132 = vmatpush1.bf16.msra.mxu0 %v5249
      %6133 = vmatprep.subr.bf16.mxu0 %v5248
      %6134 = vmatpush1.bf16.msra.mxu0 %v5247
      %6135 = vmatprep.subr.bf16.mxu0 %v5246
      %6136 = vmatpush1.bf16.msra.mxu0 %v5245
      %6137 = vmatprep.subr.bf16.mxu0 %v5244
      %6138 = vmatpush1.bf16.msra.mxu0 %v5243
      %6139 = vmatprep.subr.bf16.mxu0 %v5242
      %6140 = vmatpush1.bf16.msra.mxu0 %v5241
      %6141 = vmatprep.subr.bf16.mxu0 %v5240
      %6142 = vmatpush1.bf16.msra.mxu0 %v5239
      %6143 = vmatprep.subr.bf16.mxu0 %v5238
      %6144 = vmatpush1.bf16.msra.mxu0 %v5237
      %6145 = vmatprep.subr.bf16.mxu0 %v5236
      %6146 = vmatpush1.bf16.msra.mxu0 %v5235
      %6147 = vmatprep.subr.bf16.mxu0 %v5266
      %6148 = vmatpush2.bf16.msra.mxu0 %v5265
      %6149 = vmatprep.subr.bf16.mxu0 %v5264
      %6150 = vmatpush2.bf16.msra.mxu0 %v5263
      %6151 = vmatprep.subr.bf16.mxu0 %v5262
      %6152 = vmatpush2.bf16.msra.mxu0 %v5261
      %6153 = vmatprep.subr.bf16.mxu0 %v5260
      %6154 = vmatpush2.bf16.msra.mxu0 %v5259
      %6155 = vmatprep.subr.bf16.mxu0 %v5258
      %6156 = vmatpush2.bf16.msra.mxu0 %v5257
      %6157 = vmatprep.subr.bf16.mxu0 %v5256
      %6158 = vmatpush2.bf16.msra.mxu0 %v5255
      %6159 = vmatprep.subr.bf16.mxu0 %v5254
      %6160 = vmatpush2.bf16.msra.mxu0 %v5253
      %6161 = vmatprep.subr.bf16.mxu0 %v5252
      %6162 = vmatpush2.bf16.msra.mxu0 %v5251
      %6163 = vmatprep.mubr.bf16.mxu0 %v3000
      %6164 = vmatmul.mubr.bf16.gmra.mxu0 %v2999
      %v6165 = vpop.f32.mrf.mxu0
      %v6166 = vadd.f32 %v3884, %v6165
      %v6167 = vpop.f32.mrf.mxu0
      %v6168 = vadd.f32 %v3888, %v6167
      %v6169 = vpop.f32.mrf.mxu0
      %v6170 = vadd.f32 %v3884, %v6169
      %v6171 = vpop.f32.mrf.mxu0
      %v6172 = vadd.f32 %v3888, %v6171
      %6173 = vmatprep.mubr.bf16.mxu0 %v3004
      %6174 = vmatmul.mubr.bf16.gmra.mxu0 %v3003
      %v6175 = vpop.f32.mrf.mxu0
      %v6176 = vadd.f32 %v3884, %v6175
      %v6177 = vpop.f32.mrf.mxu0
      %v6178 = vadd.f32 %v3888, %v6177
      %v6179 = vpop.f32.mrf.mxu0
      %v6180 = vadd.f32 %v3884, %v6179
      %v6181 = vpop.f32.mrf.mxu0
      %v6182 = vadd.f32 %v3888, %v6181
      %6183 = vmatprep.mubr.bf16.mxu0 %v3008
      %6184 = vmatmul.mubr.bf16.gmra.mxu0 %v3007
      %v6185 = vpop.f32.mrf.mxu0
      %v6186 = vadd.f32 %v3884, %v6185
      %v6187 = vpop.f32.mrf.mxu0
      %v6188 = vadd.f32 %v3888, %v6187
      %v6189 = vpop.f32.mrf.mxu0
      %v6190 = vadd.f32 %v3884, %v6189
      %v6191 = vpop.f32.mrf.mxu0
      %v6192 = vadd.f32 %v3888, %v6191
      %6193 = vmatprep.mubr.bf16.mxu0 %v3012
      %6194 = vmatmul.mubr.bf16.gmra.mxu0 %v3011
      %v6195 = vpop.f32.mrf.mxu0
      %v6196 = vadd.f32 %v3884, %v6195
      %v6197 = vpop.f32.mrf.mxu0
      %v6198 = vadd.f32 %v3888, %v6197
      %v6199 = vpop.f32.mrf.mxu0
      %v6200 = vadd.f32 %v3884, %v6199
      %v6201 = vpop.f32.mrf.mxu0
      %v6202 = vadd.f32 %v3888, %v6201
      %6203 = vdwg.mxu0
      %6204 = vmatprep.subr.bf16.mxu0 %v5282
      %6205 = vmatpush1.bf16.msra.mxu0 %v5281
      %6206 = vmatprep.subr.bf16.mxu0 %v5280
      %6207 = vmatpush1.bf16.msra.mxu0 %v5279
      %6208 = vmatprep.subr.bf16.mxu0 %v5278
      %6209 = vmatpush1.bf16.msra.mxu0 %v5277
      %6210 = vmatprep.subr.bf16.mxu0 %v5276
      %6211 = vmatpush1.bf16.msra.mxu0 %v5275
      %6212 = vmatprep.subr.bf16.mxu0 %v5274
      %6213 = vmatpush1.bf16.msra.mxu0 %v5273
      %6214 = vmatprep.subr.bf16.mxu0 %v5272
      %6215 = vmatpush1.bf16.msra.mxu0 %v5271
      %6216 = vmatprep.subr.bf16.mxu0 %v5270
      %6217 = vmatpush1.bf16.msra.mxu0 %v5269
      %6218 = vmatprep.subr.bf16.mxu0 %v5268
      %6219 = vmatpush1.bf16.msra.mxu0 %v5267
      %6220 = vmatprep.subr.bf16.mxu0 %v5298
      %6221 = vmatpush2.bf16.msra.mxu0 %v5297
      %6222 = vmatprep.subr.bf16.mxu0 %v5296
      %6223 = vmatpush2.bf16.msra.mxu0 %v5295
      %6224 = vmatprep.subr.bf16.mxu0 %v5294
      %6225 = vmatpush2.bf16.msra.mxu0 %v5293
      %6226 = vmatprep.subr.bf16.mxu0 %v5292
      %6227 = vmatpush2.bf16.msra.mxu0 %v5291
      %6228 = vmatprep.subr.bf16.mxu0 %v5290
      %6229 = vmatpush2.bf16.msra.mxu0 %v5289
      %6230 = vmatprep.subr.bf16.mxu0 %v5288
      %6231 = vmatpush2.bf16.msra.mxu0 %v5287
      %6232 = vmatprep.subr.bf16.mxu0 %v5286
      %6233 = vmatpush2.bf16.msra.mxu0 %v5285
      %6234 = vmatprep.subr.bf16.mxu0 %v5284
      %6235 = vmatpush2.bf16.msra.mxu0 %v5283
      %6236 = vmatprep.mubr.bf16.mxu0 %v3002
      %6237 = vmatmul.mubr.bf16.gmra.mxu0 %v3001
      %v6238 = vpop.f32.mrf.mxu0
      %v6239 = vadd.f32 %v6166, %v6238
      %v6240 = vpop.f32.mrf.mxu0
      %v6241 = vadd.f32 %v6168, %v6240
      %v6242 = vpop.f32.mrf.mxu0
      %v6243 = vadd.f32 %v6170, %v6242
      %v6244 = vpop.f32.mrf.mxu0
      %v6245 = vadd.f32 %v6172, %v6244
      %6246 = vmatprep.mubr.bf16.mxu0 %v3006
      %6247 = vmatmul.mubr.bf16.gmra.mxu0 %v3005
      %v6248 = vpop.f32.mrf.mxu0
      %v6249 = vadd.f32 %v6176, %v6248
      %v6250 = vpop.f32.mrf.mxu0
      %v6251 = vadd.f32 %v6178, %v6250
      %v6252 = vpop.f32.mrf.mxu0
      %v6253 = vadd.f32 %v6180, %v6252
      %v6254 = vpop.f32.mrf.mxu0
      %v6255 = vadd.f32 %v6182, %v6254
      %6256 = vmatprep.mubr.bf16.mxu0 %v3010
      %6257 = vmatmul.mubr.bf16.gmra.mxu0 %v3009
      %v6258 = vpop.f32.mrf.mxu0
      %v6259 = vadd.f32 %v6186, %v6258
      %v6260 = vpop.f32.mrf.mxu0
      %v6261 = vadd.f32 %v6188, %v6260
      %v6262 = vpop.f32.mrf.mxu0
      %v6263 = vadd.f32 %v6190, %v6262
      %v6264 = vpop.f32.mrf.mxu0
      %v6265 = vadd.f32 %v6192, %v6264
      %6266 = vmatprep.mubr.bf16.mxu0 %v3014
      %6267 = vmatmul.mubr.bf16.gmra.mxu0 %v3013
      %v6268 = vpop.f32.mrf.mxu0
      %v6269 = vadd.f32 %v6196, %v6268
      %v6270 = vpop.f32.mrf.mxu0
      %v6271 = vadd.f32 %v6198, %v6270
      %v6272 = vpop.f32.mrf.mxu0
      %v6273 = vadd.f32 %v6200, %v6272
      %v6274 = vpop.f32.mrf.mxu0
      %v6275 = vadd.f32 %v6202, %v6274
      %6276 = vdwg.mxu0
      %6277 = vmatprep.subr.bf16.mxu0 %v5314
      %6278 = vmatpush1.bf16.msra.mxu0 %v5313
      %6279 = vmatprep.subr.bf16.mxu0 %v5312
      %6280 = vmatpush1.bf16.msra.mxu0 %v5311
      %6281 = vmatprep.subr.bf16.mxu0 %v5310
      %6282 = vmatpush1.bf16.msra.mxu0 %v5309
      %6283 = vmatprep.subr.bf16.mxu0 %v5308
      %6284 = vmatpush1.bf16.msra.mxu0 %v5307
      %6285 = vmatprep.subr.bf16.mxu0 %v5306
      %6286 = vmatpush1.bf16.msra.mxu0 %v5305
      %6287 = vmatprep.subr.bf16.mxu0 %v5304
      %6288 = vmatpush1.bf16.msra.mxu0 %v5303
      %6289 = vmatprep.subr.bf16.mxu0 %v5302
      %6290 = vmatpush1.bf16.msra.mxu0 %v5301
      %6291 = vmatprep.subr.bf16.mxu0 %v5300
      %6292 = vmatpush1.bf16.msra.mxu0 %v5299
      %6293 = vmatprep.subr.bf16.mxu0 %v5330
      %6294 = vmatpush2.bf16.msra.mxu0 %v5329
      %6295 = vmatprep.subr.bf16.mxu0 %v5328
      %6296 = vmatpush2.bf16.msra.mxu0 %v5327
      %6297 = vmatprep.subr.bf16.mxu0 %v5326
      %6298 = vmatpush2.bf16.msra.mxu0 %v5325
      %6299 = vmatprep.subr.bf16.mxu0 %v5324
      %6300 = vmatpush2.bf16.msra.mxu0 %v5323
      %6301 = vmatprep.subr.bf16.mxu0 %v5322
      %6302 = vmatpush2.bf16.msra.mxu0 %v5321
      %6303 = vmatprep.subr.bf16.mxu0 %v5320
      %6304 = vmatpush2.bf16.msra.mxu0 %v5319
      %6305 = vmatprep.subr.bf16.mxu0 %v5318
      %6306 = vmatpush2.bf16.msra.mxu0 %v5317
      %6307 = vmatprep.subr.bf16.mxu0 %v5316
      %6308 = vmatpush2.bf16.msra.mxu0 %v5315
      %6309 = vmatprep.mubr.bf16.mxu0 %v3064
      %6310 = vmatmul.mubr.bf16.gmra.mxu0 %v3063
      %v6311 = vpop.f32.mrf.mxu0
      %v6312 = vadd.f32 %v6239, %v6311
      %v6313 = vpop.f32.mrf.mxu0
      %v6314 = vadd.f32 %v6241, %v6313
      %v6315 = vpop.f32.mrf.mxu0
      %v6316 = vadd.f32 %v6243, %v6315
      %v6317 = vpop.f32.mrf.mxu0
      %v6318 = vadd.f32 %v6245, %v6317
      %6319 = vmatprep.mubr.bf16.mxu0 %v3068
      %6320 = vmatmul.mubr.bf16.gmra.mxu0 %v3067
      %v6321 = vpop.f32.mrf.mxu0
      %v6322 = vadd.f32 %v6249, %v6321
      %v6323 = vpop.f32.mrf.mxu0
      %v6324 = vadd.f32 %v6251, %v6323
      %v6325 = vpop.f32.mrf.mxu0
      %v6326 = vadd.f32 %v6253, %v6325
      %v6327 = vpop.f32.mrf.mxu0
      %v6328 = vadd.f32 %v6255, %v6327
      %6329 = vmatprep.mubr.bf16.mxu0 %v3072
      %6330 = vmatmul.mubr.bf16.gmra.mxu0 %v3071
      %v6331 = vpop.f32.mrf.mxu0
      %v6332 = vadd.f32 %v6259, %v6331
      %v6333 = vpop.f32.mrf.mxu0
      %v6334 = vadd.f32 %v6261, %v6333
      %v6335 = vpop.f32.mrf.mxu0
      %v6336 = vadd.f32 %v6263, %v6335
      %v6337 = vpop.f32.mrf.mxu0
      %v6338 = vadd.f32 %v6265, %v6337
      %6339 = vmatprep.mubr.bf16.mxu0 %v3076
      %6340 = vmatmul.mubr.bf16.gmra.mxu0 %v3075
      %v6341 = vpop.f32.mrf.mxu0
      %v6342 = vadd.f32 %v6269, %v6341
      %v6343 = vpop.f32.mrf.mxu0
      %v6344 = vadd.f32 %v6271, %v6343
      %v6345 = vpop.f32.mrf.mxu0
      %v6346 = vadd.f32 %v6273, %v6345
      %v6347 = vpop.f32.mrf.mxu0
      %v6348 = vadd.f32 %v6275, %v6347
      %6349 = vdwg.mxu0
      %6350 = vmatprep.subr.bf16.mxu0 %v5346
      %6351 = vmatpush1.bf16.msra.mxu0 %v5345
      %6352 = vmatprep.subr.bf16.mxu0 %v5344
      %6353 = vmatpush1.bf16.msra.mxu0 %v5343
      %6354 = vmatprep.subr.bf16.mxu0 %v5342
      %6355 = vmatpush1.bf16.msra.mxu0 %v5341
      %6356 = vmatprep.subr.bf16.mxu0 %v5340
      %6357 = vmatpush1.bf16.msra.mxu0 %v5339
      %6358 = vmatprep.subr.bf16.mxu0 %v5338
      %6359 = vmatpush1.bf16.msra.mxu0 %v5337
      %6360 = vmatprep.subr.bf16.mxu0 %v5336
      %6361 = vmatpush1.bf16.msra.mxu0 %v5335
      %6362 = vmatprep.subr.bf16.mxu0 %v5334
      %6363 = vmatpush1.bf16.msra.mxu0 %v5333
      %6364 = vmatprep.subr.bf16.mxu0 %v5332
      %6365 = vmatpush1.bf16.msra.mxu0 %v5331
      %6366 = vmatprep.subr.bf16.mxu0 %v5362
      %6367 = vmatpush2.bf16.msra.mxu0 %v5361
      %6368 = vmatprep.subr.bf16.mxu0 %v5360
      %6369 = vmatpush2.bf16.msra.mxu0 %v5359
      %6370 = vmatprep.subr.bf16.mxu0 %v5358
      %6371 = vmatpush2.bf16.msra.mxu0 %v5357
      %6372 = vmatprep.subr.bf16.mxu0 %v5356
      %6373 = vmatpush2.bf16.msra.mxu0 %v5355
      %6374 = vmatprep.subr.bf16.mxu0 %v5354
      %6375 = vmatpush2.bf16.msra.mxu0 %v5353
      %6376 = vmatprep.subr.bf16.mxu0 %v5352
      %6377 = vmatpush2.bf16.msra.mxu0 %v5351
      %6378 = vmatprep.subr.bf16.mxu0 %v5350
      %6379 = vmatpush2.bf16.msra.mxu0 %v5349
      %6380 = vmatprep.subr.bf16.mxu0 %v5348
      %6381 = vmatpush2.bf16.msra.mxu0 %v5347
      %6382 = vmatprep.mubr.bf16.mxu0 %v3066
      %6383 = vmatmul.mubr.bf16.gmra.mxu0 %v3065
      %v6384 = vpop.f32.mrf.mxu0
      %v6385 = vadd.f32 %v6312, %v6384
      %v6386 = vpop.f32.mrf.mxu0
      %v6387 = vadd.f32 %v6314, %v6386
      %v6388 = vpop.f32.mrf.mxu0
      %v6389 = vadd.f32 %v6316, %v6388
      %v6390 = vpop.f32.mrf.mxu0
      %v6391 = vadd.f32 %v6318, %v6390
      %6392 = vmatprep.mubr.bf16.mxu0 %v3070
      %6393 = vmatmul.mubr.bf16.gmra.mxu0 %v3069
      %v6394 = vpop.f32.mrf.mxu0
      %v6395 = vadd.f32 %v6322, %v6394
      %v6396 = vpop.f32.mrf.mxu0
      %v6397 = vadd.f32 %v6324, %v6396
      %v6398 = vpop.f32.mrf.mxu0
      %v6399 = vadd.f32 %v6326, %v6398
      %v6400 = vpop.f32.mrf.mxu0
      %v6401 = vadd.f32 %v6328, %v6400
      %6402 = vmatprep.mubr.bf16.mxu0 %v3074
      %6403 = vmatmul.mubr.bf16.gmra.mxu0 %v3073
      %v6404 = vpop.f32.mrf.mxu0
      %v6405 = vadd.f32 %v6332, %v6404
      %v6406 = vpop.f32.mrf.mxu0
      %v6407 = vadd.f32 %v6334, %v6406
      %v6408 = vpop.f32.mrf.mxu0
      %v6409 = vadd.f32 %v6336, %v6408
      %v6410 = vpop.f32.mrf.mxu0
      %v6411 = vadd.f32 %v6338, %v6410
      %6412 = vmatprep.mubr.bf16.mxu0 %v3078
      %6413 = vmatmul.mubr.bf16.gmra.mxu0 %v3077
      %v6414 = vpop.f32.mrf.mxu0
      %v6415 = vadd.f32 %v6342, %v6414
      %v6416 = vpop.f32.mrf.mxu0
      %v6417 = vadd.f32 %v6344, %v6416
      %v6418 = vpop.f32.mrf.mxu0
      %v6419 = vadd.f32 %v6346, %v6418
      %v6420 = vpop.f32.mrf.mxu0
      %v6421 = vadd.f32 %v6348, %v6420
      %6422 = vdwg.mxu0
      %6423 = vmatprep.subr.bf16.mxu0 %v5378
      %6424 = vmatpush1.bf16.msra.mxu0 %v5377
      %6425 = vmatprep.subr.bf16.mxu0 %v5376
      %6426 = vmatpush1.bf16.msra.mxu0 %v5375
      %6427 = vmatprep.subr.bf16.mxu0 %v5374
      %6428 = vmatpush1.bf16.msra.mxu0 %v5373
      %6429 = vmatprep.subr.bf16.mxu0 %v5372
      %6430 = vmatpush1.bf16.msra.mxu0 %v5371
      %6431 = vmatprep.subr.bf16.mxu0 %v5370
      %6432 = vmatpush1.bf16.msra.mxu0 %v5369
      %6433 = vmatprep.subr.bf16.mxu0 %v5368
      %6434 = vmatpush1.bf16.msra.mxu0 %v5367
      %6435 = vmatprep.subr.bf16.mxu0 %v5366
      %6436 = vmatpush1.bf16.msra.mxu0 %v5365
      %6437 = vmatprep.subr.bf16.mxu0 %v5364
      %6438 = vmatpush1.bf16.msra.mxu0 %v5363
      %6439 = vmatprep.subr.bf16.mxu0 %v5394
      %6440 = vmatpush2.bf16.msra.mxu0 %v5393
      %6441 = vmatprep.subr.bf16.mxu0 %v5392
      %6442 = vmatpush2.bf16.msra.mxu0 %v5391
      %6443 = vmatprep.subr.bf16.mxu0 %v5390
      %6444 = vmatpush2.bf16.msra.mxu0 %v5389
      %6445 = vmatprep.subr.bf16.mxu0 %v5388
      %6446 = vmatpush2.bf16.msra.mxu0 %v5387
      %6447 = vmatprep.subr.bf16.mxu0 %v5386
      %6448 = vmatpush2.bf16.msra.mxu0 %v5385
      %6449 = vmatprep.subr.bf16.mxu0 %v5384
      %6450 = vmatpush2.bf16.msra.mxu0 %v5383
      %6451 = vmatprep.subr.bf16.mxu0 %v5382
      %6452 = vmatpush2.bf16.msra.mxu0 %v5381
      %6453 = vmatprep.subr.bf16.mxu0 %v5380
      %6454 = vmatpush2.bf16.msra.mxu0 %v5379
      %6455 = vmatprep.mubr.bf16.mxu0 %v3128
      %6456 = vmatmul.mubr.bf16.gmra.mxu0 %v3127
      %v6457 = vpop.f32.mrf.mxu0
      %v6458 = vadd.f32 %v6385, %v6457
      %v6459 = vpop.f32.mrf.mxu0
      %v6460 = vadd.f32 %v6387, %v6459
      %v6461 = vpop.f32.mrf.mxu0
      %v6462 = vadd.f32 %v6389, %v6461
      %v6463 = vpop.f32.mrf.mxu0
      %v6464 = vadd.f32 %v6391, %v6463
      %6465 = vmatprep.mubr.bf16.mxu0 %v3132
      %6466 = vmatmul.mubr.bf16.gmra.mxu0 %v3131
      %v6467 = vpop.f32.mrf.mxu0
      %v6468 = vadd.f32 %v6395, %v6467
      %v6469 = vpop.f32.mrf.mxu0
      %v6470 = vadd.f32 %v6397, %v6469
      %v6471 = vpop.f32.mrf.mxu0
      %v6472 = vadd.f32 %v6399, %v6471
      %v6473 = vpop.f32.mrf.mxu0
      %v6474 = vadd.f32 %v6401, %v6473
      %6475 = vmatprep.mubr.bf16.mxu0 %v3136
      %6476 = vmatmul.mubr.bf16.gmra.mxu0 %v3135
      %v6477 = vpop.f32.mrf.mxu0
      %v6478 = vadd.f32 %v6405, %v6477
      %v6479 = vpop.f32.mrf.mxu0
      %v6480 = vadd.f32 %v6407, %v6479
      %v6481 = vpop.f32.mrf.mxu0
      %v6482 = vadd.f32 %v6409, %v6481
      %v6483 = vpop.f32.mrf.mxu0
      %v6484 = vadd.f32 %v6411, %v6483
      %6485 = vmatprep.mubr.bf16.mxu0 %v3140
      %6486 = vmatmul.mubr.bf16.gmra.mxu0 %v3139
      %v6487 = vpop.f32.mrf.mxu0
      %v6488 = vadd.f32 %v6415, %v6487
      %v6489 = vpop.f32.mrf.mxu0
      %v6490 = vadd.f32 %v6417, %v6489
      %v6491 = vpop.f32.mrf.mxu0
      %v6492 = vadd.f32 %v6419, %v6491
      %v6493 = vpop.f32.mrf.mxu0
      %v6494 = vadd.f32 %v6421, %v6493
      %6495 = vdwg.mxu0
      %6496 = vmatprep.subr.bf16.mxu0 %v5410
      %6497 = vmatpush1.bf16.msra.mxu0 %v5409
      %6498 = vmatprep.subr.bf16.mxu0 %v5408
      %6499 = vmatpush1.bf16.msra.mxu0 %v5407
      %6500 = vmatprep.subr.bf16.mxu0 %v5406
      %6501 = vmatpush1.bf16.msra.mxu0 %v5405
      %6502 = vmatprep.subr.bf16.mxu0 %v5404
      %6503 = vmatpush1.bf16.msra.mxu0 %v5403
      %6504 = vmatprep.subr.bf16.mxu0 %v5402
      %6505 = vmatpush1.bf16.msra.mxu0 %v5401
      %6506 = vmatprep.subr.bf16.mxu0 %v5400
      %6507 = vmatpush1.bf16.msra.mxu0 %v5399
      %6508 = vmatprep.subr.bf16.mxu0 %v5398
      %6509 = vmatpush1.bf16.msra.mxu0 %v5397
      %6510 = vmatprep.subr.bf16.mxu0 %v5396
      %6511 = vmatpush1.bf16.msra.mxu0 %v5395
      %6512 = vmatprep.subr.bf16.mxu0 %v5426
      %6513 = vmatpush2.bf16.msra.mxu0 %v5425
      %6514 = vmatprep.subr.bf16.mxu0 %v5424
      %6515 = vmatpush2.bf16.msra.mxu0 %v5423
      %6516 = vmatprep.subr.bf16.mxu0 %v5422
      %6517 = vmatpush2.bf16.msra.mxu0 %v5421
      %6518 = vmatprep.subr.bf16.mxu0 %v5420
      %6519 = vmatpush2.bf16.msra.mxu0 %v5419
      %6520 = vmatprep.subr.bf16.mxu0 %v5418
      %6521 = vmatpush2.bf16.msra.mxu0 %v5417
      %6522 = vmatprep.subr.bf16.mxu0 %v5416
      %6523 = vmatpush2.bf16.msra.mxu0 %v5415
      %6524 = vmatprep.subr.bf16.mxu0 %v5414
      %6525 = vmatpush2.bf16.msra.mxu0 %v5413
      %6526 = vmatprep.subr.bf16.mxu0 %v5412
      %6527 = vmatpush2.bf16.msra.mxu0 %v5411
      %6528 = vmatprep.mubr.bf16.mxu0 %v3130
      %6529 = vmatmul.mubr.bf16.gmra.mxu0 %v3129
      %v6530 = vpop.f32.mrf.mxu0
      %v6531 = vadd.f32 %v6458, %v6530
      %v6532 = vpop.f32.mrf.mxu0
      %v6533 = vadd.f32 %v6460, %v6532
      %v6534 = vpop.f32.mrf.mxu0
      %v6535 = vadd.f32 %v6462, %v6534
      %v6536 = vpop.f32.mrf.mxu0
      %v6537 = vadd.f32 %v6464, %v6536
      %6538 = vmatprep.mubr.bf16.mxu0 %v3134
      %6539 = vmatmul.mubr.bf16.gmra.mxu0 %v3133
      %v6540 = vpop.f32.mrf.mxu0
      %v6541 = vadd.f32 %v6468, %v6540
      %v6542 = vpop.f32.mrf.mxu0
      %v6543 = vadd.f32 %v6470, %v6542
      %v6544 = vpop.f32.mrf.mxu0
      %v6545 = vadd.f32 %v6472, %v6544
      %v6546 = vpop.f32.mrf.mxu0
      %v6547 = vadd.f32 %v6474, %v6546
      %6548 = vmatprep.mubr.bf16.mxu0 %v3138
      %6549 = vmatmul.mubr.bf16.gmra.mxu0 %v3137
      %v6550 = vpop.f32.mrf.mxu0
      %v6551 = vadd.f32 %v6478, %v6550
      %v6552 = vpop.f32.mrf.mxu0
      %v6553 = vadd.f32 %v6480, %v6552
      %v6554 = vpop.f32.mrf.mxu0
      %v6555 = vadd.f32 %v6482, %v6554
      %v6556 = vpop.f32.mrf.mxu0
      %v6557 = vadd.f32 %v6484, %v6556
      %6558 = vmatprep.mubr.bf16.mxu0 %v3142
      %6559 = vmatmul.mubr.bf16.gmra.mxu0 %v3141
      %v6560 = vpop.f32.mrf.mxu0
      %v6561 = vadd.f32 %v6488, %v6560
      %v6562 = vpop.f32.mrf.mxu0
      %v6563 = vadd.f32 %v6490, %v6562
      %v6564 = vpop.f32.mrf.mxu0
      %v6565 = vadd.f32 %v6492, %v6564
      %v6566 = vpop.f32.mrf.mxu0
      %v6567 = vadd.f32 %v6494, %v6566
      %6568 = vdwg.mxu0
      %6569 = vmatprep.subr.bf16.mxu0 %v5442
      %6570 = vmatpush1.bf16.msra.mxu0 %v5441
      %6571 = vmatprep.subr.bf16.mxu0 %v5440
      %6572 = vmatpush1.bf16.msra.mxu0 %v5439
      %6573 = vmatprep.subr.bf16.mxu0 %v5438
      %6574 = vmatpush1.bf16.msra.mxu0 %v5437
      %6575 = vmatprep.subr.bf16.mxu0 %v5436
      %6576 = vmatpush1.bf16.msra.mxu0 %v5435
      %6577 = vmatprep.subr.bf16.mxu0 %v5434
      %6578 = vmatpush1.bf16.msra.mxu0 %v5433
      %6579 = vmatprep.subr.bf16.mxu0 %v5432
      %6580 = vmatpush1.bf16.msra.mxu0 %v5431
      %6581 = vmatprep.subr.bf16.mxu0 %v5430
      %6582 = vmatpush1.bf16.msra.mxu0 %v5429
      %6583 = vmatprep.subr.bf16.mxu0 %v5428
      %6584 = vmatpush1.bf16.msra.mxu0 %v5427
      %6585 = vmatprep.subr.bf16.mxu0 %v5458
      %6586 = vmatpush2.bf16.msra.mxu0 %v5457
      %6587 = vmatprep.subr.bf16.mxu0 %v5456
      %6588 = vmatpush2.bf16.msra.mxu0 %v5455
      %6589 = vmatprep.subr.bf16.mxu0 %v5454
      %6590 = vmatpush2.bf16.msra.mxu0 %v5453
      %6591 = vmatprep.subr.bf16.mxu0 %v5452
      %6592 = vmatpush2.bf16.msra.mxu0 %v5451
      %6593 = vmatprep.subr.bf16.mxu0 %v5450
      %6594 = vmatpush2.bf16.msra.mxu0 %v5449
      %6595 = vmatprep.subr.bf16.mxu0 %v5448
      %6596 = vmatpush2.bf16.msra.mxu0 %v5447
      %6597 = vmatprep.subr.bf16.mxu0 %v5446
      %6598 = vmatpush2.bf16.msra.mxu0 %v5445
      %6599 = vmatprep.subr.bf16.mxu0 %v5444
      %6600 = vmatpush2.bf16.msra.mxu0 %v5443
      %6601 = vmatprep.mubr.bf16.mxu0 %v3208
      %6602 = vmatmul.mubr.bf16.gmra.mxu0 %v3207
      %v6603 = vpop.f32.mrf.mxu0
      %v6604 = vadd.f32 %v6531, %v6603
      %v6605 = vpop.f32.mrf.mxu0
      %v6606 = vadd.f32 %v6533, %v6605
      %v6607 = vpop.f32.mrf.mxu0
      %v6608 = vadd.f32 %v6535, %v6607
      %v6609 = vpop.f32.mrf.mxu0
      %v6610 = vadd.f32 %v6537, %v6609
      %6611 = vmatprep.mubr.bf16.mxu0 %v3212
      %6612 = vmatmul.mubr.bf16.gmra.mxu0 %v3211
      %v6613 = vpop.f32.mrf.mxu0
      %v6614 = vadd.f32 %v6541, %v6613
      %v6615 = vpop.f32.mrf.mxu0
      %v6616 = vadd.f32 %v6543, %v6615
      %v6617 = vpop.f32.mrf.mxu0
      %v6618 = vadd.f32 %v6545, %v6617
      %v6619 = vpop.f32.mrf.mxu0
      %v6620 = vadd.f32 %v6547, %v6619
      %6621 = vmatprep.mubr.bf16.mxu0 %v3216
      %6622 = vmatmul.mubr.bf16.gmra.mxu0 %v3215
      %v6623 = vpop.f32.mrf.mxu0
      %v6624 = vadd.f32 %v6551, %v6623
      %v6625 = vpop.f32.mrf.mxu0
      %v6626 = vadd.f32 %v6553, %v6625
      %v6627 = vpop.f32.mrf.mxu0
      %v6628 = vadd.f32 %v6555, %v6627
      %v6629 = vpop.f32.mrf.mxu0
      %v6630 = vadd.f32 %v6557, %v6629
      %6631 = vmatprep.mubr.bf16.mxu0 %v3220
      %6632 = vmatmul.mubr.bf16.gmra.mxu0 %v3219
      %v6633 = vpop.f32.mrf.mxu0
      %v6634 = vadd.f32 %v6561, %v6633
      %v6635 = vpop.f32.mrf.mxu0
      %v6636 = vadd.f32 %v6563, %v6635
      %v6637 = vpop.f32.mrf.mxu0
      %v6638 = vadd.f32 %v6565, %v6637
      %v6639 = vpop.f32.mrf.mxu0
      %v6640 = vadd.f32 %v6567, %v6639
      %6641 = vdwg.mxu0
      %6642 = vmatprep.subr.bf16.mxu0 %v5474
      %6643 = vmatpush1.bf16.msra.mxu0 %v5473
      %6644 = vmatprep.subr.bf16.mxu0 %v5472
      %6645 = vmatpush1.bf16.msra.mxu0 %v5471
      %6646 = vmatprep.subr.bf16.mxu0 %v5470
      %6647 = vmatpush1.bf16.msra.mxu0 %v5469
      %6648 = vmatprep.subr.bf16.mxu0 %v5468
      %6649 = vmatpush1.bf16.msra.mxu0 %v5467
      %6650 = vmatprep.subr.bf16.mxu0 %v5466
      %6651 = vmatpush1.bf16.msra.mxu0 %v5465
      %6652 = vmatprep.subr.bf16.mxu0 %v5464
      %6653 = vmatpush1.bf16.msra.mxu0 %v5463
      %6654 = vmatprep.subr.bf16.mxu0 %v5462
      %6655 = vmatpush1.bf16.msra.mxu0 %v5461
      %6656 = vmatprep.subr.bf16.mxu0 %v5460
      %6657 = vmatpush1.bf16.msra.mxu0 %v5459
      %6658 = vmatprep.subr.bf16.mxu0 %v5490
      %6659 = vmatpush2.bf16.msra.mxu0 %v5489
      %6660 = vmatprep.subr.bf16.mxu0 %v5488
      %6661 = vmatpush2.bf16.msra.mxu0 %v5487
      %6662 = vmatprep.subr.bf16.mxu0 %v5486
      %6663 = vmatpush2.bf16.msra.mxu0 %v5485
      %6664 = vmatprep.subr.bf16.mxu0 %v5484
      %6665 = vmatpush2.bf16.msra.mxu0 %v5483
      %6666 = vmatprep.subr.bf16.mxu0 %v5482
      %6667 = vmatpush2.bf16.msra.mxu0 %v5481
      %6668 = vmatprep.subr.bf16.mxu0 %v5480
      %6669 = vmatpush2.bf16.msra.mxu0 %v5479
      %6670 = vmatprep.subr.bf16.mxu0 %v5478
      %6671 = vmatpush2.bf16.msra.mxu0 %v5477
      %6672 = vmatprep.subr.bf16.mxu0 %v5476
      %6673 = vmatpush2.bf16.msra.mxu0 %v5475
      %6674 = vmatprep.mubr.bf16.mxu0 %v3210
      %6675 = vmatmul.mubr.bf16.gmra.mxu0 %v3209
      %v6676 = vpop.f32.mrf.mxu0
      %v6677 = vadd.f32 %v6604, %v6676
      %v6678 = vpop.f32.mrf.mxu0
      %v6679 = vadd.f32 %v6606, %v6678
      %v6680 = vpop.f32.mrf.mxu0
      %v6681 = vadd.f32 %v6608, %v6680
      %v6682 = vpop.f32.mrf.mxu0
      %v6683 = vadd.f32 %v6610, %v6682
      %6684 = vmatprep.mubr.bf16.mxu0 %v3214
      %6685 = vmatmul.mubr.bf16.gmra.mxu0 %v3213
      %v6686 = vpop.f32.mrf.mxu0
      %v6687 = vadd.f32 %v6614, %v6686
      %v6688 = vpop.f32.mrf.mxu0
      %v6689 = vadd.f32 %v6616, %v6688
      %v6690 = vpop.f32.mrf.mxu0
      %v6691 = vadd.f32 %v6618, %v6690
      %v6692 = vpop.f32.mrf.mxu0
      %v6693 = vadd.f32 %v6620, %v6692
      %6694 = vmatprep.mubr.bf16.mxu0 %v3218
      %6695 = vmatmul.mubr.bf16.gmra.mxu0 %v3217
      %v6696 = vpop.f32.mrf.mxu0
      %v6697 = vadd.f32 %v6624, %v6696
      %v6698 = vpop.f32.mrf.mxu0
      %v6699 = vadd.f32 %v6626, %v6698
      %v6700 = vpop.f32.mrf.mxu0
      %v6701 = vadd.f32 %v6628, %v6700
      %v6702 = vpop.f32.mrf.mxu0
      %v6703 = vadd.f32 %v6630, %v6702
      %6704 = vmatprep.mubr.bf16.mxu0 %v3222
      %6705 = vmatmul.mubr.bf16.gmra.mxu0 %v3221
      %v6706 = vpop.f32.mrf.mxu0
      %v6707 = vadd.f32 %v6634, %v6706
      %v6708 = vpop.f32.mrf.mxu0
      %v6709 = vadd.f32 %v6636, %v6708
      %v6710 = vpop.f32.mrf.mxu0
      %v6711 = vadd.f32 %v6638, %v6710
      %v6712 = vpop.f32.mrf.mxu0
      %v6713 = vadd.f32 %v6640, %v6712
      %6714 = vdwg.mxu0
      %6715 = vmatprep.subr.bf16.mxu0 %v5506
      %6716 = vmatpush1.bf16.msra.mxu0 %v5505
      %6717 = vmatprep.subr.bf16.mxu0 %v5504
      %6718 = vmatpush1.bf16.msra.mxu0 %v5503
      %6719 = vmatprep.subr.bf16.mxu0 %v5502
      %6720 = vmatpush1.bf16.msra.mxu0 %v5501
      %6721 = vmatprep.subr.bf16.mxu0 %v5500
      %6722 = vmatpush1.bf16.msra.mxu0 %v5499
      %6723 = vmatprep.subr.bf16.mxu0 %v5498
      %6724 = vmatpush1.bf16.msra.mxu0 %v5497
      %6725 = vmatprep.subr.bf16.mxu0 %v5496
      %6726 = vmatpush1.bf16.msra.mxu0 %v5495
      %6727 = vmatprep.subr.bf16.mxu0 %v5494
      %6728 = vmatpush1.bf16.msra.mxu0 %v5493
      %6729 = vmatprep.subr.bf16.mxu0 %v5492
      %6730 = vmatpush1.bf16.msra.mxu0 %v5491
      %6731 = vmatprep.subr.bf16.mxu0 %v5522
      %6732 = vmatpush2.bf16.msra.mxu0 %v5521
      %6733 = vmatprep.subr.bf16.mxu0 %v5520
      %6734 = vmatpush2.bf16.msra.mxu0 %v5519
      %6735 = vmatprep.subr.bf16.mxu0 %v5518
      %6736 = vmatpush2.bf16.msra.mxu0 %v5517
      %6737 = vmatprep.subr.bf16.mxu0 %v5516
      %6738 = vmatpush2.bf16.msra.mxu0 %v5515
      %6739 = vmatprep.subr.bf16.mxu0 %v5514
      %6740 = vmatpush2.bf16.msra.mxu0 %v5513
      %6741 = vmatprep.subr.bf16.mxu0 %v5512
      %6742 = vmatpush2.bf16.msra.mxu0 %v5511
      %6743 = vmatprep.subr.bf16.mxu0 %v5510
      %6744 = vmatpush2.bf16.msra.mxu0 %v5509
      %6745 = vmatprep.subr.bf16.mxu0 %v5508
      %6746 = vmatpush2.bf16.msra.mxu0 %v5507
      %6747 = vmatprep.mubr.bf16.mxu0 %v3272
      %6748 = vmatmul.mubr.bf16.gmra.mxu0 %v3271
      %v6749 = vpop.f32.mrf.mxu0
      %v6750 = vadd.f32 %v6677, %v6749
      %v6751 = vpop.f32.mrf.mxu0
      %v6752 = vadd.f32 %v6679, %v6751
      %v6753 = vpop.f32.mrf.mxu0
      %v6754 = vadd.f32 %v6681, %v6753
      %v6755 = vpop.f32.mrf.mxu0
      %v6756 = vadd.f32 %v6683, %v6755
      %6757 = vmatprep.mubr.bf16.mxu0 %v3276
      %6758 = vmatmul.mubr.bf16.gmra.mxu0 %v3275
      %v6759 = vpop.f32.mrf.mxu0
      %v6760 = vadd.f32 %v6687, %v6759
      %v6761 = vpop.f32.mrf.mxu0
      %v6762 = vadd.f32 %v6689, %v6761
      %v6763 = vpop.f32.mrf.mxu0
      %v6764 = vadd.f32 %v6691, %v6763
      %v6765 = vpop.f32.mrf.mxu0
      %v6766 = vadd.f32 %v6693, %v6765
      %6767 = vmatprep.mubr.bf16.mxu0 %v3280
      %6768 = vmatmul.mubr.bf16.gmra.mxu0 %v3279
      %v6769 = vpop.f32.mrf.mxu0
      %v6770 = vadd.f32 %v6697, %v6769
      %v6771 = vpop.f32.mrf.mxu0
      %v6772 = vadd.f32 %v6699, %v6771
      %v6773 = vpop.f32.mrf.mxu0
      %v6774 = vadd.f32 %v6701, %v6773
      %v6775 = vpop.f32.mrf.mxu0
      %v6776 = vadd.f32 %v6703, %v6775
      %6777 = vmatprep.mubr.bf16.mxu0 %v3284
      %6778 = vmatmul.mubr.bf16.gmra.mxu0 %v3283
      %v6779 = vpop.f32.mrf.mxu0
      %v6780 = vadd.f32 %v6707, %v6779
      %v6781 = vpop.f32.mrf.mxu0
      %v6782 = vadd.f32 %v6709, %v6781
      %v6783 = vpop.f32.mrf.mxu0
      %v6784 = vadd.f32 %v6711, %v6783
      %v6785 = vpop.f32.mrf.mxu0
      %v6786 = vadd.f32 %v6713, %v6785
      %6787 = vdwg.mxu0
      %6788 = vmatprep.subr.bf16.mxu0 %v5538
      %6789 = vmatpush1.bf16.msra.mxu0 %v5537
      %6790 = vmatprep.subr.bf16.mxu0 %v5536
      %6791 = vmatpush1.bf16.msra.mxu0 %v5535
      %6792 = vmatprep.subr.bf16.mxu0 %v5534
      %6793 = vmatpush1.bf16.msra.mxu0 %v5533
      %6794 = vmatprep.subr.bf16.mxu0 %v5532
      %6795 = vmatpush1.bf16.msra.mxu0 %v5531
      %6796 = vmatprep.subr.bf16.mxu0 %v5530
      %6797 = vmatpush1.bf16.msra.mxu0 %v5529
      %6798 = vmatprep.subr.bf16.mxu0 %v5528
      %6799 = vmatpush1.bf16.msra.mxu0 %v5527
      %6800 = vmatprep.subr.bf16.mxu0 %v5526
      %6801 = vmatpush1.bf16.msra.mxu0 %v5525
      %6802 = vmatprep.subr.bf16.mxu0 %v5524
      %6803 = vmatpush1.bf16.msra.mxu0 %v5523
      %6804 = vmatprep.subr.bf16.mxu0 %v5554
      %6805 = vmatpush2.bf16.msra.mxu0 %v5553
      %6806 = vmatprep.subr.bf16.mxu0 %v5552
      %6807 = vmatpush2.bf16.msra.mxu0 %v5551
      %6808 = vmatprep.subr.bf16.mxu0 %v5550
      %6809 = vmatpush2.bf16.msra.mxu0 %v5549
      %6810 = vmatprep.subr.bf16.mxu0 %v5548
      %6811 = vmatpush2.bf16.msra.mxu0 %v5547
      %6812 = vmatprep.subr.bf16.mxu0 %v5546
      %6813 = vmatpush2.bf16.msra.mxu0 %v5545
      %6814 = vmatprep.subr.bf16.mxu0 %v5544
      %6815 = vmatpush2.bf16.msra.mxu0 %v5543
      %6816 = vmatprep.subr.bf16.mxu0 %v5542
      %6817 = vmatpush2.bf16.msra.mxu0 %v5541
      %6818 = vmatprep.subr.bf16.mxu0 %v5540
      %6819 = vmatpush2.bf16.msra.mxu0 %v5539
      %6820 = vmatprep.mubr.bf16.mxu0 %v3274
      %6821 = vmatmul.mubr.bf16.gmra.mxu0 %v3273
      %v6822 = vpop.f32.mrf.mxu0
      %v6823 = vadd.f32 %v6750, %v6822
      %v6824 = vpop.f32.mrf.mxu0
      %v6825 = vadd.f32 %v6752, %v6824
      %v6826 = vpop.f32.mrf.mxu0
      %v6827 = vadd.f32 %v6754, %v6826
      %v6828 = vpop.f32.mrf.mxu0
      %v6829 = vadd.f32 %v6756, %v6828
      %6830 = vmatprep.mubr.bf16.mxu0 %v3278
      %6831 = vmatmul.mubr.bf16.gmra.mxu0 %v3277
      %v6832 = vpop.f32.mrf.mxu0
      %v6833 = vadd.f32 %v6760, %v6832
      %v6834 = vpop.f32.mrf.mxu0
      %v6835 = vadd.f32 %v6762, %v6834
      %v6836 = vpop.f32.mrf.mxu0
      %v6837 = vadd.f32 %v6764, %v6836
      %v6838 = vpop.f32.mrf.mxu0
      %v6839 = vadd.f32 %v6766, %v6838
      %6840 = vmatprep.mubr.bf16.mxu0 %v3282
      %6841 = vmatmul.mubr.bf16.gmra.mxu0 %v3281
      %v6842 = vpop.f32.mrf.mxu0
      %v6843 = vadd.f32 %v6770, %v6842
      %v6844 = vpop.f32.mrf.mxu0
      %v6845 = vadd.f32 %v6772, %v6844
      %v6846 = vpop.f32.mrf.mxu0
      %v6847 = vadd.f32 %v6774, %v6846
      %v6848 = vpop.f32.mrf.mxu0
      %v6849 = vadd.f32 %v6776, %v6848
      %6850 = vmatprep.mubr.bf16.mxu0 %v3286
      %6851 = vmatmul.mubr.bf16.gmra.mxu0 %v3285
      %v6852 = vpop.f32.mrf.mxu0
      %v6853 = vadd.f32 %v6780, %v6852
      %v6854 = vpop.f32.mrf.mxu0
      %v6855 = vadd.f32 %v6782, %v6854
      %v6856 = vpop.f32.mrf.mxu0
      %v6857 = vadd.f32 %v6784, %v6856
      %v6858 = vpop.f32.mrf.mxu0
      %v6859 = vadd.f32 %v6786, %v6858
      %6860 = vdwg.mxu0
      %6861 = vmatprep.subr.bf16.mxu0 %v5570
      %6862 = vmatpush1.bf16.msra.mxu0 %v5569
      %6863 = vmatprep.subr.bf16.mxu0 %v5568
      %6864 = vmatpush1.bf16.msra.mxu0 %v5567
      %6865 = vmatprep.subr.bf16.mxu0 %v5566
      %6866 = vmatpush1.bf16.msra.mxu0 %v5565
      %6867 = vmatprep.subr.bf16.mxu0 %v5564
      %6868 = vmatpush1.bf16.msra.mxu0 %v5563
      %6869 = vmatprep.subr.bf16.mxu0 %v5562
      %6870 = vmatpush1.bf16.msra.mxu0 %v5561
      %6871 = vmatprep.subr.bf16.mxu0 %v5560
      %6872 = vmatpush1.bf16.msra.mxu0 %v5559
      %6873 = vmatprep.subr.bf16.mxu0 %v5558
      %6874 = vmatpush1.bf16.msra.mxu0 %v5557
      %6875 = vmatprep.subr.bf16.mxu0 %v5556
      %6876 = vmatpush1.bf16.msra.mxu0 %v5555
      %6877 = vmatprep.subr.bf16.mxu0 %v5586
      %6878 = vmatpush2.bf16.msra.mxu0 %v5585
      %6879 = vmatprep.subr.bf16.mxu0 %v5584
      %6880 = vmatpush2.bf16.msra.mxu0 %v5583
      %6881 = vmatprep.subr.bf16.mxu0 %v5582
      %6882 = vmatpush2.bf16.msra.mxu0 %v5581
      %6883 = vmatprep.subr.bf16.mxu0 %v5580
      %6884 = vmatpush2.bf16.msra.mxu0 %v5579
      %6885 = vmatprep.subr.bf16.mxu0 %v5578
      %6886 = vmatpush2.bf16.msra.mxu0 %v5577
      %6887 = vmatprep.subr.bf16.mxu0 %v5576
      %6888 = vmatpush2.bf16.msra.mxu0 %v5575
      %6889 = vmatprep.subr.bf16.mxu0 %v5574
      %6890 = vmatpush2.bf16.msra.mxu0 %v5573
      %6891 = vmatprep.subr.bf16.mxu0 %v5572
      %6892 = vmatpush2.bf16.msra.mxu0 %v5571
      %6893 = vmatprep.mubr.bf16.mxu0 %v3336
      %6894 = vmatmul.mubr.bf16.gmra.mxu0 %v3335
      %v6895 = vpop.f32.mrf.mxu0
      %v6896 = vadd.f32 %v6823, %v6895
      %v6897 = vpop.f32.mrf.mxu0
      %v6898 = vadd.f32 %v6825, %v6897
      %v6899 = vpop.f32.mrf.mxu0
      %v6900 = vadd.f32 %v6827, %v6899
      %v6901 = vpop.f32.mrf.mxu0
      %v6902 = vadd.f32 %v6829, %v6901
      %6903 = vmatprep.mubr.bf16.mxu0 %v3340
      %6904 = vmatmul.mubr.bf16.gmra.mxu0 %v3339
      %v6905 = vpop.f32.mrf.mxu0
      %v6906 = vadd.f32 %v6833, %v6905
      %v6907 = vpop.f32.mrf.mxu0
      %v6908 = vadd.f32 %v6835, %v6907
      %v6909 = vpop.f32.mrf.mxu0
      %v6910 = vadd.f32 %v6837, %v6909
      %v6911 = vpop.f32.mrf.mxu0
      %v6912 = vadd.f32 %v6839, %v6911
      %6913 = vmatprep.mubr.bf16.mxu0 %v3344
      %6914 = vmatmul.mubr.bf16.gmra.mxu0 %v3343
      %v6915 = vpop.f32.mrf.mxu0
      %v6916 = vadd.f32 %v6843, %v6915
      %v6917 = vpop.f32.mrf.mxu0
      %v6918 = vadd.f32 %v6845, %v6917
      %v6919 = vpop.f32.mrf.mxu0
      %v6920 = vadd.f32 %v6847, %v6919
      %v6921 = vpop.f32.mrf.mxu0
      %v6922 = vadd.f32 %v6849, %v6921
      %6923 = vmatprep.mubr.bf16.mxu0 %v3348
      %6924 = vmatmul.mubr.bf16.gmra.mxu0 %v3347
      %v6925 = vpop.f32.mrf.mxu0
      %v6926 = vadd.f32 %v6853, %v6925
      %v6927 = vpop.f32.mrf.mxu0
      %v6928 = vadd.f32 %v6855, %v6927
      %v6929 = vpop.f32.mrf.mxu0
      %v6930 = vadd.f32 %v6857, %v6929
      %v6931 = vpop.f32.mrf.mxu0
      %v6932 = vadd.f32 %v6859, %v6931
      %6933 = vdwg.mxu0
      %6934 = vmatprep.subr.bf16.mxu0 %v5602
      %6935 = vmatpush1.bf16.msra.mxu0 %v5601
      %6936 = vmatprep.subr.bf16.mxu0 %v5600
      %6937 = vmatpush1.bf16.msra.mxu0 %v5599
      %6938 = vmatprep.subr.bf16.mxu0 %v5598
      %6939 = vmatpush1.bf16.msra.mxu0 %v5597
      %6940 = vmatprep.subr.bf16.mxu0 %v5596
      %6941 = vmatpush1.bf16.msra.mxu0 %v5595
      %6942 = vmatprep.subr.bf16.mxu0 %v5594
      %6943 = vmatpush1.bf16.msra.mxu0 %v5593
      %6944 = vmatprep.subr.bf16.mxu0 %v5592
      %6945 = vmatpush1.bf16.msra.mxu0 %v5591
      %6946 = vmatprep.subr.bf16.mxu0 %v5590
      %6947 = vmatpush1.bf16.msra.mxu0 %v5589
      %6948 = vmatprep.subr.bf16.mxu0 %v5588
      %6949 = vmatpush1.bf16.msra.mxu0 %v5587
      %6950 = vmatprep.subr.bf16.mxu0 %v5618
      %6951 = vmatpush2.bf16.msra.mxu0 %v5617
      %6952 = vmatprep.subr.bf16.mxu0 %v5616
      %6953 = vmatpush2.bf16.msra.mxu0 %v5615
      %6954 = vmatprep.subr.bf16.mxu0 %v5614
      %6955 = vmatpush2.bf16.msra.mxu0 %v5613
      %6956 = vmatprep.subr.bf16.mxu0 %v5612
      %6957 = vmatpush2.bf16.msra.mxu0 %v5611
      %6958 = vmatprep.subr.bf16.mxu0 %v5610
      %6959 = vmatpush2.bf16.msra.mxu0 %v5609
      %6960 = vmatprep.subr.bf16.mxu0 %v5608
      %6961 = vmatpush2.bf16.msra.mxu0 %v5607
      %6962 = vmatprep.subr.bf16.mxu0 %v5606
      %6963 = vmatpush2.bf16.msra.mxu0 %v5605
      %6964 = vmatprep.subr.bf16.mxu0 %v5604
      %6965 = vmatpush2.bf16.msra.mxu0 %v5603
      %6966 = vmatprep.mubr.bf16.mxu0 %v3338
      %6967 = vmatmul.mubr.bf16.gmra.mxu0 %v3337
      %v6968 = vpop.f32.mrf.mxu0
      %v6969 = vadd.f32 %v6896, %v6968
      %v6970 = vpop.f32.mrf.mxu0
      %v6971 = vadd.f32 %v6898, %v6970
      %v6972 = vpop.f32.mrf.mxu0
      %v6973 = vadd.f32 %v6900, %v6972
      %v6974 = vpop.f32.mrf.mxu0
      %v6975 = vadd.f32 %v6902, %v6974
      %6976 = vmatprep.mubr.bf16.mxu0 %v3342
      %6977 = vmatmul.mubr.bf16.gmra.mxu0 %v3341
      %v6978 = vpop.f32.mrf.mxu0
      %v6979 = vadd.f32 %v6906, %v6978
      %v6980 = vpop.f32.mrf.mxu0
      %v6981 = vadd.f32 %v6908, %v6980
      %v6982 = vpop.f32.mrf.mxu0
      %v6983 = vadd.f32 %v6910, %v6982
      %v6984 = vpop.f32.mrf.mxu0
      %v6985 = vadd.f32 %v6912, %v6984
      %6986 = vmatprep.mubr.bf16.mxu0 %v3346
      %6987 = vmatmul.mubr.bf16.gmra.mxu0 %v3345
      %v6988 = vpop.f32.mrf.mxu0
      %v6989 = vadd.f32 %v6916, %v6988
      %v6990 = vpop.f32.mrf.mxu0
      %v6991 = vadd.f32 %v6918, %v6990
      %v6992 = vpop.f32.mrf.mxu0
      %v6993 = vadd.f32 %v6920, %v6992
      %v6994 = vpop.f32.mrf.mxu0
      %v6995 = vadd.f32 %v6922, %v6994
      %6996 = vmatprep.mubr.bf16.mxu0 %v3350
      %6997 = vmatmul.mubr.bf16.gmra.mxu0 %v3349
      %v6998 = vpop.f32.mrf.mxu0
      %v6999 = vadd.f32 %v6926, %v6998
      %v7000 = vpop.f32.mrf.mxu0
      %v7001 = vadd.f32 %v6928, %v7000
      %v7002 = vpop.f32.mrf.mxu0
      %v7003 = vadd.f32 %v6930, %v7002
      %v7004 = vpop.f32.mrf.mxu0
      %v7005 = vadd.f32 %v6932, %v7004
      %7006 = vdwg.mxu0
      %7007 = vmatprep.subr.bf16.mxu0 %v5634
      %7008 = vmatpush1.bf16.msra.mxu0 %v5633
      %7009 = vmatprep.subr.bf16.mxu0 %v5632
      %7010 = vmatpush1.bf16.msra.mxu0 %v5631
      %7011 = vmatprep.subr.bf16.mxu0 %v5630
      %7012 = vmatpush1.bf16.msra.mxu0 %v5629
      %7013 = vmatprep.subr.bf16.mxu0 %v5628
      %7014 = vmatpush1.bf16.msra.mxu0 %v5627
      %7015 = vmatprep.subr.bf16.mxu0 %v5626
      %7016 = vmatpush1.bf16.msra.mxu0 %v5625
      %7017 = vmatprep.subr.bf16.mxu0 %v5624
      %7018 = vmatpush1.bf16.msra.mxu0 %v5623
      %7019 = vmatprep.subr.bf16.mxu0 %v5622
      %7020 = vmatpush1.bf16.msra.mxu0 %v5621
      %7021 = vmatprep.subr.bf16.mxu0 %v5620
      %7022 = vmatpush1.bf16.msra.mxu0 %v5619
      %7023 = vmatprep.subr.bf16.mxu0 %v5650
      %7024 = vmatpush2.bf16.msra.mxu0 %v5649
      %7025 = vmatprep.subr.bf16.mxu0 %v5648
      %7026 = vmatpush2.bf16.msra.mxu0 %v5647
      %7027 = vmatprep.subr.bf16.mxu0 %v5646
      %7028 = vmatpush2.bf16.msra.mxu0 %v5645
      %7029 = vmatprep.subr.bf16.mxu0 %v5644
      %7030 = vmatpush2.bf16.msra.mxu0 %v5643
      %7031 = vmatprep.subr.bf16.mxu0 %v5642
      %7032 = vmatpush2.bf16.msra.mxu0 %v5641
      %7033 = vmatprep.subr.bf16.mxu0 %v5640
      %7034 = vmatpush2.bf16.msra.mxu0 %v5639
      %7035 = vmatprep.subr.bf16.mxu0 %v5638
      %7036 = vmatpush2.bf16.msra.mxu0 %v5637
      %7037 = vmatprep.subr.bf16.mxu0 %v5636
      %7038 = vmatpush2.bf16.msra.mxu0 %v5635
      %7039 = vmatprep.mubr.bf16.mxu0 %v3400
      %7040 = vmatmul.mubr.bf16.gmra.mxu0 %v3399
      %v7041 = vpop.f32.mrf.mxu0
      %v7042 = vadd.f32 %v6969, %v7041
      %v7043 = vpop.f32.mrf.mxu0
      %v7044 = vadd.f32 %v6971, %v7043
      %v7045 = vpop.f32.mrf.mxu0
      %v7046 = vadd.f32 %v6973, %v7045
      %v7047 = vpop.f32.mrf.mxu0
      %v7048 = vadd.f32 %v6975, %v7047
      %7049 = vmatprep.mubr.bf16.mxu0 %v3404
      %7050 = vmatmul.mubr.bf16.gmra.mxu0 %v3403
      %v7051 = vpop.f32.mrf.mxu0
      %v7052 = vadd.f32 %v6979, %v7051
      %v7053 = vpop.f32.mrf.mxu0
      %v7054 = vadd.f32 %v6981, %v7053
      %v7055 = vpop.f32.mrf.mxu0
      %v7056 = vadd.f32 %v6983, %v7055
      %v7057 = vpop.f32.mrf.mxu0
      %v7058 = vadd.f32 %v6985, %v7057
      %7059 = vmatprep.mubr.bf16.mxu0 %v3408
      %7060 = vmatmul.mubr.bf16.gmra.mxu0 %v3407
      %v7061 = vpop.f32.mrf.mxu0
      %v7062 = vadd.f32 %v6989, %v7061
      %v7063 = vpop.f32.mrf.mxu0
      %v7064 = vadd.f32 %v6991, %v7063
      %v7065 = vpop.f32.mrf.mxu0
      %v7066 = vadd.f32 %v6993, %v7065
      %v7067 = vpop.f32.mrf.mxu0
      %v7068 = vadd.f32 %v6995, %v7067
      %7069 = vmatprep.mubr.bf16.mxu0 %v3412
      %7070 = vmatmul.mubr.bf16.gmra.mxu0 %v3411
      %v7071 = vpop.f32.mrf.mxu0
      %v7072 = vadd.f32 %v6999, %v7071
      %v7073 = vpop.f32.mrf.mxu0
      %v7074 = vadd.f32 %v7001, %v7073
      %v7075 = vpop.f32.mrf.mxu0
      %v7076 = vadd.f32 %v7003, %v7075
      %v7077 = vpop.f32.mrf.mxu0
      %v7078 = vadd.f32 %v7005, %v7077
      %7079 = vdwg.mxu0
      %7080 = vmatprep.subr.bf16.mxu0 %v5666
      %7081 = vmatpush1.bf16.msra.mxu0 %v5665
      %7082 = vmatprep.subr.bf16.mxu0 %v5664
      %7083 = vmatpush1.bf16.msra.mxu0 %v5663
      %7084 = vmatprep.subr.bf16.mxu0 %v5662
      %7085 = vmatpush1.bf16.msra.mxu0 %v5661
      %7086 = vmatprep.subr.bf16.mxu0 %v5660
      %7087 = vmatpush1.bf16.msra.mxu0 %v5659
      %7088 = vmatprep.subr.bf16.mxu0 %v5658
      %7089 = vmatpush1.bf16.msra.mxu0 %v5657
      %7090 = vmatprep.subr.bf16.mxu0 %v5656
      %7091 = vmatpush1.bf16.msra.mxu0 %v5655
      %7092 = vmatprep.subr.bf16.mxu0 %v5654
      %7093 = vmatpush1.bf16.msra.mxu0 %v5653
      %7094 = vmatprep.subr.bf16.mxu0 %v5652
      %7095 = vmatpush1.bf16.msra.mxu0 %v5651
      %7096 = vmatprep.subr.bf16.mxu0 %v5682
      %7097 = vmatpush2.bf16.msra.mxu0 %v5681
      %7098 = vmatprep.subr.bf16.mxu0 %v5680
      %7099 = vmatpush2.bf16.msra.mxu0 %v5679
      %7100 = vmatprep.subr.bf16.mxu0 %v5678
      %7101 = vmatpush2.bf16.msra.mxu0 %v5677
      %7102 = vmatprep.subr.bf16.mxu0 %v5676
      %7103 = vmatpush2.bf16.msra.mxu0 %v5675
      %7104 = vmatprep.subr.bf16.mxu0 %v5674
      %7105 = vmatpush2.bf16.msra.mxu0 %v5673
      %7106 = vmatprep.subr.bf16.mxu0 %v5672
      %7107 = vmatpush2.bf16.msra.mxu0 %v5671
      %7108 = vmatprep.subr.bf16.mxu0 %v5670
      %7109 = vmatpush2.bf16.msra.mxu0 %v5669
      %7110 = vmatprep.subr.bf16.mxu0 %v5668
      %7111 = vmatpush2.bf16.msra.mxu0 %v5667
      %7112 = vmatprep.mubr.bf16.mxu0 %v3402
      %7113 = vmatmul.mubr.bf16.gmra.mxu0 %v3401
      %v7114 = vpop.f32.mrf.mxu0
      %v7115 = vadd.f32 %v7042, %v7114
      %v7116 = vpop.f32.mrf.mxu0
      %v7117 = vadd.f32 %v7044, %v7116
      %v7118 = vpop.f32.mrf.mxu0
      %v7119 = vadd.f32 %v7046, %v7118
      %v7120 = vpop.f32.mrf.mxu0
      %v7121 = vadd.f32 %v7048, %v7120
      %7122 = vmatprep.mubr.bf16.mxu0 %v3406
      %7123 = vmatmul.mubr.bf16.gmra.mxu0 %v3405
      %v7124 = vpop.f32.mrf.mxu0
      %v7125 = vadd.f32 %v7052, %v7124
      %v7126 = vpop.f32.mrf.mxu0
      %v7127 = vadd.f32 %v7054, %v7126
      %v7128 = vpop.f32.mrf.mxu0
      %v7129 = vadd.f32 %v7056, %v7128
      %v7130 = vpop.f32.mrf.mxu0
      %v7131 = vadd.f32 %v7058, %v7130
      %7132 = vmatprep.mubr.bf16.mxu0 %v3410
      %7133 = vmatmul.mubr.bf16.gmra.mxu0 %v3409
      %v7134 = vpop.f32.mrf.mxu0
      %v7135 = vadd.f32 %v7062, %v7134
      %v7136 = vpop.f32.mrf.mxu0
      %v7137 = vadd.f32 %v7064, %v7136
      %v7138 = vpop.f32.mrf.mxu0
      %v7139 = vadd.f32 %v7066, %v7138
      %v7140 = vpop.f32.mrf.mxu0
      %v7141 = vadd.f32 %v7068, %v7140
      %7142 = vmatprep.mubr.bf16.mxu0 %v3414
      %7143 = vmatmul.mubr.bf16.gmra.mxu0 %v3413
      %v7144 = vpop.f32.mrf.mxu0
      %v7145 = vadd.f32 %v7072, %v7144
      %v7146 = vpop.f32.mrf.mxu0
      %v7147 = vadd.f32 %v7074, %v7146
      %v7148 = vpop.f32.mrf.mxu0
      %v7149 = vadd.f32 %v7076, %v7148
      %v7150 = vpop.f32.mrf.mxu0
      %v7151 = vadd.f32 %v7078, %v7150
      %7152 = vdwg.mxu0
      %vm7153 = vcmp.ge.f32.partialorder %v7115, 0.0
      %vm7154 = vcmp.ge.f32.partialorder %v7117, 0.0
      %vm7155 = vcmp.ge.f32.partialorder %v7119, 0.0
      %vm7156 = vcmp.ge.f32.partialorder %v7121, 0.0
      %vm7157 = vcmp.ge.f32.partialorder %v7125, 0.0
      %vm7158 = vcmp.ge.f32.partialorder %v7127, 0.0
      %vm7159 = vcmp.ge.f32.partialorder %v7129, 0.0
      %vm7160 = vcmp.ge.f32.partialorder %v7131, 0.0
      %vm7161 = vcmp.ge.f32.partialorder %v7135, 0.0
      %vm7162 = vcmp.ge.f32.partialorder %v7137, 0.0
      %vm7163 = vcmp.ge.f32.partialorder %v7139, 0.0
      %vm7164 = vcmp.ge.f32.partialorder %v7141, 0.0
      %vm7165 = vcmp.ge.f32.partialorder %v7145, 0.0
      %vm7166 = vcmp.ge.f32.partialorder %v7147, 0.0
      %vm7167 = vcmp.ge.f32.partialorder %v7149, 0.0
      %vm7168 = vcmp.ge.f32.partialorder %v7151, 0.0
      %v7169 = vmul.f32 %v7115, 0.01
      %v7170 = vmul.f32 %v7117, 0.01
      %v7171 = vmul.f32 %v7119, 0.01
      %v7172 = vmul.f32 %v7121, 0.01
      %v7173 = vmul.f32 %v7125, 0.01
      %v7174 = vmul.f32 %v7127, 0.01
      %v7175 = vmul.f32 %v7129, 0.01
      %v7176 = vmul.f32 %v7131, 0.01
      %v7177 = vmul.f32 %v7135, 0.01
      %v7178 = vmul.f32 %v7137, 0.01
      %v7179 = vmul.f32 %v7139, 0.01
      %v7180 = vmul.f32 %v7141, 0.01
      %v7181 = vmul.f32 %v7145, 0.01
      %v7182 = vmul.f32 %v7147, 0.01
      %v7183 = vmul.f32 %v7149, 0.01
      %v7184 = vmul.f32 %v7151, 0.01
      %v7185 = vsel %vm7153, %v7115, %v7169
      %v7186 = vsel %vm7154, %v7117, %v7170
      %v7187 = vsel %vm7155, %v7119, %v7171
      %v7188 = vsel %vm7156, %v7121, %v7172
      %v7189 = vsel %vm7157, %v7125, %v7173
      %v7190 = vsel %vm7158, %v7127, %v7174
      %v7191 = vsel %vm7159, %v7129, %v7175
      %v7192 = vsel %vm7160, %v7131, %v7176
      %v7193 = vsel %vm7161, %v7135, %v7177
      %v7194 = vsel %vm7162, %v7137, %v7178
      %v7195 = vsel %vm7163, %v7139, %v7179
      %v7196 = vsel %vm7164, %v7141, %v7180
      %v7197 = vsel %vm7165, %v7145, %v7181
      %v7198 = vsel %vm7166, %v7147, %v7182
      %v7199 = vsel %vm7167, %v7149, %v7183
      %v7200 = vsel %vm7168, %v7151, %v7184
      %7201 = vst [vmem:[#allocation3] sm:$0x88] 0
      %7202 = vst [vmem:[#allocation3 + $0x18] sm:$0x88] 0
      %7203 = vst [vmem:[#allocation3 + $0x30] sm:$0x88] 0
      %7204 = vst [vmem:[#allocation3 + $0x48] sm:$0x88] 0
      %7205 = vst [vmem:[#allocation3 + $0x60] sm:$0x88] 0
      %7206 = vst [vmem:[#allocation3 + $0x78] sm:$0x88] 0
      %7207 = vst [vmem:[#allocation3 + $0x90] sm:$0x88] 0
      %7208 = vst [vmem:[#allocation3 + $0xa8] sm:$0x88] 0
      %7209 = vst [vmem:[#allocation3 + $0x10] sm:$0x11] 0
      %7210 = vst [vmem:[#allocation3 + $0x28] sm:$0x11] 0
      %7211 = vst [vmem:[#allocation3 + $0x40] sm:$0x11] 0
      %7212 = vst [vmem:[#allocation3 + $0x58] sm:$0x11] 0
      %7213 = vst [vmem:[#allocation3 + $0x70] sm:$0x11] 0
      %7214 = vst [vmem:[#allocation3 + $0x88] sm:$0x11] 0
      %7215 = vst [vmem:[#allocation3 + $0xa0] sm:$0x11] 0
      %7216 = vst [vmem:[#allocation3 + $0xb8] sm:$0x11] 0
      %v7217 = vpack.c.bf16 %v7187, %v7185
      %v7218 = vpack.c.bf16 %v7188, %v7186
      %v7219 = vpack.c.bf16 %v7191, %v7189
      %v7220 = vpack.c.bf16 %v7192, %v7190
      %v7221 = vpack.c.bf16 %v7195, %v7193
      %v7222 = vpack.c.bf16 %v7196, %v7194
      %v7223 = vpack.c.bf16 %v7199, %v7197
      %v7224 = vpack.c.bf16 %v7200, %v7198
      %v7233 = vunpack.c.l.b16 %v7217
      %v7234 = vunpack.c.l.b16 %v7218
      %v7235 = vunpack.c.h.b16 %v7217
      %v7236 = vunpack.c.h.b16 %v7218
      %v7237 = vunpack.c.l.b16 %v7219
      %v7238 = vunpack.c.l.b16 %v7220
      %v7239 = vunpack.c.h.b16 %v7219
      %v7240 = vunpack.c.h.b16 %v7220
      %v7241 = vunpack.c.l.b16 %v7221
      %v7242 = vunpack.c.l.b16 %v7222
      %v7243 = vunpack.c.h.b16 %v7221
      %v7244 = vunpack.c.h.b16 %v7222
      %v7245 = vunpack.c.l.b16 %v7223
      %v7246 = vunpack.c.l.b16 %v7224
      %v7247 = vunpack.c.h.b16 %v7223
      %v7248 = vunpack.c.h.b16 %v7224
      %v7249 = vpack.c.b16 %v7234, %v7233
      %v7250 = vpack.c.b16 %v7236, %v7235
      %v7251 = vpack.c.b16 %v7238, %v7237
      %v7252 = vpack.c.b16 %v7240, %v7239
      %v7253 = vpack.c.b16 %v7242, %v7241
      %v7254 = vpack.c.b16 %v7244, %v7243
      %v7255 = vpack.c.b16 %v7246, %v7245
      %v7256 = vpack.c.b16 %v7248, %v7247
      %7265 = vst [vmem:[#allocation3 + $0x8] sm:$0xff] %v7249
      %7266 = vst [vmem:[#allocation3 + $0x20] sm:$0xff] %v7250
      %7267 = vst [vmem:[#allocation3 + $0x38] sm:$0xff] %v7251
      %7268 = vst [vmem:[#allocation3 + $0x50] sm:$0xff] %v7252
      %7269 = vst [vmem:[#allocation3 + $0x68] sm:$0xff] %v7253
      %7270 = vst [vmem:[#allocation3 + $0x80] sm:$0xff] %v7254
      %7271 = vst [vmem:[#allocation3 + $0x98] sm:$0xff] %v7255
      %7272 = vst [vmem:[#allocation3 + $0xb0] sm:$0xff] %v7256
      %v7273 = vld [vmem:[#allocation3] sm:$0x88]
      %v7274 = vld [vmem:[#allocation3 + $0x8] sm:$0x77]
      %v7275 = vld [vmem:[#allocation3 + $0x18] sm:$0x88]
      %v7276 = vld [vmem:[#allocation3 + $0x20] sm:$0x77]
      %v7277 = vld [vmem:[#allocation3 + $0x30] sm:$0x88]
      %v7278 = vld [vmem:[#allocation3 + $0x38] sm:$0x77]
      %v7279 = vld [vmem:[#allocation3 + $0x48] sm:$0x88]
      %v7280 = vld [vmem:[#allocation3 + $0x50] sm:$0x77]
      %v7281 = vld [vmem:[#allocation3 + $0x60] sm:$0x88]
      %v7282 = vld [vmem:[#allocation3 + $0x68] sm:$0x77]
      %v7283 = vld [vmem:[#allocation3 + $0x78] sm:$0x88]
      %v7284 = vld [vmem:[#allocation3 + $0x80] sm:$0x77]
      %v7285 = vld [vmem:[#allocation3 + $0x90] sm:$0x88]
      %v7286 = vld [vmem:[#allocation3 + $0x98] sm:$0x77]
      %v7287 = vld [vmem:[#allocation3 + $0xa8] sm:$0x88]
      %v7288 = vld [vmem:[#allocation3 + $0xb0] sm:$0x77]
      %v7305 = vrot.slane %v7273, 7
      %v7306 = vrot.slane %v7305, 4
      %v7307 = vrot.slane %v7274, 7
      %v7308 = vsel %vm2096, %v7306, %v7307
      %v7309 = vrot.slane %v7275, 7
      %v7310 = vrot.slane %v7309, 4
      %v7311 = vrot.slane %v7276, 7
      %v7312 = vsel %vm2096, %v7310, %v7311
      %v7313 = vrot.slane %v7277, 7
      %v7314 = vrot.slane %v7313, 4
      %v7315 = vrot.slane %v7278, 7
      %v7316 = vsel %vm2096, %v7314, %v7315
      %v7317 = vrot.slane %v7279, 7
      %v7318 = vrot.slane %v7317, 4
      %v7319 = vrot.slane %v7280, 7
      %v7320 = vsel %vm2096, %v7318, %v7319
      %v7321 = vrot.slane %v7281, 7
      %v7322 = vrot.slane %v7321, 4
      %v7323 = vrot.slane %v7282, 7
      %v7324 = vsel %vm2096, %v7322, %v7323
      %v7325 = vrot.slane %v7283, 7
      %v7326 = vrot.slane %v7325, 4
      %v7327 = vrot.slane %v7284, 7
      %v7328 = vsel %vm2096, %v7326, %v7327
      %v7329 = vrot.slane %v7285, 7
      %v7330 = vrot.slane %v7329, 4
      %v7331 = vrot.slane %v7286, 7
      %v7332 = vsel %vm2096, %v7330, %v7331
      %v7333 = vrot.slane %v7287, 7
      %v7334 = vrot.slane %v7333, 4
      %v7335 = vrot.slane %v7288, 7
      %v7336 = vsel %vm2096, %v7334, %v7335
      %v7337 = vld [vmem:[#allocation3 + $0x8] sm:$0xff]
      %v7338 = vld [vmem:[#allocation3 + $0x20] sm:$0xff]
      %v7339 = vld [vmem:[#allocation3 + $0x38] sm:$0xff]
      %v7340 = vld [vmem:[#allocation3 + $0x50] sm:$0xff]
      %v7341 = vld [vmem:[#allocation3 + $0x68] sm:$0xff]
      %v7342 = vld [vmem:[#allocation3 + $0x80] sm:$0xff]
      %v7343 = vld [vmem:[#allocation3 + $0x98] sm:$0xff]
      %v7344 = vld [vmem:[#allocation3 + $0xb0] sm:$0xff]
      %v7346 = vshrl.u32 %v7273, 16
      %v7348 = vrot.slane %v7346, 7
      %v7349 = vrot.slane %v7348, 4
      %v7351 = vshrl.u32 %v7337, 16
      %v7353 = vrot.slane %v7351, 7
      %v7354 = vshll.u32 %v7337, 16
      %v7356 = vor.u32 %v7353, %v7354
      %v7357 = vsel %vm2179, %v7349, %v7356
      %v7359 = vshrl.u32 %v7275, 16
      %v7361 = vrot.slane %v7359, 7
      %v7362 = vrot.slane %v7361, 4
      %v7364 = vshrl.u32 %v7338, 16
      %v7366 = vrot.slane %v7364, 7
      %v7367 = vshll.u32 %v7338, 16
      %v7369 = vor.u32 %v7366, %v7367
      %v7370 = vsel %vm2179, %v7362, %v7369
      %v7372 = vshrl.u32 %v7277, 16
      %v7374 = vrot.slane %v7372, 7
      %v7375 = vrot.slane %v7374, 4
      %v7377 = vshrl.u32 %v7339, 16
      %v7379 = vrot.slane %v7377, 7
      %v7380 = vshll.u32 %v7339, 16
      %v7382 = vor.u32 %v7379, %v7380
      %v7383 = vsel %vm2179, %v7375, %v7382
      %v7385 = vshrl.u32 %v7279, 16
      %v7387 = vrot.slane %v7385, 7
      %v7388 = vrot.slane %v7387, 4
      %v7390 = vshrl.u32 %v7340, 16
      %v7392 = vrot.slane %v7390, 7
      %v7393 = vshll.u32 %v7340, 16
      %v7395 = vor.u32 %v7392, %v7393
      %v7396 = vsel %vm2179, %v7388, %v7395
      %v7398 = vshrl.u32 %v7281, 16
      %v7400 = vrot.slane %v7398, 7
      %v7401 = vrot.slane %v7400, 4
      %v7403 = vshrl.u32 %v7341, 16
      %v7405 = vrot.slane %v7403, 7
      %v7406 = vshll.u32 %v7341, 16
      %v7408 = vor.u32 %v7405, %v7406
      %v7409 = vsel %vm2179, %v7401, %v7408
      %v7411 = vshrl.u32 %v7283, 16
      %v7413 = vrot.slane %v7411, 7
      %v7414 = vrot.slane %v7413, 4
      %v7416 = vshrl.u32 %v7342, 16
      %v7418 = vrot.slane %v7416, 7
      %v7419 = vshll.u32 %v7342, 16
      %v7421 = vor.u32 %v7418, %v7419
      %v7422 = vsel %vm2179, %v7414, %v7421
      %v7424 = vshrl.u32 %v7285, 16
      %v7426 = vrot.slane %v7424, 7
      %v7427 = vrot.slane %v7426, 4
      %v7429 = vshrl.u32 %v7343, 16
      %v7431 = vrot.slane %v7429, 7
      %v7432 = vshll.u32 %v7343, 16
      %v7434 = vor.u32 %v7431, %v7432
      %v7435 = vsel %vm2179, %v7427, %v7434
      %v7437 = vshrl.u32 %v7287, 16
      %v7439 = vrot.slane %v7437, 7
      %v7440 = vrot.slane %v7439, 4
      %v7442 = vshrl.u32 %v7344, 16
      %v7444 = vrot.slane %v7442, 7
      %v7445 = vshll.u32 %v7344, 16
      %v7447 = vor.u32 %v7444, %v7445
      %v7448 = vsel %vm2179, %v7440, %v7447
      %v7449 = vld [vmem:[#allocation3 + $0x10] sm:$0x11]
      %v7450 = vld [vmem:[#allocation3 + $0x28] sm:$0x11]
      %v7451 = vld [vmem:[#allocation3 + $0x40] sm:$0x11]
      %v7452 = vld [vmem:[#allocation3 + $0x58] sm:$0x11]
      %v7453 = vld [vmem:[#allocation3 + $0x70] sm:$0x11]
      %v7454 = vld [vmem:[#allocation3 + $0x88] sm:$0x11]
      %v7455 = vld [vmem:[#allocation3 + $0xa0] sm:$0x11]
      %v7456 = vld [vmem:[#allocation3 + $0xb8] sm:$0x11]
      %v7457 = vrot.slane %v7351, 4
      %v7458 = vrot.slane %v7354, 5
      %v7459 = vor.u32 %v7457, %v7458
      %v7460 = vrot.slane %v7459, 4
      %v7462 = vshll.u32 %v7449, 16
      %v7464 = vrot.slane %v7462, 5
      %v7465 = vsel %vm304, %v7460, %v7464
      %v7466 = vrot.slane %v7364, 4
      %v7467 = vrot.slane %v7367, 5
      %v7468 = vor.u32 %v7466, %v7467
      %v7469 = vrot.slane %v7468, 4
      %v7471 = vshll.u32 %v7450, 16
      %v7473 = vrot.slane %v7471, 5
      %v7474 = vsel %vm304, %v7469, %v7473
      %v7475 = vrot.slane %v7377, 4
      %v7476 = vrot.slane %v7380, 5
      %v7477 = vor.u32 %v7475, %v7476
      %v7478 = vrot.slane %v7477, 4
      %v7480 = vshll.u32 %v7451, 16
      %v7482 = vrot.slane %v7480, 5
      %v7483 = vsel %vm304, %v7478, %v7482
      %v7484 = vrot.slane %v7390, 4
      %v7485 = vrot.slane %v7393, 5
      %v7486 = vor.u32 %v7484, %v7485
      %v7487 = vrot.slane %v7486, 4
      %v7489 = vshll.u32 %v7452, 16
      %v7491 = vrot.slane %v7489, 5
      %v7492 = vsel %vm304, %v7487, %v7491
      %v7493 = vrot.slane %v7403, 4
      %v7494 = vrot.slane %v7406, 5
      %v7495 = vor.u32 %v7493, %v7494
      %v7496 = vrot.slane %v7495, 4
      %v7498 = vshll.u32 %v7453, 16
      %v7500 = vrot.slane %v7498, 5
      %v7501 = vsel %vm304, %v7496, %v7500
      %v7502 = vrot.slane %v7416, 4
      %v7503 = vrot.slane %v7419, 5
      %v7504 = vor.u32 %v7502, %v7503
      %v7505 = vrot.slane %v7504, 4
      %v7507 = vshll.u32 %v7454, 16
      %v7509 = vrot.slane %v7507, 5
      %v7510 = vsel %vm304, %v7505, %v7509
      %v7511 = vrot.slane %v7429, 4
      %v7512 = vrot.slane %v7432, 5
      %v7513 = vor.u32 %v7511, %v7512
      %v7514 = vrot.slane %v7513, 4
      %v7516 = vshll.u32 %v7455, 16
      %v7518 = vrot.slane %v7516, 5
      %v7519 = vsel %vm304, %v7514, %v7518
      %v7520 = vrot.slane %v7442, 4
      %v7521 = vrot.slane %v7445, 5
      %v7522 = vor.u32 %v7520, %v7521
      %v7523 = vrot.slane %v7522, 4
      %v7525 = vshll.u32 %v7456, 16
      %v7527 = vrot.slane %v7525, 5
      %v7528 = vsel %vm304, %v7523, %v7527
      %v7529 = vld [vmem:[#allocation3 + $0x8] sm:$0xee]
      %v7530 = vld [vmem:[#allocation3 + $0x20] sm:$0xee]
      %v7531 = vld [vmem:[#allocation3 + $0x38] sm:$0xee]
      %v7532 = vld [vmem:[#allocation3 + $0x50] sm:$0xee]
      %v7533 = vld [vmem:[#allocation3 + $0x68] sm:$0xee]
      %v7534 = vld [vmem:[#allocation3 + $0x80] sm:$0xee]
      %v7535 = vld [vmem:[#allocation3 + $0x98] sm:$0xee]
      %v7536 = vld [vmem:[#allocation3 + $0xb0] sm:$0xee]
      %v7553 = vrot.slane %v7529, 5
      %v7554 = vrot.slane %v7553, 4
      %v7555 = vrot.slane %v7449, 5
      %v7556 = vsel %vm435, %v7554, %v7555
      %v7557 = vrot.slane %v7530, 5
      %v7558 = vrot.slane %v7557, 4
      %v7559 = vrot.slane %v7450, 5
      %v7560 = vsel %vm435, %v7558, %v7559
      %v7561 = vrot.slane %v7531, 5
      %v7562 = vrot.slane %v7561, 4
      %v7563 = vrot.slane %v7451, 5
      %v7564 = vsel %vm435, %v7562, %v7563
      %v7565 = vrot.slane %v7532, 5
      %v7566 = vrot.slane %v7565, 4
      %v7567 = vrot.slane %v7452, 5
      %v7568 = vsel %vm435, %v7566, %v7567
      %v7569 = vrot.slane %v7533, 5
      %v7570 = vrot.slane %v7569, 4
      %v7571 = vrot.slane %v7453, 5
      %v7572 = vsel %vm435, %v7570, %v7571
      %v7573 = vrot.slane %v7534, 5
      %v7574 = vrot.slane %v7573, 4
      %v7575 = vrot.slane %v7454, 5
      %v7576 = vsel %vm435, %v7574, %v7575
      %v7577 = vrot.slane %v7535, 5
      %v7578 = vrot.slane %v7577, 4
      %v7579 = vrot.slane %v7455, 5
      %v7580 = vsel %vm435, %v7578, %v7579
      %v7581 = vrot.slane %v7536, 5
      %v7582 = vrot.slane %v7581, 4
      %v7583 = vrot.slane %v7456, 5
      %v7584 = vsel %vm435, %v7582, %v7583
      %v7585 = vunpack.c.l.b16 %v7308
      %v7586 = vunpack.c.h.b16 %v7308
      %v7587 = vunpack.c.l.b16 %v7312
      %v7588 = vunpack.c.h.b16 %v7312
      %v7589 = vunpack.c.l.b16 %v7316
      %v7590 = vunpack.c.h.b16 %v7316
      %v7591 = vunpack.c.l.b16 %v7320
      %v7592 = vunpack.c.h.b16 %v7320
      %v7593 = vunpack.c.l.b16 %v7324
      %v7594 = vunpack.c.h.b16 %v7324
      %v7595 = vunpack.c.l.b16 %v7328
      %v7596 = vunpack.c.h.b16 %v7328
      %v7597 = vunpack.c.l.b16 %v7332
      %v7598 = vunpack.c.h.b16 %v7332
      %v7599 = vunpack.c.l.b16 %v7336
      %v7600 = vunpack.c.h.b16 %v7336
      %v7601 = vpack.c.b16 %v7587, %v7585
      %v7602 = vpack.c.b16 %v7588, %v7586
      %v7603 = vpack.c.b16 %v7591, %v7589
      %v7604 = vpack.c.b16 %v7592, %v7590
      %v7605 = vpack.c.b16 %v7595, %v7593
      %v7606 = vpack.c.b16 %v7596, %v7594
      %v7607 = vpack.c.b16 %v7599, %v7597
      %v7608 = vpack.c.b16 %v7600, %v7598
      %v7617 = vunpack.c.l.b16 %v7357
      %v7618 = vunpack.c.h.b16 %v7357
      %v7619 = vunpack.c.l.b16 %v7370
      %v7620 = vunpack.c.h.b16 %v7370
      %v7621 = vunpack.c.l.b16 %v7383
      %v7622 = vunpack.c.h.b16 %v7383
      %v7623 = vunpack.c.l.b16 %v7396
      %v7624 = vunpack.c.h.b16 %v7396
      %v7625 = vunpack.c.l.b16 %v7409
      %v7626 = vunpack.c.h.b16 %v7409
      %v7627 = vunpack.c.l.b16 %v7422
      %v7628 = vunpack.c.h.b16 %v7422
      %v7629 = vunpack.c.l.b16 %v7435
      %v7630 = vunpack.c.h.b16 %v7435
      %v7631 = vunpack.c.l.b16 %v7448
      %v7632 = vunpack.c.h.b16 %v7448
      %v7633 = vpack.c.b16 %v7619, %v7617
      %v7634 = vpack.c.b16 %v7620, %v7618
      %v7635 = vpack.c.b16 %v7623, %v7621
      %v7636 = vpack.c.b16 %v7624, %v7622
      %v7637 = vpack.c.b16 %v7627, %v7625
      %v7638 = vpack.c.b16 %v7628, %v7626
      %v7639 = vpack.c.b16 %v7631, %v7629
      %v7640 = vpack.c.b16 %v7632, %v7630
      %v7657 = vunpack.c.l.b16 %v7337
      %v7658 = vunpack.c.h.b16 %v7337
      %v7659 = vunpack.c.l.b16 %v7338
      %v7660 = vunpack.c.h.b16 %v7338
      %v7661 = vunpack.c.l.b16 %v7339
      %v7662 = vunpack.c.h.b16 %v7339
      %v7663 = vunpack.c.l.b16 %v7340
      %v7664 = vunpack.c.h.b16 %v7340
      %v7665 = vunpack.c.l.b16 %v7341
      %v7666 = vunpack.c.h.b16 %v7341
      %v7667 = vunpack.c.l.b16 %v7342
      %v7668 = vunpack.c.h.b16 %v7342
      %v7669 = vunpack.c.l.b16 %v7343
      %v7670 = vunpack.c.h.b16 %v7343
      %v7671 = vunpack.c.l.b16 %v7344
      %v7672 = vunpack.c.h.b16 %v7344
      %v7673 = vpack.c.b16 %v7659, %v7657
      %v7674 = vpack.c.b16 %v7660, %v7658
      %v7675 = vpack.c.b16 %v7663, %v7661
      %v7676 = vpack.c.b16 %v7664, %v7662
      %v7677 = vpack.c.b16 %v7667, %v7665
      %v7678 = vpack.c.b16 %v7668, %v7666
      %v7679 = vpack.c.b16 %v7671, %v7669
      %v7680 = vpack.c.b16 %v7672, %v7670
      %v7689 = vunpack.c.l.b16 %v7465
      %v7690 = vunpack.c.h.b16 %v7465
      %v7691 = vunpack.c.l.b16 %v7474
      %v7692 = vunpack.c.h.b16 %v7474
      %v7693 = vunpack.c.l.b16 %v7483
      %v7694 = vunpack.c.h.b16 %v7483
      %v7695 = vunpack.c.l.b16 %v7492
      %v7696 = vunpack.c.h.b16 %v7492
      %v7697 = vunpack.c.l.b16 %v7501
      %v7698 = vunpack.c.h.b16 %v7501
      %v7699 = vunpack.c.l.b16 %v7510
      %v7700 = vunpack.c.h.b16 %v7510
      %v7701 = vunpack.c.l.b16 %v7519
      %v7702 = vunpack.c.h.b16 %v7519
      %v7703 = vunpack.c.l.b16 %v7528
      %v7704 = vunpack.c.h.b16 %v7528
      %v7705 = vpack.c.b16 %v7691, %v7689
      %v7706 = vpack.c.b16 %v7692, %v7690
      %v7707 = vpack.c.b16 %v7695, %v7693
      %v7708 = vpack.c.b16 %v7696, %v7694
      %v7709 = vpack.c.b16 %v7699, %v7697
      %v7710 = vpack.c.b16 %v7700, %v7698
      %v7711 = vpack.c.b16 %v7703, %v7701
      %v7712 = vpack.c.b16 %v7704, %v7702
      %v7721 = vunpack.c.l.b16 %v7556
      %v7722 = vunpack.c.h.b16 %v7556
      %v7723 = vunpack.c.l.b16 %v7560
      %v7724 = vunpack.c.h.b16 %v7560
      %v7725 = vunpack.c.l.b16 %v7564
      %v7726 = vunpack.c.h.b16 %v7564
      %v7727 = vunpack.c.l.b16 %v7568
      %v7728 = vunpack.c.h.b16 %v7568
      %v7729 = vunpack.c.l.b16 %v7572
      %v7730 = vunpack.c.h.b16 %v7572
      %v7731 = vunpack.c.l.b16 %v7576
      %v7732 = vunpack.c.h.b16 %v7576
      %v7733 = vunpack.c.l.b16 %v7580
      %v7734 = vunpack.c.h.b16 %v7580
      %v7735 = vunpack.c.l.b16 %v7584
      %v7736 = vunpack.c.h.b16 %v7584
      %v7737 = vpack.c.b16 %v7723, %v7721
      %v7738 = vpack.c.b16 %v7724, %v7722
      %v7739 = vpack.c.b16 %v7727, %v7725
      %v7740 = vpack.c.b16 %v7728, %v7726
      %v7741 = vpack.c.b16 %v7731, %v7729
      %v7742 = vpack.c.b16 %v7732, %v7730
      %v7743 = vpack.c.b16 %v7735, %v7733
      %v7744 = vpack.c.b16 %v7736, %v7734
      %v7753 = vld [vmem:[%s5] sm:$0xf]
      %v7754 = vld [vmem:[%s5 + $0x4] sm:$0xf]
      %v7755 = vld [vmem:[%s5 + $0x8] sm:$0xf]
      %v7756 = vld [vmem:[%s5 + $0xc] sm:$0xf]
      %v7757 = vld [vmem:[%s5 + $0x10] sm:$0xf]
      %v7758 = vld [vmem:[%s5 + $0x14] sm:$0xf]
      %v7759 = vld [vmem:[%s5 + $0x18] sm:$0xf]
      %v7760 = vld [vmem:[%s5 + $0x1c] sm:$0xf]
      %v7761 = vld [vmem:[%s5 + $0x20] sm:$0xf]
      %v7762 = vld [vmem:[%s5 + $0x24] sm:$0xf]
      %v7763 = vld [vmem:[%s5 + $0x28] sm:$0xf]
      %v7764 = vld [vmem:[%s5 + $0x2c] sm:$0xf]
      %v7765 = vld [vmem:[%s5 + $0x30] sm:$0xf]
      %v7766 = vld [vmem:[%s5 + $0x34] sm:$0xf]
      %v7767 = vld [vmem:[%s5 + $0x38] sm:$0xf]
      %v7768 = vld [vmem:[%s5 + $0x3c] sm:$0xf]
      %v7769 = vld [vmem:[%s5 + $0x40] sm:$0xf]
      %v7770 = vld [vmem:[%s5 + $0x44] sm:$0xf]
      %v7771 = vld [vmem:[%s5 + $0x48] sm:$0xf]
      %v7772 = vld [vmem:[%s5 + $0x4c] sm:$0xf]
      %v7773 = vld [vmem:[%s5 + $0x50] sm:$0xf]
      %v7774 = vld [vmem:[%s5 + $0x54] sm:$0xf]
      %v7775 = vld [vmem:[%s5 + $0x58] sm:$0xf]
      %v7776 = vld [vmem:[%s5 + $0x5c] sm:$0xf]
      %v7777 = vld [vmem:[%s5 + $0x60] sm:$0xf]
      %v7778 = vld [vmem:[%s5 + $0x64] sm:$0xf]
      %v7779 = vld [vmem:[%s5 + $0x68] sm:$0xf]
      %v7780 = vld [vmem:[%s5 + $0x6c] sm:$0xf]
      %v7781 = vld [vmem:[%s5 + $0x70] sm:$0xf]
      %v7782 = vld [vmem:[%s5 + $0x74] sm:$0xf]
      %v7783 = vld [vmem:[%s5 + $0x78] sm:$0xf]
      %v7784 = vld [vmem:[%s5 + $0x7c] sm:$0xf]
      %v7785 = vld [vmem:[%s5 + $0x80] sm:$0xf]
      %v7786 = vld [vmem:[%s5 + $0x84] sm:$0xf]
      %v7787 = vld [vmem:[%s5 + $0x88] sm:$0xf]
      %v7788 = vld [vmem:[%s5 + $0x8c] sm:$0xf]
      %v7789 = vld [vmem:[%s5 + $0x90] sm:$0xf]
      %v7790 = vld [vmem:[%s5 + $0x94] sm:$0xf]
      %v7791 = vld [vmem:[%s5 + $0x98] sm:$0xf]
      %v7792 = vld [vmem:[%s5 + $0x9c] sm:$0xf]
      %v7793 = vld [vmem:[%s5 + $0xa0] sm:$0xf]
      %v7794 = vld [vmem:[%s5 + $0xa4] sm:$0xf]
      %v7795 = vld [vmem:[%s5 + $0xa8] sm:$0xf]
      %v7796 = vld [vmem:[%s5 + $0xac] sm:$0xf]
      %v7797 = vld [vmem:[%s5 + $0xb0] sm:$0xf]
      %v7798 = vld [vmem:[%s5 + $0xb4] sm:$0xf]
      %v7799 = vld [vmem:[%s5 + $0xb8] sm:$0xf]
      %v7800 = vld [vmem:[%s5 + $0xbc] sm:$0xf]
      %v7801 = vld [vmem:[%s5 + $0xc0] sm:$0xf]
      %v7802 = vld [vmem:[%s5 + $0xc4] sm:$0xf]
      %v7803 = vld [vmem:[%s5 + $0xc8] sm:$0xf]
      %v7804 = vld [vmem:[%s5 + $0xcc] sm:$0xf]
      %v7805 = vld [vmem:[%s5 + $0xd0] sm:$0xf]
      %v7806 = vld [vmem:[%s5 + $0xd4] sm:$0xf]
      %v7807 = vld [vmem:[%s5 + $0xd8] sm:$0xf]
      %v7808 = vld [vmem:[%s5 + $0xdc] sm:$0xf]
      %v7809 = vld [vmem:[%s5 + $0xe0] sm:$0xf]
      %v7810 = vld [vmem:[%s5 + $0xe4] sm:$0xf]
      %v7811 = vld [vmem:[%s5 + $0xe8] sm:$0xf]
      %v7812 = vld [vmem:[%s5 + $0xec] sm:$0xf]
      %v7813 = vld [vmem:[%s5 + $0xf0] sm:$0xf]
      %v7814 = vld [vmem:[%s5 + $0xf4] sm:$0xf]
      %v7815 = vld [vmem:[%s5 + $0xf8] sm:$0xf]
      %v7816 = vld [vmem:[%s5 + $0xfc] sm:$0xf]
      %v7817 = vld [vmem:[%s5 + $0x100] sm:$0xf]
      %v7818 = vld [vmem:[%s5 + $0x104] sm:$0xf]
      %v7819 = vld [vmem:[%s5 + $0x108] sm:$0xf]
      %v7820 = vld [vmem:[%s5 + $0x10c] sm:$0xf]
      %v7821 = vld [vmem:[%s5 + $0x110] sm:$0xf]
      %v7822 = vld [vmem:[%s5 + $0x114] sm:$0xf]
      %v7823 = vld [vmem:[%s5 + $0x118] sm:$0xf]
      %v7824 = vld [vmem:[%s5 + $0x11c] sm:$0xf]
      %v7825 = vld [vmem:[%s5 + $0x120] sm:$0xf]
      %v7826 = vld [vmem:[%s5 + $0x124] sm:$0xf]
      %v7827 = vld [vmem:[%s5 + $0x128] sm:$0xf]
      %v7828 = vld [vmem:[%s5 + $0x12c] sm:$0xf]
      %v7829 = vld [vmem:[%s5 + $0x130] sm:$0xf]
      %v7830 = vld [vmem:[%s5 + $0x134] sm:$0xf]
      %v7831 = vld [vmem:[%s5 + $0x138] sm:$0xf]
      %v7832 = vld [vmem:[%s5 + $0x13c] sm:$0xf]
      %v7833 = vld [vmem:[%s5 + $0x140] sm:$0xf]
      %v7834 = vld [vmem:[%s5 + $0x144] sm:$0xf]
      %v7835 = vld [vmem:[%s5 + $0x148] sm:$0xf]
      %v7836 = vld [vmem:[%s5 + $0x14c] sm:$0xf]
      %v7837 = vld [vmem:[%s5 + $0x150] sm:$0xf]
      %v7838 = vld [vmem:[%s5 + $0x154] sm:$0xf]
      %v7839 = vld [vmem:[%s5 + $0x158] sm:$0xf]
      %v7840 = vld [vmem:[%s5 + $0x15c] sm:$0xf]
      %v7841 = vld [vmem:[%s5 + $0x160] sm:$0xf]
      %v7842 = vld [vmem:[%s5 + $0x164] sm:$0xf]
      %v7843 = vld [vmem:[%s5 + $0x168] sm:$0xf]
      %v7844 = vld [vmem:[%s5 + $0x16c] sm:$0xf]
      %v7845 = vld [vmem:[%s5 + $0x170] sm:$0xf]
      %v7846 = vld [vmem:[%s5 + $0x174] sm:$0xf]
      %v7847 = vld [vmem:[%s5 + $0x178] sm:$0xf]
      %v7848 = vld [vmem:[%s5 + $0x17c] sm:$0xf]
      %v7849 = vld [vmem:[%s5 + $0x180] sm:$0xf]
      %v7850 = vld [vmem:[%s5 + $0x184] sm:$0xf]
      %v7851 = vld [vmem:[%s5 + $0x188] sm:$0xf]
      %v7852 = vld [vmem:[%s5 + $0x18c] sm:$0xf]
      %v7853 = vld [vmem:[%s5 + $0x190] sm:$0xf]
      %v7854 = vld [vmem:[%s5 + $0x194] sm:$0xf]
      %v7855 = vld [vmem:[%s5 + $0x198] sm:$0xf]
      %v7856 = vld [vmem:[%s5 + $0x19c] sm:$0xf]
      %v7857 = vld [vmem:[%s5 + $0x1a0] sm:$0xf]
      %v7858 = vld [vmem:[%s5 + $0x1a4] sm:$0xf]
      %v7859 = vld [vmem:[%s5 + $0x1a8] sm:$0xf]
      %v7860 = vld [vmem:[%s5 + $0x1ac] sm:$0xf]
      %v7861 = vld [vmem:[%s5 + $0x1b0] sm:$0xf]
      %v7862 = vld [vmem:[%s5 + $0x1b4] sm:$0xf]
      %v7863 = vld [vmem:[%s5 + $0x1b8] sm:$0xf]
      %v7864 = vld [vmem:[%s5 + $0x1bc] sm:$0xf]
      %v7865 = vld [vmem:[%s5 + $0x1c0] sm:$0xf]
      %v7866 = vld [vmem:[%s5 + $0x1c4] sm:$0xf]
      %v7867 = vld [vmem:[%s5 + $0x1c8] sm:$0xf]
      %v7868 = vld [vmem:[%s5 + $0x1cc] sm:$0xf]
      %v7869 = vld [vmem:[%s5 + $0x1d0] sm:$0xf]
      %v7870 = vld [vmem:[%s5 + $0x1d4] sm:$0xf]
      %v7871 = vld [vmem:[%s5 + $0x1d8] sm:$0xf]
      %v7872 = vld [vmem:[%s5 + $0x1dc] sm:$0xf]
      %v7873 = vld [vmem:[%s5 + $0x1e0] sm:$0xf]
      %v7874 = vld [vmem:[%s5 + $0x1e4] sm:$0xf]
      %v7875 = vld [vmem:[%s5 + $0x1e8] sm:$0xf]
      %v7876 = vld [vmem:[%s5 + $0x1ec] sm:$0xf]
      %v7877 = vld [vmem:[%s5 + $0x1f0] sm:$0xf]
      %v7878 = vld [vmem:[%s5 + $0x1f4] sm:$0xf]
      %v7879 = vld [vmem:[%s5 + $0x1f8] sm:$0xf]
      %v7880 = vld [vmem:[%s5 + $0x1fc] sm:$0xf]
      %v7881 = vld [vmem:[%s5 + $0x200] sm:$0xf]
      %v7882 = vld [vmem:[%s5 + $0x204] sm:$0xf]
      %v7883 = vld [vmem:[%s5 + $0x208] sm:$0xf]
      %v7884 = vld [vmem:[%s5 + $0x20c] sm:$0xf]
      %v7885 = vld [vmem:[%s5 + $0x210] sm:$0xf]
      %v7886 = vld [vmem:[%s5 + $0x214] sm:$0xf]
      %v7887 = vld [vmem:[%s5 + $0x218] sm:$0xf]
      %v7888 = vld [vmem:[%s5 + $0x21c] sm:$0xf]
      %v7889 = vld [vmem:[%s5 + $0x220] sm:$0xf]
      %v7890 = vld [vmem:[%s5 + $0x224] sm:$0xf]
      %v7891 = vld [vmem:[%s5 + $0x228] sm:$0xf]
      %v7892 = vld [vmem:[%s5 + $0x22c] sm:$0xf]
      %v7893 = vld [vmem:[%s5 + $0x230] sm:$0xf]
      %v7894 = vld [vmem:[%s5 + $0x234] sm:$0xf]
      %v7895 = vld [vmem:[%s5 + $0x238] sm:$0xf]
      %v7896 = vld [vmem:[%s5 + $0x23c] sm:$0xf]
      %v7897 = vld [vmem:[%s5 + $0x240] sm:$0xf]
      %v7898 = vld [vmem:[%s5 + $0x244] sm:$0xf]
      %v7899 = vld [vmem:[%s5 + $0x248] sm:$0xf]
      %v7900 = vld [vmem:[%s5 + $0x24c] sm:$0xf]
      %v7901 = vld [vmem:[%s5 + $0x250] sm:$0xf]
      %v7902 = vld [vmem:[%s5 + $0x254] sm:$0xf]
      %v7903 = vld [vmem:[%s5 + $0x258] sm:$0xf]
      %v7904 = vld [vmem:[%s5 + $0x25c] sm:$0xf]
      %v7905 = vld [vmem:[%s5 + $0x260] sm:$0xf]
      %v7906 = vld [vmem:[%s5 + $0x264] sm:$0xf]
      %v7907 = vld [vmem:[%s5 + $0x268] sm:$0xf]
      %v7908 = vld [vmem:[%s5 + $0x26c] sm:$0xf]
      %v7909 = vld [vmem:[%s5 + $0x270] sm:$0xf]
      %v7910 = vld [vmem:[%s5 + $0x274] sm:$0xf]
      %v7911 = vld [vmem:[%s5 + $0x278] sm:$0xf]
      %v7912 = vld [vmem:[%s5 + $0x27c] sm:$0xf]
      %v7913 = vld [vmem:[%s6] sm:$0x1]
      %v7915 = vlaneseq
      %v7916 = vshrl.u32 %v7915, 7
      %v7917 = vsub.s32 0, %v7916
      %v7918 = vrot.slane %v7913, %v7917
      %v8080 = vunpack.c.l.b16 %v7753
      %v8081 = vunpack.c.l.b16 %v7754
      %v8082 = vunpack.c.l.b16 %v7755
      %v8083 = vunpack.c.l.b16 %v7756
      %v8084 = vunpack.c.l.b16 %v7757
      %v8085 = vunpack.c.l.b16 %v7758
      %v8086 = vunpack.c.l.b16 %v7759
      %v8087 = vunpack.c.l.b16 %v7760
      %v8088 = vunpack.c.l.b16 %v7761
      %v8089 = vunpack.c.l.b16 %v7762
      %v8090 = vunpack.c.l.b16 %v7763
      %v8091 = vunpack.c.l.b16 %v7764
      %v8092 = vunpack.c.l.b16 %v7765
      %v8093 = vunpack.c.l.b16 %v7766
      %v8094 = vunpack.c.l.b16 %v7767
      %v8095 = vunpack.c.l.b16 %v7768
      %v8096 = vunpack.c.l.b16 %v7769
      %v8097 = vunpack.c.l.b16 %v7770
      %v8098 = vunpack.c.l.b16 %v7771
      %v8099 = vunpack.c.l.b16 %v7772
      %v8100 = vunpack.c.l.b16 %v7773
      %v8101 = vunpack.c.l.b16 %v7774
      %v8102 = vunpack.c.l.b16 %v7775
      %v8103 = vunpack.c.l.b16 %v7776
      %v8104 = vunpack.c.l.b16 %v7777
      %v8105 = vunpack.c.l.b16 %v7778
      %v8106 = vunpack.c.l.b16 %v7779
      %v8107 = vunpack.c.l.b16 %v7780
      %v8108 = vunpack.c.l.b16 %v7781
      %v8109 = vunpack.c.l.b16 %v7782
      %v8110 = vunpack.c.l.b16 %v7783
      %v8111 = vunpack.c.l.b16 %v7784
      %v8112 = vunpack.c.l.b16 %v7785
      %v8113 = vunpack.c.l.b16 %v7786
      %v8114 = vunpack.c.l.b16 %v7787
      %v8115 = vunpack.c.l.b16 %v7788
      %v8116 = vunpack.c.l.b16 %v7789
      %v8117 = vunpack.c.l.b16 %v7790
      %v8118 = vunpack.c.l.b16 %v7791
      %v8119 = vunpack.c.l.b16 %v7792
      %v8120 = vunpack.c.l.b16 %v7793
      %v8121 = vunpack.c.l.b16 %v7794
      %v8122 = vunpack.c.l.b16 %v7795
      %v8123 = vunpack.c.l.b16 %v7796
      %v8124 = vunpack.c.l.b16 %v7797
      %v8125 = vunpack.c.l.b16 %v7798
      %v8126 = vunpack.c.l.b16 %v7799
      %v8127 = vunpack.c.l.b16 %v7800
      %v8128 = vunpack.c.l.b16 %v7801
      %v8129 = vunpack.c.l.b16 %v7802
      %v8130 = vunpack.c.l.b16 %v7803
      %v8131 = vunpack.c.l.b16 %v7804
      %v8132 = vunpack.c.l.b16 %v7805
      %v8133 = vunpack.c.l.b16 %v7806
      %v8134 = vunpack.c.l.b16 %v7807
      %v8135 = vunpack.c.l.b16 %v7808
      %v8136 = vunpack.c.l.b16 %v7809
      %v8137 = vunpack.c.l.b16 %v7810
      %v8138 = vunpack.c.l.b16 %v7811
      %v8139 = vunpack.c.l.b16 %v7812
      %v8140 = vunpack.c.l.b16 %v7813
      %v8141 = vunpack.c.l.b16 %v7814
      %v8142 = vunpack.c.l.b16 %v7815
      %v8143 = vunpack.c.l.b16 %v7816
      %v8144 = vunpack.c.l.b16 %v7817
      %v8145 = vunpack.c.l.b16 %v7818
      %v8146 = vunpack.c.l.b16 %v7819
      %v8147 = vunpack.c.l.b16 %v7820
      %v8148 = vunpack.c.l.b16 %v7821
      %v8149 = vunpack.c.l.b16 %v7822
      %v8150 = vunpack.c.l.b16 %v7823
      %v8151 = vunpack.c.l.b16 %v7824
      %v8152 = vunpack.c.l.b16 %v7825
      %v8153 = vunpack.c.l.b16 %v7826
      %v8154 = vunpack.c.l.b16 %v7827
      %v8155 = vunpack.c.l.b16 %v7828
      %v8156 = vunpack.c.l.b16 %v7829
      %v8157 = vunpack.c.l.b16 %v7830
      %v8158 = vunpack.c.l.b16 %v7831
      %v8159 = vunpack.c.l.b16 %v7832
      %v8160 = vunpack.c.l.b16 %v7833
      %v8161 = vunpack.c.l.b16 %v7834
      %v8162 = vunpack.c.l.b16 %v7835
      %v8163 = vunpack.c.l.b16 %v7836
      %v8164 = vunpack.c.l.b16 %v7837
      %v8165 = vunpack.c.l.b16 %v7838
      %v8166 = vunpack.c.l.b16 %v7839
      %v8167 = vunpack.c.l.b16 %v7840
      %v8168 = vunpack.c.l.b16 %v7841
      %v8169 = vunpack.c.l.b16 %v7842
      %v8170 = vunpack.c.l.b16 %v7843
      %v8171 = vunpack.c.l.b16 %v7844
      %v8172 = vunpack.c.l.b16 %v7845
      %v8173 = vunpack.c.l.b16 %v7846
      %v8174 = vunpack.c.l.b16 %v7847
      %v8175 = vunpack.c.l.b16 %v7848
      %v8176 = vunpack.c.l.b16 %v7849
      %v8177 = vunpack.c.l.b16 %v7850
      %v8178 = vunpack.c.l.b16 %v7851
      %v8179 = vunpack.c.l.b16 %v7852
      %v8180 = vunpack.c.l.b16 %v7853
      %v8181 = vunpack.c.l.b16 %v7854
      %v8182 = vunpack.c.l.b16 %v7855
      %v8183 = vunpack.c.l.b16 %v7856
      %v8184 = vunpack.c.l.b16 %v7857
      %v8185 = vunpack.c.l.b16 %v7858
      %v8186 = vunpack.c.l.b16 %v7859
      %v8187 = vunpack.c.l.b16 %v7860
      %v8188 = vunpack.c.l.b16 %v7861
      %v8189 = vunpack.c.l.b16 %v7862
      %v8190 = vunpack.c.l.b16 %v7863
      %v8191 = vunpack.c.l.b16 %v7864
      %v8192 = vunpack.c.l.b16 %v7865
      %v8193 = vunpack.c.l.b16 %v7866
      %v8194 = vunpack.c.l.b16 %v7867
      %v8195 = vunpack.c.l.b16 %v7868
      %v8196 = vunpack.c.l.b16 %v7869
      %v8197 = vunpack.c.l.b16 %v7870
      %v8198 = vunpack.c.l.b16 %v7871
      %v8199 = vunpack.c.l.b16 %v7872
      %v8200 = vunpack.c.l.b16 %v7873
      %v8201 = vunpack.c.l.b16 %v7874
      %v8202 = vunpack.c.l.b16 %v7875
      %v8203 = vunpack.c.l.b16 %v7876
      %v8204 = vunpack.c.l.b16 %v7877
      %v8205 = vunpack.c.l.b16 %v7878
      %v8206 = vunpack.c.l.b16 %v7879
      %v8207 = vunpack.c.l.b16 %v7880
      %v8208 = vunpack.c.l.b16 %v7881
      %v8209 = vunpack.c.l.b16 %v7882
      %v8210 = vunpack.c.l.b16 %v7883
      %v8211 = vunpack.c.l.b16 %v7884
      %v8212 = vunpack.c.l.b16 %v7885
      %v8213 = vunpack.c.l.b16 %v7886
      %v8214 = vunpack.c.l.b16 %v7887
      %v8215 = vunpack.c.l.b16 %v7888
      %v8216 = vunpack.c.l.b16 %v7889
      %v8217 = vunpack.c.l.b16 %v7890
      %v8218 = vunpack.c.l.b16 %v7891
      %v8219 = vunpack.c.l.b16 %v7892
      %v8220 = vunpack.c.l.b16 %v7893
      %v8221 = vunpack.c.l.b16 %v7894
      %v8222 = vunpack.c.l.b16 %v7895
      %v8223 = vunpack.c.l.b16 %v7896
      %v8224 = vunpack.c.l.b16 %v7897
      %v8225 = vunpack.c.l.b16 %v7898
      %v8226 = vunpack.c.l.b16 %v7899
      %v8227 = vunpack.c.l.b16 %v7900
      %v8228 = vunpack.c.l.b16 %v7901
      %v8229 = vunpack.c.l.b16 %v7902
      %v8230 = vunpack.c.l.b16 %v7903
      %v8231 = vunpack.c.l.b16 %v7904
      %v8232 = vunpack.c.l.b16 %v7905
      %v8233 = vunpack.c.l.b16 %v7906
      %v8234 = vunpack.c.l.b16 %v7907
      %v8235 = vunpack.c.l.b16 %v7908
      %v8236 = vunpack.c.l.b16 %v7909
      %v8237 = vunpack.c.l.b16 %v7910
      %v8238 = vunpack.c.l.b16 %v7911
      %v8239 = vunpack.c.l.b16 %v7912
      %v8240 = vpack.c.b16 %v8081, %v8080
      %v8241 = vpack.c.b16 %v8083, %v8082
      %v8242 = vpack.c.b16 %v8085, %v8084
      %v8243 = vpack.c.b16 %v8087, %v8086
      %v8244 = vpack.c.b16 %v8089, %v8088
      %v8245 = vpack.c.b16 %v8091, %v8090
      %v8246 = vpack.c.b16 %v8093, %v8092
      %v8247 = vpack.c.b16 %v8095, %v8094
      %v8248 = vpack.c.b16 %v8097, %v8096
      %v8249 = vpack.c.b16 %v8099, %v8098
      %v8250 = vpack.c.b16 %v8101, %v8100
      %v8251 = vpack.c.b16 %v8103, %v8102
      %v8252 = vpack.c.b16 %v8105, %v8104
      %v8253 = vpack.c.b16 %v8107, %v8106
      %v8254 = vpack.c.b16 %v8109, %v8108
      %v8255 = vpack.c.b16 %v8111, %v8110
      %v8256 = vpack.c.b16 %v8113, %v8112
      %v8257 = vpack.c.b16 %v8115, %v8114
      %v8258 = vpack.c.b16 %v8117, %v8116
      %v8259 = vpack.c.b16 %v8119, %v8118
      %v8260 = vpack.c.b16 %v8121, %v8120
      %v8261 = vpack.c.b16 %v8123, %v8122
      %v8262 = vpack.c.b16 %v8125, %v8124
      %v8263 = vpack.c.b16 %v8127, %v8126
      %v8264 = vpack.c.b16 %v8129, %v8128
      %v8265 = vpack.c.b16 %v8131, %v8130
      %v8266 = vpack.c.b16 %v8133, %v8132
      %v8267 = vpack.c.b16 %v8135, %v8134
      %v8268 = vpack.c.b16 %v8137, %v8136
      %v8269 = vpack.c.b16 %v8139, %v8138
      %v8270 = vpack.c.b16 %v8141, %v8140
      %v8271 = vpack.c.b16 %v8143, %v8142
      %v8272 = vpack.c.b16 %v8145, %v8144
      %v8273 = vpack.c.b16 %v8147, %v8146
      %v8274 = vpack.c.b16 %v8149, %v8148
      %v8275 = vpack.c.b16 %v8151, %v8150
      %v8276 = vpack.c.b16 %v8153, %v8152
      %v8277 = vpack.c.b16 %v8155, %v8154
      %v8278 = vpack.c.b16 %v8157, %v8156
      %v8279 = vpack.c.b16 %v8159, %v8158
      %v8280 = vpack.c.b16 %v8161, %v8160
      %v8281 = vpack.c.b16 %v8163, %v8162
      %v8282 = vpack.c.b16 %v8165, %v8164
      %v8283 = vpack.c.b16 %v8167, %v8166
      %v8284 = vpack.c.b16 %v8169, %v8168
      %v8285 = vpack.c.b16 %v8171, %v8170
      %v8286 = vpack.c.b16 %v8173, %v8172
      %v8287 = vpack.c.b16 %v8175, %v8174
      %v8288 = vpack.c.b16 %v8177, %v8176
      %v8289 = vpack.c.b16 %v8179, %v8178
      %v8290 = vpack.c.b16 %v8181, %v8180
      %v8291 = vpack.c.b16 %v8183, %v8182
      %v8292 = vpack.c.b16 %v8185, %v8184
      %v8293 = vpack.c.b16 %v8187, %v8186
      %v8294 = vpack.c.b16 %v8189, %v8188
      %v8295 = vpack.c.b16 %v8191, %v8190
      %v8296 = vpack.c.b16 %v8193, %v8192
      %v8297 = vpack.c.b16 %v8195, %v8194
      %v8298 = vpack.c.b16 %v8197, %v8196
      %v8299 = vpack.c.b16 %v8199, %v8198
      %v8300 = vpack.c.b16 %v8201, %v8200
      %v8301 = vpack.c.b16 %v8203, %v8202
      %v8302 = vpack.c.b16 %v8205, %v8204
      %v8303 = vpack.c.b16 %v8207, %v8206
      %v8304 = vpack.c.b16 %v8209, %v8208
      %v8305 = vpack.c.b16 %v8211, %v8210
      %v8306 = vpack.c.b16 %v8213, %v8212
      %v8307 = vpack.c.b16 %v8215, %v8214
      %v8308 = vpack.c.b16 %v8217, %v8216
      %v8309 = vpack.c.b16 %v8219, %v8218
      %v8310 = vpack.c.b16 %v8221, %v8220
      %v8311 = vpack.c.b16 %v8223, %v8222
      %v8312 = vpack.c.b16 %v8225, %v8224
      %v8313 = vpack.c.b16 %v8227, %v8226
      %v8314 = vpack.c.b16 %v8229, %v8228
      %v8315 = vpack.c.b16 %v8231, %v8230
      %v8316 = vpack.c.b16 %v8233, %v8232
      %v8317 = vpack.c.b16 %v8235, %v8234
      %v8318 = vpack.c.b16 %v8237, %v8236
      %v8319 = vpack.c.b16 %v8239, %v8238
      %8400 = vmatprep.subr.bf16.mxu0 0
      %8401 = vmatpush1.bf16.msra.mxu0 %v8247
      %8402 = vmatprep.subr.bf16.mxu0 0
      %8403 = vmatpush1.bf16.msra.mxu0 %v8246
      %8404 = vmatprep.subr.bf16.mxu0 0
      %8405 = vmatpush1.bf16.msra.mxu0 %v8245
      %8406 = vmatprep.subr.bf16.mxu0 0
      %8407 = vmatpush1.bf16.msra.mxu0 %v8244
      %8408 = vmatprep.subr.bf16.mxu0 0
      %8409 = vmatpush1.bf16.msra.mxu0 %v8243
      %8410 = vmatprep.subr.bf16.mxu0 0
      %8411 = vmatpush1.bf16.msra.mxu0 %v8242
      %8412 = vmatprep.subr.bf16.mxu0 0
      %8413 = vmatpush1.bf16.msra.mxu0 %v8241
      %8414 = vmatprep.subr.bf16.mxu0 0
      %8415 = vmatpush1.bf16.msra.mxu0 %v8240
      %8416 = vmatprep.subr.bf16.mxu0 0
      %8417 = vmatpush2.bf16.msra.mxu0 %v8255
      %8418 = vmatprep.subr.bf16.mxu0 0
      %8419 = vmatpush2.bf16.msra.mxu0 %v8254
      %8420 = vmatprep.subr.bf16.mxu0 0
      %8421 = vmatpush2.bf16.msra.mxu0 %v8253
      %8422 = vmatprep.subr.bf16.mxu0 0
      %8423 = vmatpush2.bf16.msra.mxu0 %v8252
      %8424 = vmatprep.subr.bf16.mxu0 0
      %8425 = vmatpush2.bf16.msra.mxu0 %v8251
      %8426 = vmatprep.subr.bf16.mxu0 0
      %8427 = vmatpush2.bf16.msra.mxu0 %v8250
      %8428 = vmatprep.subr.bf16.mxu0 0
      %8429 = vmatpush2.bf16.msra.mxu0 %v8249
      %8430 = vmatprep.subr.bf16.mxu0 0
      %8431 = vmatpush2.bf16.msra.mxu0 %v8248
      %8432 = vmatprep.mubr.bf16.mxu0 %v7602
      %8433 = vmatmul.mubr.bf16.gmra.mxu0 %v7601
      %v8434 = vpop.f32.mrf.mxu0
      %v8435 = vadd.f32 %v7918, %v8434
      %v8436 = vpop.f32.mrf.mxu0
      %v8437 = vpop.f32.mrf.mxu0
      %v8438 = vadd.f32 %v7918, %v8437
      %v8439 = vpop.f32.mrf.mxu0
      %8440 = vmatprep.mubr.bf16.mxu0 %v7604
      %8441 = vmatmul.mubr.bf16.gmra.mxu0 %v7603
      %v8442 = vpop.f32.mrf.mxu0
      %v8443 = vadd.f32 %v7918, %v8442
      %v8444 = vpop.f32.mrf.mxu0
      %v8445 = vpop.f32.mrf.mxu0
      %v8446 = vadd.f32 %v7918, %v8445
      %v8447 = vpop.f32.mrf.mxu0
      %8448 = vmatprep.mubr.bf16.mxu0 %v7606
      %8449 = vmatmul.mubr.bf16.gmra.mxu0 %v7605
      %v8450 = vpop.f32.mrf.mxu0
      %v8451 = vadd.f32 %v7918, %v8450
      %v8452 = vpop.f32.mrf.mxu0
      %v8453 = vpop.f32.mrf.mxu0
      %v8454 = vadd.f32 %v7918, %v8453
      %v8455 = vpop.f32.mrf.mxu0
      %8456 = vmatprep.mubr.bf16.mxu0 %v7608
      %8457 = vmatmul.mubr.bf16.gmra.mxu0 %v7607
      %v8458 = vpop.f32.mrf.mxu0
      %v8459 = vadd.f32 %v7918, %v8458
      %v8460 = vpop.f32.mrf.mxu0
      %v8461 = vpop.f32.mrf.mxu0
      %v8462 = vadd.f32 %v7918, %v8461
      %v8463 = vpop.f32.mrf.mxu0
      %8464 = vdwg.mxu0
      %8465 = vmatprep.subr.bf16.mxu0 0
      %8466 = vmatpush1.bf16.msra.mxu0 %v8263
      %8467 = vmatprep.subr.bf16.mxu0 0
      %8468 = vmatpush1.bf16.msra.mxu0 %v8262
      %8469 = vmatprep.subr.bf16.mxu0 0
      %8470 = vmatpush1.bf16.msra.mxu0 %v8261
      %8471 = vmatprep.subr.bf16.mxu0 0
      %8472 = vmatpush1.bf16.msra.mxu0 %v8260
      %8473 = vmatprep.subr.bf16.mxu0 0
      %8474 = vmatpush1.bf16.msra.mxu0 %v8259
      %8475 = vmatprep.subr.bf16.mxu0 0
      %8476 = vmatpush1.bf16.msra.mxu0 %v8258
      %8477 = vmatprep.subr.bf16.mxu0 0
      %8478 = vmatpush1.bf16.msra.mxu0 %v8257
      %8479 = vmatprep.subr.bf16.mxu0 0
      %8480 = vmatpush1.bf16.msra.mxu0 %v8256
      %8481 = vmatprep.subr.bf16.mxu0 0
      %8482 = vmatpush2.bf16.msra.mxu0 %v8271
      %8483 = vmatprep.subr.bf16.mxu0 0
      %8484 = vmatpush2.bf16.msra.mxu0 %v8270
      %8485 = vmatprep.subr.bf16.mxu0 0
      %8486 = vmatpush2.bf16.msra.mxu0 %v8269
      %8487 = vmatprep.subr.bf16.mxu0 0
      %8488 = vmatpush2.bf16.msra.mxu0 %v8268
      %8489 = vmatprep.subr.bf16.mxu0 0
      %8490 = vmatpush2.bf16.msra.mxu0 %v8267
      %8491 = vmatprep.subr.bf16.mxu0 0
      %8492 = vmatpush2.bf16.msra.mxu0 %v8266
      %8493 = vmatprep.subr.bf16.mxu0 0
      %8494 = vmatpush2.bf16.msra.mxu0 %v8265
      %8495 = vmatprep.subr.bf16.mxu0 0
      %8496 = vmatpush2.bf16.msra.mxu0 %v8264
      %8497 = vmatprep.mubr.bf16.mxu0 %v7634
      %8498 = vmatmul.mubr.bf16.gmra.mxu0 %v7633
      %v8499 = vpop.f32.mrf.mxu0
      %v8500 = vadd.f32 %v8435, %v8499
      %v8501 = vpop.f32.mrf.mxu0
      %v8502 = vpop.f32.mrf.mxu0
      %v8503 = vadd.f32 %v8438, %v8502
      %v8504 = vpop.f32.mrf.mxu0
      %8505 = vmatprep.mubr.bf16.mxu0 %v7636
      %8506 = vmatmul.mubr.bf16.gmra.mxu0 %v7635
      %v8507 = vpop.f32.mrf.mxu0
      %v8508 = vadd.f32 %v8443, %v8507
      %v8509 = vpop.f32.mrf.mxu0
      %v8510 = vpop.f32.mrf.mxu0
      %v8511 = vadd.f32 %v8446, %v8510
      %v8512 = vpop.f32.mrf.mxu0
      %8513 = vmatprep.mubr.bf16.mxu0 %v7638
      %8514 = vmatmul.mubr.bf16.gmra.mxu0 %v7637
      %v8515 = vpop.f32.mrf.mxu0
      %v8516 = vadd.f32 %v8451, %v8515
      %v8517 = vpop.f32.mrf.mxu0
      %v8518 = vpop.f32.mrf.mxu0
      %v8519 = vadd.f32 %v8454, %v8518
      %v8520 = vpop.f32.mrf.mxu0
      %8521 = vmatprep.mubr.bf16.mxu0 %v7640
      %8522 = vmatmul.mubr.bf16.gmra.mxu0 %v7639
      %v8523 = vpop.f32.mrf.mxu0
      %v8524 = vadd.f32 %v8459, %v8523
      %v8525 = vpop.f32.mrf.mxu0
      %v8526 = vpop.f32.mrf.mxu0
      %v8527 = vadd.f32 %v8462, %v8526
      %v8528 = vpop.f32.mrf.mxu0
      %8529 = vdwg.mxu0
      %8530 = vmatprep.subr.bf16.mxu0 0
      %8531 = vmatpush1.bf16.msra.mxu0 %v8279
      %8532 = vmatprep.subr.bf16.mxu0 0
      %8533 = vmatpush1.bf16.msra.mxu0 %v8278
      %8534 = vmatprep.subr.bf16.mxu0 0
      %8535 = vmatpush1.bf16.msra.mxu0 %v8277
      %8536 = vmatprep.subr.bf16.mxu0 0
      %8537 = vmatpush1.bf16.msra.mxu0 %v8276
      %8538 = vmatprep.subr.bf16.mxu0 0
      %8539 = vmatpush1.bf16.msra.mxu0 %v8275
      %8540 = vmatprep.subr.bf16.mxu0 0
      %8541 = vmatpush1.bf16.msra.mxu0 %v8274
      %8542 = vmatprep.subr.bf16.mxu0 0
      %8543 = vmatpush1.bf16.msra.mxu0 %v8273
      %8544 = vmatprep.subr.bf16.mxu0 0
      %8545 = vmatpush1.bf16.msra.mxu0 %v8272
      %8546 = vmatprep.subr.bf16.mxu0 0
      %8547 = vmatpush2.bf16.msra.mxu0 %v8287
      %8548 = vmatprep.subr.bf16.mxu0 0
      %8549 = vmatpush2.bf16.msra.mxu0 %v8286
      %8550 = vmatprep.subr.bf16.mxu0 0
      %8551 = vmatpush2.bf16.msra.mxu0 %v8285
      %8552 = vmatprep.subr.bf16.mxu0 0
      %8553 = vmatpush2.bf16.msra.mxu0 %v8284
      %8554 = vmatprep.subr.bf16.mxu0 0
      %8555 = vmatpush2.bf16.msra.mxu0 %v8283
      %8556 = vmatprep.subr.bf16.mxu0 0
      %8557 = vmatpush2.bf16.msra.mxu0 %v8282
      %8558 = vmatprep.subr.bf16.mxu0 0
      %8559 = vmatpush2.bf16.msra.mxu0 %v8281
      %8560 = vmatprep.subr.bf16.mxu0 0
      %8561 = vmatpush2.bf16.msra.mxu0 %v8280
      %8562 = vmatprep.mubr.bf16.mxu0 %v7674
      %8563 = vmatmul.mubr.bf16.gmra.mxu0 %v7673
      %v8564 = vpop.f32.mrf.mxu0
      %v8565 = vadd.f32 %v8500, %v8564
      %v8566 = vpop.f32.mrf.mxu0
      %v8567 = vpop.f32.mrf.mxu0
      %v8568 = vadd.f32 %v8503, %v8567
      %v8569 = vpop.f32.mrf.mxu0
      %8570 = vmatprep.mubr.bf16.mxu0 %v7676
      %8571 = vmatmul.mubr.bf16.gmra.mxu0 %v7675
      %v8572 = vpop.f32.mrf.mxu0
      %v8573 = vadd.f32 %v8508, %v8572
      %v8574 = vpop.f32.mrf.mxu0
      %v8575 = vpop.f32.mrf.mxu0
      %v8576 = vadd.f32 %v8511, %v8575
      %v8577 = vpop.f32.mrf.mxu0
      %8578 = vmatprep.mubr.bf16.mxu0 %v7678
      %8579 = vmatmul.mubr.bf16.gmra.mxu0 %v7677
      %v8580 = vpop.f32.mrf.mxu0
      %v8581 = vadd.f32 %v8516, %v8580
      %v8582 = vpop.f32.mrf.mxu0
      %v8583 = vpop.f32.mrf.mxu0
      %v8584 = vadd.f32 %v8519, %v8583
      %v8585 = vpop.f32.mrf.mxu0
      %8586 = vmatprep.mubr.bf16.mxu0 %v7680
      %8587 = vmatmul.mubr.bf16.gmra.mxu0 %v7679
      %v8588 = vpop.f32.mrf.mxu0
      %v8589 = vadd.f32 %v8524, %v8588
      %v8590 = vpop.f32.mrf.mxu0
      %v8591 = vpop.f32.mrf.mxu0
      %v8592 = vadd.f32 %v8527, %v8591
      %v8593 = vpop.f32.mrf.mxu0
      %8594 = vdwg.mxu0
      %8595 = vmatprep.subr.bf16.mxu0 0
      %8596 = vmatpush1.bf16.msra.mxu0 %v8295
      %8597 = vmatprep.subr.bf16.mxu0 0
      %8598 = vmatpush1.bf16.msra.mxu0 %v8294
      %8599 = vmatprep.subr.bf16.mxu0 0
      %8600 = vmatpush1.bf16.msra.mxu0 %v8293
      %8601 = vmatprep.subr.bf16.mxu0 0
      %8602 = vmatpush1.bf16.msra.mxu0 %v8292
      %8603 = vmatprep.subr.bf16.mxu0 0
      %8604 = vmatpush1.bf16.msra.mxu0 %v8291
      %8605 = vmatprep.subr.bf16.mxu0 0
      %8606 = vmatpush1.bf16.msra.mxu0 %v8290
      %8607 = vmatprep.subr.bf16.mxu0 0
      %8608 = vmatpush1.bf16.msra.mxu0 %v8289
      %8609 = vmatprep.subr.bf16.mxu0 0
      %8610 = vmatpush1.bf16.msra.mxu0 %v8288
      %8611 = vmatprep.subr.bf16.mxu0 0
      %8612 = vmatpush2.bf16.msra.mxu0 %v8303
      %8613 = vmatprep.subr.bf16.mxu0 0
      %8614 = vmatpush2.bf16.msra.mxu0 %v8302
      %8615 = vmatprep.subr.bf16.mxu0 0
      %8616 = vmatpush2.bf16.msra.mxu0 %v8301
      %8617 = vmatprep.subr.bf16.mxu0 0
      %8618 = vmatpush2.bf16.msra.mxu0 %v8300
      %8619 = vmatprep.subr.bf16.mxu0 0
      %8620 = vmatpush2.bf16.msra.mxu0 %v8299
      %8621 = vmatprep.subr.bf16.mxu0 0
      %8622 = vmatpush2.bf16.msra.mxu0 %v8298
      %8623 = vmatprep.subr.bf16.mxu0 0
      %8624 = vmatpush2.bf16.msra.mxu0 %v8297
      %8625 = vmatprep.subr.bf16.mxu0 0
      %8626 = vmatpush2.bf16.msra.mxu0 %v8296
      %8627 = vmatprep.mubr.bf16.mxu0 %v7706
      %8628 = vmatmul.mubr.bf16.gmra.mxu0 %v7705
      %v8629 = vpop.f32.mrf.mxu0
      %v8630 = vadd.f32 %v8565, %v8629
      %v8631 = vpop.f32.mrf.mxu0
      %v8632 = vpop.f32.mrf.mxu0
      %v8633 = vadd.f32 %v8568, %v8632
      %v8634 = vpop.f32.mrf.mxu0
      %8635 = vmatprep.mubr.bf16.mxu0 %v7708
      %8636 = vmatmul.mubr.bf16.gmra.mxu0 %v7707
      %v8637 = vpop.f32.mrf.mxu0
      %v8638 = vadd.f32 %v8573, %v8637
      %v8639 = vpop.f32.mrf.mxu0
      %v8640 = vpop.f32.mrf.mxu0
      %v8641 = vadd.f32 %v8576, %v8640
      %v8642 = vpop.f32.mrf.mxu0
      %8643 = vmatprep.mubr.bf16.mxu0 %v7710
      %8644 = vmatmul.mubr.bf16.gmra.mxu0 %v7709
      %v8645 = vpop.f32.mrf.mxu0
      %v8646 = vadd.f32 %v8581, %v8645
      %v8647 = vpop.f32.mrf.mxu0
      %v8648 = vpop.f32.mrf.mxu0
      %v8649 = vadd.f32 %v8584, %v8648
      %v8650 = vpop.f32.mrf.mxu0
      %8651 = vmatprep.mubr.bf16.mxu0 %v7712
      %8652 = vmatmul.mubr.bf16.gmra.mxu0 %v7711
      %v8653 = vpop.f32.mrf.mxu0
      %v8654 = vadd.f32 %v8589, %v8653
      %v8655 = vpop.f32.mrf.mxu0
      %v8656 = vpop.f32.mrf.mxu0
      %v8657 = vadd.f32 %v8592, %v8656
      %v8658 = vpop.f32.mrf.mxu0
      %8659 = vdwg.mxu0
      %8660 = vmatprep.subr.bf16.mxu0 0
      %8661 = vmatpush1.bf16.msra.mxu0 %v8311
      %8662 = vmatprep.subr.bf16.mxu0 0
      %8663 = vmatpush1.bf16.msra.mxu0 %v8310
      %8664 = vmatprep.subr.bf16.mxu0 0
      %8665 = vmatpush1.bf16.msra.mxu0 %v8309
      %8666 = vmatprep.subr.bf16.mxu0 0
      %8667 = vmatpush1.bf16.msra.mxu0 %v8308
      %8668 = vmatprep.subr.bf16.mxu0 0
      %8669 = vmatpush1.bf16.msra.mxu0 %v8307
      %8670 = vmatprep.subr.bf16.mxu0 0
      %8671 = vmatpush1.bf16.msra.mxu0 %v8306
      %8672 = vmatprep.subr.bf16.mxu0 0
      %8673 = vmatpush1.bf16.msra.mxu0 %v8305
      %8674 = vmatprep.subr.bf16.mxu0 0
      %8675 = vmatpush1.bf16.msra.mxu0 %v8304
      %8676 = vmatprep.subr.bf16.mxu0 0
      %8677 = vmatpush2.bf16.msra.mxu0 %v8319
      %8678 = vmatprep.subr.bf16.mxu0 0
      %8679 = vmatpush2.bf16.msra.mxu0 %v8318
      %8680 = vmatprep.subr.bf16.mxu0 0
      %8681 = vmatpush2.bf16.msra.mxu0 %v8317
      %8682 = vmatprep.subr.bf16.mxu0 0
      %8683 = vmatpush2.bf16.msra.mxu0 %v8316
      %8684 = vmatprep.subr.bf16.mxu0 0
      %8685 = vmatpush2.bf16.msra.mxu0 %v8315
      %8686 = vmatprep.subr.bf16.mxu0 0
      %8687 = vmatpush2.bf16.msra.mxu0 %v8314
      %8688 = vmatprep.subr.bf16.mxu0 0
      %8689 = vmatpush2.bf16.msra.mxu0 %v8313
      %8690 = vmatprep.subr.bf16.mxu0 0
      %8691 = vmatpush2.bf16.msra.mxu0 %v8312
      %8692 = vmatprep.mubr.bf16.mxu0 %v7738
      %8693 = vmatmul.mubr.bf16.gmra.mxu0 %v7737
      %v8694 = vpop.f32.mrf.mxu0
      %v8695 = vadd.f32 %v8630, %v8694
      %v8696 = vpop.f32.mrf.mxu0
      %v8697 = vpop.f32.mrf.mxu0
      %v8698 = vadd.f32 %v8633, %v8697
      %v8699 = vpop.f32.mrf.mxu0
      %8700 = vmatprep.mubr.bf16.mxu0 %v7740
      %8701 = vmatmul.mubr.bf16.gmra.mxu0 %v7739
      %v8702 = vpop.f32.mrf.mxu0
      %v8703 = vadd.f32 %v8638, %v8702
      %v8704 = vpop.f32.mrf.mxu0
      %v8705 = vpop.f32.mrf.mxu0
      %v8706 = vadd.f32 %v8641, %v8705
      %v8707 = vpop.f32.mrf.mxu0
      %8708 = vmatprep.mubr.bf16.mxu0 %v7742
      %8709 = vmatmul.mubr.bf16.gmra.mxu0 %v7741
      %v8710 = vpop.f32.mrf.mxu0
      %v8711 = vadd.f32 %v8646, %v8710
      %v8712 = vpop.f32.mrf.mxu0
      %v8713 = vpop.f32.mrf.mxu0
      %v8714 = vadd.f32 %v8649, %v8713
      %v8715 = vpop.f32.mrf.mxu0
      %8716 = vmatprep.mubr.bf16.mxu0 %v7744
      %8717 = vmatmul.mubr.bf16.gmra.mxu0 %v7743
      %v8718 = vpop.f32.mrf.mxu0
      %v8719 = vadd.f32 %v8654, %v8718
      %v8720 = vpop.f32.mrf.mxu0
      %v8721 = vpop.f32.mrf.mxu0
      %v8722 = vadd.f32 %v8657, %v8721
      %v8723 = vpop.f32.mrf.mxu0
      %8724 = vdwg.mxu0
      %v8725 = vsub.f32 0.0, %v8695
      %v8726 = vsub.f32 0.0, %v8698
      %v8727 = vsub.f32 0.0, %v8703
      %v8728 = vsub.f32 0.0, %v8706
      %v8729 = vsub.f32 0.0, %v8711
      %v8730 = vsub.f32 0.0, %v8714
      %v8731 = vsub.f32 0.0, %v8719
      %v8732 = vsub.f32 0.0, %v8722
      %v8733 = vmul.f32 %v8725, 1.442695
      %v8734 = vpow.pop %v8733
      %v8735 = vmul.f32 %v8726, 1.442695
      %v8736 = vpow.pop %v8735
      %v8737 = vmul.f32 %v8727, 1.442695
      %v8738 = vpow.pop %v8737
      %v8739 = vmul.f32 %v8728, 1.442695
      %v8740 = vpow.pop %v8739
      %v8741 = vmul.f32 %v8729, 1.442695
      %v8742 = vpow.pop %v8741
      %v8743 = vmul.f32 %v8730, 1.442695
      %v8744 = vpow.pop %v8743
      %v8745 = vmul.f32 %v8731, 1.442695
      %v8746 = vpow.pop %v8745
      %v8747 = vmul.f32 %v8732, 1.442695
      %v8748 = vpow.pop %v8747
      %v8749 = vadd.f32 %v8734, 1.0
      %v8750 = vadd.f32 %v8736, 1.0
      %v8751 = vadd.f32 %v8738, 1.0
      %v8752 = vadd.f32 %v8740, 1.0
      %v8753 = vadd.f32 %v8742, 1.0
      %v8754 = vadd.f32 %v8744, 1.0
      %v8755 = vadd.f32 %v8746, 1.0
      %v8756 = vadd.f32 %v8748, 1.0
      %v8757 = vrcp.pop %v8749
      %v8758 = vmul.f32 1.0, %v8757
      %v8759 = vrcp.pop %v8750
      %v8760 = vmul.f32 1.0, %v8759
      %v8761 = vrcp.pop %v8751
      %v8762 = vmul.f32 1.0, %v8761
      %v8763 = vrcp.pop %v8752
      %v8764 = vmul.f32 1.0, %v8763
      %v8765 = vrcp.pop %v8753
      %v8766 = vmul.f32 1.0, %v8765
      %v8767 = vrcp.pop %v8754
      %v8768 = vmul.f32 1.0, %v8767
      %v8769 = vrcp.pop %v8755
      %v8770 = vmul.f32 1.0, %v8769
      %v8771 = vrcp.pop %v8756
      %v8772 = vmul.f32 1.0, %v8771
      %8773 = vst [vmem:[%s283] sm:$0xff] %v8758
      %8774 = vst [vmem:[%s283 + $0x8] sm:$0xff] %v8760
      %8775 = vst [vmem:[%s283 + $0x10] sm:$0xff] %v8762
      %8776 = vst [vmem:[%s283 + $0x18] sm:$0xff] %v8764
      %8777 = vst [vmem:[%s283 + $0x20] sm:$0xff] %v8766
      %8778 = vst [vmem:[%s283 + $0x28] sm:$0xff] %v8768
      %8779 = vst [vmem:[%s283 + $0x30] sm:$0xff] %v8770
      %8780 = vst [vmem:[%s283 + $0x38] sm:$0xff] %v8772
      %s8781 = smul.u32 8, %s18
      %p8782 = scmp.lt.s32.totalorder %s8781, 15
      %s8783 = scalar_select %p8782, %s8781, 15
      %s8784 = smul.addr %s8783, 8
      %s8785 = scalar_lea.vmem %s7, %s8784
      // Predicated region
      $region49: #{patch_discriminator.1} parent=47 // pred_check
        %p8786 = pneg %p188
      $region50: #{patch_discriminator.1} parent=47 // pred_check_branch
        %8788 = sbr.rel (%p8786) target = $region52
      $region51: #{patch_discriminator.1} parent=47 // pred_region
        %s8789 = smul.u32 8, %s18
      $region52: #{patch_discriminator.1} parent=47 // pred_fallthru
        _
    $region48: #{patch_discriminator.1} parent=5 // pred_fallthru
      _
    %p8790 = scmp.le.s32.totalorder 2, %s13
    // Predicated region
    $region53: #{patch_discriminator.1} parent=5 // pred_check
      %p8791 = pneg %p8790
    $region54: #{patch_discriminator.1} parent=5 // pred_check_branch
      %8793 = sbr.rel (%p8791) target = $region56
    $region55: #{patch_discriminator.1} parent=5 // pred_region
      %s8794 = ssub.s32 %s13, 2
      // Predicated region
      $region57: #{patch_discriminator.1} parent=55 // pred_check
        %p8795 = pneg %p194
      $region58: #{patch_discriminator.1} parent=55 // pred_check_branch
        %8797 = sbr.rel (%p8795) target = $region60
      $region59: #{patch_discriminator.1} parent=55 // pred_region
        %s8798 = smul.u32 8, %s19
        %p8799 = scmp.lt.s32.totalorder %s8798, 15
        %s8800 = scalar_select %p8799, %s8798, 15
        %s8801 = smul.addr %s8800, 8
        %s8802 = scalar_lea.vmem %s7, %s8801
      $region60: #{patch_discriminator.1} parent=55 // pred_fallthru
        _
    $region56: #{patch_discriminator.1} parent=5 // pred_fallthru
      _
  $region6: #{patch_discriminator.1} parent=0 // loop_footer
    %s17 = sadd.s32 1, %s13
  $region7: #{patch_discriminator.1} parent=0 // loop_footer_branch
    %12 = sbr.rel target = $region3
  $region8: #{patch_discriminator.1} parent=0 // loop_exit
    _

</llo_original>
